<compile_context>
chip_gen: v6e
topology: v6e:2x2x1
jax: 0.10.0
libtpu: 0.0.40
codegen_flags: <defaults>
</compile_context>

<pallas_src>
import jax
import jax.numpy as jnp
import numpy as np
from jax.experimental import pallas as pl
from jax.experimental.pallas import tpu as pltpu


# --------------------------------------------------------------------------- #
# Kernel bodies
# --------------------------------------------------------------------------- #
def _build_col(x_ref, halo_ref, col_ref):
    """col[r, w, dx*Cin + ci] = x_padded[row0 + r, w + dx, ci] for this row tile."""
    TH, W, Cin = x_ref.shape[1], x_ref.shape[2], x_ref.shape[3]
    K = 3 * Cin
    cdt = col_ref.dtype

    # 1-pixel left/right halo columns of the dx=0 / dx=2 slabs.  Zeroed every
    # step so correctness never depends on scratch persistence or on how the
    # "parallel" grid axes are split across TensorCores.
    col_ref[:, 0:1, 0:Cin] = jnp.zeros((TH + 2, 1, Cin), cdt)
    col_ref[:, W - 1:W, 2 * Cin:K] = jnp.zeros((TH + 2, 1, Cin), cdt)

    # Center rows 1..TH come from this tile's x block.
    # TODO(synk): on v6e/v7x the two shifted slabs could be DMA'd straight from
    # HBM (x kept in pl.ANY) to take them off the vst/XLU slots entirely.
    col_ref[1:TH + 1, :, Cin:2 * Cin] = x_ref[0, :, :, :]            # dx = 1 (aligned)
    col_ref[1:TH + 1, 1:W, 0:Cin] = x_ref[0, :, 0:W - 1, :]          # dx = 0
    col_ref[1:TH + 1, 0:W - 1, 2 * Cin:K] = x_ref[0, :, 1:W, :]      # dx = 2

    # Halo rows 0 and TH+1 come from the wrapper-built halo block
    # (row directly above / below this tile; zeros at the image borders).
    col_ref[0:1, :, Cin:2 * Cin] = halo_ref[0, 0, 0:1, :, :]
    col_ref[0:1, 1:W, 0:Cin] = halo_ref[0, 0, 0:1, 0:W - 1, :]
    col_ref[0:1, 0:W - 1, 2 * Cin:K] = halo_ref[0, 0, 0:1, 1:W, :]
    col_ref[TH + 1:TH + 2, :, Cin:2 * Cin] = halo_ref[0, 0, 1:2, :, :]
    col_ref[TH + 1:TH + 2, 1:W, 0:Cin] = halo_ref[0, 0, 1:2, 0:W - 1, :]
    col_ref[TH + 1:TH + 2, 0:W - 1, 2 * Cin:K] = halo_ref[0, 0, 1:2, 1:W, :]


def _conv3x3_taps(col_ref, w_ref, TH, W):
    """sum_dy col[dy:dy+TH] @ w[dy] as one fused f32 expression (no VMEM accumulator)."""
    K = col_ref.shape[2]
    acc = jnp.dot(col_ref[0:TH, :, :].reshape(TH * W, K), w_ref[0, :, :],
                  preferred_element_type=jnp.float32)
    acc = acc + jnp.dot(col_ref[1:TH + 1, :, :].reshape(TH * W, K), w_ref[1, :, :],
                        preferred_element_type=jnp.float32)
    acc = acc + jnp.dot(col_ref[2:TH + 2, :, :].reshape(TH * W, K), w_ref[2, :, :],
                        preferred_element_type=jnp.float32)
    return acc


def _upernet_kernel(x_ref, halo_ref, w1_ref, w2_ref, b_ref, o_ref, col_ref):
    # x_ref   : (1, TH, W, Cin)    row tile, NHWC, compute dtype
    # halo_ref: (1, 1, 2, W, Cin)  rows directly above / below this tile
    # w1_ref  : (3, 3*Cin, C1)     3x3 conv weights, rows ordered (dx, ci)
    # w2_ref  : (C1, C2)           1x1 conv weights (I, O)
    # b_ref   : (1, C2) f32        folded bias  b1 @ W2 + b2
    # o_ref   : (1, TH, W, C2) f32
    # col_ref : (TH+2, W, 3*Cin)   width-im2col scratch
    TH, W, C2 = o_ref.shape[1], o_ref.shape[2], o_ref.shape[3]
    _build_col(x_ref, halo_ref, col_ref)
    acc = _conv3x3_taps(col_ref, w1_ref, TH, W)                  # (TH*W, C1) f32
    y = jnp.dot(acc.astype(w2_ref.dtype), w2_ref[:, :],
                preferred_element_type=jnp.float32) + b_ref[:, :]
    o_ref[...] = y.reshape(1, TH, W, C2).astype(o_ref.dtype)


def _upernet_fold_kernel(x_ref, halo_ref, wf_ref, b_ref, o_ref, col_ref):
    # wf_ref: (3, 3*Cin, C2) = W1[dy] @ W2 folded in the wrapper (v5e fast path).
    TH, W, C2 = o_ref.shape[1], o_ref.shape[2], o_ref.shape[3]
    _build_col(x_ref, halo_ref, col_ref)
    y = _conv3x3_taps(col_ref, wf_ref, TH, W) + b_ref[:, :]      # (TH*W, C2) f32
    o_ref[...] = y.reshape(1, TH, W, C2).astype(o_ref.dtype)


# --------------------------------------------------------------------------- #
# Wrapper
# --------------------------------------------------------------------------- #
def _device_kind():
    try:
        return jax.devices()[0].device_kind.lower()
    except Exception:
        return ""


def _invariant_spec(shape):
    """BlockSpec for a grid-invariant operand; single-buffered when supported."""
    ndim = len(shape)

    def index_map(b, i):
        del b, i
        return (0,) * ndim

    if hasattr(pl, "Buffered"):
        try:
            return pl.BlockSpec(shape, index_map, pipeline_mode=pl.Buffered(1))
        except TypeError:
            pass
    return pl.BlockSpec(shape, index_map)


def _pick_row_tile(H, W, Cin, C1, C2, itemsize, budget_bytes):
    """Largest row tile (divisor of H) whose per-step working set fits the budget."""
    best = 1
    for th in range(1, H + 1):
        if H % th:
            continue
        need = (2 * th * W * Cin * itemsize              # x block (double-buffered)
                + 2 * 2 * W * Cin * itemsize             # halo block (double-buffered)
                + 2 * th * W * C2 * 4                    # f32 output block (double-buffered)
                + (th + 2) * W * 3 * Cin * itemsize      # im2col scratch
                + 3 * 3 * Cin * C1 * itemsize            # W1 (single-buffered)
                + C1 * C2 * itemsize + C2 * 4            # W2 + bias
                + 2 * th * W * max(C1, C2) * 4)          # headroom for fused-matmul temps
        if need <= budget_bytes:
            best = th
    return best


def upernet_forward(x_nchw, w1_oihw, b1, w2_oihw, b2, *,
                    compute_dtype=jnp.bfloat16, fold_1x1=None, row_tile=None):
    """x_nchw: (N, 512, H, W) f32.  Returns (N, 128, H, W) f32.

    compute_dtype : MXU input dtype (bf16 default; f32 for exact validation).
                    Accumulation is always f32.
    fold_1x1      : fold the 1x1 conv into the 3x3 weights (Wf = W1 @ W2).
                    Default: auto (True on v5e, False elsewhere).
    row_tile      : feature-map rows per grid step (must divide H).
                    Default: largest divisor of H fitting the VMEM budget.
    """
    N, Cin, H, W = x_nchw.shape
    C1 = w1_oihw.shape[0]
    C2 = w2_oihw.shape[0]

    kind = _device_kind()
    if fold_1x1 is None:
        # v5e's 128-wide MXU runs C2=128 outputs at full width -> fold ~2x there.
        fold_1x1 = ("v5e" in kind) or ("v5 lite" in kind) or ("v5litepod" in kind)
    # v5e/v5p/v6e have 128 MiB physical VMEM; v7x has only 64 MiB (unknown -> safe).
    vmem_limit = (64 << 20) if any(t in kind for t in ("v5", "v6")) else (32 << 20)

    itemsize = np.dtype(compute_dtype).itemsize
    sublane = 8 * (4 // itemsize)
    # The free (TH, W) -> (TH*W) view and the aligned center-slab store require
    # W to be a multiple of the sublane tile.
    # TODO(synk): pad W up to the sublane tile (and crop the output) to support
    # production pyramid widths such as 7/14/28/56.
    if W % sublane:
        raise ValueError(f"W={W} must be a multiple of {sublane} for {compute_dtype}")
    if Cin % 128 or C1 % 128 or C2 % 128:
        raise ValueError("channel counts must be multiples of 128 (lane tile)")

    if row_tile is None:
        row_tile = _pick_row_tile(H, W, Cin, C1, C2, itemsize, int(0.75 * vmem_limit))
    if H % row_tile:
        raise ValueError(f"row_tile={row_tile} must divide H={H}")
    TH = row_tile
    nH = H // TH

    # ---- operand prep (cheap relative to the conv) ---------------------------
    x_nhwc = jnp.transpose(x_nchw, (0, 2, 3, 1)).astype(compute_dtype)   # (N,H,W,Cin)

    # 1-row halos per row tile: halo[:, i, 0] = row above tile i, halo[:, i, 1]
    # = row below (zeros at the image borders).  Only 2 rows per TH rows, so it
    # keeps every BlockSpec plain-blocked without duplicating x in HBM.
    zrow = jnp.zeros((N, 1, W, Cin), compute_dtype)
    if nH > 1:
        top = jnp.concatenate([zrow, x_nhwc[:, TH - 1:H - 1:TH]], axis=1)
        bot = jnp.concatenate([x_nhwc[:, TH:H:TH], zrow], axis=1)
    else:
        top, bot = zrow, zrow
    halo = jnp.stack([top, bot], axis=2)                                 # (N,nH,2,W,Cin)

    # OIHW -> (dy, dx*Cin + ci, co): row order matches the im2col lane layout.
    w1_r = jnp.transpose(w1_oihw, (2, 3, 1, 0)).reshape(3, 3 * Cin, C1)  # f32
    w2_io = jnp.transpose(w2_oihw[:, :, 0, 0], (1, 0))                   # (C1, C2) f32
    # 3x3 bias pushed through the 1x1 conv: out = conv3x3(x) @ W2 + (b1 @ W2 + b2).
    b_out = (b1 @ w2_io + b2).reshape(1, C2).astype(jnp.float32)

    x_spec = pl.BlockSpec((1, TH, W, Cin), lambda b, i: (b, i, 0, 0))
    halo_spec = pl.BlockSpec((1, 1, 2, W, Cin), lambda b, i: (b, i, 0, 0, 0))
    out_spec = pl.BlockSpec((1, TH, W, C2), lambda b, i: (b, i, 0, 0))
    col_scratch = pltpu.VMEM((TH + 2, W, 3 * Cin), compute_dtype)

    if fold_1x1:
        # Valid only because the module has no BN/activation between the convs.
        w_taps = jnp.einsum("dkc,co->dko", w1_r, w2_io).astype(compute_dtype)
        kernel = _upernet_fold_kernel
        in_specs = [x_spec, halo_spec,
                    _invariant_spec((3, 3 * Cin, C2)),
                    _invariant_spec((1, C2))]
        args = (x_nhwc, halo, w_taps, b_out)
    else:
        kernel = _upernet_kernel
        in_specs = [x_spec, halo_spec,
                    _invariant_spec((3, 3 * Cin, C1)),
                    _invariant_spec((C1, C2)),
                    _invariant_spec((1, C2))]
        args = (x_nhwc, halo, w1_r.astype(compute_dtype),
                w2_io.astype(compute_dtype), b_out)

    out_nhwc = pl.pallas_call(
        kernel,
        out_shape=jax.ShapeDtypeStruct((N, H, W, C2), jnp.float32),
        grid_spec=pltpu.PrefetchScalarGridSpec(
            num_scalar_prefetch=0,
            grid=(N, nH),
            in_specs=in_specs,
            out_specs=out_spec,
            scratch_shapes=[col_scratch],
        ),
        compiler_params=pltpu.CompilerParams(
            dimension_semantics=("parallel", "parallel"),
            vmem_limit_bytes=vmem_limit,
        ),
    )(*args)

    return jnp.transpose(out_nhwc, (0, 3, 1, 2))                         # back to NCHW


def reference_forward(x_nchw, w1_oihw, b1, w2_oihw, b2):
    """Pure-JAX f32 reference mirroring the PyTorch forward (NCHW)."""
    y = jax.lax.conv_general_dilated(
        x_nchw, w1_oihw, window_strides=(1, 1), padding=((1, 1), (1, 1)),
        dimension_numbers=("NCHW", "OIHW", "NCHW"))
    y = y + b1[None, :, None, None]
    y = jax.lax.conv_general_dilated(
        y, w2_oihw, window_strides=(1, 1), padding="VALID",
        dimension_numbers=("NCHW", "OIHW", "NCHW"))
    y = y + b2[None, :, None, None]
    return y


if __name__ == "__main__":
    # Module-implied shapes: in_channels=512 (fixed by __init__),
    # decoder_pyramid_channels=256, decoder_segmentation_channels=128.
    N, Cin, H, W = 2, 512, 16, 16
    C1, C2 = 256, 128

    key = jax.random.PRNGKey(0)
    kx, kw1, kb1, kw2, kb2 = jax.random.split(key, 5)

    x = jax.random.normal(kx, (N, Cin, H, W), dtype=jnp.float32)
    # Deterministic synthetic parameters (shapes match the nn.Conv2d layers):
    #   decoder:    Conv2d(512, 256, k=3, pad=1) -> weight (256, 512, 3, 3), bias (256,)
    #   in-forward: Conv2d(256, 128, k=1)        -> weight (128, 256, 1, 1), bias (128,)
    w1 = jax.random.normal(kw1, (C1, Cin, 3, 3), dtype=jnp.float32) * (1.0 / np.sqrt(Cin * 9))
    b1 = jax.random.normal(kb1, (C1,), dtype=jnp.float32) * 0.01
    w2 = jax.random.normal(kw2, (C2, C1, 1, 1), dtype=jnp.float32) * (1.0 / np.sqrt(C1))
    b2 = jax.random.normal(kb2, (C2,), dtype=jnp.float32) * 0.01

    ref = jax.block_until_ready(reference_forward(x, w1, b1, w2, b2))

    def check(out, tol, tag):
        assert out.shape == (N, C2, H, W), (tag, out.shape)
        err = float(np.max(np.abs(np.asarray(out) - np.asarray(ref))))
        assert np.allclose(np.asarray(out), np.asarray(ref), rtol=tol, atol=tol), (
            "%s: max abs err = %g" % (tag, err))

    # f32, single row tile: structural check at the original tight tolerance.
    check(jax.block_until_ready(upernet_forward(
        x, w1, b1, w2, b2, compute_dtype=jnp.float32, fold_1x1=False)),
        1e-3, "f32")
    # f32, multiple row tiles: exercises the halo / row-tiling machinery.
    check(jax.block_until_ready(upernet_forward(
        x, w1, b1, w2, b2, compute_dtype=jnp.float32, fold_1x1=False, row_tile=8)),
        1e-3, "f32 row_tile=8")
    # f32, folded 1x1 (v5e formulation), even smaller row tiles.
    check(jax.block_until_ready(upernet_forward(
        x, w1, b1, w2, b2, compute_dtype=jnp.float32, fold_1x1=True, row_tile=4)),
        1e-3, "f32 folded row_tile=4")
    # bf16 MXU path with auto config for the local device (default call).
    check(jax.block_until_ready(upernet_forward(x, w1, b1, w2, b2)),
          2e-2, "bf16 default")
    # bf16, folded weights.
    check(jax.block_until_ready(upernet_forward(x, w1, b1, w2, b2, fold_1x1=True)),
          2e-2, "bf16 folded")

    print("KERNEL_OK")
</pallas_src>

<mosaic_0001>
module attributes {stable_mosaic.version = 11 : i64} {
  func.func @_upernet_kernel(%arg0: i32, %arg1: i32, %arg2: memref<1x16x16x512xf32, #tpu.memory_space<vmem>>, %arg3: memref<1x1x2x16x512xf32, #tpu.memory_space<vmem>>, %arg4: memref<3x1536x256xf32, #tpu.memory_space<vmem>>, %arg5: memref<256x128xf32, #tpu.memory_space<vmem>>, %arg6: memref<1x128xf32, #tpu.memory_space<vmem>>, %arg7: memref<1x16x16x128xf32, #tpu.memory_space<vmem>>, %arg8: memref<18x16x1536xf32, #tpu.memory_space<vmem>>) attributes {dimension_semantics = [#tpu.dimension_semantics<parallel>, #tpu.dimension_semantics<parallel>], iteration_bounds = array<i64: 2, 1>, scalar_prefetch = 0 : i64, scratch_operands = 1 : i64, tpu.core_type = #tpu.core_type<tc>, window_params = [{transform_indices = @transform_0, window_bounds = array<i64: 1, 16, 16, 512>}, {transform_indices = @transform_1, window_bounds = array<i64: 1, 1, 2, 16, 512>}, {pipeline_mode = #tpu.pipeline_mode<synchronous>, transform_indices = @transform_2, window_bounds = array<i64: 3, 1536, 256>}, {pipeline_mode = #tpu.pipeline_mode<synchronous>, transform_indices = @transform_3, window_bounds = array<i64: 256, 128>}, {pipeline_mode = #tpu.pipeline_mode<synchronous>, transform_indices = @transform_4, window_bounds = array<i64: 1, 128>}, {transform_indices = @transform_5, window_bounds = array<i64: 1, 16, 16, 128>}]} {
    %cst = arith.constant 0.000000e+00 : f32
    %0 = vector.broadcast %cst : f32 to vector<18x1x512xf32>
    %c0 = arith.constant 0 : index
    %c0_0 = arith.constant 0 : index
    %c0_1 = arith.constant 0 : index
    %1 = vector.load %arg8[%c0, %c0_0, %c0_1] : memref<18x16x1536xf32, #tpu.memory_space<vmem>>, vector<18x1x512xf32>
    tpu.vector_store %arg8[%c0, %c0_0, %c0_1], %0 {strides = array<i32>} : memref<18x16x1536xf32, #tpu.memory_space<vmem>>, vector<18x1x512xf32>,
    %cst_2 = arith.constant 0.000000e+00 : f32
    %2 = vector.broadcast %cst_2 : f32 to vector<18x1x512xf32>
    %c0_3 = arith.constant 0 : index
    %c15 = arith.constant 15 : index
    %c1024 = arith.constant 1024 : index
    %3 = vector.load %arg8[%c0_3, %c15, %c1024] : memref<18x16x1536xf32, #tpu.memory_space<vmem>>, vector<18x1x512xf32>
    tpu.vector_store %arg8[%c0_3, %c15, %c1024], %2 {strides = array<i32>} : memref<18x16x1536xf32, #tpu.memory_space<vmem>>, vector<18x1x512xf32>,
    %c0_4 = arith.constant 0 : index
    %c0_5 = arith.constant 0 : index
    %c0_6 = arith.constant 0 : index
    %c0_7 = arith.constant 0 : index
    %4 = vector.load %arg2[%c0_4, %c0_5, %c0_6, %c0_7] : memref<1x16x16x512xf32, #tpu.memory_space<vmem>>, vector<1x16x16x512xf32>
    %5 = vector.shape_cast %4 : vector<1x16x16x512xf32> to vector<16x16x512xf32>
    %c1 = arith.constant 1 : index
    %c0_8 = arith.constant 0 : index
    %c512 = arith.constant 512 : index
    %6 = vector.load %arg8[%c1, %c0_8, %c512] : memref<18x16x1536xf32, #tpu.memory_space<vmem>>, vector<16x16x512xf32>
    tpu.vector_store %arg8[%c1, %c0_8, %c512], %5 {strides = array<i32>} : memref<18x16x1536xf32, #tpu.memory_space<vmem>>, vector<16x16x512xf32>,
    %c0_9 = arith.constant 0 : index
    %c0_10 = arith.constant 0 : index
    %c0_11 = arith.constant 0 : index
    %c0_12 = arith.constant 0 : index
    %7 = vector.load %arg2[%c0_9, %c0_10, %c0_11, %c0_12] : memref<1x16x16x512xf32, #tpu.memory_space<vmem>>, vector<1x16x15x512xf32>
    %8 = vector.shape_cast %7 : vector<1x16x15x512xf32> to vector<16x15x512xf32>
    %c1_13 = arith.constant 1 : index
    %c1_14 = arith.constant 1 : index
    %c0_15 = arith.constant 0 : index
    %9 = vector.load %arg8[%c1_13, %c1_14, %c0_15] : memref<18x16x1536xf32, #tpu.memory_space<vmem>>, vector<16x15x512xf32>
    tpu.vector_store %arg8[%c1_13, %c1_14, %c0_15], %8 {strides = array<i32>} : memref<18x16x1536xf32, #tpu.memory_space<vmem>>, vector<16x15x512xf32>,
    %c0_16 = arith.constant 0 : index
    %c0_17 = arith.constant 0 : index
    %c1_18 = arith.constant 1 : index
    %c0_19 = arith.constant 0 : index
    %10 = vector.load %arg2[%c0_16, %c0_17, %c1_18, %c0_19] : memref<1x16x16x512xf32, #tpu.memory_space<vmem>>, vector<1x16x15x512xf32>
    %11 = vector.shape_cast %10 : vector<1x16x15x512xf32> to vector<16x15x512xf32>
    %c1_20 = arith.constant 1 : index
    %c0_21 = arith.constant 0 : index
    %c1024_22 = arith.constant 1024 : index
    %12 = vector.load %arg8[%c1_20, %c0_21, %c1024_22] : memref<18x16x1536xf32, #tpu.memory_space<vmem>>, vector<16x15x512xf32>
    tpu.vector_store %arg8[%c1_20, %c0_21, %c1024_22], %11 {strides = array<i32>} : memref<18x16x1536xf32, #tpu.memory_space<vmem>>, vector<16x15x512xf32>,
    %c0_23 = arith.constant 0 : index
    %c0_24 = arith.constant 0 : index
    %c0_25 = arith.constant 0 : index
    %c0_26 = arith.constant 0 : index
    %c0_27 = arith.constant 0 : index
    %13 = vector.load %arg3[%c0_23, %c0_24, %c0_25, %c0_26, %c0_27] : memref<1x1x2x16x512xf32, #tpu.memory_space<vmem>>, vector<1x1x1x16x512xf32>
    %14 = vector.shape_cast %13 : vector<1x1x1x16x512xf32> to vector<1x16x512xf32>
    %c0_28 = arith.constant 0 : index
    %c0_29 = arith.constant 0 : index
    %c512_30 = arith.constant 512 : index
    %15 = vector.load %arg8[%c0_28, %c0_29, %c512_30] : memref<18x16x1536xf32, #tpu.memory_space<vmem>>, vector<1x16x512xf32>
    tpu.vector_store %arg8[%c0_28, %c0_29, %c512_30], %14 {strides = array<i32>} : memref<18x16x1536xf32, #tpu.memory_space<vmem>>, vector<1x16x512xf32>,
    %c0_31 = arith.constant 0 : index
    %c0_32 = arith.constant 0 : index
    %c0_33 = arith.constant 0 : index
    %c0_34 = arith.constant 0 : index
    %c0_35 = arith.constant 0 : index
    %16 = vector.load %arg3[%c0_31, %c0_32, %c0_33, %c0_34, %c0_35] : memref<1x1x2x16x512xf32, #tpu.memory_space<vmem>>, vector<1x1x1x15x512xf32>
    %17 = vector.shape_cast %16 : vector<1x1x1x15x512xf32> to vector<1x15x512xf32>
    %c0_36 = arith.constant 0 : index
    %c1_37 = arith.constant 1 : index
    %c0_38 = arith.constant 0 : index
    %18 = vector.load %arg8[%c0_36, %c1_37, %c0_38] : memref<18x16x1536xf32, #tpu.memory_space<vmem>>, vector<1x15x512xf32>
    tpu.vector_store %arg8[%c0_36, %c1_37, %c0_38], %17 {strides = array<i32>} : memref<18x16x1536xf32, #tpu.memory_space<vmem>>, vector<1x15x512xf32>,
    %c0_39 = arith.constant 0 : index
    %c0_40 = arith.constant 0 : index
    %c0_41 = arith.constant 0 : index
    %c1_42 = arith.constant 1 : index
    %c0_43 = arith.constant 0 : index
    %19 = vector.load %arg3[%c0_39, %c0_40, %c0_41, %c1_42, %c0_43] : memref<1x1x2x16x512xf32, #tpu.memory_space<vmem>>, vector<1x1x1x15x512xf32>
    %20 = vector.shape_cast %19 : vector<1x1x1x15x512xf32> to vector<1x15x512xf32>
    %c0_44 = arith.constant 0 : index
    %c0_45 = arith.constant 0 : index
    %c1024_46 = arith.constant 1024 : index
    %21 = vector.load %arg8[%c0_44, %c0_45, %c1024_46] : memref<18x16x1536xf32, #tpu.memory_space<vmem>>, vector<1x15x512xf32>
    tpu.vector_store %arg8[%c0_44, %c0_45, %c1024_46], %20 {strides = array<i32>} : memref<18x16x1536xf32, #tpu.memory_space<vmem>>, vector<1x15x512xf32>,
    %c0_47 = arith.constant 0 : index
    %c0_48 = arith.constant 0 : index
    %c1_49 = arith.constant 1 : index
    %c0_50 = arith.constant 0 : index
    %c0_51 = arith.constant 0 : index
    %22 = vector.load %arg3[%c0_47, %c0_48, %c1_49, %c0_50, %c0_51] : memref<1x1x2x16x512xf32, #tpu.memory_space<vmem>>, vector<1x1x1x16x512xf32>
    %23 = vector.shape_cast %22 : vector<1x1x1x16x512xf32> to vector<1x16x512xf32>
    %c17 = arith.constant 17 : index
    %c0_52 = arith.constant 0 : index
    %c512_53 = arith.constant 512 : index
    %24 = vector.load %arg8[%c17, %c0_52, %c512_53] : memref<18x16x1536xf32, #tpu.memory_space<vmem>>, vector<1x16x512xf32>
    tpu.vector_store %arg8[%c17, %c0_52, %c512_53], %23 {strides = array<i32>} : memref<18x16x1536xf32, #tpu.memory_space<vmem>>, vector<1x16x512xf32>,
    %c0_54 = arith.constant 0 : index
    %c0_55 = arith.constant 0 : index
    %c1_56 = arith.constant 1 : index
    %c0_57 = arith.constant 0 : index
    %c0_58 = arith.constant 0 : index
    %25 = vector.load %arg3[%c0_54, %c0_55, %c1_56, %c0_57, %c0_58] : memref<1x1x2x16x512xf32, #tpu.memory_space<vmem>>, vector<1x1x1x15x512xf32>
    %26 = vector.shape_cast %25 : vector<1x1x1x15x512xf32> to vector<1x15x512xf32>
    %c17_59 = arith.constant 17 : index
    %c1_60 = arith.constant 1 : index
    %c0_61 = arith.constant 0 : index
    %27 = vector.load %arg8[%c17_59, %c1_60, %c0_61] : memref<18x16x1536xf32, #tpu.memory_space<vmem>>, vector<1x15x512xf32>
    tpu.vector_store %arg8[%c17_59, %c1_60, %c0_61], %26 {strides = array<i32>} : memref<18x16x1536xf32, #tpu.memory_space<vmem>>, vector<1x15x512xf32>,
    %c0_62 = arith.constant 0 : index
    %c0_63 = arith.constant 0 : index
    %c1_64 = arith.constant 1 : index
    %c1_65 = arith.constant 1 : index
    %c0_66 = arith.constant 0 : index
    %28 = vector.load %arg3[%c0_62, %c0_63, %c1_64, %c1_65, %c0_66] : memref<1x1x2x16x512xf32, #tpu.memory_space<vmem>>, vector<1x1x1x15x512xf32>
    %29 = vector.shape_cast %28 : vector<1x1x1x15x512xf32> to vector<1x15x512xf32>
    %c17_67 = arith.constant 17 : index
    %c0_68 = arith.constant 0 : index
    %c1024_69 = arith.constant 1024 : index
    %30 = vector.load %arg8[%c17_67, %c0_68, %c1024_69] : memref<18x16x1536xf32, #tpu.memory_space<vmem>>, vector<1x15x512xf32>
    tpu.vector_store %arg8[%c17_67, %c0_68, %c1024_69], %29 {strides = array<i32>} : memref<18x16x1536xf32, #tpu.memory_space<vmem>>, vector<1x15x512xf32>,
    %c0_70 = arith.constant 0 : index
    %c0_71 = arith.constant 0 : index
    %c0_72 = arith.constant 0 : index
    %31 = vector.load %arg8[%c0_70, %c0_71, %c0_72] : memref<18x16x1536xf32, #tpu.memory_space<vmem>>, vector<16x16x1536xf32>
    %32 = vector.shape_cast %31 : vector<16x16x1536xf32> to vector<256x1536xf32>
    %c0_73 = arith.constant 0 : index
    %c0_74 = arith.constant 0 : index
    %c0_75 = arith.constant 0 : index
    %33 = vector.load %arg4[%c0_73, %c0_74, %c0_75] : memref<3x1536x256xf32, #tpu.memory_space<vmem>>, vector<1x1536x256xf32>
    %34 = vector.shape_cast %33 : vector<1x1536x256xf32> to vector<1536x256xf32>
    %cst_76 = arith.constant dense<0.000000e+00> : vector<256x256xf32>
    %35 = tpu.matmul %32, %34, %cst_76 {dimension_numbers = #tpu.dot_dimension_numbers<[1], [0], [0], [1], [0, 0, 1, 1], [], []>} : vector<256x1536xf32>, vector<1536x256xf32>, vector<256x256xf32> -> vector<256x256xf32>
    %c1_77 = arith.constant 1 : index
    %c0_78 = arith.constant 0 : index
    %c0_79 = arith.constant 0 : index
    %36 = vector.load %arg8[%c1_77, %c0_78, %c0_79] : memref<18x16x1536xf32, #tpu.memory_space<vmem>>, vector<16x16x1536xf32>
    %37 = vector.shape_cast %36 : vector<16x16x1536xf32> to vector<256x1536xf32>
    %c1_80 = arith.constant 1 : index
    %c0_81 = arith.constant 0 : index
    %c0_82 = arith.constant 0 : index
    %38 = vector.load %arg4[%c1_80, %c0_81, %c0_82] : memref<3x1536x256xf32, #tpu.memory_space<vmem>>, vector<1x1536x256xf32>
    %39 = vector.shape_cast %38 : vector<1x1536x256xf32> to vector<1536x256xf32>
    %cst_83 = arith.constant dense<0.000000e+00> : vector<256x256xf32>
    %40 = tpu.matmul %37, %39, %cst_83 {dimension_numbers = #tpu.dot_dimension_numbers<[1], [0], [0], [1], [0, 0, 1, 1], [], []>} : vector<256x1536xf32>, vector<1536x256xf32>, vector<256x256xf32> -> vector<256x256xf32>
    %41 = arith.addf %35, %40 : vector<256x256xf32>
    %c2 = arith.constant 2 : index
    %c0_84 = arith.constant 0 : index
    %c0_85 = arith.constant 0 : index
    %42 = vector.load %arg8[%c2, %c0_84, %c0_85] : memref<18x16x1536xf32, #tpu.memory_space<vmem>>, vector<16x16x1536xf32>
    %43 = vector.shape_cast %42 : vector<16x16x1536xf32> to vector<256x1536xf32>
    %c2_86 = arith.constant 2 : index
    %c0_87 = arith.constant 0 : index
    %c0_88 = arith.constant 0 : index
    %44 = vector.load %arg4[%c2_86, %c0_87, %c0_88] : memref<3x1536x256xf32, #tpu.memory_space<vmem>>, vector<1x1536x256xf32>
    %45 = vector.shape_cast %44 : vector<1x1536x256xf32> to vector<1536x256xf32>
    %cst_89 = arith.constant dense<0.000000e+00> : vector<256x256xf32>
    %46 = tpu.matmul %43, %45, %cst_89 {dimension_numbers = #tpu.dot_dimension_numbers<[1], [0], [0], [1], [0, 0, 1, 1], [], []>} : vector<256x1536xf32>, vector<1536x256xf32>, vector<256x256xf32> -> vector<256x256xf32>
    %47 = arith.addf %41, %46 : vector<256x256xf32>
    %c0_90 = arith.constant 0 : index
    %c0_91 = arith.constant 0 : index
    %48 = vector.load %arg5[%c0_90, %c0_91] : memref<256x128xf32, #tpu.memory_space<vmem>>, vector<256x128xf32>
    %cst_92 = arith.constant dense<0.000000e+00> : vector<256x128xf32>
    %49 = tpu.matmul %47, %48, %cst_92 {dimension_numbers = #tpu.dot_dimension_numbers<[1], [0], [0], [1], [0, 0, 1, 1], [], []>} : vector<256x256xf32>, vector<256x128xf32>, vector<256x128xf32> -> vector<256x128xf32>
    %c0_93 = arith.constant 0 : index
    %c0_94 = arith.constant 0 : index
    %50 = vector.load %arg6[%c0_93, %c0_94] : memref<1x128xf32, #tpu.memory_space<vmem>>, vector<1x128xf32>
    %51 = vector.broadcast %50 : vector<1x128xf32> to vector<256x128xf32>
    %52 = arith.addf %49, %51 : vector<256x128xf32>
    %53 = vector.shape_cast %52 : vector<256x128xf32> to vector<1x16x16x128xf32>
    %c0_95 = arith.constant 0 : index
    %c0_96 = arith.constant 0 : index
    %c0_97 = arith.constant 0 : index
    %c0_98 = arith.constant 0 : index
    %54 = vector.load %arg7[%c0_95, %c0_96, %c0_97, %c0_98] : memref<1x16x16x128xf32, #tpu.memory_space<vmem>>, vector<1x16x16x128xf32>
    tpu.vector_store %arg7[%c0_95, %c0_96, %c0_97, %c0_98], %53 {strides = array<i32>} : memref<1x16x16x128xf32, #tpu.memory_space<vmem>>, vector<1x16x16x128xf32>,
    return
  }
  func.func @transform_0(%arg0: i32, %arg1: i32) -> (i32, i32, i32, i32) {
    %c0_i32 = arith.constant 0 : i32
    %c0_i32_0 = arith.constant 0 : i32
    %c0_i32_1 = arith.constant 0 : i32
    return %arg0, %arg1, %c0_i32, %c0_i32_0 : i32, i32, i32, i32
  }
  func.func @transform_1(%arg0: i32, %arg1: i32) -> (i32, i32, i32, i32, i32) {
    %c0_i32 = arith.constant 0 : i32
    %c0_i32_0 = arith.constant 0 : i32
    %c0_i32_1 = arith.constant 0 : i32
    %c0_i32_2 = arith.constant 0 : i32
    return %arg0, %arg1, %c0_i32, %c0_i32_0, %c0_i32_1 : i32, i32, i32, i32, i32
  }
  func.func @transform_2(%arg0: i32, %arg1: i32) -> (i32, i32, i32) {
    %c0_i32 = arith.constant 0 : i32
    %c0_i32_0 = arith.constant 0 : i32
    %c0_i32_1 = arith.constant 0 : i32
    %c0_i32_2 = arith.constant 0 : i32
    return %c0_i32, %c0_i32_0, %c0_i32_1 : i32, i32, i32
  }
  func.func @transform_3(%arg0: i32, %arg1: i32) -> (i32, i32) {
    %c0_i32 = arith.constant 0 : i32
    %c0_i32_0 = arith.constant 0 : i32
    %c0_i32_1 = arith.constant 0 : i32
    return %c0_i32, %c0_i32_0 : i32, i32
  }
  func.func @transform_4(%arg0: i32, %arg1: i32) -> (i32, i32) {
    %c0_i32 = arith.constant 0 : i32
    %c0_i32_0 = arith.constant 0 : i32
    %c0_i32_1 = arith.constant 0 : i32
    return %c0_i32, %c0_i32_0 : i32, i32
  }
  func.func @transform_5(%arg0: i32, %arg1: i32) -> (i32, i32, i32, i32) {
    %c0_i32 = arith.constant 0 : i32
    %c0_i32_0 = arith.constant 0 : i32
    %c0_i32_1 = arith.constant 0 : i32
    return %arg0, %arg1, %c0_i32, %c0_i32_0 : i32, i32, i32, i32
  }
}

</mosaic_0001>

<llo_original>
// kernel: tpu_custom_call.1
$region0: #{tpu_custom_call.1}
  #allocation0 [shape = 'u32[]', space=smem, size = 0x4, offset = 0x4, fixed_abs, tag = 'smem constant byte address 0x4 - core index']
  #allocation1 [shape = 'u32[144,128]{1,0:T(1,128)}', space=vmem, size = 0x12000, scoped, tag = 'internal scratch']
  #allocation2 [shape = 'f32[18,16,1536]{2,1,0:T(8,128)}', space=vmem, size = 0x1b0000, scoped, tag = 'scratch operand']
  %s0 = inlined_call_operand.hbm [shape: f32[2,16,16,512], index: 0, kind: input, shape index: {}]
  %s1 = inlined_call_operand.hbm [shape: f32[2,1,2,16,512], index: 1, kind: input, shape index: {}]
  %s2 = inlined_call_operand.hbm [shape: f32[3,1536,256], index: 2, kind: input, shape index: {}]
  %s3 = inlined_call_operand.hbm [shape: f32[256,128], index: 3, kind: input, shape index: {}]
  %s4 = inlined_call_operand.hbm [shape: f32[1,128], index: 4, kind: input, shape index: {}]
  %s5 = inlined_call_operand.hbm [shape: f32[2,16,16,128], index: 5, kind: output, shape index: {}]
  %s6 = sld [smem:[#allocation0]]
  $region73: #{tpu_custom_call.1} parent=0
    _
  %s8 = ssub.s32 1, %s6
  %s9 = scalar_select 0, %s8, %s6
  $region1: #{tpu_custom_call.1} parent=0
    #allocation3 [shape = 'u8[1048576]{0}', space=vmem, size = 0x100000, scoped, tag = 'input window, operand 0']
    #allocation4 [shape = 's32[2]{0}', space=sflag, size = 0x8, scoped, tag = 'scoped memory for tpu_custom_call.1']
    #allocation5 [shape = 's32[2]{0}', space=sflag, size = 0x8, scoped, tag = 'scoped memory for tpu_custom_call.1']
    #allocation6 [shape = 'u8[131072]{0}', space=vmem, size = 0x20000, scoped, tag = 'input window, operand 1']
    #allocation7 [shape = 's32[2]{0}', space=sflag, size = 0x8, scoped, tag = 'scoped memory for tpu_custom_call.1']
    #allocation8 [shape = 'u8[4718592]{0}', space=vmem, size = 0x480000, scoped, tag = 'input window, operand 2, single buffered']
    #allocation9 [shape = 'u8[131072]{0}', space=vmem, size = 0x20000, scoped, tag = 'input window, operand 3, single buffered']
    #allocation10 [shape = 's32[1]{0}', space=sflag, size = 0x4, scoped, tag = 'scoped memory for tpu_custom_call.1']
    #allocation11 [shape = 'u8[512]{0}', space=vmem, size = 0x400, scoped, tag = 'input window, operand 4, single buffered']
    #allocation12 [shape = 'u8[262144]{0}', space=vmem, size = 0x40000, scoped, tag = 'output window, operand 0']
    %10 = vsyncpa [#allocation4], 0
    %s11 = scalar_lea.sflag [#allocation4], 1
    %12 = vsyncpa %s11, 0
    %13 = vsyncpa [#allocation7], 0
    %s14 = scalar_lea.sflag [#allocation7], 1
    %15 = vsyncpa %s14, 0
    %16 = vsyncpa [#allocation10], 0
    %17 = vsyncpa [#allocation5], 0
    %s18 = scalar_lea.sflag [#allocation5], 1
    %19 = vsyncpa %s18, 0
    loop: start=0, step=1, limit=4
    $region2: #{tpu_custom_call.1} parent=1 // loop_pre_header
      _
    $region3: #{tpu_custom_call.1} parent=1 // loop_header
      %s21 = sphi 0, %s25
      %p22 = scmp.ge.s32.totalorder %s21, 4
      %s28 = sphi 0, %s40
      %s29 = sphi 0, %s36
      %s30 = sphi 0, %s28
      %s31 = sphi 0, %s29
      %s32 = sphi 0, %s30
      %s33 = sphi 0, %s31
      %s45 = sphi 0, %s47
      %s48 = sphi 0, %s45
      %s49 = sphi 0, %s48
      %s65 = sphi 0, %s49
      %s73 = sphi 0, %s75
      %s76 = sphi 0, %s73
      %s77 = sphi 0, %s76
      %s93 = sphi 0, %s77
      %s97 = sphi 0, %s97
      %s99 = sphi 0, %s97
      %s100 = sphi 0, %s99
      %s114 = sphi 0, %s100
      %s118 = sphi 0, %s118
      %s120 = sphi 0, %s118
      %s121 = sphi 0, %s120
      %s135 = sphi 0, %s121
      %s139 = sphi 0, %s139
      %s141 = sphi 0, %s139
      %s142 = sphi 0, %s141
      %s156 = sphi 0, %s142
      %s164 = sphi 0, %s166
      %s167 = sphi 0, %s164
      %s168 = sphi 0, %s167
      %s184 = sphi 0, %s168
    $region4: #{tpu_custom_call.1} parent=1 // loop_header_branch
      %24 = sbr.rel (%p22) target = $region8
    $region5: #{tpu_custom_call.1} parent=1 // loop_body
      %s26 = ssub.s32 %s21, 1
      %s27 = ssub.s32 %s21, 2
      %s34 = sadd.s32 1, %s29
      %p35 = scmp.ge.s32.totalorder %s34, 1
      %s36 = scalar_select %p35, 0, %s34
      %s37 = sadd.s32 1, %s28
      %s38 = scalar_select %p35, %s37, %s28
      %p39 = scmp.ge.s32.totalorder %s38, 2
      %s40 = scalar_select %p39, 0, %s38
      %s41 = ssub.s32 %s28, %s40
      %s42 = ssub.s32 %s29, %s36
      %s43 = sor.u32 %s41, %s42
      %p44 = scmp.eq.s32.totalorder %s43, 0
      %s46 = sadd.s32 %s45, 1
      %s47 = scalar_select %p44, %s45, %s46
      %p50 = pneg %p44
      %p51 = scmp.eq.s32.totalorder %s21, 1
      %p52 = por %p50, %p51
      %p53 = scmp.ne.s32.totalorder %s45, %s48
      %p54 = scmp.eq.s32.totalorder %s21, 0
      %p55 = por %p53, %p54
      %p56 = scmp.ne.s32.totalorder %s45, %s48
      %p57 = scmp.eq.s32.totalorder %s26, 1
      %p58 = por %p56, %p57
      %p59 = scmp.ne.s32.totalorder %s48, %s49
      %p60 = scmp.eq.s32.totalorder %s26, 0
      %p61 = por %p59, %p60
      %p62 = scmp.ne.s32.totalorder %s48, %s49
      %p63 = scmp.eq.s32.totalorder %s27, 1
      %p64 = por %p62, %p63
      %p66 = scmp.ne.s32.totalorder %s49, %s65
      %p67 = scmp.eq.s32.totalorder %s27, 0
      %p68 = por %p66, %p67
      %s69 = ssub.s32 %s28, %s40
      %s70 = ssub.s32 %s29, %s36
      %s71 = sor.u32 %s69, %s70
      %p72 = scmp.eq.s32.totalorder %s71, 0
      %s74 = sadd.s32 %s73, 1
      %s75 = scalar_select %p72, %s73, %s74
      %p78 = pneg %p72
      %p79 = scmp.eq.s32.totalorder %s21, 1
      %p80 = por %p78, %p79
      %p81 = scmp.ne.s32.totalorder %s73, %s76
      %p82 = scmp.eq.s32.totalorder %s21, 0
      %p83 = por %p81, %p82
      %p84 = scmp.ne.s32.totalorder %s73, %s76
      %p85 = scmp.eq.s32.totalorder %s26, 1
      %p86 = por %p84, %p85
      %p87 = scmp.ne.s32.totalorder %s76, %s77
      %p88 = scmp.eq.s32.totalorder %s26, 0
      %p89 = por %p87, %p88
      %p90 = scmp.ne.s32.totalorder %s76, %s77
      %p91 = scmp.eq.s32.totalorder %s27, 1
      %p92 = por %p90, %p91
      %p94 = scmp.ne.s32.totalorder %s77, %s93
      %p95 = scmp.eq.s32.totalorder %s27, 0
      %p96 = por %p94, %p95
      %s98 = sadd.s32 %s97, 1
      %p101 = scmp.eq.s32.totalorder %s21, 1
      %p102 = scmp.ne.s32.totalorder %s97, %s99
      %p103 = scmp.eq.s32.totalorder %s21, 0
      %p104 = por %p102, %p103
      %p105 = scmp.ne.s32.totalorder %s97, %s99
      %p106 = scmp.eq.s32.totalorder %s26, 1
      %p107 = por %p105, %p106
      %p108 = scmp.ne.s32.totalorder %s99, %s100
      %p109 = scmp.eq.s32.totalorder %s26, 0
      %p110 = por %p108, %p109
      %p111 = scmp.ne.s32.totalorder %s99, %s100
      %p112 = scmp.eq.s32.totalorder %s27, 1
      %p113 = por %p111, %p112
      %p115 = scmp.ne.s32.totalorder %s100, %s114
      %p116 = scmp.eq.s32.totalorder %s27, 0
      %p117 = por %p115, %p116
      %s119 = sadd.s32 %s118, 1
      %p122 = scmp.eq.s32.totalorder %s21, 1
      %p123 = scmp.ne.s32.totalorder %s118, %s120
      %p124 = scmp.eq.s32.totalorder %s21, 0
      %p125 = por %p123, %p124
      %p126 = scmp.ne.s32.totalorder %s118, %s120
      %p127 = scmp.eq.s32.totalorder %s26, 1
      %p128 = por %p126, %p127
      %p129 = scmp.ne.s32.totalorder %s120, %s121
      %p130 = scmp.eq.s32.totalorder %s26, 0
      %p131 = por %p129, %p130
      %p132 = scmp.ne.s32.totalorder %s120, %s121
      %p133 = scmp.eq.s32.totalorder %s27, 1
      %p134 = por %p132, %p133
      %p136 = scmp.ne.s32.totalorder %s121, %s135
      %p137 = scmp.eq.s32.totalorder %s27, 0
      %p138 = por %p136, %p137
      %s140 = sadd.s32 %s139, 1
      %p143 = scmp.eq.s32.totalorder %s21, 1
      %p144 = scmp.ne.s32.totalorder %s139, %s141
      %p145 = scmp.eq.s32.totalorder %s21, 0
      %p146 = por %p144, %p145
      %p147 = scmp.ne.s32.totalorder %s139, %s141
      %p148 = scmp.eq.s32.totalorder %s26, 1
      %p149 = por %p147, %p148
      %p150 = scmp.ne.s32.totalorder %s141, %s142
      %p151 = scmp.eq.s32.totalorder %s26, 0
      %p152 = por %p150, %p151
      %p153 = scmp.ne.s32.totalorder %s141, %s142
      %p154 = scmp.eq.s32.totalorder %s27, 1
      %p155 = por %p153, %p154
      %p157 = scmp.ne.s32.totalorder %s142, %s156
      %p158 = scmp.eq.s32.totalorder %s27, 0
      %p159 = por %p157, %p158
      %s160 = ssub.s32 %s28, %s40
      %s161 = ssub.s32 %s29, %s36
      %s162 = sor.u32 %s160, %s161
      %p163 = scmp.eq.s32.totalorder %s162, 0
      %s165 = sadd.s32 %s164, 1
      %s166 = scalar_select %p163, %s164, %s165
      %p169 = pneg %p163
      %p170 = scmp.eq.s32.totalorder %s21, 1
      %p171 = por %p169, %p170
      %p172 = scmp.ne.s32.totalorder %s164, %s167
      %p173 = scmp.eq.s32.totalorder %s21, 0
      %p174 = por %p172, %p173
      %p175 = scmp.ne.s32.totalorder %s164, %s167
      %p176 = scmp.eq.s32.totalorder %s26, 1
      %p177 = por %p175, %p176
      %p178 = scmp.ne.s32.totalorder %s167, %s168
      %p179 = scmp.eq.s32.totalorder %s26, 0
      %p180 = por %p178, %p179
      %p181 = scmp.ne.s32.totalorder %s167, %s168
      %p182 = scmp.eq.s32.totalorder %s27, 1
      %p183 = por %p181, %p182
      %p185 = scmp.ne.s32.totalorder %s168, %s184
      %p186 = scmp.eq.s32.totalorder %s27, 0
      %p187 = por %p185, %p186
      %p188 = scmp.le.s32.totalorder 1, %s21
      %p189 = scmp.lt.s32.totalorder %s21, 3
      %p190 = pnand %p188, %p189
      %p191 = pneg %p190
      // Predicated region
      $region9: #{tpu_custom_call.1} parent=5 // pred_check
        _
      $region10: #{tpu_custom_call.1} parent=5 // pred_check_branch
        %193 = sbr.rel (%p190) target = $region12
      $region11: #{tpu_custom_call.1} parent=5 // pred_region
        %s194 = ssub.s32 %s21, 1
        // Predicated region
        $region13: #{tpu_custom_call.1} parent=11 // pred_check
          %p195 = pneg %p110
        $region14: #{tpu_custom_call.1} parent=11 // pred_check_branch
          %197 = sbr.rel (%p195) target = $region16
        $region15: #{tpu_custom_call.1} parent=11 // pred_region
          %s199 = ssub.s32 147456, 147456
          %200 = vsyncadd [#allocation7], %s199
          %s201 = sshll.u32 [#allocation8], 4
          %s202 = int_to_ptr.vmem [resolvable:$true] %s201
          %207 = dma.hbm_to_vmem [thread:$0]  %s2, 147456, %s202, [#allocation7], 256, 256, 16
        $region16: #{tpu_custom_call.1} parent=11 // pred_fallthru
          _
        // Predicated region
        $region17: #{tpu_custom_call.1} parent=11 // pred_check
          %p208 = pneg %p131
        $region18: #{tpu_custom_call.1} parent=11 // pred_check_branch
          %210 = sbr.rel (%p208) target = $region20
        $region19: #{tpu_custom_call.1} parent=11 // pred_region
          %s212 = ssub.s32 4096, 4096
          %213 = vsyncadd [#allocation10], %s212
          %s214 = sshll.u32 [#allocation9], 4
          %s215 = int_to_ptr.vmem [resolvable:$true] %s214
          %220 = dma.hbm_to_vmem [thread:$0]  %s3, 4096, %s215, [#allocation10], 128, 128, 8
        $region20: #{tpu_custom_call.1} parent=11 // pred_fallthru
          _
        // Predicated region
        $region21: #{tpu_custom_call.1} parent=11 // pred_check
          %p221 = pneg %p152
        $region22: #{tpu_custom_call.1} parent=11 // pred_check_branch
          %223 = sbr.rel (%p221) target = $region24
        $region23: #{tpu_custom_call.1} parent=11 // pred_region
          %s225 = ssub.s32 16, 16
          %226 = vsyncadd [#allocation10], %s225
          %s228 = sshll.u32 [#allocation11], 4
          %s229 = int_to_ptr.vmem [resolvable:$true] %s228
          %231 = dma.hbm_to_vmem [thread:$0]  %s4, 16, %s229, [#allocation10]
        $region24: #{tpu_custom_call.1} parent=11 // pred_fallthru
          _
      $region12: #{tpu_custom_call.1} parent=5 // pred_fallthru
        _
      %p232 = scmp.lt.s32.totalorder %s21, 2
      // Predicated region
      $region25: #{tpu_custom_call.1} parent=5 // pred_check
        %p233 = pneg %p232
      $region26: #{tpu_custom_call.1} parent=5 // pred_check_branch
        %235 = sbr.rel (%p233) target = $region28
      $region27: #{tpu_custom_call.1} parent=5 // pred_region
        // Predicated region
        $region29: #{tpu_custom_call.1} parent=27 // pred_check
          %p236 = pneg %p55
        $region30: #{tpu_custom_call.1} parent=27 // pred_check_branch
          %238 = sbr.rel (%p236) target = $region32
        $region31: #{tpu_custom_call.1} parent=27 // pred_region
          %s239 = sand.u32 %s45, 1
          %s240 = scalar_lea.sflag [#allocation4], %s239
          %s241 = sand.u32 %s45, 1
          %s242 = smul.addr %s241, 1024
          %s243 = scalar_lea.vmem [#allocation3], %s242
          %s244 = smul.u32 16, %s29
          %s246 = ssub.s32 16384, 16384
          %247 = vsyncadd %s240, %s246
          %s248 = smul.addr %s244, 8
          %s249 = smul.addr %s28, 128
          %s250 = sadd.s32 %s248, %s249
          %s251 = smul.addr %s250, 128
          %s252 = scalar_lea.hbm %s0, %s251
          %s253 = sshll.u32 %s243, 4
          %s254 = int_to_ptr.vmem [resolvable:$true] %s253
          %259 = dma.hbm_to_vmem [thread:$0]  %s252, 16384, %s254, %s240, 512, 512, 32
        $region32: #{tpu_custom_call.1} parent=27 // pred_fallthru
          _
        // Predicated region
        $region33: #{tpu_custom_call.1} parent=27 // pred_check
          %p260 = pneg %p83
        $region34: #{tpu_custom_call.1} parent=27 // pred_check_branch
          %262 = sbr.rel (%p260) target = $region36
        $region35: #{tpu_custom_call.1} parent=27 // pred_region
          %s263 = sand.u32 %s21, 1
          %s264 = scalar_lea.sflag [#allocation7], %s263
          %s265 = sand.u32 %s73, 1
          %s266 = smul.addr %s265, 128
          %s267 = scalar_lea.vmem [#allocation6], %s266
          %s269 = ssub.s32 2048, 2048
          %270 = vsyncadd %s264, %s269
          %s271 = smul.addr %s29, 16
          %s272 = smul.addr %s28, 16
          %s273 = sadd.s32 %s271, %s272
          %s274 = smul.addr %s273, 128
          %s275 = scalar_lea.hbm %s1, %s274
          %s276 = sshll.u32 %s267, 4
          %s277 = int_to_ptr.vmem [resolvable:$true] %s276
          %282 = dma.hbm_to_vmem [thread:$0]  %s275, 2048, %s277, %s264, 512, 512, 32
        $region36: #{tpu_custom_call.1} parent=27 // pred_fallthru
          _
      $region28: #{tpu_custom_call.1} parent=5 // pred_fallthru
        _
      %p283 = scmp.le.s32.totalorder 1, %s21
      %p284 = scmp.lt.s32.totalorder %s21, 3
      %p285 = pnand %p283, %p284
      %p286 = pneg %p285
      // Predicated region
      $region37: #{tpu_custom_call.1} parent=5 // pred_check
        _
      $region38: #{tpu_custom_call.1} parent=5 // pred_check_branch
        %288 = sbr.rel (%p285) target = $region40
      $region39: #{tpu_custom_call.1} parent=5 // pred_region
        %s289 = ssub.s32 %s21, 1
        %s290 = sand.u32 %s48, 1
        %s291 = scalar_lea.sflag [#allocation4], %s290
        %s292 = sand.u32 %s48, 1
        %s293 = smul.addr %s292, 1024
        %s294 = scalar_lea.vmem [#allocation3], %s293
        // Predicated region
        $region41: #{tpu_custom_call.1} parent=39 // pred_check
          %p295 = pneg %p61
        $region42: #{tpu_custom_call.1} parent=39 // pred_check_branch
          %297 = sbr.rel (%p295) target = $region44
        $region43: #{tpu_custom_call.1} parent=39 // pred_region
          %298 = dma.done %s291, 16384
        $region44: #{tpu_custom_call.1} parent=39 // pred_fallthru
          _
        %s299 = sand.u32 %s26, 1
        %s300 = scalar_lea.sflag [#allocation7], %s299
        %s301 = sand.u32 %s76, 1
        %s302 = smul.addr %s301, 128
        %s303 = scalar_lea.vmem [#allocation6], %s302
        // Predicated region
        $region45: #{tpu_custom_call.1} parent=39 // pred_check
          %p304 = pneg %p89
        $region46: #{tpu_custom_call.1} parent=39 // pred_check_branch
          %306 = sbr.rel (%p304) target = $region48
        $region47: #{tpu_custom_call.1} parent=39 // pred_region
          %307 = dma.done %s300, 2048
        $region48: #{tpu_custom_call.1} parent=39 // pred_fallthru
          _
        // Predicated region
        $region49: #{tpu_custom_call.1} parent=39 // pred_check
          %p308 = pneg %p110
        $region50: #{tpu_custom_call.1} parent=39 // pred_check_branch
          %310 = sbr.rel (%p308) target = $region52
        $region51: #{tpu_custom_call.1} parent=39 // pred_region
          %311 = dma.done [#allocation7], 147456
        $region52: #{tpu_custom_call.1} parent=39 // pred_fallthru
          _
        // Predicated region
        $region53: #{tpu_custom_call.1} parent=39 // pred_check
          %p312 = pneg %p131
        $region54: #{tpu_custom_call.1} parent=39 // pred_check_branch
          %314 = sbr.rel (%p312) target = $region56
        $region55: #{tpu_custom_call.1} parent=39 // pred_region
          %315 = dma.done [#allocation10], 4096
        $region56: #{tpu_custom_call.1} parent=39 // pred_fallthru
          _
        // Predicated region
        $region57: #{tpu_custom_call.1} parent=39 // pred_check
          %p316 = pneg %p152
        $region58: #{tpu_custom_call.1} parent=39 // pred_check_branch
          %318 = sbr.rel (%p316) target = $region60
        $region59: #{tpu_custom_call.1} parent=39 // pred_region
          %319 = dma.done [#allocation10], 16
        $region60: #{tpu_custom_call.1} parent=39 // pred_fallthru
          _
        %s320 = sand.u32 %s48, 1
        %s321 = scalar_lea.sflag [#allocation4], %s320
        %s322 = sand.u32 %s48, 1
        %s323 = smul.addr %s322, 1024
        %s324 = scalar_lea.vmem [#allocation3], %s323
        %p325 = pneg %p61
        %p326 = pneg %p58
        %s327 = sand.u32 %s26, 1
        %s328 = scalar_lea.sflag [#allocation7], %s327
        %s329 = sand.u32 %s76, 1
        %s330 = smul.addr %s329, 128
        %s331 = scalar_lea.vmem [#allocation6], %s330
        %p332 = pneg %p89
        %p333 = pneg %p86
        %p334 = pneg %p110
        %p335 = pneg %p107
        %p336 = pneg %p131
        %p337 = pneg %p128
        %p338 = pneg %p152
        %p339 = pneg %p149
        %p340 = pneg %p180
        %p341 = pneg %p177
        %s342 = sand.u32 %s167, 1
        %s343 = scalar_lea.sflag [#allocation5], %s342
        %s344 = sand.u32 %s167, 1
        %s345 = smul.addr %s344, 256
        %s346 = scalar_lea.vmem [#allocation12], %s345
        %s347 = smul.u32 16, %s31
        %s348 = smul.u32 16, %s31
        %v349 = vlaneseq
        %vm350 = vcmp.ge.s32.totalorder %v349, 0
        %vm351 = vcmp.lt.s32.totalorder %v349, 512
        %vm352 = vmand %vm350, %vm351
        %353 = vst.msk [vmem:[#allocation2] ss:$8 sm:$0xf] %vm352, 0.0
        %354 = vst.msk [vmem:[#allocation2] ss:$8 sm:$0x0] %vm352, 0.0
        %s355 = scalar_lea.vmem [#allocation2], 192
        %356 = vst.msk [vmem:[%s355] ss:$8 sm:$0xf] %vm352, 0.0
        %357 = vst.msk [vmem:[%s355] ss:$8 sm:$0x0] %vm352, 0.0
        %s358 = scalar_lea.vmem [#allocation2], 384
        %359 = vst.msk [vmem:[%s358] ss:$8 sm:$0xf] %vm352, 0.0
        %360 = vst.msk [vmem:[%s358] ss:$8 sm:$0x0] %vm352, 0.0
        %s361 = scalar_lea.vmem [#allocation2], 576
        %362 = vst.msk [vmem:[%s361] ss:$8 sm:$0xf] %vm352, 0.0
        %363 = vst.msk [vmem:[%s361] ss:$8 sm:$0x0] %vm352, 0.0
        %s364 = scalar_lea.vmem [#allocation2], 768
        %365 = vst.msk [vmem:[%s364] ss:$8 sm:$0xf] %vm352, 0.0
        %366 = vst.msk [vmem:[%s364] ss:$8 sm:$0x0] %vm352, 0.0
        %s367 = scalar_lea.vmem [#allocation2], 960
        %368 = vst.msk [vmem:[%s367] ss:$8 sm:$0xf] %vm352, 0.0
        %369 = vst.msk [vmem:[%s367] ss:$8 sm:$0x0] %vm352, 0.0
        %s370 = scalar_lea.vmem [#allocation2], 1152
        %371 = vst.msk [vmem:[%s370] ss:$8 sm:$0xf] %vm352, 0.0
        %372 = vst.msk [vmem:[%s370] ss:$8 sm:$0x0] %vm352, 0.0
        %s373 = scalar_lea.vmem [#allocation2], 1344
        %374 = vst.msk [vmem:[%s373] ss:$8 sm:$0xf] %vm352, 0.0
        %375 = vst.msk [vmem:[%s373] ss:$8 sm:$0x0] %vm352, 0.0
        %s376 = scalar_lea.vmem [#allocation2], 1536
        %377 = vst.msk [vmem:[%s376] ss:$8 sm:$0xf] %vm352, 0.0
        %378 = vst.msk [vmem:[%s376] ss:$8 sm:$0x0] %vm352, 0.0
        %s379 = scalar_lea.vmem [#allocation2], 1728
        %380 = vst.msk [vmem:[%s379] ss:$8 sm:$0xf] %vm352, 0.0
        %381 = vst.msk [vmem:[%s379] ss:$8 sm:$0x0] %vm352, 0.0
        %s382 = scalar_lea.vmem [#allocation2], 1920
        %383 = vst.msk [vmem:[%s382] ss:$8 sm:$0xf] %vm352, 0.0
        %384 = vst.msk [vmem:[%s382] ss:$8 sm:$0x0] %vm352, 0.0
        %s385 = scalar_lea.vmem [#allocation2], 2112
        %386 = vst.msk [vmem:[%s385] ss:$8 sm:$0xf] %vm352, 0.0
        %387 = vst.msk [vmem:[%s385] ss:$8 sm:$0x0] %vm352, 0.0
        %s388 = scalar_lea.vmem [#allocation2], 2304
        %389 = vst.msk [vmem:[%s388] ss:$8 sm:$0xf] %vm352, 0.0
        %390 = vst.msk [vmem:[%s388] ss:$8 sm:$0x0] %vm352, 0.0
        %s391 = scalar_lea.vmem [#allocation2], 2496
        %392 = vst.msk [vmem:[%s391] ss:$8 sm:$0xf] %vm352, 0.0
        %393 = vst.msk [vmem:[%s391] ss:$8 sm:$0x0] %vm352, 0.0
        %s394 = scalar_lea.vmem [#allocation2], 2688
        %395 = vst.msk [vmem:[%s394] ss:$8 sm:$0xf] %vm352, 0.0
        %396 = vst.msk [vmem:[%s394] ss:$8 sm:$0x0] %vm352, 0.0
        %s397 = scalar_lea.vmem [#allocation2], 2880
        %398 = vst.msk [vmem:[%s397] ss:$8 sm:$0xf] %vm352, 0.0
        %399 = vst.msk [vmem:[%s397] ss:$8 sm:$0x0] %vm352, 0.0
        %s400 = scalar_lea.vmem [#allocation2], 3072
        %401 = vst.msk [vmem:[%s400] ss:$8 sm:$0xf] %vm352, 0.0
        %402 = vst.msk [vmem:[%s400] ss:$8 sm:$0x0] %vm352, 0.0
        %s403 = scalar_lea.vmem [#allocation2], 3264
        %404 = vst.msk [vmem:[%s403] ss:$8 sm:$0xf] %vm352, 0.0
        %405 = vst.msk [vmem:[%s403] ss:$8 sm:$0x0] %vm352, 0.0
        %s406 = scalar_lea.vmem [#allocation2], 167
        %407 = vst.msk [vmem:[%s406] ss:$8 sm:$0xf] %vm352, 0.0
        %408 = vst.msk [vmem:[%s406] ss:$8 sm:$0x0] %vm352, 0.0
        %s409 = scalar_lea.vmem [#allocation2], 359
        %410 = vst.msk [vmem:[%s409] ss:$8 sm:$0xf] %vm352, 0.0
        %411 = vst.msk [vmem:[%s409] ss:$8 sm:$0x0] %vm352, 0.0
        %s412 = scalar_lea.vmem [#allocation2], 551
        %413 = vst.msk [vmem:[%s412] ss:$8 sm:$0xf] %vm352, 0.0
        %414 = vst.msk [vmem:[%s412] ss:$8 sm:$0x0] %vm352, 0.0
        %s415 = scalar_lea.vmem [#allocation2], 743
        %416 = vst.msk [vmem:[%s415] ss:$8 sm:$0xf] %vm352, 0.0
        %417 = vst.msk [vmem:[%s415] ss:$8 sm:$0x0] %vm352, 0.0
        %s418 = scalar_lea.vmem [#allocation2], 935
        %419 = vst.msk [vmem:[%s418] ss:$8 sm:$0xf] %vm352, 0.0
        %420 = vst.msk [vmem:[%s418] ss:$8 sm:$0x0] %vm352, 0.0
        %s421 = scalar_lea.vmem [#allocation2], 1127
        %422 = vst.msk [vmem:[%s421] ss:$8 sm:$0xf] %vm352, 0.0
        %423 = vst.msk [vmem:[%s421] ss:$8 sm:$0x0] %vm352, 0.0
        %s424 = scalar_lea.vmem [#allocation2], 1319
        %425 = vst.msk [vmem:[%s424] ss:$8 sm:$0xf] %vm352, 0.0
        %426 = vst.msk [vmem:[%s424] ss:$8 sm:$0x0] %vm352, 0.0
        %s427 = scalar_lea.vmem [#allocation2], 1511
        %428 = vst.msk [vmem:[%s427] ss:$8 sm:$0xf] %vm352, 0.0
        %429 = vst.msk [vmem:[%s427] ss:$8 sm:$0x0] %vm352, 0.0
        %s430 = scalar_lea.vmem [#allocation2], 1703
        %431 = vst.msk [vmem:[%s430] ss:$8 sm:$0xf] %vm352, 0.0
        %432 = vst.msk [vmem:[%s430] ss:$8 sm:$0x0] %vm352, 0.0
        %s433 = scalar_lea.vmem [#allocation2], 1895
        %434 = vst.msk [vmem:[%s433] ss:$8 sm:$0xf] %vm352, 0.0
        %435 = vst.msk [vmem:[%s433] ss:$8 sm:$0x0] %vm352, 0.0
        %s436 = scalar_lea.vmem [#allocation2], 2087
        %437 = vst.msk [vmem:[%s436] ss:$8 sm:$0xf] %vm352, 0.0
        %438 = vst.msk [vmem:[%s436] ss:$8 sm:$0x0] %vm352, 0.0
        %s439 = scalar_lea.vmem [#allocation2], 2279
        %440 = vst.msk [vmem:[%s439] ss:$8 sm:$0xf] %vm352, 0.0
        %441 = vst.msk [vmem:[%s439] ss:$8 sm:$0x0] %vm352, 0.0
        %s442 = scalar_lea.vmem [#allocation2], 2471
        %443 = vst.msk [vmem:[%s442] ss:$8 sm:$0xf] %vm352, 0.0
        %444 = vst.msk [vmem:[%s442] ss:$8 sm:$0x0] %vm352, 0.0
        %s445 = scalar_lea.vmem [#allocation2], 2663
        %446 = vst.msk [vmem:[%s445] ss:$8 sm:$0xf] %vm352, 0.0
        %447 = vst.msk [vmem:[%s445] ss:$8 sm:$0x0] %vm352, 0.0
        %s448 = scalar_lea.vmem [#allocation2], 2855
        %449 = vst.msk [vmem:[%s448] ss:$8 sm:$0xf] %vm352, 0.0
        %450 = vst.msk [vmem:[%s448] ss:$8 sm:$0x0] %vm352, 0.0
        %s451 = scalar_lea.vmem [#allocation2], 3047
        %452 = vst.msk [vmem:[%s451] ss:$8 sm:$0xf] %vm352, 0.0
        %453 = vst.msk [vmem:[%s451] ss:$8 sm:$0x0] %vm352, 0.0
        %s454 = scalar_lea.vmem [#allocation2], 3239
        %455 = vst.msk [vmem:[%s454] ss:$8 sm:$0xf] %vm352, 0.0
        %456 = vst.msk [vmem:[%s454] ss:$8 sm:$0x0] %vm352, 0.0
        %s457 = scalar_lea.vmem [#allocation2], 3431
        %458 = vst.msk [vmem:[%s457] ss:$8 sm:$0xf] %vm352, 0.0
        %459 = vst.msk [vmem:[%s457] ss:$8 sm:$0x0] %vm352, 0.0
        %v460 = vld [vmem:[%s294] sm:$0xff]
        %v461 = vld [vmem:[%s294 + $0x8] sm:$0xff]
        %v462 = vld [vmem:[%s294 + $0x10] sm:$0xff]
        %v463 = vld [vmem:[%s294 + $0x18] sm:$0xff]
        %v464 = vld [vmem:[%s294 + $0x20] sm:$0xff]
        %v465 = vld [vmem:[%s294 + $0x28] sm:$0xff]
        %v466 = vld [vmem:[%s294 + $0x30] sm:$0xff]
        %v467 = vld [vmem:[%s294 + $0x38] sm:$0xff]
        %v468 = vld [vmem:[%s294 + $0x40] sm:$0xff]
        %v469 = vld [vmem:[%s294 + $0x48] sm:$0xff]
        %v470 = vld [vmem:[%s294 + $0x50] sm:$0xff]
        %v471 = vld [vmem:[%s294 + $0x58] sm:$0xff]
        %v472 = vld [vmem:[%s294 + $0x60] sm:$0xff]
        %v473 = vld [vmem:[%s294 + $0x68] sm:$0xff]
        %v474 = vld [vmem:[%s294 + $0x70] sm:$0xff]
        %v475 = vld [vmem:[%s294 + $0x78] sm:$0xff]
        %v476 = vld [vmem:[%s294 + $0x80] sm:$0xff]
        %v477 = vld [vmem:[%s294 + $0x88] sm:$0xff]
        %v478 = vld [vmem:[%s294 + $0x90] sm:$0xff]
        %v479 = vld [vmem:[%s294 + $0x98] sm:$0xff]
        %v480 = vld [vmem:[%s294 + $0xa0] sm:$0xff]
        %v481 = vld [vmem:[%s294 + $0xa8] sm:$0xff]
        %v482 = vld [vmem:[%s294 + $0xb0] sm:$0xff]
        %v483 = vld [vmem:[%s294 + $0xb8] sm:$0xff]
        %v484 = vld [vmem:[%s294 + $0xc0] sm:$0xff]
        %v485 = vld [vmem:[%s294 + $0xc8] sm:$0xff]
        %v486 = vld [vmem:[%s294 + $0xd0] sm:$0xff]
        %v487 = vld [vmem:[%s294 + $0xd8] sm:$0xff]
        %v488 = vld [vmem:[%s294 + $0xe0] sm:$0xff]
        %v489 = vld [vmem:[%s294 + $0xe8] sm:$0xff]
        %v490 = vld [vmem:[%s294 + $0xf0] sm:$0xff]
        %v491 = vld [vmem:[%s294 + $0xf8] sm:$0xff]
        %v492 = vld [vmem:[%s294 + $0x100] sm:$0xff]
        %v493 = vld [vmem:[%s294 + $0x108] sm:$0xff]
        %v494 = vld [vmem:[%s294 + $0x110] sm:$0xff]
        %v495 = vld [vmem:[%s294 + $0x118] sm:$0xff]
        %v496 = vld [vmem:[%s294 + $0x120] sm:$0xff]
        %v497 = vld [vmem:[%s294 + $0x128] sm:$0xff]
        %v498 = vld [vmem:[%s294 + $0x130] sm:$0xff]
        %v499 = vld [vmem:[%s294 + $0x138] sm:$0xff]
        %v500 = vld [vmem:[%s294 + $0x140] sm:$0xff]
        %v501 = vld [vmem:[%s294 + $0x148] sm:$0xff]
        %v502 = vld [vmem:[%s294 + $0x150] sm:$0xff]
        %v503 = vld [vmem:[%s294 + $0x158] sm:$0xff]
        %v504 = vld [vmem:[%s294 + $0x160] sm:$0xff]
        %v505 = vld [vmem:[%s294 + $0x168] sm:$0xff]
        %v506 = vld [vmem:[%s294 + $0x170] sm:$0xff]
        %v507 = vld [vmem:[%s294 + $0x178] sm:$0xff]
        %v508 = vld [vmem:[%s294 + $0x180] sm:$0xff]
        %v509 = vld [vmem:[%s294 + $0x188] sm:$0xff]
        %v510 = vld [vmem:[%s294 + $0x190] sm:$0xff]
        %v511 = vld [vmem:[%s294 + $0x198] sm:$0xff]
        %v512 = vld [vmem:[%s294 + $0x1a0] sm:$0xff]
        %v513 = vld [vmem:[%s294 + $0x1a8] sm:$0xff]
        %v514 = vld [vmem:[%s294 + $0x1b0] sm:$0xff]
        %v515 = vld [vmem:[%s294 + $0x1b8] sm:$0xff]
        %v516 = vld [vmem:[%s294 + $0x1c0] sm:$0xff]
        %v517 = vld [vmem:[%s294 + $0x1c8] sm:$0xff]
        %v518 = vld [vmem:[%s294 + $0x1d0] sm:$0xff]
        %v519 = vld [vmem:[%s294 + $0x1d8] sm:$0xff]
        %v520 = vld [vmem:[%s294 + $0x1e0] sm:$0xff]
        %v521 = vld [vmem:[%s294 + $0x1e8] sm:$0xff]
        %v522 = vld [vmem:[%s294 + $0x1f0] sm:$0xff]
        %v523 = vld [vmem:[%s294 + $0x1f8] sm:$0xff]
        %v524 = vld [vmem:[%s294 + $0x200] sm:$0xff]
        %v525 = vld [vmem:[%s294 + $0x208] sm:$0xff]
        %v526 = vld [vmem:[%s294 + $0x210] sm:$0xff]
        %v527 = vld [vmem:[%s294 + $0x218] sm:$0xff]
        %v528 = vld [vmem:[%s294 + $0x220] sm:$0xff]
        %v529 = vld [vmem:[%s294 + $0x228] sm:$0xff]
        %v530 = vld [vmem:[%s294 + $0x230] sm:$0xff]
        %v531 = vld [vmem:[%s294 + $0x238] sm:$0xff]
        %v532 = vld [vmem:[%s294 + $0x240] sm:$0xff]
        %v533 = vld [vmem:[%s294 + $0x248] sm:$0xff]
        %v534 = vld [vmem:[%s294 + $0x250] sm:$0xff]
        %v535 = vld [vmem:[%s294 + $0x258] sm:$0xff]
        %v536 = vld [vmem:[%s294 + $0x260] sm:$0xff]
        %v537 = vld [vmem:[%s294 + $0x268] sm:$0xff]
        %v538 = vld [vmem:[%s294 + $0x270] sm:$0xff]
        %v539 = vld [vmem:[%s294 + $0x278] sm:$0xff]
        %v540 = vld [vmem:[%s294 + $0x280] sm:$0xff]
        %v541 = vld [vmem:[%s294 + $0x288] sm:$0xff]
        %v542 = vld [vmem:[%s294 + $0x290] sm:$0xff]
        %v543 = vld [vmem:[%s294 + $0x298] sm:$0xff]
        %v544 = vld [vmem:[%s294 + $0x2a0] sm:$0xff]
        %v545 = vld [vmem:[%s294 + $0x2a8] sm:$0xff]
        %v546 = vld [vmem:[%s294 + $0x2b0] sm:$0xff]
        %v547 = vld [vmem:[%s294 + $0x2b8] sm:$0xff]
        %v548 = vld [vmem:[%s294 + $0x2c0] sm:$0xff]
        %v549 = vld [vmem:[%s294 + $0x2c8] sm:$0xff]
        %v550 = vld [vmem:[%s294 + $0x2d0] sm:$0xff]
        %v551 = vld [vmem:[%s294 + $0x2d8] sm:$0xff]
        %v552 = vld [vmem:[%s294 + $0x2e0] sm:$0xff]
        %v553 = vld [vmem:[%s294 + $0x2e8] sm:$0xff]
        %v554 = vld [vmem:[%s294 + $0x2f0] sm:$0xff]
        %v555 = vld [vmem:[%s294 + $0x2f8] sm:$0xff]
        %v556 = vld [vmem:[%s294 + $0x300] sm:$0xff]
        %v557 = vld [vmem:[%s294 + $0x308] sm:$0xff]
        %v558 = vld [vmem:[%s294 + $0x310] sm:$0xff]
        %v559 = vld [vmem:[%s294 + $0x318] sm:$0xff]
        %v560 = vld [vmem:[%s294 + $0x320] sm:$0xff]
        %v561 = vld [vmem:[%s294 + $0x328] sm:$0xff]
        %v562 = vld [vmem:[%s294 + $0x330] sm:$0xff]
        %v563 = vld [vmem:[%s294 + $0x338] sm:$0xff]
        %v564 = vld [vmem:[%s294 + $0x340] sm:$0xff]
        %v565 = vld [vmem:[%s294 + $0x348] sm:$0xff]
        %v566 = vld [vmem:[%s294 + $0x350] sm:$0xff]
        %v567 = vld [vmem:[%s294 + $0x358] sm:$0xff]
        %v568 = vld [vmem:[%s294 + $0x360] sm:$0xff]
        %v569 = vld [vmem:[%s294 + $0x368] sm:$0xff]
        %v570 = vld [vmem:[%s294 + $0x370] sm:$0xff]
        %v571 = vld [vmem:[%s294 + $0x378] sm:$0xff]
        %v572 = vld [vmem:[%s294 + $0x380] sm:$0xff]
        %v573 = vld [vmem:[%s294 + $0x388] sm:$0xff]
        %v574 = vld [vmem:[%s294 + $0x390] sm:$0xff]
        %v575 = vld [vmem:[%s294 + $0x398] sm:$0xff]
        %v576 = vld [vmem:[%s294 + $0x3a0] sm:$0xff]
        %v577 = vld [vmem:[%s294 + $0x3a8] sm:$0xff]
        %v578 = vld [vmem:[%s294 + $0x3b0] sm:$0xff]
        %v579 = vld [vmem:[%s294 + $0x3b8] sm:$0xff]
        %v580 = vld [vmem:[%s294 + $0x3c0] sm:$0xff]
        %v581 = vld [vmem:[%s294 + $0x3c8] sm:$0xff]
        %v582 = vld [vmem:[%s294 + $0x3d0] sm:$0xff]
        %v583 = vld [vmem:[%s294 + $0x3d8] sm:$0xff]
        %v584 = vld [vmem:[%s294 + $0x3e0] sm:$0xff]
        %v585 = vld [vmem:[%s294 + $0x3e8] sm:$0xff]
        %v586 = vld [vmem:[%s294 + $0x3f0] sm:$0xff]
        %v587 = vld [vmem:[%s294 + $0x3f8] sm:$0xff]
        %s588 = scalar_lea.vmem [#allocation2], 192
        %589 = vst [vmem:[%s588 + $0x20] sm:$0xff] %v460
        %590 = vst [vmem:[%s588 + $0x28] sm:$0xff] %v461
        %591 = vst [vmem:[%s588 + $0x30] sm:$0xff] %v462
        %592 = vst [vmem:[%s588 + $0x38] sm:$0xff] %v463
        %593 = vst [vmem:[%s588 + $0x80] sm:$0xff] %v464
        %594 = vst [vmem:[%s588 + $0x88] sm:$0xff] %v465
        %595 = vst [vmem:[%s588 + $0x90] sm:$0xff] %v466
        %596 = vst [vmem:[%s588 + $0x98] sm:$0xff] %v467
        %597 = vst [vmem:[%s588 + $0xe0] sm:$0xff] %v468
        %598 = vst [vmem:[%s588 + $0xe8] sm:$0xff] %v469
        %599 = vst [vmem:[%s588 + $0xf0] sm:$0xff] %v470
        %600 = vst [vmem:[%s588 + $0xf8] sm:$0xff] %v471
        %601 = vst [vmem:[%s588 + $0x140] sm:$0xff] %v472
        %602 = vst [vmem:[%s588 + $0x148] sm:$0xff] %v473
        %603 = vst [vmem:[%s588 + $0x150] sm:$0xff] %v474
        %604 = vst [vmem:[%s588 + $0x158] sm:$0xff] %v475
        %605 = vst [vmem:[%s588 + $0x1a0] sm:$0xff] %v476
        %606 = vst [vmem:[%s588 + $0x1a8] sm:$0xff] %v477
        %607 = vst [vmem:[%s588 + $0x1b0] sm:$0xff] %v478
        %608 = vst [vmem:[%s588 + $0x1b8] sm:$0xff] %v479
        %609 = vst [vmem:[%s588 + $0x200] sm:$0xff] %v480
        %610 = vst [vmem:[%s588 + $0x208] sm:$0xff] %v481
        %611 = vst [vmem:[%s588 + $0x210] sm:$0xff] %v482
        %612 = vst [vmem:[%s588 + $0x218] sm:$0xff] %v483
        %613 = vst [vmem:[%s588 + $0x260] sm:$0xff] %v484
        %614 = vst [vmem:[%s588 + $0x268] sm:$0xff] %v485
        %615 = vst [vmem:[%s588 + $0x270] sm:$0xff] %v486
        %616 = vst [vmem:[%s588 + $0x278] sm:$0xff] %v487
        %617 = vst [vmem:[%s588 + $0x2c0] sm:$0xff] %v488
        %618 = vst [vmem:[%s588 + $0x2c8] sm:$0xff] %v489
        %619 = vst [vmem:[%s588 + $0x2d0] sm:$0xff] %v490
        %620 = vst [vmem:[%s588 + $0x2d8] sm:$0xff] %v491
        %621 = vst [vmem:[%s588 + $0x320] sm:$0xff] %v492
        %622 = vst [vmem:[%s588 + $0x328] sm:$0xff] %v493
        %623 = vst [vmem:[%s588 + $0x330] sm:$0xff] %v494
        %624 = vst [vmem:[%s588 + $0x338] sm:$0xff] %v495
        %625 = vst [vmem:[%s588 + $0x380] sm:$0xff] %v496
        %626 = vst [vmem:[%s588 + $0x388] sm:$0xff] %v497
        %627 = vst [vmem:[%s588 + $0x390] sm:$0xff] %v498
        %628 = vst [vmem:[%s588 + $0x398] sm:$0xff] %v499
        %629 = vst [vmem:[%s588 + $0x3e0] sm:$0xff] %v500
        %630 = vst [vmem:[%s588 + $0x3e8] sm:$0xff] %v501
        %631 = vst [vmem:[%s588 + $0x3f0] sm:$0xff] %v502
        %632 = vst [vmem:[%s588 + $0x3f8] sm:$0xff] %v503
        %633 = vst [vmem:[%s588 + $0x440] sm:$0xff] %v504
        %634 = vst [vmem:[%s588 + $0x448] sm:$0xff] %v505
        %635 = vst [vmem:[%s588 + $0x450] sm:$0xff] %v506
        %636 = vst [vmem:[%s588 + $0x458] sm:$0xff] %v507
        %637 = vst [vmem:[%s588 + $0x4a0] sm:$0xff] %v508
        %638 = vst [vmem:[%s588 + $0x4a8] sm:$0xff] %v509
        %639 = vst [vmem:[%s588 + $0x4b0] sm:$0xff] %v510
        %640 = vst [vmem:[%s588 + $0x4b8] sm:$0xff] %v511
        %641 = vst [vmem:[%s588 + $0x500] sm:$0xff] %v512
        %642 = vst [vmem:[%s588 + $0x508] sm:$0xff] %v513
        %643 = vst [vmem:[%s588 + $0x510] sm:$0xff] %v514
        %644 = vst [vmem:[%s588 + $0x518] sm:$0xff] %v515
        %645 = vst [vmem:[%s588 + $0x560] sm:$0xff] %v516
        %646 = vst [vmem:[%s588 + $0x568] sm:$0xff] %v517
        %647 = vst [vmem:[%s588 + $0x570] sm:$0xff] %v518
        %648 = vst [vmem:[%s588 + $0x578] sm:$0xff] %v519
        %649 = vst [vmem:[%s588 + $0x5c0] sm:$0xff] %v520
        %650 = vst [vmem:[%s588 + $0x5c8] sm:$0xff] %v521
        %651 = vst [vmem:[%s588 + $0x5d0] sm:$0xff] %v522
        %652 = vst [vmem:[%s588 + $0x5d8] sm:$0xff] %v523
        %653 = vst [vmem:[%s588 + $0x620] sm:$0xff] %v524
        %654 = vst [vmem:[%s588 + $0x628] sm:$0xff] %v525
        %655 = vst [vmem:[%s588 + $0x630] sm:$0xff] %v526
        %656 = vst [vmem:[%s588 + $0x638] sm:$0xff] %v527
        %657 = vst [vmem:[%s588 + $0x680] sm:$0xff] %v528
        %658 = vst [vmem:[%s588 + $0x688] sm:$0xff] %v529
        %659 = vst [vmem:[%s588 + $0x690] sm:$0xff] %v530
        %660 = vst [vmem:[%s588 + $0x698] sm:$0xff] %v531
        %661 = vst [vmem:[%s588 + $0x6e0] sm:$0xff] %v532
        %662 = vst [vmem:[%s588 + $0x6e8] sm:$0xff] %v533
        %663 = vst [vmem:[%s588 + $0x6f0] sm:$0xff] %v534
        %664 = vst [vmem:[%s588 + $0x6f8] sm:$0xff] %v535
        %665 = vst [vmem:[%s588 + $0x740] sm:$0xff] %v536
        %666 = vst [vmem:[%s588 + $0x748] sm:$0xff] %v537
        %667 = vst [vmem:[%s588 + $0x750] sm:$0xff] %v538
        %668 = vst [vmem:[%s588 + $0x758] sm:$0xff] %v539
        %669 = vst [vmem:[%s588 + $0x7a0] sm:$0xff] %v540
        %670 = vst [vmem:[%s588 + $0x7a8] sm:$0xff] %v541
        %671 = vst [vmem:[%s588 + $0x7b0] sm:$0xff] %v542
        %672 = vst [vmem:[%s588 + $0x7b8] sm:$0xff] %v543
        %673 = vst [vmem:[%s588 + $0x800] sm:$0xff] %v544
        %674 = vst [vmem:[%s588 + $0x808] sm:$0xff] %v545
        %675 = vst [vmem:[%s588 + $0x810] sm:$0xff] %v546
        %676 = vst [vmem:[%s588 + $0x818] sm:$0xff] %v547
        %677 = vst [vmem:[%s588 + $0x860] sm:$0xff] %v548
        %678 = vst [vmem:[%s588 + $0x868] sm:$0xff] %v549
        %679 = vst [vmem:[%s588 + $0x870] sm:$0xff] %v550
        %680 = vst [vmem:[%s588 + $0x878] sm:$0xff] %v551
        %681 = vst [vmem:[%s588 + $0x8c0] sm:$0xff] %v552
        %682 = vst [vmem:[%s588 + $0x8c8] sm:$0xff] %v553
        %683 = vst [vmem:[%s588 + $0x8d0] sm:$0xff] %v554
        %684 = vst [vmem:[%s588 + $0x8d8] sm:$0xff] %v555
        %685 = vst [vmem:[%s588 + $0x920] sm:$0xff] %v556
        %686 = vst [vmem:[%s588 + $0x928] sm:$0xff] %v557
        %687 = vst [vmem:[%s588 + $0x930] sm:$0xff] %v558
        %688 = vst [vmem:[%s588 + $0x938] sm:$0xff] %v559
        %689 = vst [vmem:[%s588 + $0x980] sm:$0xff] %v560
        %690 = vst [vmem:[%s588 + $0x988] sm:$0xff] %v561
        %691 = vst [vmem:[%s588 + $0x990] sm:$0xff] %v562
        %692 = vst [vmem:[%s588 + $0x998] sm:$0xff] %v563
        %693 = vst [vmem:[%s588 + $0x9e0] sm:$0xff] %v564
        %694 = vst [vmem:[%s588 + $0x9e8] sm:$0xff] %v565
        %695 = vst [vmem:[%s588 + $0x9f0] sm:$0xff] %v566
        %696 = vst [vmem:[%s588 + $0x9f8] sm:$0xff] %v567
        %697 = vst [vmem:[%s588 + $0xa40] sm:$0xff] %v568
        %698 = vst [vmem:[%s588 + $0xa48] sm:$0xff] %v569
        %699 = vst [vmem:[%s588 + $0xa50] sm:$0xff] %v570
        %700 = vst [vmem:[%s588 + $0xa58] sm:$0xff] %v571
        %701 = vst [vmem:[%s588 + $0xaa0] sm:$0xff] %v572
        %702 = vst [vmem:[%s588 + $0xaa8] sm:$0xff] %v573
        %703 = vst [vmem:[%s588 + $0xab0] sm:$0xff] %v574
        %704 = vst [vmem:[%s588 + $0xab8] sm:$0xff] %v575
        %705 = vst [vmem:[%s588 + $0xb00] sm:$0xff] %v576
        %706 = vst [vmem:[%s588 + $0xb08] sm:$0xff] %v577
        %707 = vst [vmem:[%s588 + $0xb10] sm:$0xff] %v578
        %708 = vst [vmem:[%s588 + $0xb18] sm:$0xff] %v579
        %709 = vst [vmem:[%s588 + $0xb60] sm:$0xff] %v580
        %710 = vst [vmem:[%s588 + $0xb68] sm:$0xff] %v581
        %711 = vst [vmem:[%s588 + $0xb70] sm:$0xff] %v582
        %712 = vst [vmem:[%s588 + $0xb78] sm:$0xff] %v583
        %713 = vst [vmem:[%s588 + $0xbc0] sm:$0xff] %v584
        %714 = vst [vmem:[%s588 + $0xbc8] sm:$0xff] %v585
        %715 = vst [vmem:[%s588 + $0xbd0] sm:$0xff] %v586
        %716 = vst [vmem:[%s588 + $0xbd8] sm:$0xff] %v587
        %v717 = vld [vmem:[%s294] sm:$0xff]
        %v718 = vld [vmem:[%s294 + $0x8] sm:$0xff]
        %v719 = vld [vmem:[%s294 + $0x10] sm:$0xff]
        %v720 = vld [vmem:[%s294 + $0x18] sm:$0xff]
        %v721 = vld [vmem:[%s294 + $0x20] sm:$0x7f]
        %v722 = vld [vmem:[%s294 + $0x28] sm:$0x7f]
        %v723 = vld [vmem:[%s294 + $0x30] sm:$0x7f]
        %v724 = vld [vmem:[%s294 + $0x38] sm:$0x7f]
        %v725 = vld [vmem:[%s294 + $0x40] sm:$0xff]
        %v726 = vld [vmem:[%s294 + $0x48] sm:$0xff]
        %v727 = vld [vmem:[%s294 + $0x50] sm:$0xff]
        %v728 = vld [vmem:[%s294 + $0x58] sm:$0xff]
        %v729 = vld [vmem:[%s294 + $0x60] sm:$0x7f]
        %v730 = vld [vmem:[%s294 + $0x68] sm:$0x7f]
        %v731 = vld [vmem:[%s294 + $0x70] sm:$0x7f]
        %v732 = vld [vmem:[%s294 + $0x78] sm:$0x7f]
        %v733 = vld [vmem:[%s294 + $0x80] sm:$0xff]
        %v734 = vld [vmem:[%s294 + $0x88] sm:$0xff]
        %v735 = vld [vmem:[%s294 + $0x90] sm:$0xff]
        %v736 = vld [vmem:[%s294 + $0x98] sm:$0xff]
        %v737 = vld [vmem:[%s294 + $0xa0] sm:$0x7f]
        %v738 = vld [vmem:[%s294 + $0xa8] sm:$0x7f]
        %v739 = vld [vmem:[%s294 + $0xb0] sm:$0x7f]
        %v740 = vld [vmem:[%s294 + $0xb8] sm:$0x7f]
        %v741 = vld [vmem:[%s294 + $0xc0] sm:$0xff]
        %v742 = vld [vmem:[%s294 + $0xc8] sm:$0xff]
        %v743 = vld [vmem:[%s294 + $0xd0] sm:$0xff]
        %v744 = vld [vmem:[%s294 + $0xd8] sm:$0xff]
        %v745 = vld [vmem:[%s294 + $0xe0] sm:$0x7f]
        %v746 = vld [vmem:[%s294 + $0xe8] sm:$0x7f]
        %v747 = vld [vmem:[%s294 + $0xf0] sm:$0x7f]
        %v748 = vld [vmem:[%s294 + $0xf8] sm:$0x7f]
        %v749 = vld [vmem:[%s294 + $0x100] sm:$0xff]
        %v750 = vld [vmem:[%s294 + $0x108] sm:$0xff]
        %v751 = vld [vmem:[%s294 + $0x110] sm:$0xff]
        %v752 = vld [vmem:[%s294 + $0x118] sm:$0xff]
        %v753 = vld [vmem:[%s294 + $0x120] sm:$0x7f]
        %v754 = vld [vmem:[%s294 + $0x128] sm:$0x7f]
        %v755 = vld [vmem:[%s294 + $0x130] sm:$0x7f]
        %v756 = vld [vmem:[%s294 + $0x138] sm:$0x7f]
        %v757 = vld [vmem:[%s294 + $0x140] sm:$0xff]
        %v758 = vld [vmem:[%s294 + $0x148] sm:$0xff]
        %v759 = vld [vmem:[%s294 + $0x150] sm:$0xff]
        %v760 = vld [vmem:[%s294 + $0x158] sm:$0xff]
        %v761 = vld [vmem:[%s294 + $0x160] sm:$0x7f]
        %v762 = vld [vmem:[%s294 + $0x168] sm:$0x7f]
        %v763 = vld [vmem:[%s294 + $0x170] sm:$0x7f]
        %v764 = vld [vmem:[%s294 + $0x178] sm:$0x7f]
        %v765 = vld [vmem:[%s294 + $0x180] sm:$0xff]
        %v766 = vld [vmem:[%s294 + $0x188] sm:$0xff]
        %v767 = vld [vmem:[%s294 + $0x190] sm:$0xff]
        %v768 = vld [vmem:[%s294 + $0x198] sm:$0xff]
        %v769 = vld [vmem:[%s294 + $0x1a0] sm:$0x7f]
        %v770 = vld [vmem:[%s294 + $0x1a8] sm:$0x7f]
        %v771 = vld [vmem:[%s294 + $0x1b0] sm:$0x7f]
        %v772 = vld [vmem:[%s294 + $0x1b8] sm:$0x7f]
        %v773 = vld [vmem:[%s294 + $0x1c0] sm:$0xff]
        %v774 = vld [vmem:[%s294 + $0x1c8] sm:$0xff]
        %v775 = vld [vmem:[%s294 + $0x1d0] sm:$0xff]
        %v776 = vld [vmem:[%s294 + $0x1d8] sm:$0xff]
        %v777 = vld [vmem:[%s294 + $0x1e0] sm:$0x7f]
        %v778 = vld [vmem:[%s294 + $0x1e8] sm:$0x7f]
        %v779 = vld [vmem:[%s294 + $0x1f0] sm:$0x7f]
        %v780 = vld [vmem:[%s294 + $0x1f8] sm:$0x7f]
        %v781 = vld [vmem:[%s294 + $0x200] sm:$0xff]
        %v782 = vld [vmem:[%s294 + $0x208] sm:$0xff]
        %v783 = vld [vmem:[%s294 + $0x210] sm:$0xff]
        %v784 = vld [vmem:[%s294 + $0x218] sm:$0xff]
        %v785 = vld [vmem:[%s294 + $0x220] sm:$0x7f]
        %v786 = vld [vmem:[%s294 + $0x228] sm:$0x7f]
        %v787 = vld [vmem:[%s294 + $0x230] sm:$0x7f]
        %v788 = vld [vmem:[%s294 + $0x238] sm:$0x7f]
        %v789 = vld [vmem:[%s294 + $0x240] sm:$0xff]
        %v790 = vld [vmem:[%s294 + $0x248] sm:$0xff]
        %v791 = vld [vmem:[%s294 + $0x250] sm:$0xff]
        %v792 = vld [vmem:[%s294 + $0x258] sm:$0xff]
        %v793 = vld [vmem:[%s294 + $0x260] sm:$0x7f]
        %v794 = vld [vmem:[%s294 + $0x268] sm:$0x7f]
        %v795 = vld [vmem:[%s294 + $0x270] sm:$0x7f]
        %v796 = vld [vmem:[%s294 + $0x278] sm:$0x7f]
        %v797 = vld [vmem:[%s294 + $0x280] sm:$0xff]
        %v798 = vld [vmem:[%s294 + $0x288] sm:$0xff]
        %v799 = vld [vmem:[%s294 + $0x290] sm:$0xff]
        %v800 = vld [vmem:[%s294 + $0x298] sm:$0xff]
        %v801 = vld [vmem:[%s294 + $0x2a0] sm:$0x7f]
        %v802 = vld [vmem:[%s294 + $0x2a8] sm:$0x7f]
        %v803 = vld [vmem:[%s294 + $0x2b0] sm:$0x7f]
        %v804 = vld [vmem:[%s294 + $0x2b8] sm:$0x7f]
        %v805 = vld [vmem:[%s294 + $0x2c0] sm:$0xff]
        %v806 = vld [vmem:[%s294 + $0x2c8] sm:$0xff]
        %v807 = vld [vmem:[%s294 + $0x2d0] sm:$0xff]
        %v808 = vld [vmem:[%s294 + $0x2d8] sm:$0xff]
        %v809 = vld [vmem:[%s294 + $0x2e0] sm:$0x7f]
        %v810 = vld [vmem:[%s294 + $0x2e8] sm:$0x7f]
        %v811 = vld [vmem:[%s294 + $0x2f0] sm:$0x7f]
        %v812 = vld [vmem:[%s294 + $0x2f8] sm:$0x7f]
        %v813 = vld [vmem:[%s294 + $0x300] sm:$0xff]
        %v814 = vld [vmem:[%s294 + $0x308] sm:$0xff]
        %v815 = vld [vmem:[%s294 + $0x310] sm:$0xff]
        %v816 = vld [vmem:[%s294 + $0x318] sm:$0xff]
        %v817 = vld [vmem:[%s294 + $0x320] sm:$0x7f]
        %v818 = vld [vmem:[%s294 + $0x328] sm:$0x7f]
        %v819 = vld [vmem:[%s294 + $0x330] sm:$0x7f]
        %v820 = vld [vmem:[%s294 + $0x338] sm:$0x7f]
        %v821 = vld [vmem:[%s294 + $0x340] sm:$0xff]
        %v822 = vld [vmem:[%s294 + $0x348] sm:$0xff]
        %v823 = vld [vmem:[%s294 + $0x350] sm:$0xff]
        %v824 = vld [vmem:[%s294 + $0x358] sm:$0xff]
        %v825 = vld [vmem:[%s294 + $0x360] sm:$0x7f]
        %v826 = vld [vmem:[%s294 + $0x368] sm:$0x7f]
        %v827 = vld [vmem:[%s294 + $0x370] sm:$0x7f]
        %v828 = vld [vmem:[%s294 + $0x378] sm:$0x7f]
        %v829 = vld [vmem:[%s294 + $0x380] sm:$0xff]
        %v830 = vld [vmem:[%s294 + $0x388] sm:$0xff]
        %v831 = vld [vmem:[%s294 + $0x390] sm:$0xff]
        %v832 = vld [vmem:[%s294 + $0x398] sm:$0xff]
        %v833 = vld [vmem:[%s294 + $0x3a0] sm:$0x7f]
        %v834 = vld [vmem:[%s294 + $0x3a8] sm:$0x7f]
        %v835 = vld [vmem:[%s294 + $0x3b0] sm:$0x7f]
        %v836 = vld [vmem:[%s294 + $0x3b8] sm:$0x7f]
        %v837 = vld [vmem:[%s294 + $0x3c0] sm:$0xff]
        %v838 = vld [vmem:[%s294 + $0x3c8] sm:$0xff]
        %v839 = vld [vmem:[%s294 + $0x3d0] sm:$0xff]
        %v840 = vld [vmem:[%s294 + $0x3d8] sm:$0xff]
        %v841 = vld [vmem:[%s294 + $0x3e0] sm:$0x7f]
        %v842 = vld [vmem:[%s294 + $0x3e8] sm:$0x7f]
        %v843 = vld [vmem:[%s294 + $0x3f0] sm:$0x7f]
        %v844 = vld [vmem:[%s294 + $0x3f8] sm:$0x7f]
        %vm973 = vcmask 1040384
        %v974 = vrot.slane %v717, 7
        %v975 = vrot.slane %v718, 7
        %v976 = vrot.slane %v719, 7
        %v977 = vrot.slane %v720, 7
        %v978 = vrot.slane %v721, 7
        %v979 = vsel %vm973, %v974, %v978
        %v980 = vrot.slane %v722, 7
        %v981 = vsel %vm973, %v975, %v980
        %v982 = vrot.slane %v723, 7
        %v983 = vsel %vm973, %v976, %v982
        %v984 = vrot.slane %v724, 7
        %v985 = vsel %vm973, %v977, %v984
        %v986 = vrot.slane %v725, 7
        %v987 = vrot.slane %v726, 7
        %v988 = vrot.slane %v727, 7
        %v989 = vrot.slane %v728, 7
        %v990 = vrot.slane %v729, 7
        %v991 = vsel %vm973, %v986, %v990
        %v992 = vrot.slane %v730, 7
        %v993 = vsel %vm973, %v987, %v992
        %v994 = vrot.slane %v731, 7
        %v995 = vsel %vm973, %v988, %v994
        %v996 = vrot.slane %v732, 7
        %v997 = vsel %vm973, %v989, %v996
        %v998 = vrot.slane %v733, 7
        %v999 = vrot.slane %v734, 7
        %v1000 = vrot.slane %v735, 7
        %v1001 = vrot.slane %v736, 7
        %v1002 = vrot.slane %v737, 7
        %v1003 = vsel %vm973, %v998, %v1002
        %v1004 = vrot.slane %v738, 7
        %v1005 = vsel %vm973, %v999, %v1004
        %v1006 = vrot.slane %v739, 7
        %v1007 = vsel %vm973, %v1000, %v1006
        %v1008 = vrot.slane %v740, 7
        %v1009 = vsel %vm973, %v1001, %v1008
        %v1010 = vrot.slane %v741, 7
        %v1011 = vrot.slane %v742, 7
        %v1012 = vrot.slane %v743, 7
        %v1013 = vrot.slane %v744, 7
        %v1014 = vrot.slane %v745, 7
        %v1015 = vsel %vm973, %v1010, %v1014
        %v1016 = vrot.slane %v746, 7
        %v1017 = vsel %vm973, %v1011, %v1016
        %v1018 = vrot.slane %v747, 7
        %v1019 = vsel %vm973, %v1012, %v1018
        %v1020 = vrot.slane %v748, 7
        %v1021 = vsel %vm973, %v1013, %v1020
        %v1022 = vrot.slane %v749, 7
        %v1023 = vrot.slane %v750, 7
        %v1024 = vrot.slane %v751, 7
        %v1025 = vrot.slane %v752, 7
        %v1026 = vrot.slane %v753, 7
        %v1027 = vsel %vm973, %v1022, %v1026
        %v1028 = vrot.slane %v754, 7
        %v1029 = vsel %vm973, %v1023, %v1028
        %v1030 = vrot.slane %v755, 7
        %v1031 = vsel %vm973, %v1024, %v1030
        %v1032 = vrot.slane %v756, 7
        %v1033 = vsel %vm973, %v1025, %v1032
        %v1034 = vrot.slane %v757, 7
        %v1035 = vrot.slane %v758, 7
        %v1036 = vrot.slane %v759, 7
        %v1037 = vrot.slane %v760, 7
        %v1038 = vrot.slane %v761, 7
        %v1039 = vsel %vm973, %v1034, %v1038
        %v1040 = vrot.slane %v762, 7
        %v1041 = vsel %vm973, %v1035, %v1040
        %v1042 = vrot.slane %v763, 7
        %v1043 = vsel %vm973, %v1036, %v1042
        %v1044 = vrot.slane %v764, 7
        %v1045 = vsel %vm973, %v1037, %v1044
        %v1046 = vrot.slane %v765, 7
        %v1047 = vrot.slane %v766, 7
        %v1048 = vrot.slane %v767, 7
        %v1049 = vrot.slane %v768, 7
        %v1050 = vrot.slane %v769, 7
        %v1051 = vsel %vm973, %v1046, %v1050
        %v1052 = vrot.slane %v770, 7
        %v1053 = vsel %vm973, %v1047, %v1052
        %v1054 = vrot.slane %v771, 7
        %v1055 = vsel %vm973, %v1048, %v1054
        %v1056 = vrot.slane %v772, 7
        %v1057 = vsel %vm973, %v1049, %v1056
        %v1058 = vrot.slane %v773, 7
        %v1059 = vrot.slane %v774, 7
        %v1060 = vrot.slane %v775, 7
        %v1061 = vrot.slane %v776, 7
        %v1062 = vrot.slane %v777, 7
        %v1063 = vsel %vm973, %v1058, %v1062
        %v1064 = vrot.slane %v778, 7
        %v1065 = vsel %vm973, %v1059, %v1064
        %v1066 = vrot.slane %v779, 7
        %v1067 = vsel %vm973, %v1060, %v1066
        %v1068 = vrot.slane %v780, 7
        %v1069 = vsel %vm973, %v1061, %v1068
        %v1070 = vrot.slane %v781, 7
        %v1071 = vrot.slane %v782, 7
        %v1072 = vrot.slane %v783, 7
        %v1073 = vrot.slane %v784, 7
        %v1074 = vrot.slane %v785, 7
        %v1075 = vsel %vm973, %v1070, %v1074
        %v1076 = vrot.slane %v786, 7
        %v1077 = vsel %vm973, %v1071, %v1076
        %v1078 = vrot.slane %v787, 7
        %v1079 = vsel %vm973, %v1072, %v1078
        %v1080 = vrot.slane %v788, 7
        %v1081 = vsel %vm973, %v1073, %v1080
        %v1082 = vrot.slane %v789, 7
        %v1083 = vrot.slane %v790, 7
        %v1084 = vrot.slane %v791, 7
        %v1085 = vrot.slane %v792, 7
        %v1086 = vrot.slane %v793, 7
        %v1087 = vsel %vm973, %v1082, %v1086
        %v1088 = vrot.slane %v794, 7
        %v1089 = vsel %vm973, %v1083, %v1088
        %v1090 = vrot.slane %v795, 7
        %v1091 = vsel %vm973, %v1084, %v1090
        %v1092 = vrot.slane %v796, 7
        %v1093 = vsel %vm973, %v1085, %v1092
        %v1094 = vrot.slane %v797, 7
        %v1095 = vrot.slane %v798, 7
        %v1096 = vrot.slane %v799, 7
        %v1097 = vrot.slane %v800, 7
        %v1098 = vrot.slane %v801, 7
        %v1099 = vsel %vm973, %v1094, %v1098
        %v1100 = vrot.slane %v802, 7
        %v1101 = vsel %vm973, %v1095, %v1100
        %v1102 = vrot.slane %v803, 7
        %v1103 = vsel %vm973, %v1096, %v1102
        %v1104 = vrot.slane %v804, 7
        %v1105 = vsel %vm973, %v1097, %v1104
        %v1106 = vrot.slane %v805, 7
        %v1107 = vrot.slane %v806, 7
        %v1108 = vrot.slane %v807, 7
        %v1109 = vrot.slane %v808, 7
        %v1110 = vrot.slane %v809, 7
        %v1111 = vsel %vm973, %v1106, %v1110
        %v1112 = vrot.slane %v810, 7
        %v1113 = vsel %vm973, %v1107, %v1112
        %v1114 = vrot.slane %v811, 7
        %v1115 = vsel %vm973, %v1108, %v1114
        %v1116 = vrot.slane %v812, 7
        %v1117 = vsel %vm973, %v1109, %v1116
        %v1118 = vrot.slane %v813, 7
        %v1119 = vrot.slane %v814, 7
        %v1120 = vrot.slane %v815, 7
        %v1121 = vrot.slane %v816, 7
        %v1122 = vrot.slane %v817, 7
        %v1123 = vsel %vm973, %v1118, %v1122
        %v1124 = vrot.slane %v818, 7
        %v1125 = vsel %vm973, %v1119, %v1124
        %v1126 = vrot.slane %v819, 7
        %v1127 = vsel %vm973, %v1120, %v1126
        %v1128 = vrot.slane %v820, 7
        %v1129 = vsel %vm973, %v1121, %v1128
        %v1130 = vrot.slane %v821, 7
        %v1131 = vrot.slane %v822, 7
        %v1132 = vrot.slane %v823, 7
        %v1133 = vrot.slane %v824, 7
        %v1134 = vrot.slane %v825, 7
        %v1135 = vsel %vm973, %v1130, %v1134
        %v1136 = vrot.slane %v826, 7
        %v1137 = vsel %vm973, %v1131, %v1136
        %v1138 = vrot.slane %v827, 7
        %v1139 = vsel %vm973, %v1132, %v1138
        %v1140 = vrot.slane %v828, 7
        %v1141 = vsel %vm973, %v1133, %v1140
        %v1142 = vrot.slane %v829, 7
        %v1143 = vrot.slane %v830, 7
        %v1144 = vrot.slane %v831, 7
        %v1145 = vrot.slane %v832, 7
        %v1146 = vrot.slane %v833, 7
        %v1147 = vsel %vm973, %v1142, %v1146
        %v1148 = vrot.slane %v834, 7
        %v1149 = vsel %vm973, %v1143, %v1148
        %v1150 = vrot.slane %v835, 7
        %v1151 = vsel %vm973, %v1144, %v1150
        %v1152 = vrot.slane %v836, 7
        %v1153 = vsel %vm973, %v1145, %v1152
        %v1154 = vrot.slane %v837, 7
        %v1155 = vrot.slane %v838, 7
        %v1156 = vrot.slane %v839, 7
        %v1157 = vrot.slane %v840, 7
        %v1158 = vrot.slane %v841, 7
        %v1159 = vsel %vm973, %v1154, %v1158
        %v1160 = vrot.slane %v842, 7
        %v1161 = vsel %vm973, %v1155, %v1160
        %v1162 = vrot.slane %v843, 7
        %v1163 = vsel %vm973, %v1156, %v1162
        %v1164 = vrot.slane %v844, 7
        %v1165 = vsel %vm973, %v1157, %v1164
        %1294 = vst [vmem:[%s588] sm:$0xfe] %v974
        %1295 = vst [vmem:[%s588 + $0x8] sm:$0xfe] %v975
        %1296 = vst [vmem:[%s588 + $0x10] sm:$0xfe] %v976
        %1297 = vst [vmem:[%s588 + $0x18] sm:$0xfe] %v977
        %1298 = vst [vmem:[%s588 + $0x60] sm:$0xff] %v979
        %1299 = vst [vmem:[%s588 + $0x68] sm:$0xff] %v981
        %1300 = vst [vmem:[%s588 + $0x70] sm:$0xff] %v983
        %1301 = vst [vmem:[%s588 + $0x78] sm:$0xff] %v985
        %1302 = vst [vmem:[%s588 + $0xc0] sm:$0xfe] %v986
        %1303 = vst [vmem:[%s588 + $0xc8] sm:$0xfe] %v987
        %1304 = vst [vmem:[%s588 + $0xd0] sm:$0xfe] %v988
        %1305 = vst [vmem:[%s588 + $0xd8] sm:$0xfe] %v989
        %1306 = vst [vmem:[%s588 + $0x120] sm:$0xff] %v991
        %1307 = vst [vmem:[%s588 + $0x128] sm:$0xff] %v993
        %1308 = vst [vmem:[%s588 + $0x130] sm:$0xff] %v995
        %1309 = vst [vmem:[%s588 + $0x138] sm:$0xff] %v997
        %1310 = vst [vmem:[%s588 + $0x180] sm:$0xfe] %v998
        %1311 = vst [vmem:[%s588 + $0x188] sm:$0xfe] %v999
        %1312 = vst [vmem:[%s588 + $0x190] sm:$0xfe] %v1000
        %1313 = vst [vmem:[%s588 + $0x198] sm:$0xfe] %v1001
        %1314 = vst [vmem:[%s588 + $0x1e0] sm:$0xff] %v1003
        %1315 = vst [vmem:[%s588 + $0x1e8] sm:$0xff] %v1005
        %1316 = vst [vmem:[%s588 + $0x1f0] sm:$0xff] %v1007
        %1317 = vst [vmem:[%s588 + $0x1f8] sm:$0xff] %v1009
        %1318 = vst [vmem:[%s588 + $0x240] sm:$0xfe] %v1010
        %1319 = vst [vmem:[%s588 + $0x248] sm:$0xfe] %v1011
        %1320 = vst [vmem:[%s588 + $0x250] sm:$0xfe] %v1012
        %1321 = vst [vmem:[%s588 + $0x258] sm:$0xfe] %v1013
        %1322 = vst [vmem:[%s588 + $0x2a0] sm:$0xff] %v1015
        %1323 = vst [vmem:[%s588 + $0x2a8] sm:$0xff] %v1017
        %1324 = vst [vmem:[%s588 + $0x2b0] sm:$0xff] %v1019
        %1325 = vst [vmem:[%s588 + $0x2b8] sm:$0xff] %v1021
        %1326 = vst [vmem:[%s588 + $0x300] sm:$0xfe] %v1022
        %1327 = vst [vmem:[%s588 + $0x308] sm:$0xfe] %v1023
        %1328 = vst [vmem:[%s588 + $0x310] sm:$0xfe] %v1024
        %1329 = vst [vmem:[%s588 + $0x318] sm:$0xfe] %v1025
        %1330 = vst [vmem:[%s588 + $0x360] sm:$0xff] %v1027
        %1331 = vst [vmem:[%s588 + $0x368] sm:$0xff] %v1029
        %1332 = vst [vmem:[%s588 + $0x370] sm:$0xff] %v1031
        %1333 = vst [vmem:[%s588 + $0x378] sm:$0xff] %v1033
        %1334 = vst [vmem:[%s588 + $0x3c0] sm:$0xfe] %v1034
        %1335 = vst [vmem:[%s588 + $0x3c8] sm:$0xfe] %v1035
        %1336 = vst [vmem:[%s588 + $0x3d0] sm:$0xfe] %v1036
        %1337 = vst [vmem:[%s588 + $0x3d8] sm:$0xfe] %v1037
        %1338 = vst [vmem:[%s588 + $0x420] sm:$0xff] %v1039
        %1339 = vst [vmem:[%s588 + $0x428] sm:$0xff] %v1041
        %1340 = vst [vmem:[%s588 + $0x430] sm:$0xff] %v1043
        %1341 = vst [vmem:[%s588 + $0x438] sm:$0xff] %v1045
        %1342 = vst [vmem:[%s588 + $0x480] sm:$0xfe] %v1046
        %1343 = vst [vmem:[%s588 + $0x488] sm:$0xfe] %v1047
        %1344 = vst [vmem:[%s588 + $0x490] sm:$0xfe] %v1048
        %1345 = vst [vmem:[%s588 + $0x498] sm:$0xfe] %v1049
        %1346 = vst [vmem:[%s588 + $0x4e0] sm:$0xff] %v1051
        %1347 = vst [vmem:[%s588 + $0x4e8] sm:$0xff] %v1053
        %1348 = vst [vmem:[%s588 + $0x4f0] sm:$0xff] %v1055
        %1349 = vst [vmem:[%s588 + $0x4f8] sm:$0xff] %v1057
        %1350 = vst [vmem:[%s588 + $0x540] sm:$0xfe] %v1058
        %1351 = vst [vmem:[%s588 + $0x548] sm:$0xfe] %v1059
        %1352 = vst [vmem:[%s588 + $0x550] sm:$0xfe] %v1060
        %1353 = vst [vmem:[%s588 + $0x558] sm:$0xfe] %v1061
        %1354 = vst [vmem:[%s588 + $0x5a0] sm:$0xff] %v1063
        %1355 = vst [vmem:[%s588 + $0x5a8] sm:$0xff] %v1065
        %1356 = vst [vmem:[%s588 + $0x5b0] sm:$0xff] %v1067
        %1357 = vst [vmem:[%s588 + $0x5b8] sm:$0xff] %v1069
        %1358 = vst [vmem:[%s588 + $0x600] sm:$0xfe] %v1070
        %1359 = vst [vmem:[%s588 + $0x608] sm:$0xfe] %v1071
        %1360 = vst [vmem:[%s588 + $0x610] sm:$0xfe] %v1072
        %1361 = vst [vmem:[%s588 + $0x618] sm:$0xfe] %v1073
        %1362 = vst [vmem:[%s588 + $0x660] sm:$0xff] %v1075
        %1363 = vst [vmem:[%s588 + $0x668] sm:$0xff] %v1077
        %1364 = vst [vmem:[%s588 + $0x670] sm:$0xff] %v1079
        %1365 = vst [vmem:[%s588 + $0x678] sm:$0xff] %v1081
        %1366 = vst [vmem:[%s588 + $0x6c0] sm:$0xfe] %v1082
        %1367 = vst [vmem:[%s588 + $0x6c8] sm:$0xfe] %v1083
        %1368 = vst [vmem:[%s588 + $0x6d0] sm:$0xfe] %v1084
        %1369 = vst [vmem:[%s588 + $0x6d8] sm:$0xfe] %v1085
        %1370 = vst [vmem:[%s588 + $0x720] sm:$0xff] %v1087
        %1371 = vst [vmem:[%s588 + $0x728] sm:$0xff] %v1089
        %1372 = vst [vmem:[%s588 + $0x730] sm:$0xff] %v1091
        %1373 = vst [vmem:[%s588 + $0x738] sm:$0xff] %v1093
        %1374 = vst [vmem:[%s588 + $0x780] sm:$0xfe] %v1094
        %1375 = vst [vmem:[%s588 + $0x788] sm:$0xfe] %v1095
        %1376 = vst [vmem:[%s588 + $0x790] sm:$0xfe] %v1096
        %1377 = vst [vmem:[%s588 + $0x798] sm:$0xfe] %v1097
        %1378 = vst [vmem:[%s588 + $0x7e0] sm:$0xff] %v1099
        %1379 = vst [vmem:[%s588 + $0x7e8] sm:$0xff] %v1101
        %1380 = vst [vmem:[%s588 + $0x7f0] sm:$0xff] %v1103
        %1381 = vst [vmem:[%s588 + $0x7f8] sm:$0xff] %v1105
        %1382 = vst [vmem:[%s588 + $0x840] sm:$0xfe] %v1106
        %1383 = vst [vmem:[%s588 + $0x848] sm:$0xfe] %v1107
        %1384 = vst [vmem:[%s588 + $0x850] sm:$0xfe] %v1108
        %1385 = vst [vmem:[%s588 + $0x858] sm:$0xfe] %v1109
        %1386 = vst [vmem:[%s588 + $0x8a0] sm:$0xff] %v1111
        %1387 = vst [vmem:[%s588 + $0x8a8] sm:$0xff] %v1113
        %1388 = vst [vmem:[%s588 + $0x8b0] sm:$0xff] %v1115
        %1389 = vst [vmem:[%s588 + $0x8b8] sm:$0xff] %v1117
        %1390 = vst [vmem:[%s588 + $0x900] sm:$0xfe] %v1118
        %1391 = vst [vmem:[%s588 + $0x908] sm:$0xfe] %v1119
        %1392 = vst [vmem:[%s588 + $0x910] sm:$0xfe] %v1120
        %1393 = vst [vmem:[%s588 + $0x918] sm:$0xfe] %v1121
        %1394 = vst [vmem:[%s588 + $0x960] sm:$0xff] %v1123
        %1395 = vst [vmem:[%s588 + $0x968] sm:$0xff] %v1125
        %1396 = vst [vmem:[%s588 + $0x970] sm:$0xff] %v1127
        %1397 = vst [vmem:[%s588 + $0x978] sm:$0xff] %v1129
        %1398 = vst [vmem:[%s588 + $0x9c0] sm:$0xfe] %v1130
        %1399 = vst [vmem:[%s588 + $0x9c8] sm:$0xfe] %v1131
        %1400 = vst [vmem:[%s588 + $0x9d0] sm:$0xfe] %v1132
        %1401 = vst [vmem:[%s588 + $0x9d8] sm:$0xfe] %v1133
        %1402 = vst [vmem:[%s588 + $0xa20] sm:$0xff] %v1135
        %1403 = vst [vmem:[%s588 + $0xa28] sm:$0xff] %v1137
        %1404 = vst [vmem:[%s588 + $0xa30] sm:$0xff] %v1139
        %1405 = vst [vmem:[%s588 + $0xa38] sm:$0xff] %v1141
        %1406 = vst [vmem:[%s588 + $0xa80] sm:$0xfe] %v1142
        %1407 = vst [vmem:[%s588 + $0xa88] sm:$0xfe] %v1143
        %1408 = vst [vmem:[%s588 + $0xa90] sm:$0xfe] %v1144
        %1409 = vst [vmem:[%s588 + $0xa98] sm:$0xfe] %v1145
        %1410 = vst [vmem:[%s588 + $0xae0] sm:$0xff] %v1147
        %1411 = vst [vmem:[%s588 + $0xae8] sm:$0xff] %v1149
        %1412 = vst [vmem:[%s588 + $0xaf0] sm:$0xff] %v1151
        %1413 = vst [vmem:[%s588 + $0xaf8] sm:$0xff] %v1153
        %1414 = vst [vmem:[%s588 + $0xb40] sm:$0xfe] %v1154
        %1415 = vst [vmem:[%s588 + $0xb48] sm:$0xfe] %v1155
        %1416 = vst [vmem:[%s588 + $0xb50] sm:$0xfe] %v1156
        %1417 = vst [vmem:[%s588 + $0xb58] sm:$0xfe] %v1157
        %1418 = vst [vmem:[%s588 + $0xba0] sm:$0xff] %v1159
        %1419 = vst [vmem:[%s588 + $0xba8] sm:$0xff] %v1161
        %1420 = vst [vmem:[%s588 + $0xbb0] sm:$0xff] %v1163
        %1421 = vst [vmem:[%s588 + $0xbb8] sm:$0xff] %v1165
        %v1422 = vld [vmem:[%s294] sm:$0xfe]
        %v1423 = vld [vmem:[%s294 + $0x8] sm:$0xfe]
        %v1424 = vld [vmem:[%s294 + $0x10] sm:$0xfe]
        %v1425 = vld [vmem:[%s294 + $0x18] sm:$0xfe]
        %v1426 = vld [vmem:[%s294 + $0x20] sm:$0xff]
        %v1427 = vld [vmem:[%s294 + $0x28] sm:$0xff]
        %v1428 = vld [vmem:[%s294 + $0x30] sm:$0xff]
        %v1429 = vld [vmem:[%s294 + $0x38] sm:$0xff]
        %v1430 = vld [vmem:[%s294 + $0x40] sm:$0xfe]
        %v1431 = vld [vmem:[%s294 + $0x48] sm:$0xfe]
        %v1432 = vld [vmem:[%s294 + $0x50] sm:$0xfe]
        %v1433 = vld [vmem:[%s294 + $0x58] sm:$0xfe]
        %v1434 = vld [vmem:[%s294 + $0x60] sm:$0xff]
        %v1435 = vld [vmem:[%s294 + $0x68] sm:$0xff]
        %v1436 = vld [vmem:[%s294 + $0x70] sm:$0xff]
        %v1437 = vld [vmem:[%s294 + $0x78] sm:$0xff]
        %v1438 = vld [vmem:[%s294 + $0x80] sm:$0xfe]
        %v1439 = vld [vmem:[%s294 + $0x88] sm:$0xfe]
        %v1440 = vld [vmem:[%s294 + $0x90] sm:$0xfe]
        %v1441 = vld [vmem:[%s294 + $0x98] sm:$0xfe]
        %v1442 = vld [vmem:[%s294 + $0xa0] sm:$0xff]
        %v1443 = vld [vmem:[%s294 + $0xa8] sm:$0xff]
        %v1444 = vld [vmem:[%s294 + $0xb0] sm:$0xff]
        %v1445 = vld [vmem:[%s294 + $0xb8] sm:$0xff]
        %v1446 = vld [vmem:[%s294 + $0xc0] sm:$0xfe]
        %v1447 = vld [vmem:[%s294 + $0xc8] sm:$0xfe]
        %v1448 = vld [vmem:[%s294 + $0xd0] sm:$0xfe]
        %v1449 = vld [vmem:[%s294 + $0xd8] sm:$0xfe]
        %v1450 = vld [vmem:[%s294 + $0xe0] sm:$0xff]
        %v1451 = vld [vmem:[%s294 + $0xe8] sm:$0xff]
        %v1452 = vld [vmem:[%s294 + $0xf0] sm:$0xff]
        %v1453 = vld [vmem:[%s294 + $0xf8] sm:$0xff]
        %v1454 = vld [vmem:[%s294 + $0x100] sm:$0xfe]
        %v1455 = vld [vmem:[%s294 + $0x108] sm:$0xfe]
        %v1456 = vld [vmem:[%s294 + $0x110] sm:$0xfe]
        %v1457 = vld [vmem:[%s294 + $0x118] sm:$0xfe]
        %v1458 = vld [vmem:[%s294 + $0x120] sm:$0xff]
        %v1459 = vld [vmem:[%s294 + $0x128] sm:$0xff]
        %v1460 = vld [vmem:[%s294 + $0x130] sm:$0xff]
        %v1461 = vld [vmem:[%s294 + $0x138] sm:$0xff]
        %v1462 = vld [vmem:[%s294 + $0x140] sm:$0xfe]
        %v1463 = vld [vmem:[%s294 + $0x148] sm:$0xfe]
        %v1464 = vld [vmem:[%s294 + $0x150] sm:$0xfe]
        %v1465 = vld [vmem:[%s294 + $0x158] sm:$0xfe]
        %v1466 = vld [vmem:[%s294 + $0x160] sm:$0xff]
        %v1467 = vld [vmem:[%s294 + $0x168] sm:$0xff]
        %v1468 = vld [vmem:[%s294 + $0x170] sm:$0xff]
        %v1469 = vld [vmem:[%s294 + $0x178] sm:$0xff]
        %v1470 = vld [vmem:[%s294 + $0x180] sm:$0xfe]
        %v1471 = vld [vmem:[%s294 + $0x188] sm:$0xfe]
        %v1472 = vld [vmem:[%s294 + $0x190] sm:$0xfe]
        %v1473 = vld [vmem:[%s294 + $0x198] sm:$0xfe]
        %v1474 = vld [vmem:[%s294 + $0x1a0] sm:$0xff]
        %v1475 = vld [vmem:[%s294 + $0x1a8] sm:$0xff]
        %v1476 = vld [vmem:[%s294 + $0x1b0] sm:$0xff]
        %v1477 = vld [vmem:[%s294 + $0x1b8] sm:$0xff]
        %v1478 = vld [vmem:[%s294 + $0x1c0] sm:$0xfe]
        %v1479 = vld [vmem:[%s294 + $0x1c8] sm:$0xfe]
        %v1480 = vld [vmem:[%s294 + $0x1d0] sm:$0xfe]
        %v1481 = vld [vmem:[%s294 + $0x1d8] sm:$0xfe]
        %v1482 = vld [vmem:[%s294 + $0x1e0] sm:$0xff]
        %v1483 = vld [vmem:[%s294 + $0x1e8] sm:$0xff]
        %v1484 = vld [vmem:[%s294 + $0x1f0] sm:$0xff]
        %v1485 = vld [vmem:[%s294 + $0x1f8] sm:$0xff]
        %v1486 = vld [vmem:[%s294 + $0x200] sm:$0xfe]
        %v1487 = vld [vmem:[%s294 + $0x208] sm:$0xfe]
        %v1488 = vld [vmem:[%s294 + $0x210] sm:$0xfe]
        %v1489 = vld [vmem:[%s294 + $0x218] sm:$0xfe]
        %v1490 = vld [vmem:[%s294 + $0x220] sm:$0xff]
        %v1491 = vld [vmem:[%s294 + $0x228] sm:$0xff]
        %v1492 = vld [vmem:[%s294 + $0x230] sm:$0xff]
        %v1493 = vld [vmem:[%s294 + $0x238] sm:$0xff]
        %v1494 = vld [vmem:[%s294 + $0x240] sm:$0xfe]
        %v1495 = vld [vmem:[%s294 + $0x248] sm:$0xfe]
        %v1496 = vld [vmem:[%s294 + $0x250] sm:$0xfe]
        %v1497 = vld [vmem:[%s294 + $0x258] sm:$0xfe]
        %v1498 = vld [vmem:[%s294 + $0x260] sm:$0xff]
        %v1499 = vld [vmem:[%s294 + $0x268] sm:$0xff]
        %v1500 = vld [vmem:[%s294 + $0x270] sm:$0xff]
        %v1501 = vld [vmem:[%s294 + $0x278] sm:$0xff]
        %v1502 = vld [vmem:[%s294 + $0x280] sm:$0xfe]
        %v1503 = vld [vmem:[%s294 + $0x288] sm:$0xfe]
        %v1504 = vld [vmem:[%s294 + $0x290] sm:$0xfe]
        %v1505 = vld [vmem:[%s294 + $0x298] sm:$0xfe]
        %v1506 = vld [vmem:[%s294 + $0x2a0] sm:$0xff]
        %v1507 = vld [vmem:[%s294 + $0x2a8] sm:$0xff]
        %v1508 = vld [vmem:[%s294 + $0x2b0] sm:$0xff]
        %v1509 = vld [vmem:[%s294 + $0x2b8] sm:$0xff]
        %v1510 = vld [vmem:[%s294 + $0x2c0] sm:$0xfe]
        %v1511 = vld [vmem:[%s294 + $0x2c8] sm:$0xfe]
        %v1512 = vld [vmem:[%s294 + $0x2d0] sm:$0xfe]
        %v1513 = vld [vmem:[%s294 + $0x2d8] sm:$0xfe]
        %v1514 = vld [vmem:[%s294 + $0x2e0] sm:$0xff]
        %v1515 = vld [vmem:[%s294 + $0x2e8] sm:$0xff]
        %v1516 = vld [vmem:[%s294 + $0x2f0] sm:$0xff]
        %v1517 = vld [vmem:[%s294 + $0x2f8] sm:$0xff]
        %v1518 = vld [vmem:[%s294 + $0x300] sm:$0xfe]
        %v1519 = vld [vmem:[%s294 + $0x308] sm:$0xfe]
        %v1520 = vld [vmem:[%s294 + $0x310] sm:$0xfe]
        %v1521 = vld [vmem:[%s294 + $0x318] sm:$0xfe]
        %v1522 = vld [vmem:[%s294 + $0x320] sm:$0xff]
        %v1523 = vld [vmem:[%s294 + $0x328] sm:$0xff]
        %v1524 = vld [vmem:[%s294 + $0x330] sm:$0xff]
        %v1525 = vld [vmem:[%s294 + $0x338] sm:$0xff]
        %v1526 = vld [vmem:[%s294 + $0x340] sm:$0xfe]
        %v1527 = vld [vmem:[%s294 + $0x348] sm:$0xfe]
        %v1528 = vld [vmem:[%s294 + $0x350] sm:$0xfe]
        %v1529 = vld [vmem:[%s294 + $0x358] sm:$0xfe]
        %v1530 = vld [vmem:[%s294 + $0x360] sm:$0xff]
        %v1531 = vld [vmem:[%s294 + $0x368] sm:$0xff]
        %v1532 = vld [vmem:[%s294 + $0x370] sm:$0xff]
        %v1533 = vld [vmem:[%s294 + $0x378] sm:$0xff]
        %v1534 = vld [vmem:[%s294 + $0x380] sm:$0xfe]
        %v1535 = vld [vmem:[%s294 + $0x388] sm:$0xfe]
        %v1536 = vld [vmem:[%s294 + $0x390] sm:$0xfe]
        %v1537 = vld [vmem:[%s294 + $0x398] sm:$0xfe]
        %v1538 = vld [vmem:[%s294 + $0x3a0] sm:$0xff]
        %v1539 = vld [vmem:[%s294 + $0x3a8] sm:$0xff]
        %v1540 = vld [vmem:[%s294 + $0x3b0] sm:$0xff]
        %v1541 = vld [vmem:[%s294 + $0x3b8] sm:$0xff]
        %v1542 = vld [vmem:[%s294 + $0x3c0] sm:$0xfe]
        %v1543 = vld [vmem:[%s294 + $0x3c8] sm:$0xfe]
        %v1544 = vld [vmem:[%s294 + $0x3d0] sm:$0xfe]
        %v1545 = vld [vmem:[%s294 + $0x3d8] sm:$0xfe]
        %v1546 = vld [vmem:[%s294 + $0x3e0] sm:$0xff]
        %v1547 = vld [vmem:[%s294 + $0x3e8] sm:$0xff]
        %v1548 = vld [vmem:[%s294 + $0x3f0] sm:$0xff]
        %v1549 = vld [vmem:[%s294 + $0x3f8] sm:$0xff]
        %vm1678 = vcmask 1046528
        %v1679 = vrot.slane %v1422, 1
        %v1680 = vrot.slane %v1426, 1
        %v1681 = vsel %vm1678, %v1679, %v1680
        %v1682 = vrot.slane %v1423, 1
        %v1683 = vrot.slane %v1427, 1
        %v1684 = vsel %vm1678, %v1682, %v1683
        %v1685 = vrot.slane %v1424, 1
        %v1686 = vrot.slane %v1428, 1
        %v1687 = vsel %vm1678, %v1685, %v1686
        %v1688 = vrot.slane %v1425, 1
        %v1689 = vrot.slane %v1429, 1
        %v1690 = vsel %vm1678, %v1688, %v1689
        %v1691 = vrot.slane %v1430, 1
        %v1692 = vrot.slane %v1434, 1
        %v1693 = vsel %vm1678, %v1691, %v1692
        %v1694 = vrot.slane %v1431, 1
        %v1695 = vrot.slane %v1435, 1
        %v1696 = vsel %vm1678, %v1694, %v1695
        %v1697 = vrot.slane %v1432, 1
        %v1698 = vrot.slane %v1436, 1
        %v1699 = vsel %vm1678, %v1697, %v1698
        %v1700 = vrot.slane %v1433, 1
        %v1701 = vrot.slane %v1437, 1
        %v1702 = vsel %vm1678, %v1700, %v1701
        %v1703 = vrot.slane %v1438, 1
        %v1704 = vrot.slane %v1442, 1
        %v1705 = vsel %vm1678, %v1703, %v1704
        %v1706 = vrot.slane %v1439, 1
        %v1707 = vrot.slane %v1443, 1
        %v1708 = vsel %vm1678, %v1706, %v1707
        %v1709 = vrot.slane %v1440, 1
        %v1710 = vrot.slane %v1444, 1
        %v1711 = vsel %vm1678, %v1709, %v1710
        %v1712 = vrot.slane %v1441, 1
        %v1713 = vrot.slane %v1445, 1
        %v1714 = vsel %vm1678, %v1712, %v1713
        %v1715 = vrot.slane %v1446, 1
        %v1716 = vrot.slane %v1450, 1
        %v1717 = vsel %vm1678, %v1715, %v1716
        %v1718 = vrot.slane %v1447, 1
        %v1719 = vrot.slane %v1451, 1
        %v1720 = vsel %vm1678, %v1718, %v1719
        %v1721 = vrot.slane %v1448, 1
        %v1722 = vrot.slane %v1452, 1
        %v1723 = vsel %vm1678, %v1721, %v1722
        %v1724 = vrot.slane %v1449, 1
        %v1725 = vrot.slane %v1453, 1
        %v1726 = vsel %vm1678, %v1724, %v1725
        %v1727 = vrot.slane %v1454, 1
        %v1728 = vrot.slane %v1458, 1
        %v1729 = vsel %vm1678, %v1727, %v1728
        %v1730 = vrot.slane %v1455, 1
        %v1731 = vrot.slane %v1459, 1
        %v1732 = vsel %vm1678, %v1730, %v1731
        %v1733 = vrot.slane %v1456, 1
        %v1734 = vrot.slane %v1460, 1
        %v1735 = vsel %vm1678, %v1733, %v1734
        %v1736 = vrot.slane %v1457, 1
        %v1737 = vrot.slane %v1461, 1
        %v1738 = vsel %vm1678, %v1736, %v1737
        %v1739 = vrot.slane %v1462, 1
        %v1740 = vrot.slane %v1466, 1
        %v1741 = vsel %vm1678, %v1739, %v1740
        %v1742 = vrot.slane %v1463, 1
        %v1743 = vrot.slane %v1467, 1
        %v1744 = vsel %vm1678, %v1742, %v1743
        %v1745 = vrot.slane %v1464, 1
        %v1746 = vrot.slane %v1468, 1
        %v1747 = vsel %vm1678, %v1745, %v1746
        %v1748 = vrot.slane %v1465, 1
        %v1749 = vrot.slane %v1469, 1
        %v1750 = vsel %vm1678, %v1748, %v1749
        %v1751 = vrot.slane %v1470, 1
        %v1752 = vrot.slane %v1474, 1
        %v1753 = vsel %vm1678, %v1751, %v1752
        %v1754 = vrot.slane %v1471, 1
        %v1755 = vrot.slane %v1475, 1
        %v1756 = vsel %vm1678, %v1754, %v1755
        %v1757 = vrot.slane %v1472, 1
        %v1758 = vrot.slane %v1476, 1
        %v1759 = vsel %vm1678, %v1757, %v1758
        %v1760 = vrot.slane %v1473, 1
        %v1761 = vrot.slane %v1477, 1
        %v1762 = vsel %vm1678, %v1760, %v1761
        %v1763 = vrot.slane %v1478, 1
        %v1764 = vrot.slane %v1482, 1
        %v1765 = vsel %vm1678, %v1763, %v1764
        %v1766 = vrot.slane %v1479, 1
        %v1767 = vrot.slane %v1483, 1
        %v1768 = vsel %vm1678, %v1766, %v1767
        %v1769 = vrot.slane %v1480, 1
        %v1770 = vrot.slane %v1484, 1
        %v1771 = vsel %vm1678, %v1769, %v1770
        %v1772 = vrot.slane %v1481, 1
        %v1773 = vrot.slane %v1485, 1
        %v1774 = vsel %vm1678, %v1772, %v1773
        %v1775 = vrot.slane %v1486, 1
        %v1776 = vrot.slane %v1490, 1
        %v1777 = vsel %vm1678, %v1775, %v1776
        %v1778 = vrot.slane %v1487, 1
        %v1779 = vrot.slane %v1491, 1
        %v1780 = vsel %vm1678, %v1778, %v1779
        %v1781 = vrot.slane %v1488, 1
        %v1782 = vrot.slane %v1492, 1
        %v1783 = vsel %vm1678, %v1781, %v1782
        %v1784 = vrot.slane %v1489, 1
        %v1785 = vrot.slane %v1493, 1
        %v1786 = vsel %vm1678, %v1784, %v1785
        %v1787 = vrot.slane %v1494, 1
        %v1788 = vrot.slane %v1498, 1
        %v1789 = vsel %vm1678, %v1787, %v1788
        %v1790 = vrot.slane %v1495, 1
        %v1791 = vrot.slane %v1499, 1
        %v1792 = vsel %vm1678, %v1790, %v1791
        %v1793 = vrot.slane %v1496, 1
        %v1794 = vrot.slane %v1500, 1
        %v1795 = vsel %vm1678, %v1793, %v1794
        %v1796 = vrot.slane %v1497, 1
        %v1797 = vrot.slane %v1501, 1
        %v1798 = vsel %vm1678, %v1796, %v1797
        %v1799 = vrot.slane %v1502, 1
        %v1800 = vrot.slane %v1506, 1
        %v1801 = vsel %vm1678, %v1799, %v1800
        %v1802 = vrot.slane %v1503, 1
        %v1803 = vrot.slane %v1507, 1
        %v1804 = vsel %vm1678, %v1802, %v1803
        %v1805 = vrot.slane %v1504, 1
        %v1806 = vrot.slane %v1508, 1
        %v1807 = vsel %vm1678, %v1805, %v1806
        %v1808 = vrot.slane %v1505, 1
        %v1809 = vrot.slane %v1509, 1
        %v1810 = vsel %vm1678, %v1808, %v1809
        %v1811 = vrot.slane %v1510, 1
        %v1812 = vrot.slane %v1514, 1
        %v1813 = vsel %vm1678, %v1811, %v1812
        %v1814 = vrot.slane %v1511, 1
        %v1815 = vrot.slane %v1515, 1
        %v1816 = vsel %vm1678, %v1814, %v1815
        %v1817 = vrot.slane %v1512, 1
        %v1818 = vrot.slane %v1516, 1
        %v1819 = vsel %vm1678, %v1817, %v1818
        %v1820 = vrot.slane %v1513, 1
        %v1821 = vrot.slane %v1517, 1
        %v1822 = vsel %vm1678, %v1820, %v1821
        %v1823 = vrot.slane %v1518, 1
        %v1824 = vrot.slane %v1522, 1
        %v1825 = vsel %vm1678, %v1823, %v1824
        %v1826 = vrot.slane %v1519, 1
        %v1827 = vrot.slane %v1523, 1
        %v1828 = vsel %vm1678, %v1826, %v1827
        %v1829 = vrot.slane %v1520, 1
        %v1830 = vrot.slane %v1524, 1
        %v1831 = vsel %vm1678, %v1829, %v1830
        %v1832 = vrot.slane %v1521, 1
        %v1833 = vrot.slane %v1525, 1
        %v1834 = vsel %vm1678, %v1832, %v1833
        %v1835 = vrot.slane %v1526, 1
        %v1836 = vrot.slane %v1530, 1
        %v1837 = vsel %vm1678, %v1835, %v1836
        %v1838 = vrot.slane %v1527, 1
        %v1839 = vrot.slane %v1531, 1
        %v1840 = vsel %vm1678, %v1838, %v1839
        %v1841 = vrot.slane %v1528, 1
        %v1842 = vrot.slane %v1532, 1
        %v1843 = vsel %vm1678, %v1841, %v1842
        %v1844 = vrot.slane %v1529, 1
        %v1845 = vrot.slane %v1533, 1
        %v1846 = vsel %vm1678, %v1844, %v1845
        %v1847 = vrot.slane %v1534, 1
        %v1848 = vrot.slane %v1538, 1
        %v1849 = vsel %vm1678, %v1847, %v1848
        %v1850 = vrot.slane %v1535, 1
        %v1851 = vrot.slane %v1539, 1
        %v1852 = vsel %vm1678, %v1850, %v1851
        %v1853 = vrot.slane %v1536, 1
        %v1854 = vrot.slane %v1540, 1
        %v1855 = vsel %vm1678, %v1853, %v1854
        %v1856 = vrot.slane %v1537, 1
        %v1857 = vrot.slane %v1541, 1
        %v1858 = vsel %vm1678, %v1856, %v1857
        %v1859 = vrot.slane %v1542, 1
        %v1860 = vrot.slane %v1546, 1
        %v1861 = vsel %vm1678, %v1859, %v1860
        %v1862 = vrot.slane %v1543, 1
        %v1863 = vrot.slane %v1547, 1
        %v1864 = vsel %vm1678, %v1862, %v1863
        %v1865 = vrot.slane %v1544, 1
        %v1866 = vrot.slane %v1548, 1
        %v1867 = vsel %vm1678, %v1865, %v1866
        %v1868 = vrot.slane %v1545, 1
        %v1869 = vrot.slane %v1549, 1
        %v1870 = vsel %vm1678, %v1868, %v1869
        %1999 = vst [vmem:[%s588 + $0x40] sm:$0xff] %v1681
        %2000 = vst [vmem:[%s588 + $0x48] sm:$0xff] %v1684
        %2001 = vst [vmem:[%s588 + $0x50] sm:$0xff] %v1687
        %2002 = vst [vmem:[%s588 + $0x58] sm:$0xff] %v1690
        %2003 = vst [vmem:[%s588 + $0xa0] sm:$0x7f] %v1680
        %2004 = vst [vmem:[%s588 + $0xa8] sm:$0x7f] %v1683
        %2005 = vst [vmem:[%s588 + $0xb0] sm:$0x7f] %v1686
        %2006 = vst [vmem:[%s588 + $0xb8] sm:$0x7f] %v1689
        %2007 = vst [vmem:[%s588 + $0x100] sm:$0xff] %v1693
        %2008 = vst [vmem:[%s588 + $0x108] sm:$0xff] %v1696
        %2009 = vst [vmem:[%s588 + $0x110] sm:$0xff] %v1699
        %2010 = vst [vmem:[%s588 + $0x118] sm:$0xff] %v1702
        %2011 = vst [vmem:[%s588 + $0x160] sm:$0x7f] %v1692
        %2012 = vst [vmem:[%s588 + $0x168] sm:$0x7f] %v1695
        %2013 = vst [vmem:[%s588 + $0x170] sm:$0x7f] %v1698
        %2014 = vst [vmem:[%s588 + $0x178] sm:$0x7f] %v1701
        %2015 = vst [vmem:[%s588 + $0x1c0] sm:$0xff] %v1705
        %2016 = vst [vmem:[%s588 + $0x1c8] sm:$0xff] %v1708
        %2017 = vst [vmem:[%s588 + $0x1d0] sm:$0xff] %v1711
        %2018 = vst [vmem:[%s588 + $0x1d8] sm:$0xff] %v1714
        %2019 = vst [vmem:[%s588 + $0x220] sm:$0x7f] %v1704
        %2020 = vst [vmem:[%s588 + $0x228] sm:$0x7f] %v1707
        %2021 = vst [vmem:[%s588 + $0x230] sm:$0x7f] %v1710
        %2022 = vst [vmem:[%s588 + $0x238] sm:$0x7f] %v1713
        %2023 = vst [vmem:[%s588 + $0x280] sm:$0xff] %v1717
        %2024 = vst [vmem:[%s588 + $0x288] sm:$0xff] %v1720
        %2025 = vst [vmem:[%s588 + $0x290] sm:$0xff] %v1723
        %2026 = vst [vmem:[%s588 + $0x298] sm:$0xff] %v1726
        %2027 = vst [vmem:[%s588 + $0x2e0] sm:$0x7f] %v1716
        %2028 = vst [vmem:[%s588 + $0x2e8] sm:$0x7f] %v1719
        %2029 = vst [vmem:[%s588 + $0x2f0] sm:$0x7f] %v1722
        %2030 = vst [vmem:[%s588 + $0x2f8] sm:$0x7f] %v1725
        %2031 = vst [vmem:[%s588 + $0x340] sm:$0xff] %v1729
        %2032 = vst [vmem:[%s588 + $0x348] sm:$0xff] %v1732
        %2033 = vst [vmem:[%s588 + $0x350] sm:$0xff] %v1735
        %2034 = vst [vmem:[%s588 + $0x358] sm:$0xff] %v1738
        %2035 = vst [vmem:[%s588 + $0x3a0] sm:$0x7f] %v1728
        %2036 = vst [vmem:[%s588 + $0x3a8] sm:$0x7f] %v1731
        %2037 = vst [vmem:[%s588 + $0x3b0] sm:$0x7f] %v1734
        %2038 = vst [vmem:[%s588 + $0x3b8] sm:$0x7f] %v1737
        %2039 = vst [vmem:[%s588 + $0x400] sm:$0xff] %v1741
        %2040 = vst [vmem:[%s588 + $0x408] sm:$0xff] %v1744
        %2041 = vst [vmem:[%s588 + $0x410] sm:$0xff] %v1747
        %2042 = vst [vmem:[%s588 + $0x418] sm:$0xff] %v1750
        %2043 = vst [vmem:[%s588 + $0x460] sm:$0x7f] %v1740
        %2044 = vst [vmem:[%s588 + $0x468] sm:$0x7f] %v1743
        %2045 = vst [vmem:[%s588 + $0x470] sm:$0x7f] %v1746
        %2046 = vst [vmem:[%s588 + $0x478] sm:$0x7f] %v1749
        %2047 = vst [vmem:[%s588 + $0x4c0] sm:$0xff] %v1753
        %2048 = vst [vmem:[%s588 + $0x4c8] sm:$0xff] %v1756
        %2049 = vst [vmem:[%s588 + $0x4d0] sm:$0xff] %v1759
        %2050 = vst [vmem:[%s588 + $0x4d8] sm:$0xff] %v1762
        %2051 = vst [vmem:[%s588 + $0x520] sm:$0x7f] %v1752
        %2052 = vst [vmem:[%s588 + $0x528] sm:$0x7f] %v1755
        %2053 = vst [vmem:[%s588 + $0x530] sm:$0x7f] %v1758
        %2054 = vst [vmem:[%s588 + $0x538] sm:$0x7f] %v1761
        %2055 = vst [vmem:[%s588 + $0x580] sm:$0xff] %v1765
        %2056 = vst [vmem:[%s588 + $0x588] sm:$0xff] %v1768
        %2057 = vst [vmem:[%s588 + $0x590] sm:$0xff] %v1771
        %2058 = vst [vmem:[%s588 + $0x598] sm:$0xff] %v1774
        %2059 = vst [vmem:[%s588 + $0x5e0] sm:$0x7f] %v1764
        %2060 = vst [vmem:[%s588 + $0x5e8] sm:$0x7f] %v1767
        %2061 = vst [vmem:[%s588 + $0x5f0] sm:$0x7f] %v1770
        %2062 = vst [vmem:[%s588 + $0x5f8] sm:$0x7f] %v1773
        %2063 = vst [vmem:[%s588 + $0x640] sm:$0xff] %v1777
        %2064 = vst [vmem:[%s588 + $0x648] sm:$0xff] %v1780
        %2065 = vst [vmem:[%s588 + $0x650] sm:$0xff] %v1783
        %2066 = vst [vmem:[%s588 + $0x658] sm:$0xff] %v1786
        %2067 = vst [vmem:[%s588 + $0x6a0] sm:$0x7f] %v1776
        %2068 = vst [vmem:[%s588 + $0x6a8] sm:$0x7f] %v1779
        %2069 = vst [vmem:[%s588 + $0x6b0] sm:$0x7f] %v1782
        %2070 = vst [vmem:[%s588 + $0x6b8] sm:$0x7f] %v1785
        %2071 = vst [vmem:[%s588 + $0x700] sm:$0xff] %v1789
        %2072 = vst [vmem:[%s588 + $0x708] sm:$0xff] %v1792
        %2073 = vst [vmem:[%s588 + $0x710] sm:$0xff] %v1795
        %2074 = vst [vmem:[%s588 + $0x718] sm:$0xff] %v1798
        %2075 = vst [vmem:[%s588 + $0x760] sm:$0x7f] %v1788
        %2076 = vst [vmem:[%s588 + $0x768] sm:$0x7f] %v1791
        %2077 = vst [vmem:[%s588 + $0x770] sm:$0x7f] %v1794
        %2078 = vst [vmem:[%s588 + $0x778] sm:$0x7f] %v1797
        %2079 = vst [vmem:[%s588 + $0x7c0] sm:$0xff] %v1801
        %2080 = vst [vmem:[%s588 + $0x7c8] sm:$0xff] %v1804
        %2081 = vst [vmem:[%s588 + $0x7d0] sm:$0xff] %v1807
        %2082 = vst [vmem:[%s588 + $0x7d8] sm:$0xff] %v1810
        %2083 = vst [vmem:[%s588 + $0x820] sm:$0x7f] %v1800
        %2084 = vst [vmem:[%s588 + $0x828] sm:$0x7f] %v1803
        %2085 = vst [vmem:[%s588 + $0x830] sm:$0x7f] %v1806
        %2086 = vst [vmem:[%s588 + $0x838] sm:$0x7f] %v1809
        %2087 = vst [vmem:[%s588 + $0x880] sm:$0xff] %v1813
        %2088 = vst [vmem:[%s588 + $0x888] sm:$0xff] %v1816
        %2089 = vst [vmem:[%s588 + $0x890] sm:$0xff] %v1819
        %2090 = vst [vmem:[%s588 + $0x898] sm:$0xff] %v1822
        %2091 = vst [vmem:[%s588 + $0x8e0] sm:$0x7f] %v1812
        %2092 = vst [vmem:[%s588 + $0x8e8] sm:$0x7f] %v1815
        %2093 = vst [vmem:[%s588 + $0x8f0] sm:$0x7f] %v1818
        %2094 = vst [vmem:[%s588 + $0x8f8] sm:$0x7f] %v1821
        %2095 = vst [vmem:[%s588 + $0x940] sm:$0xff] %v1825
        %2096 = vst [vmem:[%s588 + $0x948] sm:$0xff] %v1828
        %2097 = vst [vmem:[%s588 + $0x950] sm:$0xff] %v1831
        %2098 = vst [vmem:[%s588 + $0x958] sm:$0xff] %v1834
        %2099 = vst [vmem:[%s588 + $0x9a0] sm:$0x7f] %v1824
        %2100 = vst [vmem:[%s588 + $0x9a8] sm:$0x7f] %v1827
        %2101 = vst [vmem:[%s588 + $0x9b0] sm:$0x7f] %v1830
        %2102 = vst [vmem:[%s588 + $0x9b8] sm:$0x7f] %v1833
        %2103 = vst [vmem:[%s588 + $0xa00] sm:$0xff] %v1837
        %2104 = vst [vmem:[%s588 + $0xa08] sm:$0xff] %v1840
        %2105 = vst [vmem:[%s588 + $0xa10] sm:$0xff] %v1843
        %2106 = vst [vmem:[%s588 + $0xa18] sm:$0xff] %v1846
        %2107 = vst [vmem:[%s588 + $0xa60] sm:$0x7f] %v1836
        %2108 = vst [vmem:[%s588 + $0xa68] sm:$0x7f] %v1839
        %2109 = vst [vmem:[%s588 + $0xa70] sm:$0x7f] %v1842
        %2110 = vst [vmem:[%s588 + $0xa78] sm:$0x7f] %v1845
        %2111 = vst [vmem:[%s588 + $0xac0] sm:$0xff] %v1849
        %2112 = vst [vmem:[%s588 + $0xac8] sm:$0xff] %v1852
        %2113 = vst [vmem:[%s588 + $0xad0] sm:$0xff] %v1855
        %2114 = vst [vmem:[%s588 + $0xad8] sm:$0xff] %v1858
        %2115 = vst [vmem:[%s588 + $0xb20] sm:$0x7f] %v1848
        %2116 = vst [vmem:[%s588 + $0xb28] sm:$0x7f] %v1851
        %2117 = vst [vmem:[%s588 + $0xb30] sm:$0x7f] %v1854
        %2118 = vst [vmem:[%s588 + $0xb38] sm:$0x7f] %v1857
        %2119 = vst [vmem:[%s588 + $0xb80] sm:$0xff] %v1861
        %2120 = vst [vmem:[%s588 + $0xb88] sm:$0xff] %v1864
        %2121 = vst [vmem:[%s588 + $0xb90] sm:$0xff] %v1867
        %2122 = vst [vmem:[%s588 + $0xb98] sm:$0xff] %v1870
        %2123 = vst [vmem:[%s588 + $0xbe0] sm:$0x7f] %v1860
        %2124 = vst [vmem:[%s588 + $0xbe8] sm:$0x7f] %v1863
        %2125 = vst [vmem:[%s588 + $0xbf0] sm:$0x7f] %v1866
        %2126 = vst [vmem:[%s588 + $0xbf8] sm:$0x7f] %v1869
        %v2127 = vld [vmem:[%s303] sm:$0xff]
        %v2128 = vld [vmem:[%s303 + $0x8] sm:$0xff]
        %v2129 = vld [vmem:[%s303 + $0x10] sm:$0xff]
        %v2130 = vld [vmem:[%s303 + $0x18] sm:$0xff]
        %v2131 = vld [vmem:[%s303 + $0x20] sm:$0xff]
        %v2132 = vld [vmem:[%s303 + $0x28] sm:$0xff]
        %v2133 = vld [vmem:[%s303 + $0x30] sm:$0xff]
        %v2134 = vld [vmem:[%s303 + $0x38] sm:$0xff]
        %2135 = vst [vmem:[#allocation2 + $0x20] sm:$0xff] %v2127
        %2136 = vst [vmem:[#allocation2 + $0x28] sm:$0xff] %v2128
        %2137 = vst [vmem:[#allocation2 + $0x30] sm:$0xff] %v2129
        %2138 = vst [vmem:[#allocation2 + $0x38] sm:$0xff] %v2130
        %2139 = vst [vmem:[#allocation2 + $0x80] sm:$0xff] %v2131
        %2140 = vst [vmem:[#allocation2 + $0x88] sm:$0xff] %v2132
        %2141 = vst [vmem:[#allocation2 + $0x90] sm:$0xff] %v2133
        %2142 = vst [vmem:[#allocation2 + $0x98] sm:$0xff] %v2134
        %v2143 = vld [vmem:[%s303] sm:$0xff]
        %v2144 = vld [vmem:[%s303 + $0x8] sm:$0xff]
        %v2145 = vld [vmem:[%s303 + $0x10] sm:$0xff]
        %v2146 = vld [vmem:[%s303 + $0x18] sm:$0xff]
        %v2147 = vld [vmem:[%s303 + $0x20] sm:$0x7f]
        %v2148 = vld [vmem:[%s303 + $0x28] sm:$0x7f]
        %v2149 = vld [vmem:[%s303 + $0x30] sm:$0x7f]
        %v2150 = vld [vmem:[%s303 + $0x38] sm:$0x7f]
        %v2159 = vrot.slane %v2143, 7
        %v2160 = vrot.slane %v2144, 7
        %v2161 = vrot.slane %v2145, 7
        %v2162 = vrot.slane %v2146, 7
        %v2163 = vrot.slane %v2147, 7
        %v2164 = vsel %vm973, %v2159, %v2163
        %v2165 = vrot.slane %v2148, 7
        %v2166 = vsel %vm973, %v2160, %v2165
        %v2167 = vrot.slane %v2149, 7
        %v2168 = vsel %vm973, %v2161, %v2167
        %v2169 = vrot.slane %v2150, 7
        %v2170 = vsel %vm973, %v2162, %v2169
        %2179 = vst [vmem:[#allocation2] sm:$0xfe] %v2159
        %2180 = vst [vmem:[#allocation2 + $0x8] sm:$0xfe] %v2160
        %2181 = vst [vmem:[#allocation2 + $0x10] sm:$0xfe] %v2161
        %2182 = vst [vmem:[#allocation2 + $0x18] sm:$0xfe] %v2162
        %2183 = vst [vmem:[#allocation2 + $0x60] sm:$0xff] %v2164
        %2184 = vst [vmem:[#allocation2 + $0x68] sm:$0xff] %v2166
        %2185 = vst [vmem:[#allocation2 + $0x70] sm:$0xff] %v2168
        %2186 = vst [vmem:[#allocation2 + $0x78] sm:$0xff] %v2170
        %v2187 = vld [vmem:[%s303] sm:$0xfe]
        %v2188 = vld [vmem:[%s303 + $0x8] sm:$0xfe]
        %v2189 = vld [vmem:[%s303 + $0x10] sm:$0xfe]
        %v2190 = vld [vmem:[%s303 + $0x18] sm:$0xfe]
        %v2191 = vld [vmem:[%s303 + $0x20] sm:$0xff]
        %v2192 = vld [vmem:[%s303 + $0x28] sm:$0xff]
        %v2193 = vld [vmem:[%s303 + $0x30] sm:$0xff]
        %v2194 = vld [vmem:[%s303 + $0x38] sm:$0xff]
        %v2203 = vrot.slane %v2187, 1
        %v2204 = vrot.slane %v2191, 1
        %v2205 = vsel %vm1678, %v2203, %v2204
        %v2206 = vrot.slane %v2188, 1
        %v2207 = vrot.slane %v2192, 1
        %v2208 = vsel %vm1678, %v2206, %v2207
        %v2209 = vrot.slane %v2189, 1
        %v2210 = vrot.slane %v2193, 1
        %v2211 = vsel %vm1678, %v2209, %v2210
        %v2212 = vrot.slane %v2190, 1
        %v2213 = vrot.slane %v2194, 1
        %v2214 = vsel %vm1678, %v2212, %v2213
        %2223 = vst [vmem:[#allocation2 + $0x40] sm:$0xff] %v2205
        %2224 = vst [vmem:[#allocation2 + $0x48] sm:$0xff] %v2208
        %2225 = vst [vmem:[#allocation2 + $0x50] sm:$0xff] %v2211
        %2226 = vst [vmem:[#allocation2 + $0x58] sm:$0xff] %v2214
        %2227 = vst [vmem:[#allocation2 + $0xa0] sm:$0x7f] %v2204
        %2228 = vst [vmem:[#allocation2 + $0xa8] sm:$0x7f] %v2207
        %2229 = vst [vmem:[#allocation2 + $0xb0] sm:$0x7f] %v2210
        %2230 = vst [vmem:[#allocation2 + $0xb8] sm:$0x7f] %v2213
        %s2231 = scalar_lea.vmem %s303, 64 [#allocation6]
        %v2232 = vld [vmem:[%s2231] sm:$0xff]
        %v2233 = vld [vmem:[%s2231 + $0x8] sm:$0xff]
        %v2234 = vld [vmem:[%s2231 + $0x10] sm:$0xff]
        %v2235 = vld [vmem:[%s2231 + $0x18] sm:$0xff]
        %v2236 = vld [vmem:[%s2231 + $0x20] sm:$0xff]
        %v2237 = vld [vmem:[%s2231 + $0x28] sm:$0xff]
        %v2238 = vld [vmem:[%s2231 + $0x30] sm:$0xff]
        %v2239 = vld [vmem:[%s2231 + $0x38] sm:$0xff]
        %s2240 = scalar_lea.vmem [#allocation2], 3264
        %2241 = vst [vmem:[%s2240 + $0x20] sm:$0xff] %v2232
        %2242 = vst [vmem:[%s2240 + $0x28] sm:$0xff] %v2233
        %2243 = vst [vmem:[%s2240 + $0x30] sm:$0xff] %v2234
        %2244 = vst [vmem:[%s2240 + $0x38] sm:$0xff] %v2235
        %2245 = vst [vmem:[%s2240 + $0x80] sm:$0xff] %v2236
        %2246 = vst [vmem:[%s2240 + $0x88] sm:$0xff] %v2237
        %2247 = vst [vmem:[%s2240 + $0x90] sm:$0xff] %v2238
        %2248 = vst [vmem:[%s2240 + $0x98] sm:$0xff] %v2239
        %v2249 = vld [vmem:[%s2231] sm:$0xff]
        %v2250 = vld [vmem:[%s2231 + $0x8] sm:$0xff]
        %v2251 = vld [vmem:[%s2231 + $0x10] sm:$0xff]
        %v2252 = vld [vmem:[%s2231 + $0x18] sm:$0xff]
        %v2253 = vld [vmem:[%s2231 + $0x20] sm:$0x7f]
        %v2254 = vld [vmem:[%s2231 + $0x28] sm:$0x7f]
        %v2255 = vld [vmem:[%s2231 + $0x30] sm:$0x7f]
        %v2256 = vld [vmem:[%s2231 + $0x38] sm:$0x7f]
        %v2265 = vrot.slane %v2249, 7
        %v2266 = vrot.slane %v2250, 7
        %v2267 = vrot.slane %v2251, 7
        %v2268 = vrot.slane %v2252, 7
        %v2269 = vrot.slane %v2253, 7
        %v2270 = vsel %vm973, %v2265, %v2269
        %v2271 = vrot.slane %v2254, 7
        %v2272 = vsel %vm973, %v2266, %v2271
        %v2273 = vrot.slane %v2255, 7
        %v2274 = vsel %vm973, %v2267, %v2273
        %v2275 = vrot.slane %v2256, 7
        %v2276 = vsel %vm973, %v2268, %v2275
        %2285 = vst [vmem:[%s2240] sm:$0xfe] %v2265
        %2286 = vst [vmem:[%s2240 + $0x8] sm:$0xfe] %v2266
        %2287 = vst [vmem:[%s2240 + $0x10] sm:$0xfe] %v2267
        %2288 = vst [vmem:[%s2240 + $0x18] sm:$0xfe] %v2268
        %2289 = vst [vmem:[%s2240 + $0x60] sm:$0xff] %v2270
        %2290 = vst [vmem:[%s2240 + $0x68] sm:$0xff] %v2272
        %2291 = vst [vmem:[%s2240 + $0x70] sm:$0xff] %v2274
        %2292 = vst [vmem:[%s2240 + $0x78] sm:$0xff] %v2276
        %v2293 = vld [vmem:[%s2231] sm:$0xfe]
        %v2294 = vld [vmem:[%s2231 + $0x8] sm:$0xfe]
        %v2295 = vld [vmem:[%s2231 + $0x10] sm:$0xfe]
        %v2296 = vld [vmem:[%s2231 + $0x18] sm:$0xfe]
        %v2297 = vld [vmem:[%s2231 + $0x20] sm:$0xff]
        %v2298 = vld [vmem:[%s2231 + $0x28] sm:$0xff]
        %v2299 = vld [vmem:[%s2231 + $0x30] sm:$0xff]
        %v2300 = vld [vmem:[%s2231 + $0x38] sm:$0xff]
        %v2309 = vrot.slane %v2293, 1
        %v2310 = vrot.slane %v2297, 1
        %v2311 = vsel %vm1678, %v2309, %v2310
        %v2312 = vrot.slane %v2294, 1
        %v2313 = vrot.slane %v2298, 1
        %v2314 = vsel %vm1678, %v2312, %v2313
        %v2315 = vrot.slane %v2295, 1
        %v2316 = vrot.slane %v2299, 1
        %v2317 = vsel %vm1678, %v2315, %v2316
        %v2318 = vrot.slane %v2296, 1
        %v2319 = vrot.slane %v2300, 1
        %v2320 = vsel %vm1678, %v2318, %v2319
        %2329 = vst [vmem:[%s2240 + $0x40] sm:$0xff] %v2311
        %2330 = vst [vmem:[%s2240 + $0x48] sm:$0xff] %v2314
        %2331 = vst [vmem:[%s2240 + $0x50] sm:$0xff] %v2317
        %2332 = vst [vmem:[%s2240 + $0x58] sm:$0xff] %v2320
        %2333 = vst [vmem:[%s2240 + $0xa0] sm:$0x7f] %v2310
        %2334 = vst [vmem:[%s2240 + $0xa8] sm:$0x7f] %v2313
        %2335 = vst [vmem:[%s2240 + $0xb0] sm:$0x7f] %v2316
        %2336 = vst [vmem:[%s2240 + $0xb8] sm:$0x7f] %v2319
        %v2337 = vld [vmem:[#allocation2] sm:$0xff]
        %v2338 = vld [vmem:[#allocation2 + $0x8] sm:$0xff]
        %v2339 = vld [vmem:[#allocation2 + $0x10] sm:$0xff]
        %v2340 = vld [vmem:[#allocation2 + $0x18] sm:$0xff]
        %v2341 = vld [vmem:[#allocation2 + $0x20] sm:$0xff]
        %v2342 = vld [vmem:[#allocation2 + $0x28] sm:$0xff]
        %v2343 = vld [vmem:[#allocation2 + $0x30] sm:$0xff]
        %v2344 = vld [vmem:[#allocation2 + $0x38] sm:$0xff]
        %v2345 = vld [vmem:[#allocation2 + $0x40] sm:$0xff]
        %v2346 = vld [vmem:[#allocation2 + $0x48] sm:$0xff]
        %v2347 = vld [vmem:[#allocation2 + $0x50] sm:$0xff]
        %v2348 = vld [vmem:[#allocation2 + $0x58] sm:$0xff]
        %v2349 = vld [vmem:[#allocation2 + $0x60] sm:$0xff]
        %v2350 = vld [vmem:[#allocation2 + $0x68] sm:$0xff]
        %v2351 = vld [vmem:[#allocation2 + $0x70] sm:$0xff]
        %v2352 = vld [vmem:[#allocation2 + $0x78] sm:$0xff]
        %v2353 = vld [vmem:[#allocation2 + $0x80] sm:$0xff]
        %v2354 = vld [vmem:[#allocation2 + $0x88] sm:$0xff]
        %v2355 = vld [vmem:[#allocation2 + $0x90] sm:$0xff]
        %v2356 = vld [vmem:[#allocation2 + $0x98] sm:$0xff]
        %v2357 = vld [vmem:[#allocation2 + $0xa0] sm:$0xff]
        %v2358 = vld [vmem:[#allocation2 + $0xa8] sm:$0xff]
        %v2359 = vld [vmem:[#allocation2 + $0xb0] sm:$0xff]
        %v2360 = vld [vmem:[#allocation2 + $0xb8] sm:$0xff]
        %v2361 = vld [vmem:[#allocation2 + $0xc0] sm:$0xff]
        %v2362 = vld [vmem:[#allocation2 + $0xc8] sm:$0xff]
        %v2363 = vld [vmem:[#allocation2 + $0xd0] sm:$0xff]
        %v2364 = vld [vmem:[#allocation2 + $0xd8] sm:$0xff]
        %v2365 = vld [vmem:[#allocation2 + $0xe0] sm:$0xff]
        %v2366 = vld [vmem:[#allocation2 + $0xe8] sm:$0xff]
        %v2367 = vld [vmem:[#allocation2 + $0xf0] sm:$0xff]
        %v2368 = vld [vmem:[#allocation2 + $0xf8] sm:$0xff]
        %v2369 = vld [vmem:[#allocation2 + $0x100] sm:$0xff]
        %v2370 = vld [vmem:[#allocation2 + $0x108] sm:$0xff]
        %v2371 = vld [vmem:[#allocation2 + $0x110] sm:$0xff]
        %v2372 = vld [vmem:[#allocation2 + $0x118] sm:$0xff]
        %v2373 = vld [vmem:[#allocation2 + $0x120] sm:$0xff]
        %v2374 = vld [vmem:[#allocation2 + $0x128] sm:$0xff]
        %v2375 = vld [vmem:[#allocation2 + $0x130] sm:$0xff]
        %v2376 = vld [vmem:[#allocation2 + $0x138] sm:$0xff]
        %v2377 = vld [vmem:[#allocation2 + $0x140] sm:$0xff]
        %v2378 = vld [vmem:[#allocation2 + $0x148] sm:$0xff]
        %v2379 = vld [vmem:[#allocation2 + $0x150] sm:$0xff]
        %v2380 = vld [vmem:[#allocation2 + $0x158] sm:$0xff]
        %v2381 = vld [vmem:[#allocation2 + $0x160] sm:$0xff]
        %v2382 = vld [vmem:[#allocation2 + $0x168] sm:$0xff]
        %v2383 = vld [vmem:[#allocation2 + $0x170] sm:$0xff]
        %v2384 = vld [vmem:[#allocation2 + $0x178] sm:$0xff]
        %v2385 = vld [vmem:[#allocation2 + $0x180] sm:$0xff]
        %v2386 = vld [vmem:[#allocation2 + $0x188] sm:$0xff]
        %v2387 = vld [vmem:[#allocation2 + $0x190] sm:$0xff]
        %v2388 = vld [vmem:[#allocation2 + $0x198] sm:$0xff]
        %v2389 = vld [vmem:[#allocation2 + $0x1a0] sm:$0xff]
        %v2390 = vld [vmem:[#allocation2 + $0x1a8] sm:$0xff]
        %v2391 = vld [vmem:[#allocation2 + $0x1b0] sm:$0xff]
        %v2392 = vld [vmem:[#allocation2 + $0x1b8] sm:$0xff]
        %v2393 = vld [vmem:[#allocation2 + $0x1c0] sm:$0xff]
        %v2394 = vld [vmem:[#allocation2 + $0x1c8] sm:$0xff]
        %v2395 = vld [vmem:[#allocation2 + $0x1d0] sm:$0xff]
        %v2396 = vld [vmem:[#allocation2 + $0x1d8] sm:$0xff]
        %v2397 = vld [vmem:[#allocation2 + $0x1e0] sm:$0xff]
        %v2398 = vld [vmem:[#allocation2 + $0x1e8] sm:$0xff]
        %v2399 = vld [vmem:[#allocation2 + $0x1f0] sm:$0xff]
        %v2400 = vld [vmem:[#allocation2 + $0x1f8] sm:$0xff]
        %v2401 = vld [vmem:[#allocation2 + $0x200] sm:$0xff]
        %v2402 = vld [vmem:[#allocation2 + $0x208] sm:$0xff]
        %v2403 = vld [vmem:[#allocation2 + $0x210] sm:$0xff]
        %v2404 = vld [vmem:[#allocation2 + $0x218] sm:$0xff]
        %v2405 = vld [vmem:[#allocation2 + $0x220] sm:$0xff]
        %v2406 = vld [vmem:[#allocation2 + $0x228] sm:$0xff]
        %v2407 = vld [vmem:[#allocation2 + $0x230] sm:$0xff]
        %v2408 = vld [vmem:[#allocation2 + $0x238] sm:$0xff]
        %v2409 = vld [vmem:[#allocation2 + $0x240] sm:$0xff]
        %v2410 = vld [vmem:[#allocation2 + $0x248] sm:$0xff]
        %v2411 = vld [vmem:[#allocation2 + $0x250] sm:$0xff]
        %v2412 = vld [vmem:[#allocation2 + $0x258] sm:$0xff]
        %v2413 = vld [vmem:[#allocation2 + $0x260] sm:$0xff]
        %v2414 = vld [vmem:[#allocation2 + $0x268] sm:$0xff]
        %v2415 = vld [vmem:[#allocation2 + $0x270] sm:$0xff]
        %v2416 = vld [vmem:[#allocation2 + $0x278] sm:$0xff]
        %v2417 = vld [vmem:[#allocation2 + $0x280] sm:$0xff]
        %v2418 = vld [vmem:[#allocation2 + $0x288] sm:$0xff]
        %v2419 = vld [vmem:[#allocation2 + $0x290] sm:$0xff]
        %v2420 = vld [vmem:[#allocation2 + $0x298] sm:$0xff]
        %v2421 = vld [vmem:[#allocation2 + $0x2a0] sm:$0xff]
        %v2422 = vld [vmem:[#allocation2 + $0x2a8] sm:$0xff]
        %v2423 = vld [vmem:[#allocation2 + $0x2b0] sm:$0xff]
        %v2424 = vld [vmem:[#allocation2 + $0x2b8] sm:$0xff]
        %v2425 = vld [vmem:[#allocation2 + $0x2c0] sm:$0xff]
        %v2426 = vld [vmem:[#allocation2 + $0x2c8] sm:$0xff]
        %v2427 = vld [vmem:[#allocation2 + $0x2d0] sm:$0xff]
        %v2428 = vld [vmem:[#allocation2 + $0x2d8] sm:$0xff]
        %v2429 = vld [vmem:[#allocation2 + $0x2e0] sm:$0xff]
        %v2430 = vld [vmem:[#allocation2 + $0x2e8] sm:$0xff]
        %v2431 = vld [vmem:[#allocation2 + $0x2f0] sm:$0xff]
        %v2432 = vld [vmem:[#allocation2 + $0x2f8] sm:$0xff]
        %v2433 = vld [vmem:[#allocation2 + $0x300] sm:$0xff]
        %v2434 = vld [vmem:[#allocation2 + $0x308] sm:$0xff]
        %v2435 = vld [vmem:[#allocation2 + $0x310] sm:$0xff]
        %v2436 = vld [vmem:[#allocation2 + $0x318] sm:$0xff]
        %v2437 = vld [vmem:[#allocation2 + $0x320] sm:$0xff]
        %v2438 = vld [vmem:[#allocation2 + $0x328] sm:$0xff]
        %v2439 = vld [vmem:[#allocation2 + $0x330] sm:$0xff]
        %v2440 = vld [vmem:[#allocation2 + $0x338] sm:$0xff]
        %v2441 = vld [vmem:[#allocation2 + $0x340] sm:$0xff]
        %v2442 = vld [vmem:[#allocation2 + $0x348] sm:$0xff]
        %v2443 = vld [vmem:[#allocation2 + $0x350] sm:$0xff]
        %v2444 = vld [vmem:[#allocation2 + $0x358] sm:$0xff]
        %v2445 = vld [vmem:[#allocation2 + $0x360] sm:$0xff]
        %v2446 = vld [vmem:[#allocation2 + $0x368] sm:$0xff]
        %v2447 = vld [vmem:[#allocation2 + $0x370] sm:$0xff]
        %v2448 = vld [vmem:[#allocation2 + $0x378] sm:$0xff]
        %v2449 = vld [vmem:[#allocation2 + $0x380] sm:$0xff]
        %v2450 = vld [vmem:[#allocation2 + $0x388] sm:$0xff]
        %v2451 = vld [vmem:[#allocation2 + $0x390] sm:$0xff]
        %v2452 = vld [vmem:[#allocation2 + $0x398] sm:$0xff]
        %v2453 = vld [vmem:[#allocation2 + $0x3a0] sm:$0xff]
        %v2454 = vld [vmem:[#allocation2 + $0x3a8] sm:$0xff]
        %v2455 = vld [vmem:[#allocation2 + $0x3b0] sm:$0xff]
        %v2456 = vld [vmem:[#allocation2 + $0x3b8] sm:$0xff]
        %v2457 = vld [vmem:[#allocation2 + $0x3c0] sm:$0xff]
        %v2458 = vld [vmem:[#allocation2 + $0x3c8] sm:$0xff]
        %v2459 = vld [vmem:[#allocation2 + $0x3d0] sm:$0xff]
        %v2460 = vld [vmem:[#allocation2 + $0x3d8] sm:$0xff]
        %v2461 = vld [vmem:[#allocation2 + $0x3e0] sm:$0xff]
        %v2462 = vld [vmem:[#allocation2 + $0x3e8] sm:$0xff]
        %v2463 = vld [vmem:[#allocation2 + $0x3f0] sm:$0xff]
        %v2464 = vld [vmem:[#allocation2 + $0x3f8] sm:$0xff]
        %v2465 = vld [vmem:[#allocation2 + $0x400] sm:$0xff]
        %v2466 = vld [vmem:[#allocation2 + $0x408] sm:$0xff]
        %v2467 = vld [vmem:[#allocation2 + $0x410] sm:$0xff]
        %v2468 = vld [vmem:[#allocation2 + $0x418] sm:$0xff]
        %v2469 = vld [vmem:[#allocation2 + $0x420] sm:$0xff]
        %v2470 = vld [vmem:[#allocation2 + $0x428] sm:$0xff]
        %v2471 = vld [vmem:[#allocation2 + $0x430] sm:$0xff]
        %v2472 = vld [vmem:[#allocation2 + $0x438] sm:$0xff]
        %v2473 = vld [vmem:[#allocation2 + $0x440] sm:$0xff]
        %v2474 = vld [vmem:[#allocation2 + $0x448] sm:$0xff]
        %v2475 = vld [vmem:[#allocation2 + $0x450] sm:$0xff]
        %v2476 = vld [vmem:[#allocation2 + $0x458] sm:$0xff]
        %v2477 = vld [vmem:[#allocation2 + $0x460] sm:$0xff]
        %v2478 = vld [vmem:[#allocation2 + $0x468] sm:$0xff]
        %v2479 = vld [vmem:[#allocation2 + $0x470] sm:$0xff]
        %v2480 = vld [vmem:[#allocation2 + $0x478] sm:$0xff]
        %v2481 = vld [vmem:[#allocation2 + $0x480] sm:$0xff]
        %v2482 = vld [vmem:[#allocation2 + $0x488] sm:$0xff]
        %v2483 = vld [vmem:[#allocation2 + $0x490] sm:$0xff]
        %v2484 = vld [vmem:[#allocation2 + $0x498] sm:$0xff]
        %v2485 = vld [vmem:[#allocation2 + $0x4a0] sm:$0xff]
        %v2486 = vld [vmem:[#allocation2 + $0x4a8] sm:$0xff]
        %v2487 = vld [vmem:[#allocation2 + $0x4b0] sm:$0xff]
        %v2488 = vld [vmem:[#allocation2 + $0x4b8] sm:$0xff]
        %v2489 = vld [vmem:[#allocation2 + $0x4c0] sm:$0xff]
        %v2490 = vld [vmem:[#allocation2 + $0x4c8] sm:$0xff]
        %v2491 = vld [vmem:[#allocation2 + $0x4d0] sm:$0xff]
        %v2492 = vld [vmem:[#allocation2 + $0x4d8] sm:$0xff]
        %v2493 = vld [vmem:[#allocation2 + $0x4e0] sm:$0xff]
        %v2494 = vld [vmem:[#allocation2 + $0x4e8] sm:$0xff]
        %v2495 = vld [vmem:[#allocation2 + $0x4f0] sm:$0xff]
        %v2496 = vld [vmem:[#allocation2 + $0x4f8] sm:$0xff]
        %v2497 = vld [vmem:[#allocation2 + $0x500] sm:$0xff]
        %v2498 = vld [vmem:[#allocation2 + $0x508] sm:$0xff]
        %v2499 = vld [vmem:[#allocation2 + $0x510] sm:$0xff]
        %v2500 = vld [vmem:[#allocation2 + $0x518] sm:$0xff]
        %v2501 = vld [vmem:[#allocation2 + $0x520] sm:$0xff]
        %v2502 = vld [vmem:[#allocation2 + $0x528] sm:$0xff]
        %v2503 = vld [vmem:[#allocation2 + $0x530] sm:$0xff]
        %v2504 = vld [vmem:[#allocation2 + $0x538] sm:$0xff]
        %v2505 = vld [vmem:[#allocation2 + $0x540] sm:$0xff]
        %v2506 = vld [vmem:[#allocation2 + $0x548] sm:$0xff]
        %v2507 = vld [vmem:[#allocation2 + $0x550] sm:$0xff]
        %v2508 = vld [vmem:[#allocation2 + $0x558] sm:$0xff]
        %v2509 = vld [vmem:[#allocation2 + $0x560] sm:$0xff]
        %v2510 = vld [vmem:[#allocation2 + $0x568] sm:$0xff]
        %v2511 = vld [vmem:[#allocation2 + $0x570] sm:$0xff]
        %v2512 = vld [vmem:[#allocation2 + $0x578] sm:$0xff]
        %v2513 = vld [vmem:[#allocation2 + $0x580] sm:$0xff]
        %v2514 = vld [vmem:[#allocation2 + $0x588] sm:$0xff]
        %v2515 = vld [vmem:[#allocation2 + $0x590] sm:$0xff]
        %v2516 = vld [vmem:[#allocation2 + $0x598] sm:$0xff]
        %v2517 = vld [vmem:[#allocation2 + $0x5a0] sm:$0xff]
        %v2518 = vld [vmem:[#allocation2 + $0x5a8] sm:$0xff]
        %v2519 = vld [vmem:[#allocation2 + $0x5b0] sm:$0xff]
        %v2520 = vld [vmem:[#allocation2 + $0x5b8] sm:$0xff]
        %v2521 = vld [vmem:[#allocation2 + $0x5c0] sm:$0xff]
        %v2522 = vld [vmem:[#allocation2 + $0x5c8] sm:$0xff]
        %v2523 = vld [vmem:[#allocation2 + $0x5d0] sm:$0xff]
        %v2524 = vld [vmem:[#allocation2 + $0x5d8] sm:$0xff]
        %v2525 = vld [vmem:[#allocation2 + $0x5e0] sm:$0xff]
        %v2526 = vld [vmem:[#allocation2 + $0x5e8] sm:$0xff]
        %v2527 = vld [vmem:[#allocation2 + $0x5f0] sm:$0xff]
        %v2528 = vld [vmem:[#allocation2 + $0x5f8] sm:$0xff]
        %v2529 = vld [vmem:[#allocation2 + $0x600] sm:$0xff]
        %v2530 = vld [vmem:[#allocation2 + $0x608] sm:$0xff]
        %v2531 = vld [vmem:[#allocation2 + $0x610] sm:$0xff]
        %v2532 = vld [vmem:[#allocation2 + $0x618] sm:$0xff]
        %v2533 = vld [vmem:[#allocation2 + $0x620] sm:$0xff]
        %v2534 = vld [vmem:[#allocation2 + $0x628] sm:$0xff]
        %v2535 = vld [vmem:[#allocation2 + $0x630] sm:$0xff]
        %v2536 = vld [vmem:[#allocation2 + $0x638] sm:$0xff]
        %v2537 = vld [vmem:[#allocation2 + $0x640] sm:$0xff]
        %v2538 = vld [vmem:[#allocation2 + $0x648] sm:$0xff]
        %v2539 = vld [vmem:[#allocation2 + $0x650] sm:$0xff]
        %v2540 = vld [vmem:[#allocation2 + $0x658] sm:$0xff]
        %v2541 = vld [vmem:[#allocation2 + $0x660] sm:$0xff]
        %v2542 = vld [vmem:[#allocation2 + $0x668] sm:$0xff]
        %v2543 = vld [vmem:[#allocation2 + $0x670] sm:$0xff]
        %v2544 = vld [vmem:[#allocation2 + $0x678] sm:$0xff]
        %v2545 = vld [vmem:[#allocation2 + $0x680] sm:$0xff]
        %v2546 = vld [vmem:[#allocation2 + $0x688] sm:$0xff]
        %v2547 = vld [vmem:[#allocation2 + $0x690] sm:$0xff]
        %v2548 = vld [vmem:[#allocation2 + $0x698] sm:$0xff]
        %v2549 = vld [vmem:[#allocation2 + $0x6a0] sm:$0xff]
        %v2550 = vld [vmem:[#allocation2 + $0x6a8] sm:$0xff]
        %v2551 = vld [vmem:[#allocation2 + $0x6b0] sm:$0xff]
        %v2552 = vld [vmem:[#allocation2 + $0x6b8] sm:$0xff]
        %v2553 = vld [vmem:[#allocation2 + $0x6c0] sm:$0xff]
        %v2554 = vld [vmem:[#allocation2 + $0x6c8] sm:$0xff]
        %v2555 = vld [vmem:[#allocation2 + $0x6d0] sm:$0xff]
        %v2556 = vld [vmem:[#allocation2 + $0x6d8] sm:$0xff]
        %v2557 = vld [vmem:[#allocation2 + $0x6e0] sm:$0xff]
        %v2558 = vld [vmem:[#allocation2 + $0x6e8] sm:$0xff]
        %v2559 = vld [vmem:[#allocation2 + $0x6f0] sm:$0xff]
        %v2560 = vld [vmem:[#allocation2 + $0x6f8] sm:$0xff]
        %v2561 = vld [vmem:[#allocation2 + $0x700] sm:$0xff]
        %v2562 = vld [vmem:[#allocation2 + $0x708] sm:$0xff]
        %v2563 = vld [vmem:[#allocation2 + $0x710] sm:$0xff]
        %v2564 = vld [vmem:[#allocation2 + $0x718] sm:$0xff]
        %v2565 = vld [vmem:[#allocation2 + $0x720] sm:$0xff]
        %v2566 = vld [vmem:[#allocation2 + $0x728] sm:$0xff]
        %v2567 = vld [vmem:[#allocation2 + $0x730] sm:$0xff]
        %v2568 = vld [vmem:[#allocation2 + $0x738] sm:$0xff]
        %v2569 = vld [vmem:[#allocation2 + $0x740] sm:$0xff]
        %v2570 = vld [vmem:[#allocation2 + $0x748] sm:$0xff]
        %v2571 = vld [vmem:[#allocation2 + $0x750] sm:$0xff]
        %v2572 = vld [vmem:[#allocation2 + $0x758] sm:$0xff]
        %v2573 = vld [vmem:[#allocation2 + $0x760] sm:$0xff]
        %v2574 = vld [vmem:[#allocation2 + $0x768] sm:$0xff]
        %v2575 = vld [vmem:[#allocation2 + $0x770] sm:$0xff]
        %v2576 = vld [vmem:[#allocation2 + $0x778] sm:$0xff]
        %v2577 = vld [vmem:[#allocation2 + $0x780] sm:$0xff]
        %v2578 = vld [vmem:[#allocation2 + $0x788] sm:$0xff]
        %v2579 = vld [vmem:[#allocation2 + $0x790] sm:$0xff]
        %v2580 = vld [vmem:[#allocation2 + $0x798] sm:$0xff]
        %v2581 = vld [vmem:[#allocation2 + $0x7a0] sm:$0xff]
        %v2582 = vld [vmem:[#allocation2 + $0x7a8] sm:$0xff]
        %v2583 = vld [vmem:[#allocation2 + $0x7b0] sm:$0xff]
        %v2584 = vld [vmem:[#allocation2 + $0x7b8] sm:$0xff]
        %v2585 = vld [vmem:[#allocation2 + $0x7c0] sm:$0xff]
        %v2586 = vld [vmem:[#allocation2 + $0x7c8] sm:$0xff]
        %v2587 = vld [vmem:[#allocation2 + $0x7d0] sm:$0xff]
        %v2588 = vld [vmem:[#allocation2 + $0x7d8] sm:$0xff]
        %v2589 = vld [vmem:[#allocation2 + $0x7e0] sm:$0xff]
        %v2590 = vld [vmem:[#allocation2 + $0x7e8] sm:$0xff]
        %v2591 = vld [vmem:[#allocation2 + $0x7f0] sm:$0xff]
        %v2592 = vld [vmem:[#allocation2 + $0x7f8] sm:$0xff]
        %v2593 = vld [vmem:[#allocation2 + $0x800] sm:$0xff]
        %v2594 = vld [vmem:[#allocation2 + $0x808] sm:$0xff]
        %v2595 = vld [vmem:[#allocation2 + $0x810] sm:$0xff]
        %v2596 = vld [vmem:[#allocation2 + $0x818] sm:$0xff]
        %v2597 = vld [vmem:[#allocation2 + $0x820] sm:$0xff]
        %v2598 = vld [vmem:[#allocation2 + $0x828] sm:$0xff]
        %v2599 = vld [vmem:[#allocation2 + $0x830] sm:$0xff]
        %v2600 = vld [vmem:[#allocation2 + $0x838] sm:$0xff]
        %v2601 = vld [vmem:[#allocation2 + $0x840] sm:$0xff]
        %v2602 = vld [vmem:[#allocation2 + $0x848] sm:$0xff]
        %v2603 = vld [vmem:[#allocation2 + $0x850] sm:$0xff]
        %v2604 = vld [vmem:[#allocation2 + $0x858] sm:$0xff]
        %v2605 = vld [vmem:[#allocation2 + $0x860] sm:$0xff]
        %v2606 = vld [vmem:[#allocation2 + $0x868] sm:$0xff]
        %v2607 = vld [vmem:[#allocation2 + $0x870] sm:$0xff]
        %v2608 = vld [vmem:[#allocation2 + $0x878] sm:$0xff]
        %v2609 = vld [vmem:[#allocation2 + $0x880] sm:$0xff]
        %v2610 = vld [vmem:[#allocation2 + $0x888] sm:$0xff]
        %v2611 = vld [vmem:[#allocation2 + $0x890] sm:$0xff]
        %v2612 = vld [vmem:[#allocation2 + $0x898] sm:$0xff]
        %v2613 = vld [vmem:[#allocation2 + $0x8a0] sm:$0xff]
        %v2614 = vld [vmem:[#allocation2 + $0x8a8] sm:$0xff]
        %v2615 = vld [vmem:[#allocation2 + $0x8b0] sm:$0xff]
        %v2616 = vld [vmem:[#allocation2 + $0x8b8] sm:$0xff]
        %v2617 = vld [vmem:[#allocation2 + $0x8c0] sm:$0xff]
        %v2618 = vld [vmem:[#allocation2 + $0x8c8] sm:$0xff]
        %v2619 = vld [vmem:[#allocation2 + $0x8d0] sm:$0xff]
        %v2620 = vld [vmem:[#allocation2 + $0x8d8] sm:$0xff]
        %v2621 = vld [vmem:[#allocation2 + $0x8e0] sm:$0xff]
        %v2622 = vld [vmem:[#allocation2 + $0x8e8] sm:$0xff]
        %v2623 = vld [vmem:[#allocation2 + $0x8f0] sm:$0xff]
        %v2624 = vld [vmem:[#allocation2 + $0x8f8] sm:$0xff]
        %v2625 = vld [vmem:[#allocation2 + $0x900] sm:$0xff]
        %v2626 = vld [vmem:[#allocation2 + $0x908] sm:$0xff]
        %v2627 = vld [vmem:[#allocation2 + $0x910] sm:$0xff]
        %v2628 = vld [vmem:[#allocation2 + $0x918] sm:$0xff]
        %v2629 = vld [vmem:[#allocation2 + $0x920] sm:$0xff]
        %v2630 = vld [vmem:[#allocation2 + $0x928] sm:$0xff]
        %v2631 = vld [vmem:[#allocation2 + $0x930] sm:$0xff]
        %v2632 = vld [vmem:[#allocation2 + $0x938] sm:$0xff]
        %v2633 = vld [vmem:[#allocation2 + $0x940] sm:$0xff]
        %v2634 = vld [vmem:[#allocation2 + $0x948] sm:$0xff]
        %v2635 = vld [vmem:[#allocation2 + $0x950] sm:$0xff]
        %v2636 = vld [vmem:[#allocation2 + $0x958] sm:$0xff]
        %v2637 = vld [vmem:[#allocation2 + $0x960] sm:$0xff]
        %v2638 = vld [vmem:[#allocation2 + $0x968] sm:$0xff]
        %v2639 = vld [vmem:[#allocation2 + $0x970] sm:$0xff]
        %v2640 = vld [vmem:[#allocation2 + $0x978] sm:$0xff]
        %v2641 = vld [vmem:[#allocation2 + $0x980] sm:$0xff]
        %v2642 = vld [vmem:[#allocation2 + $0x988] sm:$0xff]
        %v2643 = vld [vmem:[#allocation2 + $0x990] sm:$0xff]
        %v2644 = vld [vmem:[#allocation2 + $0x998] sm:$0xff]
        %v2645 = vld [vmem:[#allocation2 + $0x9a0] sm:$0xff]
        %v2646 = vld [vmem:[#allocation2 + $0x9a8] sm:$0xff]
        %v2647 = vld [vmem:[#allocation2 + $0x9b0] sm:$0xff]
        %v2648 = vld [vmem:[#allocation2 + $0x9b8] sm:$0xff]
        %v2649 = vld [vmem:[#allocation2 + $0x9c0] sm:$0xff]
        %v2650 = vld [vmem:[#allocation2 + $0x9c8] sm:$0xff]
        %v2651 = vld [vmem:[#allocation2 + $0x9d0] sm:$0xff]
        %v2652 = vld [vmem:[#allocation2 + $0x9d8] sm:$0xff]
        %v2653 = vld [vmem:[#allocation2 + $0x9e0] sm:$0xff]
        %v2654 = vld [vmem:[#allocation2 + $0x9e8] sm:$0xff]
        %v2655 = vld [vmem:[#allocation2 + $0x9f0] sm:$0xff]
        %v2656 = vld [vmem:[#allocation2 + $0x9f8] sm:$0xff]
        %v2657 = vld [vmem:[#allocation2 + $0xa00] sm:$0xff]
        %v2658 = vld [vmem:[#allocation2 + $0xa08] sm:$0xff]
        %v2659 = vld [vmem:[#allocation2 + $0xa10] sm:$0xff]
        %v2660 = vld [vmem:[#allocation2 + $0xa18] sm:$0xff]
        %v2661 = vld [vmem:[#allocation2 + $0xa20] sm:$0xff]
        %v2662 = vld [vmem:[#allocation2 + $0xa28] sm:$0xff]
        %v2663 = vld [vmem:[#allocation2 + $0xa30] sm:$0xff]
        %v2664 = vld [vmem:[#allocation2 + $0xa38] sm:$0xff]
        %v2665 = vld [vmem:[#allocation2 + $0xa40] sm:$0xff]
        %v2666 = vld [vmem:[#allocation2 + $0xa48] sm:$0xff]
        %v2667 = vld [vmem:[#allocation2 + $0xa50] sm:$0xff]
        %v2668 = vld [vmem:[#allocation2 + $0xa58] sm:$0xff]
        %v2669 = vld [vmem:[#allocation2 + $0xa60] sm:$0xff]
        %v2670 = vld [vmem:[#allocation2 + $0xa68] sm:$0xff]
        %v2671 = vld [vmem:[#allocation2 + $0xa70] sm:$0xff]
        %v2672 = vld [vmem:[#allocation2 + $0xa78] sm:$0xff]
        %v2673 = vld [vmem:[#allocation2 + $0xa80] sm:$0xff]
        %v2674 = vld [vmem:[#allocation2 + $0xa88] sm:$0xff]
        %v2675 = vld [vmem:[#allocation2 + $0xa90] sm:$0xff]
        %v2676 = vld [vmem:[#allocation2 + $0xa98] sm:$0xff]
        %v2677 = vld [vmem:[#allocation2 + $0xaa0] sm:$0xff]
        %v2678 = vld [vmem:[#allocation2 + $0xaa8] sm:$0xff]
        %v2679 = vld [vmem:[#allocation2 + $0xab0] sm:$0xff]
        %v2680 = vld [vmem:[#allocation2 + $0xab8] sm:$0xff]
        %v2681 = vld [vmem:[#allocation2 + $0xac0] sm:$0xff]
        %v2682 = vld [vmem:[#allocation2 + $0xac8] sm:$0xff]
        %v2683 = vld [vmem:[#allocation2 + $0xad0] sm:$0xff]
        %v2684 = vld [vmem:[#allocation2 + $0xad8] sm:$0xff]
        %v2685 = vld [vmem:[#allocation2 + $0xae0] sm:$0xff]
        %v2686 = vld [vmem:[#allocation2 + $0xae8] sm:$0xff]
        %v2687 = vld [vmem:[#allocation2 + $0xaf0] sm:$0xff]
        %v2688 = vld [vmem:[#allocation2 + $0xaf8] sm:$0xff]
        %v2689 = vld [vmem:[#allocation2 + $0xb00] sm:$0xff]
        %v2690 = vld [vmem:[#allocation2 + $0xb08] sm:$0xff]
        %v2691 = vld [vmem:[#allocation2 + $0xb10] sm:$0xff]
        %v2692 = vld [vmem:[#allocation2 + $0xb18] sm:$0xff]
        %v2693 = vld [vmem:[#allocation2 + $0xb20] sm:$0xff]
        %v2694 = vld [vmem:[#allocation2 + $0xb28] sm:$0xff]
        %v2695 = vld [vmem:[#allocation2 + $0xb30] sm:$0xff]
        %v2696 = vld [vmem:[#allocation2 + $0xb38] sm:$0xff]
        %v2697 = vld [vmem:[#allocation2 + $0xb40] sm:$0xff]
        %v2698 = vld [vmem:[#allocation2 + $0xb48] sm:$0xff]
        %v2699 = vld [vmem:[#allocation2 + $0xb50] sm:$0xff]
        %v2700 = vld [vmem:[#allocation2 + $0xb58] sm:$0xff]
        %v2701 = vld [vmem:[#allocation2 + $0xb60] sm:$0xff]
        %v2702 = vld [vmem:[#allocation2 + $0xb68] sm:$0xff]
        %v2703 = vld [vmem:[#allocation2 + $0xb70] sm:$0xff]
        %v2704 = vld [vmem:[#allocation2 + $0xb78] sm:$0xff]
        %v2705 = vld [vmem:[#allocation2 + $0xb80] sm:$0xff]
        %v2706 = vld [vmem:[#allocation2 + $0xb88] sm:$0xff]
        %v2707 = vld [vmem:[#allocation2 + $0xb90] sm:$0xff]
        %v2708 = vld [vmem:[#allocation2 + $0xb98] sm:$0xff]
        %v2709 = vld [vmem:[#allocation2 + $0xba0] sm:$0xff]
        %v2710 = vld [vmem:[#allocation2 + $0xba8] sm:$0xff]
        %v2711 = vld [vmem:[#allocation2 + $0xbb0] sm:$0xff]
        %v2712 = vld [vmem:[#allocation2 + $0xbb8] sm:$0xff]
        %v2713 = vld [vmem:[#allocation2 + $0xbc0] sm:$0xff]
        %v2714 = vld [vmem:[#allocation2 + $0xbc8] sm:$0xff]
        %v2715 = vld [vmem:[#allocation2 + $0xbd0] sm:$0xff]
        %v2716 = vld [vmem:[#allocation2 + $0xbd8] sm:$0xff]
        %v2717 = vld [vmem:[#allocation2 + $0xbe0] sm:$0xff]
        %v2718 = vld [vmem:[#allocation2 + $0xbe8] sm:$0xff]
        %v2719 = vld [vmem:[#allocation2 + $0xbf0] sm:$0xff]
        %v2720 = vld [vmem:[#allocation2 + $0xbf8] sm:$0xff]
        %v2721 = vld [vmem:[#allocation8] sm:$0xff]
        %v2722 = vld [vmem:[#allocation8 + $0x8] sm:$0xff]
        %v2723 = vld [vmem:[#allocation8 + $0x10] sm:$0xff]
        %v2724 = vld [vmem:[#allocation8 + $0x18] sm:$0xff]
        %v2725 = vld [vmem:[#allocation8 + $0x20] sm:$0xff]
        %v2726 = vld [vmem:[#allocation8 + $0x28] sm:$0xff]
        %v2727 = vld [vmem:[#allocation8 + $0x30] sm:$0xff]
        %v2728 = vld [vmem:[#allocation8 + $0x38] sm:$0xff]
        %v2729 = vld [vmem:[#allocation8 + $0x40] sm:$0xff]
        %v2730 = vld [vmem:[#allocation8 + $0x48] sm:$0xff]
        %v2731 = vld [vmem:[#allocation8 + $0x50] sm:$0xff]
        %v2732 = vld [vmem:[#allocation8 + $0x58] sm:$0xff]
        %v2733 = vld [vmem:[#allocation8 + $0x60] sm:$0xff]
        %v2734 = vld [vmem:[#allocation8 + $0x68] sm:$0xff]
        %v2735 = vld [vmem:[#allocation8 + $0x70] sm:$0xff]
        %v2736 = vld [vmem:[#allocation8 + $0x78] sm:$0xff]
        %v2737 = vld [vmem:[#allocation8 + $0x80] sm:$0xff]
        %v2738 = vld [vmem:[#allocation8 + $0x88] sm:$0xff]
        %v2739 = vld [vmem:[#allocation8 + $0x90] sm:$0xff]
        %v2740 = vld [vmem:[#allocation8 + $0x98] sm:$0xff]
        %v2741 = vld [vmem:[#allocation8 + $0xa0] sm:$0xff]
        %v2742 = vld [vmem:[#allocation8 + $0xa8] sm:$0xff]
        %v2743 = vld [vmem:[#allocation8 + $0xb0] sm:$0xff]
        %v2744 = vld [vmem:[#allocation8 + $0xb8] sm:$0xff]
        %v2745 = vld [vmem:[#allocation8 + $0xc0] sm:$0xff]
        %v2746 = vld [vmem:[#allocation8 + $0xc8] sm:$0xff]
        %v2747 = vld [vmem:[#allocation8 + $0xd0] sm:$0xff]
        %v2748 = vld [vmem:[#allocation8 + $0xd8] sm:$0xff]
        %v2749 = vld [vmem:[#allocation8 + $0xe0] sm:$0xff]
        %v2750 = vld [vmem:[#allocation8 + $0xe8] sm:$0xff]
        %v2751 = vld [vmem:[#allocation8 + $0xf0] sm:$0xff]
        %v2752 = vld [vmem:[#allocation8 + $0xf8] sm:$0xff]
        %v2753 = vld [vmem:[#allocation8 + $0x100] sm:$0xff]
        %v2754 = vld [vmem:[#allocation8 + $0x108] sm:$0xff]
        %v2755 = vld [vmem:[#allocation8 + $0x110] sm:$0xff]
        %v2756 = vld [vmem:[#allocation8 + $0x118] sm:$0xff]
        %v2757 = vld [vmem:[#allocation8 + $0x120] sm:$0xff]
        %v2758 = vld [vmem:[#allocation8 + $0x128] sm:$0xff]
        %v2759 = vld [vmem:[#allocation8 + $0x130] sm:$0xff]
        %v2760 = vld [vmem:[#allocation8 + $0x138] sm:$0xff]
        %v2761 = vld [vmem:[#allocation8 + $0x140] sm:$0xff]
        %v2762 = vld [vmem:[#allocation8 + $0x148] sm:$0xff]
        %v2763 = vld [vmem:[#allocation8 + $0x150] sm:$0xff]
        %v2764 = vld [vmem:[#allocation8 + $0x158] sm:$0xff]
        %v2765 = vld [vmem:[#allocation8 + $0x160] sm:$0xff]
        %v2766 = vld [vmem:[#allocation8 + $0x168] sm:$0xff]
        %v2767 = vld [vmem:[#allocation8 + $0x170] sm:$0xff]
        %v2768 = vld [vmem:[#allocation8 + $0x178] sm:$0xff]
        %v2769 = vld [vmem:[#allocation8 + $0x180] sm:$0xff]
        %v2770 = vld [vmem:[#allocation8 + $0x188] sm:$0xff]
        %v2771 = vld [vmem:[#allocation8 + $0x190] sm:$0xff]
        %v2772 = vld [vmem:[#allocation8 + $0x198] sm:$0xff]
        %v2773 = vld [vmem:[#allocation8 + $0x1a0] sm:$0xff]
        %v2774 = vld [vmem:[#allocation8 + $0x1a8] sm:$0xff]
        %v2775 = vld [vmem:[#allocation8 + $0x1b0] sm:$0xff]
        %v2776 = vld [vmem:[#allocation8 + $0x1b8] sm:$0xff]
        %v2777 = vld [vmem:[#allocation8 + $0x1c0] sm:$0xff]
        %v2778 = vld [vmem:[#allocation8 + $0x1c8] sm:$0xff]
        %v2779 = vld [vmem:[#allocation8 + $0x1d0] sm:$0xff]
        %v2780 = vld [vmem:[#allocation8 + $0x1d8] sm:$0xff]
        %v2781 = vld [vmem:[#allocation8 + $0x1e0] sm:$0xff]
        %v2782 = vld [vmem:[#allocation8 + $0x1e8] sm:$0xff]
        %v2783 = vld [vmem:[#allocation8 + $0x1f0] sm:$0xff]
        %v2784 = vld [vmem:[#allocation8 + $0x1f8] sm:$0xff]
        %v2785 = vld [vmem:[#allocation8 + $0x200] sm:$0xff]
        %v2786 = vld [vmem:[#allocation8 + $0x208] sm:$0xff]
        %v2787 = vld [vmem:[#allocation8 + $0x210] sm:$0xff]
        %v2788 = vld [vmem:[#allocation8 + $0x218] sm:$0xff]
        %v2789 = vld [vmem:[#allocation8 + $0x220] sm:$0xff]
        %v2790 = vld [vmem:[#allocation8 + $0x228] sm:$0xff]
        %v2791 = vld [vmem:[#allocation8 + $0x230] sm:$0xff]
        %v2792 = vld [vmem:[#allocation8 + $0x238] sm:$0xff]
        %v2793 = vld [vmem:[#allocation8 + $0x240] sm:$0xff]
        %v2794 = vld [vmem:[#allocation8 + $0x248] sm:$0xff]
        %v2795 = vld [vmem:[#allocation8 + $0x250] sm:$0xff]
        %v2796 = vld [vmem:[#allocation8 + $0x258] sm:$0xff]
        %v2797 = vld [vmem:[#allocation8 + $0x260] sm:$0xff]
        %v2798 = vld [vmem:[#allocation8 + $0x268] sm:$0xff]
        %v2799 = vld [vmem:[#allocation8 + $0x270] sm:$0xff]
        %v2800 = vld [vmem:[#allocation8 + $0x278] sm:$0xff]
        %v2801 = vld [vmem:[#allocation8 + $0x280] sm:$0xff]
        %v2802 = vld [vmem:[#allocation8 + $0x288] sm:$0xff]
        %v2803 = vld [vmem:[#allocation8 + $0x290] sm:$0xff]
        %v2804 = vld [vmem:[#allocation8 + $0x298] sm:$0xff]
        %v2805 = vld [vmem:[#allocation8 + $0x2a0] sm:$0xff]
        %v2806 = vld [vmem:[#allocation8 + $0x2a8] sm:$0xff]
        %v2807 = vld [vmem:[#allocation8 + $0x2b0] sm:$0xff]
        %v2808 = vld [vmem:[#allocation8 + $0x2b8] sm:$0xff]
        %v2809 = vld [vmem:[#allocation8 + $0x2c0] sm:$0xff]
        %v2810 = vld [vmem:[#allocation8 + $0x2c8] sm:$0xff]
        %v2811 = vld [vmem:[#allocation8 + $0x2d0] sm:$0xff]
        %v2812 = vld [vmem:[#allocation8 + $0x2d8] sm:$0xff]
        %v2813 = vld [vmem:[#allocation8 + $0x2e0] sm:$0xff]
        %v2814 = vld [vmem:[#allocation8 + $0x2e8] sm:$0xff]
        %v2815 = vld [vmem:[#allocation8 + $0x2f0] sm:$0xff]
        %v2816 = vld [vmem:[#allocation8 + $0x2f8] sm:$0xff]
        %v2817 = vld [vmem:[#allocation8 + $0x300] sm:$0xff]
        %v2818 = vld [vmem:[#allocation8 + $0x308] sm:$0xff]
        %v2819 = vld [vmem:[#allocation8 + $0x310] sm:$0xff]
        %v2820 = vld [vmem:[#allocation8 + $0x318] sm:$0xff]
        %v2821 = vld [vmem:[#allocation8 + $0x320] sm:$0xff]
        %v2822 = vld [vmem:[#allocation8 + $0x328] sm:$0xff]
        %v2823 = vld [vmem:[#allocation8 + $0x330] sm:$0xff]
        %v2824 = vld [vmem:[#allocation8 + $0x338] sm:$0xff]
        %v2825 = vld [vmem:[#allocation8 + $0x340] sm:$0xff]
        %v2826 = vld [vmem:[#allocation8 + $0x348] sm:$0xff]
        %v2827 = vld [vmem:[#allocation8 + $0x350] sm:$0xff]
        %v2828 = vld [vmem:[#allocation8 + $0x358] sm:$0xff]
        %v2829 = vld [vmem:[#allocation8 + $0x360] sm:$0xff]
        %v2830 = vld [vmem:[#allocation8 + $0x368] sm:$0xff]
        %v2831 = vld [vmem:[#allocation8 + $0x370] sm:$0xff]
        %v2832 = vld [vmem:[#allocation8 + $0x378] sm:$0xff]
        %v2833 = vld [vmem:[#allocation8 + $0x380] sm:$0xff]
        %v2834 = vld [vmem:[#allocation8 + $0x388] sm:$0xff]
        %v2835 = vld [vmem:[#allocation8 + $0x390] sm:$0xff]
        %v2836 = vld [vmem:[#allocation8 + $0x398] sm:$0xff]
        %v2837 = vld [vmem:[#allocation8 + $0x3a0] sm:$0xff]
        %v2838 = vld [vmem:[#allocation8 + $0x3a8] sm:$0xff]
        %v2839 = vld [vmem:[#allocation8 + $0x3b0] sm:$0xff]
        %v2840 = vld [vmem:[#allocation8 + $0x3b8] sm:$0xff]
        %v2841 = vld [vmem:[#allocation8 + $0x3c0] sm:$0xff]
        %v2842 = vld [vmem:[#allocation8 + $0x3c8] sm:$0xff]
        %v2843 = vld [vmem:[#allocation8 + $0x3d0] sm:$0xff]
        %v2844 = vld [vmem:[#allocation8 + $0x3d8] sm:$0xff]
        %v2845 = vld [vmem:[#allocation8 + $0x3e0] sm:$0xff]
        %v2846 = vld [vmem:[#allocation8 + $0x3e8] sm:$0xff]
        %v2847 = vld [vmem:[#allocation8 + $0x3f0] sm:$0xff]
        %v2848 = vld [vmem:[#allocation8 + $0x3f8] sm:$0xff]
        %v2849 = vld [vmem:[#allocation8 + $0x400] sm:$0xff]
        %v2850 = vld [vmem:[#allocation8 + $0x408] sm:$0xff]
        %v2851 = vld [vmem:[#allocation8 + $0x410] sm:$0xff]
        %v2852 = vld [vmem:[#allocation8 + $0x418] sm:$0xff]
        %v2853 = vld [vmem:[#allocation8 + $0x420] sm:$0xff]
        %v2854 = vld [vmem:[#allocation8 + $0x428] sm:$0xff]
        %v2855 = vld [vmem:[#allocation8 + $0x430] sm:$0xff]
        %v2856 = vld [vmem:[#allocation8 + $0x438] sm:$0xff]
        %v2857 = vld [vmem:[#allocation8 + $0x440] sm:$0xff]
        %v2858 = vld [vmem:[#allocation8 + $0x448] sm:$0xff]
        %v2859 = vld [vmem:[#allocation8 + $0x450] sm:$0xff]
        %v2860 = vld [vmem:[#allocation8 + $0x458] sm:$0xff]
        %v2861 = vld [vmem:[#allocation8 + $0x460] sm:$0xff]
        %v2862 = vld [vmem:[#allocation8 + $0x468] sm:$0xff]
        %v2863 = vld [vmem:[#allocation8 + $0x470] sm:$0xff]
        %v2864 = vld [vmem:[#allocation8 + $0x478] sm:$0xff]
        %v2865 = vld [vmem:[#allocation8 + $0x480] sm:$0xff]
        %v2866 = vld [vmem:[#allocation8 + $0x488] sm:$0xff]
        %v2867 = vld [vmem:[#allocation8 + $0x490] sm:$0xff]
        %v2868 = vld [vmem:[#allocation8 + $0x498] sm:$0xff]
        %v2869 = vld [vmem:[#allocation8 + $0x4a0] sm:$0xff]
        %v2870 = vld [vmem:[#allocation8 + $0x4a8] sm:$0xff]
        %v2871 = vld [vmem:[#allocation8 + $0x4b0] sm:$0xff]
        %v2872 = vld [vmem:[#allocation8 + $0x4b8] sm:$0xff]
        %v2873 = vld [vmem:[#allocation8 + $0x4c0] sm:$0xff]
        %v2874 = vld [vmem:[#allocation8 + $0x4c8] sm:$0xff]
        %v2875 = vld [vmem:[#allocation8 + $0x4d0] sm:$0xff]
        %v2876 = vld [vmem:[#allocation8 + $0x4d8] sm:$0xff]
        %v2877 = vld [vmem:[#allocation8 + $0x4e0] sm:$0xff]
        %v2878 = vld [vmem:[#allocation8 + $0x4e8] sm:$0xff]
        %v2879 = vld [vmem:[#allocation8 + $0x4f0] sm:$0xff]
        %v2880 = vld [vmem:[#allocation8 + $0x4f8] sm:$0xff]
        %v2881 = vld [vmem:[#allocation8 + $0x500] sm:$0xff]
        %v2882 = vld [vmem:[#allocation8 + $0x508] sm:$0xff]
        %v2883 = vld [vmem:[#allocation8 + $0x510] sm:$0xff]
        %v2884 = vld [vmem:[#allocation8 + $0x518] sm:$0xff]
        %v2885 = vld [vmem:[#allocation8 + $0x520] sm:$0xff]
        %v2886 = vld [vmem:[#allocation8 + $0x528] sm:$0xff]
        %v2887 = vld [vmem:[#allocation8 + $0x530] sm:$0xff]
        %v2888 = vld [vmem:[#allocation8 + $0x538] sm:$0xff]
        %v2889 = vld [vmem:[#allocation8 + $0x540] sm:$0xff]
        %v2890 = vld [vmem:[#allocation8 + $0x548] sm:$0xff]
        %v2891 = vld [vmem:[#allocation8 + $0x550] sm:$0xff]
        %v2892 = vld [vmem:[#allocation8 + $0x558] sm:$0xff]
        %v2893 = vld [vmem:[#allocation8 + $0x560] sm:$0xff]
        %v2894 = vld [vmem:[#allocation8 + $0x568] sm:$0xff]
        %v2895 = vld [vmem:[#allocation8 + $0x570] sm:$0xff]
        %v2896 = vld [vmem:[#allocation8 + $0x578] sm:$0xff]
        %v2897 = vld [vmem:[#allocation8 + $0x580] sm:$0xff]
        %v2898 = vld [vmem:[#allocation8 + $0x588] sm:$0xff]
        %v2899 = vld [vmem:[#allocation8 + $0x590] sm:$0xff]
        %v2900 = vld [vmem:[#allocation8 + $0x598] sm:$0xff]
        %v2901 = vld [vmem:[#allocation8 + $0x5a0] sm:$0xff]
        %v2902 = vld [vmem:[#allocation8 + $0x5a8] sm:$0xff]
        %v2903 = vld [vmem:[#allocation8 + $0x5b0] sm:$0xff]
        %v2904 = vld [vmem:[#allocation8 + $0x5b8] sm:$0xff]
        %v2905 = vld [vmem:[#allocation8 + $0x5c0] sm:$0xff]
        %v2906 = vld [vmem:[#allocation8 + $0x5c8] sm:$0xff]
        %v2907 = vld [vmem:[#allocation8 + $0x5d0] sm:$0xff]
        %v2908 = vld [vmem:[#allocation8 + $0x5d8] sm:$0xff]
        %v2909 = vld [vmem:[#allocation8 + $0x5e0] sm:$0xff]
        %v2910 = vld [vmem:[#allocation8 + $0x5e8] sm:$0xff]
        %v2911 = vld [vmem:[#allocation8 + $0x5f0] sm:$0xff]
        %v2912 = vld [vmem:[#allocation8 + $0x5f8] sm:$0xff]
        %v2913 = vld [vmem:[#allocation8 + $0x600] sm:$0xff]
        %v2914 = vld [vmem:[#allocation8 + $0x608] sm:$0xff]
        %v2915 = vld [vmem:[#allocation8 + $0x610] sm:$0xff]
        %v2916 = vld [vmem:[#allocation8 + $0x618] sm:$0xff]
        %v2917 = vld [vmem:[#allocation8 + $0x620] sm:$0xff]
        %v2918 = vld [vmem:[#allocation8 + $0x628] sm:$0xff]
        %v2919 = vld [vmem:[#allocation8 + $0x630] sm:$0xff]
        %v2920 = vld [vmem:[#allocation8 + $0x638] sm:$0xff]
        %v2921 = vld [vmem:[#allocation8 + $0x640] sm:$0xff]
        %v2922 = vld [vmem:[#allocation8 + $0x648] sm:$0xff]
        %v2923 = vld [vmem:[#allocation8 + $0x650] sm:$0xff]
        %v2924 = vld [vmem:[#allocation8 + $0x658] sm:$0xff]
        %v2925 = vld [vmem:[#allocation8 + $0x660] sm:$0xff]
        %v2926 = vld [vmem:[#allocation8 + $0x668] sm:$0xff]
        %v2927 = vld [vmem:[#allocation8 + $0x670] sm:$0xff]
        %v2928 = vld [vmem:[#allocation8 + $0x678] sm:$0xff]
        %v2929 = vld [vmem:[#allocation8 + $0x680] sm:$0xff]
        %v2930 = vld [vmem:[#allocation8 + $0x688] sm:$0xff]
        %v2931 = vld [vmem:[#allocation8 + $0x690] sm:$0xff]
        %v2932 = vld [vmem:[#allocation8 + $0x698] sm:$0xff]
        %v2933 = vld [vmem:[#allocation8 + $0x6a0] sm:$0xff]
        %v2934 = vld [vmem:[#allocation8 + $0x6a8] sm:$0xff]
        %v2935 = vld [vmem:[#allocation8 + $0x6b0] sm:$0xff]
        %v2936 = vld [vmem:[#allocation8 + $0x6b8] sm:$0xff]
        %v2937 = vld [vmem:[#allocation8 + $0x6c0] sm:$0xff]
        %v2938 = vld [vmem:[#allocation8 + $0x6c8] sm:$0xff]
        %v2939 = vld [vmem:[#allocation8 + $0x6d0] sm:$0xff]
        %v2940 = vld [vmem:[#allocation8 + $0x6d8] sm:$0xff]
        %v2941 = vld [vmem:[#allocation8 + $0x6e0] sm:$0xff]
        %v2942 = vld [vmem:[#allocation8 + $0x6e8] sm:$0xff]
        %v2943 = vld [vmem:[#allocation8 + $0x6f0] sm:$0xff]
        %v2944 = vld [vmem:[#allocation8 + $0x6f8] sm:$0xff]
        %v2945 = vld [vmem:[#allocation8 + $0x700] sm:$0xff]
        %v2946 = vld [vmem:[#allocation8 + $0x708] sm:$0xff]
        %v2947 = vld [vmem:[#allocation8 + $0x710] sm:$0xff]
        %v2948 = vld [vmem:[#allocation8 + $0x718] sm:$0xff]
        %v2949 = vld [vmem:[#allocation8 + $0x720] sm:$0xff]
        %v2950 = vld [vmem:[#allocation8 + $0x728] sm:$0xff]
        %v2951 = vld [vmem:[#allocation8 + $0x730] sm:$0xff]
        %v2952 = vld [vmem:[#allocation8 + $0x738] sm:$0xff]
        %v2953 = vld [vmem:[#allocation8 + $0x740] sm:$0xff]
        %v2954 = vld [vmem:[#allocation8 + $0x748] sm:$0xff]
        %v2955 = vld [vmem:[#allocation8 + $0x750] sm:$0xff]
        %v2956 = vld [vmem:[#allocation8 + $0x758] sm:$0xff]
        %v2957 = vld [vmem:[#allocation8 + $0x760] sm:$0xff]
        %v2958 = vld [vmem:[#allocation8 + $0x768] sm:$0xff]
        %v2959 = vld [vmem:[#allocation8 + $0x770] sm:$0xff]
        %v2960 = vld [vmem:[#allocation8 + $0x778] sm:$0xff]
        %v2961 = vld [vmem:[#allocation8 + $0x780] sm:$0xff]
        %v2962 = vld [vmem:[#allocation8 + $0x788] sm:$0xff]
        %v2963 = vld [vmem:[#allocation8 + $0x790] sm:$0xff]
        %v2964 = vld [vmem:[#allocation8 + $0x798] sm:$0xff]
        %v2965 = vld [vmem:[#allocation8 + $0x7a0] sm:$0xff]
        %v2966 = vld [vmem:[#allocation8 + $0x7a8] sm:$0xff]
        %v2967 = vld [vmem:[#allocation8 + $0x7b0] sm:$0xff]
        %v2968 = vld [vmem:[#allocation8 + $0x7b8] sm:$0xff]
        %v2969 = vld [vmem:[#allocation8 + $0x7c0] sm:$0xff]
        %v2970 = vld [vmem:[#allocation8 + $0x7c8] sm:$0xff]
        %v2971 = vld [vmem:[#allocation8 + $0x7d0] sm:$0xff]
        %v2972 = vld [vmem:[#allocation8 + $0x7d8] sm:$0xff]
        %v2973 = vld [vmem:[#allocation8 + $0x7e0] sm:$0xff]
        %v2974 = vld [vmem:[#allocation8 + $0x7e8] sm:$0xff]
        %v2975 = vld [vmem:[#allocation8 + $0x7f0] sm:$0xff]
        %v2976 = vld [vmem:[#allocation8 + $0x7f8] sm:$0xff]
        %v2977 = vld [vmem:[#allocation8 + $0x800] sm:$0xff]
        %v2978 = vld [vmem:[#allocation8 + $0x808] sm:$0xff]
        %v2979 = vld [vmem:[#allocation8 + $0x810] sm:$0xff]
        %v2980 = vld [vmem:[#allocation8 + $0x818] sm:$0xff]
        %v2981 = vld [vmem:[#allocation8 + $0x820] sm:$0xff]
        %v2982 = vld [vmem:[#allocation8 + $0x828] sm:$0xff]
        %v2983 = vld [vmem:[#allocation8 + $0x830] sm:$0xff]
        %v2984 = vld [vmem:[#allocation8 + $0x838] sm:$0xff]
        %v2985 = vld [vmem:[#allocation8 + $0x840] sm:$0xff]
        %v2986 = vld [vmem:[#allocation8 + $0x848] sm:$0xff]
        %v2987 = vld [vmem:[#allocation8 + $0x850] sm:$0xff]
        %v2988 = vld [vmem:[#allocation8 + $0x858] sm:$0xff]
        %v2989 = vld [vmem:[#allocation8 + $0x860] sm:$0xff]
        %v2990 = vld [vmem:[#allocation8 + $0x868] sm:$0xff]
        %v2991 = vld [vmem:[#allocation8 + $0x870] sm:$0xff]
        %v2992 = vld [vmem:[#allocation8 + $0x878] sm:$0xff]
        %v2993 = vld [vmem:[#allocation8 + $0x880] sm:$0xff]
        %v2994 = vld [vmem:[#allocation8 + $0x888] sm:$0xff]
        %v2995 = vld [vmem:[#allocation8 + $0x890] sm:$0xff]
        %v2996 = vld [vmem:[#allocation8 + $0x898] sm:$0xff]
        %v2997 = vld [vmem:[#allocation8 + $0x8a0] sm:$0xff]
        %v2998 = vld [vmem:[#allocation8 + $0x8a8] sm:$0xff]
        %v2999 = vld [vmem:[#allocation8 + $0x8b0] sm:$0xff]
        %v3000 = vld [vmem:[#allocation8 + $0x8b8] sm:$0xff]
        %v3001 = vld [vmem:[#allocation8 + $0x8c0] sm:$0xff]
        %v3002 = vld [vmem:[#allocation8 + $0x8c8] sm:$0xff]
        %v3003 = vld [vmem:[#allocation8 + $0x8d0] sm:$0xff]
        %v3004 = vld [vmem:[#allocation8 + $0x8d8] sm:$0xff]
        %v3005 = vld [vmem:[#allocation8 + $0x8e0] sm:$0xff]
        %v3006 = vld [vmem:[#allocation8 + $0x8e8] sm:$0xff]
        %v3007 = vld [vmem:[#allocation8 + $0x8f0] sm:$0xff]
        %v3008 = vld [vmem:[#allocation8 + $0x8f8] sm:$0xff]
        %v3009 = vld [vmem:[#allocation8 + $0x900] sm:$0xff]
        %v3010 = vld [vmem:[#allocation8 + $0x908] sm:$0xff]
        %v3011 = vld [vmem:[#allocation8 + $0x910] sm:$0xff]
        %v3012 = vld [vmem:[#allocation8 + $0x918] sm:$0xff]
        %v3013 = vld [vmem:[#allocation8 + $0x920] sm:$0xff]
        %v3014 = vld [vmem:[#allocation8 + $0x928] sm:$0xff]
        %v3015 = vld [vmem:[#allocation8 + $0x930] sm:$0xff]
        %v3016 = vld [vmem:[#allocation8 + $0x938] sm:$0xff]
        %v3017 = vld [vmem:[#allocation8 + $0x940] sm:$0xff]
        %v3018 = vld [vmem:[#allocation8 + $0x948] sm:$0xff]
        %v3019 = vld [vmem:[#allocation8 + $0x950] sm:$0xff]
        %v3020 = vld [vmem:[#allocation8 + $0x958] sm:$0xff]
        %v3021 = vld [vmem:[#allocation8 + $0x960] sm:$0xff]
        %v3022 = vld [vmem:[#allocation8 + $0x968] sm:$0xff]
        %v3023 = vld [vmem:[#allocation8 + $0x970] sm:$0xff]
        %v3024 = vld [vmem:[#allocation8 + $0x978] sm:$0xff]
        %v3025 = vld [vmem:[#allocation8 + $0x980] sm:$0xff]
        %v3026 = vld [vmem:[#allocation8 + $0x988] sm:$0xff]
        %v3027 = vld [vmem:[#allocation8 + $0x990] sm:$0xff]
        %v3028 = vld [vmem:[#allocation8 + $0x998] sm:$0xff]
        %v3029 = vld [vmem:[#allocation8 + $0x9a0] sm:$0xff]
        %v3030 = vld [vmem:[#allocation8 + $0x9a8] sm:$0xff]
        %v3031 = vld [vmem:[#allocation8 + $0x9b0] sm:$0xff]
        %v3032 = vld [vmem:[#allocation8 + $0x9b8] sm:$0xff]
        %v3033 = vld [vmem:[#allocation8 + $0x9c0] sm:$0xff]
        %v3034 = vld [vmem:[#allocation8 + $0x9c8] sm:$0xff]
        %v3035 = vld [vmem:[#allocation8 + $0x9d0] sm:$0xff]
        %v3036 = vld [vmem:[#allocation8 + $0x9d8] sm:$0xff]
        %v3037 = vld [vmem:[#allocation8 + $0x9e0] sm:$0xff]
        %v3038 = vld [vmem:[#allocation8 + $0x9e8] sm:$0xff]
        %v3039 = vld [vmem:[#allocation8 + $0x9f0] sm:$0xff]
        %v3040 = vld [vmem:[#allocation8 + $0x9f8] sm:$0xff]
        %v3041 = vld [vmem:[#allocation8 + $0xa00] sm:$0xff]
        %v3042 = vld [vmem:[#allocation8 + $0xa08] sm:$0xff]
        %v3043 = vld [vmem:[#allocation8 + $0xa10] sm:$0xff]
        %v3044 = vld [vmem:[#allocation8 + $0xa18] sm:$0xff]
        %v3045 = vld [vmem:[#allocation8 + $0xa20] sm:$0xff]
        %v3046 = vld [vmem:[#allocation8 + $0xa28] sm:$0xff]
        %v3047 = vld [vmem:[#allocation8 + $0xa30] sm:$0xff]
        %v3048 = vld [vmem:[#allocation8 + $0xa38] sm:$0xff]
        %v3049 = vld [vmem:[#allocation8 + $0xa40] sm:$0xff]
        %v3050 = vld [vmem:[#allocation8 + $0xa48] sm:$0xff]
        %v3051 = vld [vmem:[#allocation8 + $0xa50] sm:$0xff]
        %v3052 = vld [vmem:[#allocation8 + $0xa58] sm:$0xff]
        %v3053 = vld [vmem:[#allocation8 + $0xa60] sm:$0xff]
        %v3054 = vld [vmem:[#allocation8 + $0xa68] sm:$0xff]
        %v3055 = vld [vmem:[#allocation8 + $0xa70] sm:$0xff]
        %v3056 = vld [vmem:[#allocation8 + $0xa78] sm:$0xff]
        %v3057 = vld [vmem:[#allocation8 + $0xa80] sm:$0xff]
        %v3058 = vld [vmem:[#allocation8 + $0xa88] sm:$0xff]
        %v3059 = vld [vmem:[#allocation8 + $0xa90] sm:$0xff]
        %v3060 = vld [vmem:[#allocation8 + $0xa98] sm:$0xff]
        %v3061 = vld [vmem:[#allocation8 + $0xaa0] sm:$0xff]
        %v3062 = vld [vmem:[#allocation8 + $0xaa8] sm:$0xff]
        %v3063 = vld [vmem:[#allocation8 + $0xab0] sm:$0xff]
        %v3064 = vld [vmem:[#allocation8 + $0xab8] sm:$0xff]
        %v3065 = vld [vmem:[#allocation8 + $0xac0] sm:$0xff]
        %v3066 = vld [vmem:[#allocation8 + $0xac8] sm:$0xff]
        %v3067 = vld [vmem:[#allocation8 + $0xad0] sm:$0xff]
        %v3068 = vld [vmem:[#allocation8 + $0xad8] sm:$0xff]
        %v3069 = vld [vmem:[#allocation8 + $0xae0] sm:$0xff]
        %v3070 = vld [vmem:[#allocation8 + $0xae8] sm:$0xff]
        %v3071 = vld [vmem:[#allocation8 + $0xaf0] sm:$0xff]
        %v3072 = vld [vmem:[#allocation8 + $0xaf8] sm:$0xff]
        %v3073 = vld [vmem:[#allocation8 + $0xb00] sm:$0xff]
        %v3074 = vld [vmem:[#allocation8 + $0xb08] sm:$0xff]
        %v3075 = vld [vmem:[#allocation8 + $0xb10] sm:$0xff]
        %v3076 = vld [vmem:[#allocation8 + $0xb18] sm:$0xff]
        %v3077 = vld [vmem:[#allocation8 + $0xb20] sm:$0xff]
        %v3078 = vld [vmem:[#allocation8 + $0xb28] sm:$0xff]
        %v3079 = vld [vmem:[#allocation8 + $0xb30] sm:$0xff]
        %v3080 = vld [vmem:[#allocation8 + $0xb38] sm:$0xff]
        %v3081 = vld [vmem:[#allocation8 + $0xb40] sm:$0xff]
        %v3082 = vld [vmem:[#allocation8 + $0xb48] sm:$0xff]
        %v3083 = vld [vmem:[#allocation8 + $0xb50] sm:$0xff]
        %v3084 = vld [vmem:[#allocation8 + $0xb58] sm:$0xff]
        %v3085 = vld [vmem:[#allocation8 + $0xb60] sm:$0xff]
        %v3086 = vld [vmem:[#allocation8 + $0xb68] sm:$0xff]
        %v3087 = vld [vmem:[#allocation8 + $0xb70] sm:$0xff]
        %v3088 = vld [vmem:[#allocation8 + $0xb78] sm:$0xff]
        %v3089 = vld [vmem:[#allocation8 + $0xb80] sm:$0xff]
        %v3090 = vld [vmem:[#allocation8 + $0xb88] sm:$0xff]
        %v3091 = vld [vmem:[#allocation8 + $0xb90] sm:$0xff]
        %v3092 = vld [vmem:[#allocation8 + $0xb98] sm:$0xff]
        %v3093 = vld [vmem:[#allocation8 + $0xba0] sm:$0xff]
        %v3094 = vld [vmem:[#allocation8 + $0xba8] sm:$0xff]
        %v3095 = vld [vmem:[#allocation8 + $0xbb0] sm:$0xff]
        %v3096 = vld [vmem:[#allocation8 + $0xbb8] sm:$0xff]
        %v3097 = vld [vmem:[#allocation8 + $0xbc0] sm:$0xff]
        %v3098 = vld [vmem:[#allocation8 + $0xbc8] sm:$0xff]
        %v3099 = vld [vmem:[#allocation8 + $0xbd0] sm:$0xff]
        %v3100 = vld [vmem:[#allocation8 + $0xbd8] sm:$0xff]
        %v3101 = vld [vmem:[#allocation8 + $0xbe0] sm:$0xff]
        %v3102 = vld [vmem:[#allocation8 + $0xbe8] sm:$0xff]
        %v3103 = vld [vmem:[#allocation8 + $0xbf0] sm:$0xff]
        %v3104 = vld [vmem:[#allocation8 + $0xbf8] sm:$0xff]
        %v3105 = vld [vmem:[%s588] sm:$0xff]
        %v3106 = vld [vmem:[%s588 + $0x8] sm:$0xff]
        %v3107 = vld [vmem:[%s588 + $0x10] sm:$0xff]
        %v3108 = vld [vmem:[%s588 + $0x18] sm:$0xff]
        %v3109 = vld [vmem:[%s588 + $0x20] sm:$0xff]
        %v3110 = vld [vmem:[%s588 + $0x28] sm:$0xff]
        %v3111 = vld [vmem:[%s588 + $0x30] sm:$0xff]
        %v3112 = vld [vmem:[%s588 + $0x38] sm:$0xff]
        %v3113 = vld [vmem:[%s588 + $0x40] sm:$0xff]
        %v3114 = vld [vmem:[%s588 + $0x48] sm:$0xff]
        %v3115 = vld [vmem:[%s588 + $0x50] sm:$0xff]
        %v3116 = vld [vmem:[%s588 + $0x58] sm:$0xff]
        %v3117 = vld [vmem:[%s588 + $0x60] sm:$0xff]
        %v3118 = vld [vmem:[%s588 + $0x68] sm:$0xff]
        %v3119 = vld [vmem:[%s588 + $0x70] sm:$0xff]
        %v3120 = vld [vmem:[%s588 + $0x78] sm:$0xff]
        %v3121 = vld [vmem:[%s588 + $0x80] sm:$0xff]
        %v3122 = vld [vmem:[%s588 + $0x88] sm:$0xff]
        %v3123 = vld [vmem:[%s588 + $0x90] sm:$0xff]
        %v3124 = vld [vmem:[%s588 + $0x98] sm:$0xff]
        %v3125 = vld [vmem:[%s588 + $0xa0] sm:$0xff]
        %v3126 = vld [vmem:[%s588 + $0xa8] sm:$0xff]
        %v3127 = vld [vmem:[%s588 + $0xb0] sm:$0xff]
        %v3128 = vld [vmem:[%s588 + $0xb8] sm:$0xff]
        %v3129 = vld [vmem:[%s588 + $0xc0] sm:$0xff]
        %v3130 = vld [vmem:[%s588 + $0xc8] sm:$0xff]
        %v3131 = vld [vmem:[%s588 + $0xd0] sm:$0xff]
        %v3132 = vld [vmem:[%s588 + $0xd8] sm:$0xff]
        %v3133 = vld [vmem:[%s588 + $0xe0] sm:$0xff]
        %v3134 = vld [vmem:[%s588 + $0xe8] sm:$0xff]
        %v3135 = vld [vmem:[%s588 + $0xf0] sm:$0xff]
        %v3136 = vld [vmem:[%s588 + $0xf8] sm:$0xff]
        %v3137 = vld [vmem:[%s588 + $0x100] sm:$0xff]
        %v3138 = vld [vmem:[%s588 + $0x108] sm:$0xff]
        %v3139 = vld [vmem:[%s588 + $0x110] sm:$0xff]
        %v3140 = vld [vmem:[%s588 + $0x118] sm:$0xff]
        %v3141 = vld [vmem:[%s588 + $0x120] sm:$0xff]
        %v3142 = vld [vmem:[%s588 + $0x128] sm:$0xff]
        %v3143 = vld [vmem:[%s588 + $0x130] sm:$0xff]
        %v3144 = vld [vmem:[%s588 + $0x138] sm:$0xff]
        %v3145 = vld [vmem:[%s588 + $0x140] sm:$0xff]
        %v3146 = vld [vmem:[%s588 + $0x148] sm:$0xff]
        %v3147 = vld [vmem:[%s588 + $0x150] sm:$0xff]
        %v3148 = vld [vmem:[%s588 + $0x158] sm:$0xff]
        %v3149 = vld [vmem:[%s588 + $0x160] sm:$0xff]
        %v3150 = vld [vmem:[%s588 + $0x168] sm:$0xff]
        %v3151 = vld [vmem:[%s588 + $0x170] sm:$0xff]
        %v3152 = vld [vmem:[%s588 + $0x178] sm:$0xff]
        %v3153 = vld [vmem:[%s588 + $0x180] sm:$0xff]
        %v3154 = vld [vmem:[%s588 + $0x188] sm:$0xff]
        %v3155 = vld [vmem:[%s588 + $0x190] sm:$0xff]
        %v3156 = vld [vmem:[%s588 + $0x198] sm:$0xff]
        %v3157 = vld [vmem:[%s588 + $0x1a0] sm:$0xff]
        %v3158 = vld [vmem:[%s588 + $0x1a8] sm:$0xff]
        %v3159 = vld [vmem:[%s588 + $0x1b0] sm:$0xff]
        %v3160 = vld [vmem:[%s588 + $0x1b8] sm:$0xff]
        %v3161 = vld [vmem:[%s588 + $0x1c0] sm:$0xff]
        %v3162 = vld [vmem:[%s588 + $0x1c8] sm:$0xff]
        %v3163 = vld [vmem:[%s588 + $0x1d0] sm:$0xff]
        %v3164 = vld [vmem:[%s588 + $0x1d8] sm:$0xff]
        %v3165 = vld [vmem:[%s588 + $0x1e0] sm:$0xff]
        %v3166 = vld [vmem:[%s588 + $0x1e8] sm:$0xff]
        %v3167 = vld [vmem:[%s588 + $0x1f0] sm:$0xff]
        %v3168 = vld [vmem:[%s588 + $0x1f8] sm:$0xff]
        %v3169 = vld [vmem:[%s588 + $0x200] sm:$0xff]
        %v3170 = vld [vmem:[%s588 + $0x208] sm:$0xff]
        %v3171 = vld [vmem:[%s588 + $0x210] sm:$0xff]
        %v3172 = vld [vmem:[%s588 + $0x218] sm:$0xff]
        %v3173 = vld [vmem:[%s588 + $0x220] sm:$0xff]
        %v3174 = vld [vmem:[%s588 + $0x228] sm:$0xff]
        %v3175 = vld [vmem:[%s588 + $0x230] sm:$0xff]
        %v3176 = vld [vmem:[%s588 + $0x238] sm:$0xff]
        %v3177 = vld [vmem:[%s588 + $0x240] sm:$0xff]
        %v3178 = vld [vmem:[%s588 + $0x248] sm:$0xff]
        %v3179 = vld [vmem:[%s588 + $0x250] sm:$0xff]
        %v3180 = vld [vmem:[%s588 + $0x258] sm:$0xff]
        %v3181 = vld [vmem:[%s588 + $0x260] sm:$0xff]
        %v3182 = vld [vmem:[%s588 + $0x268] sm:$0xff]
        %v3183 = vld [vmem:[%s588 + $0x270] sm:$0xff]
        %v3184 = vld [vmem:[%s588 + $0x278] sm:$0xff]
        %v3185 = vld [vmem:[%s588 + $0x280] sm:$0xff]
        %v3186 = vld [vmem:[%s588 + $0x288] sm:$0xff]
        %v3187 = vld [vmem:[%s588 + $0x290] sm:$0xff]
        %v3188 = vld [vmem:[%s588 + $0x298] sm:$0xff]
        %v3189 = vld [vmem:[%s588 + $0x2a0] sm:$0xff]
        %v3190 = vld [vmem:[%s588 + $0x2a8] sm:$0xff]
        %v3191 = vld [vmem:[%s588 + $0x2b0] sm:$0xff]
        %v3192 = vld [vmem:[%s588 + $0x2b8] sm:$0xff]
        %v3193 = vld [vmem:[%s588 + $0x2c0] sm:$0xff]
        %v3194 = vld [vmem:[%s588 + $0x2c8] sm:$0xff]
        %v3195 = vld [vmem:[%s588 + $0x2d0] sm:$0xff]
        %v3196 = vld [vmem:[%s588 + $0x2d8] sm:$0xff]
        %v3197 = vld [vmem:[%s588 + $0x2e0] sm:$0xff]
        %v3198 = vld [vmem:[%s588 + $0x2e8] sm:$0xff]
        %v3199 = vld [vmem:[%s588 + $0x2f0] sm:$0xff]
        %v3200 = vld [vmem:[%s588 + $0x2f8] sm:$0xff]
        %v3201 = vld [vmem:[%s588 + $0x300] sm:$0xff]
        %v3202 = vld [vmem:[%s588 + $0x308] sm:$0xff]
        %v3203 = vld [vmem:[%s588 + $0x310] sm:$0xff]
        %v3204 = vld [vmem:[%s588 + $0x318] sm:$0xff]
        %v3205 = vld [vmem:[%s588 + $0x320] sm:$0xff]
        %v3206 = vld [vmem:[%s588 + $0x328] sm:$0xff]
        %v3207 = vld [vmem:[%s588 + $0x330] sm:$0xff]
        %v3208 = vld [vmem:[%s588 + $0x338] sm:$0xff]
        %v3209 = vld [vmem:[%s588 + $0x340] sm:$0xff]
        %v3210 = vld [vmem:[%s588 + $0x348] sm:$0xff]
        %v3211 = vld [vmem:[%s588 + $0x350] sm:$0xff]
        %v3212 = vld [vmem:[%s588 + $0x358] sm:$0xff]
        %v3213 = vld [vmem:[%s588 + $0x360] sm:$0xff]
        %v3214 = vld [vmem:[%s588 + $0x368] sm:$0xff]
        %v3215 = vld [vmem:[%s588 + $0x370] sm:$0xff]
        %v3216 = vld [vmem:[%s588 + $0x378] sm:$0xff]
        %v3217 = vld [vmem:[%s588 + $0x380] sm:$0xff]
        %v3218 = vld [vmem:[%s588 + $0x388] sm:$0xff]
        %v3219 = vld [vmem:[%s588 + $0x390] sm:$0xff]
        %v3220 = vld [vmem:[%s588 + $0x398] sm:$0xff]
        %v3221 = vld [vmem:[%s588 + $0x3a0] sm:$0xff]
        %v3222 = vld [vmem:[%s588 + $0x3a8] sm:$0xff]
        %v3223 = vld [vmem:[%s588 + $0x3b0] sm:$0xff]
        %v3224 = vld [vmem:[%s588 + $0x3b8] sm:$0xff]
        %v3225 = vld [vmem:[%s588 + $0x3c0] sm:$0xff]
        %v3226 = vld [vmem:[%s588 + $0x3c8] sm:$0xff]
        %v3227 = vld [vmem:[%s588 + $0x3d0] sm:$0xff]
        %v3228 = vld [vmem:[%s588 + $0x3d8] sm:$0xff]
        %v3229 = vld [vmem:[%s588 + $0x3e0] sm:$0xff]
        %v3230 = vld [vmem:[%s588 + $0x3e8] sm:$0xff]
        %v3231 = vld [vmem:[%s588 + $0x3f0] sm:$0xff]
        %v3232 = vld [vmem:[%s588 + $0x3f8] sm:$0xff]
        %v3233 = vld [vmem:[%s588 + $0x400] sm:$0xff]
        %v3234 = vld [vmem:[%s588 + $0x408] sm:$0xff]
        %v3235 = vld [vmem:[%s588 + $0x410] sm:$0xff]
        %v3236 = vld [vmem:[%s588 + $0x418] sm:$0xff]
        %v3237 = vld [vmem:[%s588 + $0x420] sm:$0xff]
        %v3238 = vld [vmem:[%s588 + $0x428] sm:$0xff]
        %v3239 = vld [vmem:[%s588 + $0x430] sm:$0xff]
        %v3240 = vld [vmem:[%s588 + $0x438] sm:$0xff]
        %v3241 = vld [vmem:[%s588 + $0x440] sm:$0xff]
        %v3242 = vld [vmem:[%s588 + $0x448] sm:$0xff]
        %v3243 = vld [vmem:[%s588 + $0x450] sm:$0xff]
        %v3244 = vld [vmem:[%s588 + $0x458] sm:$0xff]
        %v3245 = vld [vmem:[%s588 + $0x460] sm:$0xff]
        %v3246 = vld [vmem:[%s588 + $0x468] sm:$0xff]
        %v3247 = vld [vmem:[%s588 + $0x470] sm:$0xff]
        %v3248 = vld [vmem:[%s588 + $0x478] sm:$0xff]
        %v3249 = vld [vmem:[%s588 + $0x480] sm:$0xff]
        %v3250 = vld [vmem:[%s588 + $0x488] sm:$0xff]
        %v3251 = vld [vmem:[%s588 + $0x490] sm:$0xff]
        %v3252 = vld [vmem:[%s588 + $0x498] sm:$0xff]
        %v3253 = vld [vmem:[%s588 + $0x4a0] sm:$0xff]
        %v3254 = vld [vmem:[%s588 + $0x4a8] sm:$0xff]
        %v3255 = vld [vmem:[%s588 + $0x4b0] sm:$0xff]
        %v3256 = vld [vmem:[%s588 + $0x4b8] sm:$0xff]
        %v3257 = vld [vmem:[%s588 + $0x4c0] sm:$0xff]
        %v3258 = vld [vmem:[%s588 + $0x4c8] sm:$0xff]
        %v3259 = vld [vmem:[%s588 + $0x4d0] sm:$0xff]
        %v3260 = vld [vmem:[%s588 + $0x4d8] sm:$0xff]
        %v3261 = vld [vmem:[%s588 + $0x4e0] sm:$0xff]
        %v3262 = vld [vmem:[%s588 + $0x4e8] sm:$0xff]
        %v3263 = vld [vmem:[%s588 + $0x4f0] sm:$0xff]
        %v3264 = vld [vmem:[%s588 + $0x4f8] sm:$0xff]
        %v3265 = vld [vmem:[%s588 + $0x500] sm:$0xff]
        %v3266 = vld [vmem:[%s588 + $0x508] sm:$0xff]
        %v3267 = vld [vmem:[%s588 + $0x510] sm:$0xff]
        %v3268 = vld [vmem:[%s588 + $0x518] sm:$0xff]
        %v3269 = vld [vmem:[%s588 + $0x520] sm:$0xff]
        %v3270 = vld [vmem:[%s588 + $0x528] sm:$0xff]
        %v3271 = vld [vmem:[%s588 + $0x530] sm:$0xff]
        %v3272 = vld [vmem:[%s588 + $0x538] sm:$0xff]
        %v3273 = vld [vmem:[%s588 + $0x540] sm:$0xff]
        %v3274 = vld [vmem:[%s588 + $0x548] sm:$0xff]
        %v3275 = vld [vmem:[%s588 + $0x550] sm:$0xff]
        %v3276 = vld [vmem:[%s588 + $0x558] sm:$0xff]
        %v3277 = vld [vmem:[%s588 + $0x560] sm:$0xff]
        %v3278 = vld [vmem:[%s588 + $0x568] sm:$0xff]
        %v3279 = vld [vmem:[%s588 + $0x570] sm:$0xff]
        %v3280 = vld [vmem:[%s588 + $0x578] sm:$0xff]
        %v3281 = vld [vmem:[%s588 + $0x580] sm:$0xff]
        %v3282 = vld [vmem:[%s588 + $0x588] sm:$0xff]
        %v3283 = vld [vmem:[%s588 + $0x590] sm:$0xff]
        %v3284 = vld [vmem:[%s588 + $0x598] sm:$0xff]
        %v3285 = vld [vmem:[%s588 + $0x5a0] sm:$0xff]
        %v3286 = vld [vmem:[%s588 + $0x5a8] sm:$0xff]
        %v3287 = vld [vmem:[%s588 + $0x5b0] sm:$0xff]
        %v3288 = vld [vmem:[%s588 + $0x5b8] sm:$0xff]
        %v3289 = vld [vmem:[%s588 + $0x5c0] sm:$0xff]
        %v3290 = vld [vmem:[%s588 + $0x5c8] sm:$0xff]
        %v3291 = vld [vmem:[%s588 + $0x5d0] sm:$0xff]
        %v3292 = vld [vmem:[%s588 + $0x5d8] sm:$0xff]
        %v3293 = vld [vmem:[%s588 + $0x5e0] sm:$0xff]
        %v3294 = vld [vmem:[%s588 + $0x5e8] sm:$0xff]
        %v3295 = vld [vmem:[%s588 + $0x5f0] sm:$0xff]
        %v3296 = vld [vmem:[%s588 + $0x5f8] sm:$0xff]
        %v3297 = vld [vmem:[%s588 + $0x600] sm:$0xff]
        %v3298 = vld [vmem:[%s588 + $0x608] sm:$0xff]
        %v3299 = vld [vmem:[%s588 + $0x610] sm:$0xff]
        %v3300 = vld [vmem:[%s588 + $0x618] sm:$0xff]
        %v3301 = vld [vmem:[%s588 + $0x620] sm:$0xff]
        %v3302 = vld [vmem:[%s588 + $0x628] sm:$0xff]
        %v3303 = vld [vmem:[%s588 + $0x630] sm:$0xff]
        %v3304 = vld [vmem:[%s588 + $0x638] sm:$0xff]
        %v3305 = vld [vmem:[%s588 + $0x640] sm:$0xff]
        %v3306 = vld [vmem:[%s588 + $0x648] sm:$0xff]
        %v3307 = vld [vmem:[%s588 + $0x650] sm:$0xff]
        %v3308 = vld [vmem:[%s588 + $0x658] sm:$0xff]
        %v3309 = vld [vmem:[%s588 + $0x660] sm:$0xff]
        %v3310 = vld [vmem:[%s588 + $0x668] sm:$0xff]
        %v3311 = vld [vmem:[%s588 + $0x670] sm:$0xff]
        %v3312 = vld [vmem:[%s588 + $0x678] sm:$0xff]
        %v3313 = vld [vmem:[%s588 + $0x680] sm:$0xff]
        %v3314 = vld [vmem:[%s588 + $0x688] sm:$0xff]
        %v3315 = vld [vmem:[%s588 + $0x690] sm:$0xff]
        %v3316 = vld [vmem:[%s588 + $0x698] sm:$0xff]
        %v3317 = vld [vmem:[%s588 + $0x6a0] sm:$0xff]
        %v3318 = vld [vmem:[%s588 + $0x6a8] sm:$0xff]
        %v3319 = vld [vmem:[%s588 + $0x6b0] sm:$0xff]
        %v3320 = vld [vmem:[%s588 + $0x6b8] sm:$0xff]
        %v3321 = vld [vmem:[%s588 + $0x6c0] sm:$0xff]
        %v3322 = vld [vmem:[%s588 + $0x6c8] sm:$0xff]
        %v3323 = vld [vmem:[%s588 + $0x6d0] sm:$0xff]
        %v3324 = vld [vmem:[%s588 + $0x6d8] sm:$0xff]
        %v3325 = vld [vmem:[%s588 + $0x6e0] sm:$0xff]
        %v3326 = vld [vmem:[%s588 + $0x6e8] sm:$0xff]
        %v3327 = vld [vmem:[%s588 + $0x6f0] sm:$0xff]
        %v3328 = vld [vmem:[%s588 + $0x6f8] sm:$0xff]
        %v3329 = vld [vmem:[%s588 + $0x700] sm:$0xff]
        %v3330 = vld [vmem:[%s588 + $0x708] sm:$0xff]
        %v3331 = vld [vmem:[%s588 + $0x710] sm:$0xff]
        %v3332 = vld [vmem:[%s588 + $0x718] sm:$0xff]
        %v3333 = vld [vmem:[%s588 + $0x720] sm:$0xff]
        %v3334 = vld [vmem:[%s588 + $0x728] sm:$0xff]
        %v3335 = vld [vmem:[%s588 + $0x730] sm:$0xff]
        %v3336 = vld [vmem:[%s588 + $0x738] sm:$0xff]
        %v3337 = vld [vmem:[%s588 + $0x740] sm:$0xff]
        %v3338 = vld [vmem:[%s588 + $0x748] sm:$0xff]
        %v3339 = vld [vmem:[%s588 + $0x750] sm:$0xff]
        %v3340 = vld [vmem:[%s588 + $0x758] sm:$0xff]
        %v3341 = vld [vmem:[%s588 + $0x760] sm:$0xff]
        %v3342 = vld [vmem:[%s588 + $0x768] sm:$0xff]
        %v3343 = vld [vmem:[%s588 + $0x770] sm:$0xff]
        %v3344 = vld [vmem:[%s588 + $0x778] sm:$0xff]
        %v3345 = vld [vmem:[%s588 + $0x780] sm:$0xff]
        %v3346 = vld [vmem:[%s588 + $0x788] sm:$0xff]
        %v3347 = vld [vmem:[%s588 + $0x790] sm:$0xff]
        %v3348 = vld [vmem:[%s588 + $0x798] sm:$0xff]
        %v3349 = vld [vmem:[%s588 + $0x7a0] sm:$0xff]
        %v3350 = vld [vmem:[%s588 + $0x7a8] sm:$0xff]
        %v3351 = vld [vmem:[%s588 + $0x7b0] sm:$0xff]
        %v3352 = vld [vmem:[%s588 + $0x7b8] sm:$0xff]
        %v3353 = vld [vmem:[%s588 + $0x7c0] sm:$0xff]
        %v3354 = vld [vmem:[%s588 + $0x7c8] sm:$0xff]
        %v3355 = vld [vmem:[%s588 + $0x7d0] sm:$0xff]
        %v3356 = vld [vmem:[%s588 + $0x7d8] sm:$0xff]
        %v3357 = vld [vmem:[%s588 + $0x7e0] sm:$0xff]
        %v3358 = vld [vmem:[%s588 + $0x7e8] sm:$0xff]
        %v3359 = vld [vmem:[%s588 + $0x7f0] sm:$0xff]
        %v3360 = vld [vmem:[%s588 + $0x7f8] sm:$0xff]
        %v3361 = vld [vmem:[%s588 + $0x800] sm:$0xff]
        %v3362 = vld [vmem:[%s588 + $0x808] sm:$0xff]
        %v3363 = vld [vmem:[%s588 + $0x810] sm:$0xff]
        %v3364 = vld [vmem:[%s588 + $0x818] sm:$0xff]
        %v3365 = vld [vmem:[%s588 + $0x820] sm:$0xff]
        %v3366 = vld [vmem:[%s588 + $0x828] sm:$0xff]
        %v3367 = vld [vmem:[%s588 + $0x830] sm:$0xff]
        %v3368 = vld [vmem:[%s588 + $0x838] sm:$0xff]
        %v3369 = vld [vmem:[%s588 + $0x840] sm:$0xff]
        %v3370 = vld [vmem:[%s588 + $0x848] sm:$0xff]
        %v3371 = vld [vmem:[%s588 + $0x850] sm:$0xff]
        %v3372 = vld [vmem:[%s588 + $0x858] sm:$0xff]
        %v3373 = vld [vmem:[%s588 + $0x860] sm:$0xff]
        %v3374 = vld [vmem:[%s588 + $0x868] sm:$0xff]
        %v3375 = vld [vmem:[%s588 + $0x870] sm:$0xff]
        %v3376 = vld [vmem:[%s588 + $0x878] sm:$0xff]
        %v3377 = vld [vmem:[%s588 + $0x880] sm:$0xff]
        %v3378 = vld [vmem:[%s588 + $0x888] sm:$0xff]
        %v3379 = vld [vmem:[%s588 + $0x890] sm:$0xff]
        %v3380 = vld [vmem:[%s588 + $0x898] sm:$0xff]
        %v3381 = vld [vmem:[%s588 + $0x8a0] sm:$0xff]
        %v3382 = vld [vmem:[%s588 + $0x8a8] sm:$0xff]
        %v3383 = vld [vmem:[%s588 + $0x8b0] sm:$0xff]
        %v3384 = vld [vmem:[%s588 + $0x8b8] sm:$0xff]
        %v3385 = vld [vmem:[%s588 + $0x8c0] sm:$0xff]
        %v3386 = vld [vmem:[%s588 + $0x8c8] sm:$0xff]
        %v3387 = vld [vmem:[%s588 + $0x8d0] sm:$0xff]
        %v3388 = vld [vmem:[%s588 + $0x8d8] sm:$0xff]
        %v3389 = vld [vmem:[%s588 + $0x8e0] sm:$0xff]
        %v3390 = vld [vmem:[%s588 + $0x8e8] sm:$0xff]
        %v3391 = vld [vmem:[%s588 + $0x8f0] sm:$0xff]
        %v3392 = vld [vmem:[%s588 + $0x8f8] sm:$0xff]
        %v3393 = vld [vmem:[%s588 + $0x900] sm:$0xff]
        %v3394 = vld [vmem:[%s588 + $0x908] sm:$0xff]
        %v3395 = vld [vmem:[%s588 + $0x910] sm:$0xff]
        %v3396 = vld [vmem:[%s588 + $0x918] sm:$0xff]
        %v3397 = vld [vmem:[%s588 + $0x920] sm:$0xff]
        %v3398 = vld [vmem:[%s588 + $0x928] sm:$0xff]
        %v3399 = vld [vmem:[%s588 + $0x930] sm:$0xff]
        %v3400 = vld [vmem:[%s588 + $0x938] sm:$0xff]
        %v3401 = vld [vmem:[%s588 + $0x940] sm:$0xff]
        %v3402 = vld [vmem:[%s588 + $0x948] sm:$0xff]
        %v3403 = vld [vmem:[%s588 + $0x950] sm:$0xff]
        %v3404 = vld [vmem:[%s588 + $0x958] sm:$0xff]
        %v3405 = vld [vmem:[%s588 + $0x960] sm:$0xff]
        %v3406 = vld [vmem:[%s588 + $0x968] sm:$0xff]
        %v3407 = vld [vmem:[%s588 + $0x970] sm:$0xff]
        %v3408 = vld [vmem:[%s588 + $0x978] sm:$0xff]
        %v3409 = vld [vmem:[%s588 + $0x980] sm:$0xff]
        %v3410 = vld [vmem:[%s588 + $0x988] sm:$0xff]
        %v3411 = vld [vmem:[%s588 + $0x990] sm:$0xff]
        %v3412 = vld [vmem:[%s588 + $0x998] sm:$0xff]
        %v3413 = vld [vmem:[%s588 + $0x9a0] sm:$0xff]
        %v3414 = vld [vmem:[%s588 + $0x9a8] sm:$0xff]
        %v3415 = vld [vmem:[%s588 + $0x9b0] sm:$0xff]
        %v3416 = vld [vmem:[%s588 + $0x9b8] sm:$0xff]
        %v3417 = vld [vmem:[%s588 + $0x9c0] sm:$0xff]
        %v3418 = vld [vmem:[%s588 + $0x9c8] sm:$0xff]
        %v3419 = vld [vmem:[%s588 + $0x9d0] sm:$0xff]
        %v3420 = vld [vmem:[%s588 + $0x9d8] sm:$0xff]
        %v3421 = vld [vmem:[%s588 + $0x9e0] sm:$0xff]
        %v3422 = vld [vmem:[%s588 + $0x9e8] sm:$0xff]
        %v3423 = vld [vmem:[%s588 + $0x9f0] sm:$0xff]
        %v3424 = vld [vmem:[%s588 + $0x9f8] sm:$0xff]
        %v3425 = vld [vmem:[%s588 + $0xa00] sm:$0xff]
        %v3426 = vld [vmem:[%s588 + $0xa08] sm:$0xff]
        %v3427 = vld [vmem:[%s588 + $0xa10] sm:$0xff]
        %v3428 = vld [vmem:[%s588 + $0xa18] sm:$0xff]
        %v3429 = vld [vmem:[%s588 + $0xa20] sm:$0xff]
        %v3430 = vld [vmem:[%s588 + $0xa28] sm:$0xff]
        %v3431 = vld [vmem:[%s588 + $0xa30] sm:$0xff]
        %v3432 = vld [vmem:[%s588 + $0xa38] sm:$0xff]
        %v3433 = vld [vmem:[%s588 + $0xa40] sm:$0xff]
        %v3434 = vld [vmem:[%s588 + $0xa48] sm:$0xff]
        %v3435 = vld [vmem:[%s588 + $0xa50] sm:$0xff]
        %v3436 = vld [vmem:[%s588 + $0xa58] sm:$0xff]
        %v3437 = vld [vmem:[%s588 + $0xa60] sm:$0xff]
        %v3438 = vld [vmem:[%s588 + $0xa68] sm:$0xff]
        %v3439 = vld [vmem:[%s588 + $0xa70] sm:$0xff]
        %v3440 = vld [vmem:[%s588 + $0xa78] sm:$0xff]
        %v3441 = vld [vmem:[%s588 + $0xa80] sm:$0xff]
        %v3442 = vld [vmem:[%s588 + $0xa88] sm:$0xff]
        %v3443 = vld [vmem:[%s588 + $0xa90] sm:$0xff]
        %v3444 = vld [vmem:[%s588 + $0xa98] sm:$0xff]
        %v3445 = vld [vmem:[%s588 + $0xaa0] sm:$0xff]
        %v3446 = vld [vmem:[%s588 + $0xaa8] sm:$0xff]
        %v3447 = vld [vmem:[%s588 + $0xab0] sm:$0xff]
        %v3448 = vld [vmem:[%s588 + $0xab8] sm:$0xff]
        %v3449 = vld [vmem:[%s588 + $0xac0] sm:$0xff]
        %v3450 = vld [vmem:[%s588 + $0xac8] sm:$0xff]
        %v3451 = vld [vmem:[%s588 + $0xad0] sm:$0xff]
        %v3452 = vld [vmem:[%s588 + $0xad8] sm:$0xff]
        %v3453 = vld [vmem:[%s588 + $0xae0] sm:$0xff]
        %v3454 = vld [vmem:[%s588 + $0xae8] sm:$0xff]
        %v3455 = vld [vmem:[%s588 + $0xaf0] sm:$0xff]
        %v3456 = vld [vmem:[%s588 + $0xaf8] sm:$0xff]
        %v3457 = vld [vmem:[%s588 + $0xb00] sm:$0xff]
        %v3458 = vld [vmem:[%s588 + $0xb08] sm:$0xff]
        %v3459 = vld [vmem:[%s588 + $0xb10] sm:$0xff]
        %v3460 = vld [vmem:[%s588 + $0xb18] sm:$0xff]
        %v3461 = vld [vmem:[%s588 + $0xb20] sm:$0xff]
        %v3462 = vld [vmem:[%s588 + $0xb28] sm:$0xff]
        %v3463 = vld [vmem:[%s588 + $0xb30] sm:$0xff]
        %v3464 = vld [vmem:[%s588 + $0xb38] sm:$0xff]
        %v3465 = vld [vmem:[%s588 + $0xb40] sm:$0xff]
        %v3466 = vld [vmem:[%s588 + $0xb48] sm:$0xff]
        %v3467 = vld [vmem:[%s588 + $0xb50] sm:$0xff]
        %v3468 = vld [vmem:[%s588 + $0xb58] sm:$0xff]
        %v3469 = vld [vmem:[%s588 + $0xb60] sm:$0xff]
        %v3470 = vld [vmem:[%s588 + $0xb68] sm:$0xff]
        %v3471 = vld [vmem:[%s588 + $0xb70] sm:$0xff]
        %v3472 = vld [vmem:[%s588 + $0xb78] sm:$0xff]
        %v3473 = vld [vmem:[%s588 + $0xb80] sm:$0xff]
        %v3474 = vld [vmem:[%s588 + $0xb88] sm:$0xff]
        %v3475 = vld [vmem:[%s588 + $0xb90] sm:$0xff]
        %v3476 = vld [vmem:[%s588 + $0xb98] sm:$0xff]
        %v3477 = vld [vmem:[%s588 + $0xba0] sm:$0xff]
        %v3478 = vld [vmem:[%s588 + $0xba8] sm:$0xff]
        %v3479 = vld [vmem:[%s588 + $0xbb0] sm:$0xff]
        %v3480 = vld [vmem:[%s588 + $0xbb8] sm:$0xff]
        %v3481 = vld [vmem:[%s588 + $0xbc0] sm:$0xff]
        %v3482 = vld [vmem:[%s588 + $0xbc8] sm:$0xff]
        %v3483 = vld [vmem:[%s588 + $0xbd0] sm:$0xff]
        %v3484 = vld [vmem:[%s588 + $0xbd8] sm:$0xff]
        %v3485 = vld [vmem:[%s588 + $0xbe0] sm:$0xff]
        %v3486 = vld [vmem:[%s588 + $0xbe8] sm:$0xff]
        %v3487 = vld [vmem:[%s588 + $0xbf0] sm:$0xff]
        %v3488 = vld [vmem:[%s588 + $0xbf8] sm:$0xff]
        %s3489 = scalar_lea.vmem [#allocation8], 3072
        %v3490 = vld [vmem:[%s3489] sm:$0xff]
        %v3491 = vld [vmem:[%s3489 + $0x8] sm:$0xff]
        %v3492 = vld [vmem:[%s3489 + $0x10] sm:$0xff]
        %v3493 = vld [vmem:[%s3489 + $0x18] sm:$0xff]
        %v3494 = vld [vmem:[%s3489 + $0x20] sm:$0xff]
        %v3495 = vld [vmem:[%s3489 + $0x28] sm:$0xff]
        %v3496 = vld [vmem:[%s3489 + $0x30] sm:$0xff]
        %v3497 = vld [vmem:[%s3489 + $0x38] sm:$0xff]
        %v3498 = vld [vmem:[%s3489 + $0x40] sm:$0xff]
        %v3499 = vld [vmem:[%s3489 + $0x48] sm:$0xff]
        %v3500 = vld [vmem:[%s3489 + $0x50] sm:$0xff]
        %v3501 = vld [vmem:[%s3489 + $0x58] sm:$0xff]
        %v3502 = vld [vmem:[%s3489 + $0x60] sm:$0xff]
        %v3503 = vld [vmem:[%s3489 + $0x68] sm:$0xff]
        %v3504 = vld [vmem:[%s3489 + $0x70] sm:$0xff]
        %v3505 = vld [vmem:[%s3489 + $0x78] sm:$0xff]
        %v3506 = vld [vmem:[%s3489 + $0x80] sm:$0xff]
        %v3507 = vld [vmem:[%s3489 + $0x88] sm:$0xff]
        %v3508 = vld [vmem:[%s3489 + $0x90] sm:$0xff]
        %v3509 = vld [vmem:[%s3489 + $0x98] sm:$0xff]
        %v3510 = vld [vmem:[%s3489 + $0xa0] sm:$0xff]
        %v3511 = vld [vmem:[%s3489 + $0xa8] sm:$0xff]
        %v3512 = vld [vmem:[%s3489 + $0xb0] sm:$0xff]
        %v3513 = vld [vmem:[%s3489 + $0xb8] sm:$0xff]
        %v3514 = vld [vmem:[%s3489 + $0xc0] sm:$0xff]
        %v3515 = vld [vmem:[%s3489 + $0xc8] sm:$0xff]
        %v3516 = vld [vmem:[%s3489 + $0xd0] sm:$0xff]
        %v3517 = vld [vmem:[%s3489 + $0xd8] sm:$0xff]
        %v3518 = vld [vmem:[%s3489 + $0xe0] sm:$0xff]
        %v3519 = vld [vmem:[%s3489 + $0xe8] sm:$0xff]
        %v3520 = vld [vmem:[%s3489 + $0xf0] sm:$0xff]
        %v3521 = vld [vmem:[%s3489 + $0xf8] sm:$0xff]
        %v3522 = vld [vmem:[%s3489 + $0x100] sm:$0xff]
        %v3523 = vld [vmem:[%s3489 + $0x108] sm:$0xff]
        %v3524 = vld [vmem:[%s3489 + $0x110] sm:$0xff]
        %v3525 = vld [vmem:[%s3489 + $0x118] sm:$0xff]
        %v3526 = vld [vmem:[%s3489 + $0x120] sm:$0xff]
        %v3527 = vld [vmem:[%s3489 + $0x128] sm:$0xff]
        %v3528 = vld [vmem:[%s3489 + $0x130] sm:$0xff]
        %v3529 = vld [vmem:[%s3489 + $0x138] sm:$0xff]
        %v3530 = vld [vmem:[%s3489 + $0x140] sm:$0xff]
        %v3531 = vld [vmem:[%s3489 + $0x148] sm:$0xff]
        %v3532 = vld [vmem:[%s3489 + $0x150] sm:$0xff]
        %v3533 = vld [vmem:[%s3489 + $0x158] sm:$0xff]
        %v3534 = vld [vmem:[%s3489 + $0x160] sm:$0xff]
        %v3535 = vld [vmem:[%s3489 + $0x168] sm:$0xff]
        %v3536 = vld [vmem:[%s3489 + $0x170] sm:$0xff]
        %v3537 = vld [vmem:[%s3489 + $0x178] sm:$0xff]
        %v3538 = vld [vmem:[%s3489 + $0x180] sm:$0xff]
        %v3539 = vld [vmem:[%s3489 + $0x188] sm:$0xff]
        %v3540 = vld [vmem:[%s3489 + $0x190] sm:$0xff]
        %v3541 = vld [vmem:[%s3489 + $0x198] sm:$0xff]
        %v3542 = vld [vmem:[%s3489 + $0x1a0] sm:$0xff]
        %v3543 = vld [vmem:[%s3489 + $0x1a8] sm:$0xff]
        %v3544 = vld [vmem:[%s3489 + $0x1b0] sm:$0xff]
        %v3545 = vld [vmem:[%s3489 + $0x1b8] sm:$0xff]
        %v3546 = vld [vmem:[%s3489 + $0x1c0] sm:$0xff]
        %v3547 = vld [vmem:[%s3489 + $0x1c8] sm:$0xff]
        %v3548 = vld [vmem:[%s3489 + $0x1d0] sm:$0xff]
        %v3549 = vld [vmem:[%s3489 + $0x1d8] sm:$0xff]
        %v3550 = vld [vmem:[%s3489 + $0x1e0] sm:$0xff]
        %v3551 = vld [vmem:[%s3489 + $0x1e8] sm:$0xff]
        %v3552 = vld [vmem:[%s3489 + $0x1f0] sm:$0xff]
        %v3553 = vld [vmem:[%s3489 + $0x1f8] sm:$0xff]
        %v3554 = vld [vmem:[%s3489 + $0x200] sm:$0xff]
        %v3555 = vld [vmem:[%s3489 + $0x208] sm:$0xff]
        %v3556 = vld [vmem:[%s3489 + $0x210] sm:$0xff]
        %v3557 = vld [vmem:[%s3489 + $0x218] sm:$0xff]
        %v3558 = vld [vmem:[%s3489 + $0x220] sm:$0xff]
        %v3559 = vld [vmem:[%s3489 + $0x228] sm:$0xff]
        %v3560 = vld [vmem:[%s3489 + $0x230] sm:$0xff]
        %v3561 = vld [vmem:[%s3489 + $0x238] sm:$0xff]
        %v3562 = vld [vmem:[%s3489 + $0x240] sm:$0xff]
        %v3563 = vld [vmem:[%s3489 + $0x248] sm:$0xff]
        %v3564 = vld [vmem:[%s3489 + $0x250] sm:$0xff]
        %v3565 = vld [vmem:[%s3489 + $0x258] sm:$0xff]
        %v3566 = vld [vmem:[%s3489 + $0x260] sm:$0xff]
        %v3567 = vld [vmem:[%s3489 + $0x268] sm:$0xff]
        %v3568 = vld [vmem:[%s3489 + $0x270] sm:$0xff]
        %v3569 = vld [vmem:[%s3489 + $0x278] sm:$0xff]
        %v3570 = vld [vmem:[%s3489 + $0x280] sm:$0xff]
        %v3571 = vld [vmem:[%s3489 + $0x288] sm:$0xff]
        %v3572 = vld [vmem:[%s3489 + $0x290] sm:$0xff]
        %v3573 = vld [vmem:[%s3489 + $0x298] sm:$0xff]
        %v3574 = vld [vmem:[%s3489 + $0x2a0] sm:$0xff]
        %v3575 = vld [vmem:[%s3489 + $0x2a8] sm:$0xff]
        %v3576 = vld [vmem:[%s3489 + $0x2b0] sm:$0xff]
        %v3577 = vld [vmem:[%s3489 + $0x2b8] sm:$0xff]
        %v3578 = vld [vmem:[%s3489 + $0x2c0] sm:$0xff]
        %v3579 = vld [vmem:[%s3489 + $0x2c8] sm:$0xff]
        %v3580 = vld [vmem:[%s3489 + $0x2d0] sm:$0xff]
        %v3581 = vld [vmem:[%s3489 + $0x2d8] sm:$0xff]
        %v3582 = vld [vmem:[%s3489 + $0x2e0] sm:$0xff]
        %v3583 = vld [vmem:[%s3489 + $0x2e8] sm:$0xff]
        %v3584 = vld [vmem:[%s3489 + $0x2f0] sm:$0xff]
        %v3585 = vld [vmem:[%s3489 + $0x2f8] sm:$0xff]
        %v3586 = vld [vmem:[%s3489 + $0x300] sm:$0xff]
        %v3587 = vld [vmem:[%s3489 + $0x308] sm:$0xff]
        %v3588 = vld [vmem:[%s3489 + $0x310] sm:$0xff]
        %v3589 = vld [vmem:[%s3489 + $0x318] sm:$0xff]
        %v3590 = vld [vmem:[%s3489 + $0x320] sm:$0xff]
        %v3591 = vld [vmem:[%s3489 + $0x328] sm:$0xff]
        %v3592 = vld [vmem:[%s3489 + $0x330] sm:$0xff]
        %v3593 = vld [vmem:[%s3489 + $0x338] sm:$0xff]
        %v3594 = vld [vmem:[%s3489 + $0x340] sm:$0xff]
        %v3595 = vld [vmem:[%s3489 + $0x348] sm:$0xff]
        %v3596 = vld [vmem:[%s3489 + $0x350] sm:$0xff]
        %v3597 = vld [vmem:[%s3489 + $0x358] sm:$0xff]
        %v3598 = vld [vmem:[%s3489 + $0x360] sm:$0xff]
        %v3599 = vld [vmem:[%s3489 + $0x368] sm:$0xff]
        %v3600 = vld [vmem:[%s3489 + $0x370] sm:$0xff]
        %v3601 = vld [vmem:[%s3489 + $0x378] sm:$0xff]
        %v3602 = vld [vmem:[%s3489 + $0x380] sm:$0xff]
        %v3603 = vld [vmem:[%s3489 + $0x388] sm:$0xff]
        %v3604 = vld [vmem:[%s3489 + $0x390] sm:$0xff]
        %v3605 = vld [vmem:[%s3489 + $0x398] sm:$0xff]
        %v3606 = vld [vmem:[%s3489 + $0x3a0] sm:$0xff]
        %v3607 = vld [vmem:[%s3489 + $0x3a8] sm:$0xff]
        %v3608 = vld [vmem:[%s3489 + $0x3b0] sm:$0xff]
        %v3609 = vld [vmem:[%s3489 + $0x3b8] sm:$0xff]
        %v3610 = vld [vmem:[%s3489 + $0x3c0] sm:$0xff]
        %v3611 = vld [vmem:[%s3489 + $0x3c8] sm:$0xff]
        %v3612 = vld [vmem:[%s3489 + $0x3d0] sm:$0xff]
        %v3613 = vld [vmem:[%s3489 + $0x3d8] sm:$0xff]
        %v3614 = vld [vmem:[%s3489 + $0x3e0] sm:$0xff]
        %v3615 = vld [vmem:[%s3489 + $0x3e8] sm:$0xff]
        %v3616 = vld [vmem:[%s3489 + $0x3f0] sm:$0xff]
        %v3617 = vld [vmem:[%s3489 + $0x3f8] sm:$0xff]
        %v3618 = vld [vmem:[%s3489 + $0x400] sm:$0xff]
        %v3619 = vld [vmem:[%s3489 + $0x408] sm:$0xff]
        %v3620 = vld [vmem:[%s3489 + $0x410] sm:$0xff]
        %v3621 = vld [vmem:[%s3489 + $0x418] sm:$0xff]
        %v3622 = vld [vmem:[%s3489 + $0x420] sm:$0xff]
        %v3623 = vld [vmem:[%s3489 + $0x428] sm:$0xff]
        %v3624 = vld [vmem:[%s3489 + $0x430] sm:$0xff]
        %v3625 = vld [vmem:[%s3489 + $0x438] sm:$0xff]
        %v3626 = vld [vmem:[%s3489 + $0x440] sm:$0xff]
        %v3627 = vld [vmem:[%s3489 + $0x448] sm:$0xff]
        %v3628 = vld [vmem:[%s3489 + $0x450] sm:$0xff]
        %v3629 = vld [vmem:[%s3489 + $0x458] sm:$0xff]
        %v3630 = vld [vmem:[%s3489 + $0x460] sm:$0xff]
        %v3631 = vld [vmem:[%s3489 + $0x468] sm:$0xff]
        %v3632 = vld [vmem:[%s3489 + $0x470] sm:$0xff]
        %v3633 = vld [vmem:[%s3489 + $0x478] sm:$0xff]
        %v3634 = vld [vmem:[%s3489 + $0x480] sm:$0xff]
        %v3635 = vld [vmem:[%s3489 + $0x488] sm:$0xff]
        %v3636 = vld [vmem:[%s3489 + $0x490] sm:$0xff]
        %v3637 = vld [vmem:[%s3489 + $0x498] sm:$0xff]
        %v3638 = vld [vmem:[%s3489 + $0x4a0] sm:$0xff]
        %v3639 = vld [vmem:[%s3489 + $0x4a8] sm:$0xff]
        %v3640 = vld [vmem:[%s3489 + $0x4b0] sm:$0xff]
        %v3641 = vld [vmem:[%s3489 + $0x4b8] sm:$0xff]
        %v3642 = vld [vmem:[%s3489 + $0x4c0] sm:$0xff]
        %v3643 = vld [vmem:[%s3489 + $0x4c8] sm:$0xff]
        %v3644 = vld [vmem:[%s3489 + $0x4d0] sm:$0xff]
        %v3645 = vld [vmem:[%s3489 + $0x4d8] sm:$0xff]
        %v3646 = vld [vmem:[%s3489 + $0x4e0] sm:$0xff]
        %v3647 = vld [vmem:[%s3489 + $0x4e8] sm:$0xff]
        %v3648 = vld [vmem:[%s3489 + $0x4f0] sm:$0xff]
        %v3649 = vld [vmem:[%s3489 + $0x4f8] sm:$0xff]
        %v3650 = vld [vmem:[%s3489 + $0x500] sm:$0xff]
        %v3651 = vld [vmem:[%s3489 + $0x508] sm:$0xff]
        %v3652 = vld [vmem:[%s3489 + $0x510] sm:$0xff]
        %v3653 = vld [vmem:[%s3489 + $0x518] sm:$0xff]
        %v3654 = vld [vmem:[%s3489 + $0x520] sm:$0xff]
        %v3655 = vld [vmem:[%s3489 + $0x528] sm:$0xff]
        %v3656 = vld [vmem:[%s3489 + $0x530] sm:$0xff]
        %v3657 = vld [vmem:[%s3489 + $0x538] sm:$0xff]
        %v3658 = vld [vmem:[%s3489 + $0x540] sm:$0xff]
        %v3659 = vld [vmem:[%s3489 + $0x548] sm:$0xff]
        %v3660 = vld [vmem:[%s3489 + $0x550] sm:$0xff]
        %v3661 = vld [vmem:[%s3489 + $0x558] sm:$0xff]
        %v3662 = vld [vmem:[%s3489 + $0x560] sm:$0xff]
        %v3663 = vld [vmem:[%s3489 + $0x568] sm:$0xff]
        %v3664 = vld [vmem:[%s3489 + $0x570] sm:$0xff]
        %v3665 = vld [vmem:[%s3489 + $0x578] sm:$0xff]
        %v3666 = vld [vmem:[%s3489 + $0x580] sm:$0xff]
        %v3667 = vld [vmem:[%s3489 + $0x588] sm:$0xff]
        %v3668 = vld [vmem:[%s3489 + $0x590] sm:$0xff]
        %v3669 = vld [vmem:[%s3489 + $0x598] sm:$0xff]
        %v3670 = vld [vmem:[%s3489 + $0x5a0] sm:$0xff]
        %v3671 = vld [vmem:[%s3489 + $0x5a8] sm:$0xff]
        %v3672 = vld [vmem:[%s3489 + $0x5b0] sm:$0xff]
        %v3673 = vld [vmem:[%s3489 + $0x5b8] sm:$0xff]
        %v3674 = vld [vmem:[%s3489 + $0x5c0] sm:$0xff]
        %v3675 = vld [vmem:[%s3489 + $0x5c8] sm:$0xff]
        %v3676 = vld [vmem:[%s3489 + $0x5d0] sm:$0xff]
        %v3677 = vld [vmem:[%s3489 + $0x5d8] sm:$0xff]
        %v3678 = vld [vmem:[%s3489 + $0x5e0] sm:$0xff]
        %v3679 = vld [vmem:[%s3489 + $0x5e8] sm:$0xff]
        %v3680 = vld [vmem:[%s3489 + $0x5f0] sm:$0xff]
        %v3681 = vld [vmem:[%s3489 + $0x5f8] sm:$0xff]
        %v3682 = vld [vmem:[%s3489 + $0x600] sm:$0xff]
        %v3683 = vld [vmem:[%s3489 + $0x608] sm:$0xff]
        %v3684 = vld [vmem:[%s3489 + $0x610] sm:$0xff]
        %v3685 = vld [vmem:[%s3489 + $0x618] sm:$0xff]
        %v3686 = vld [vmem:[%s3489 + $0x620] sm:$0xff]
        %v3687 = vld [vmem:[%s3489 + $0x628] sm:$0xff]
        %v3688 = vld [vmem:[%s3489 + $0x630] sm:$0xff]
        %v3689 = vld [vmem:[%s3489 + $0x638] sm:$0xff]
        %v3690 = vld [vmem:[%s3489 + $0x640] sm:$0xff]
        %v3691 = vld [vmem:[%s3489 + $0x648] sm:$0xff]
        %v3692 = vld [vmem:[%s3489 + $0x650] sm:$0xff]
        %v3693 = vld [vmem:[%s3489 + $0x658] sm:$0xff]
        %v3694 = vld [vmem:[%s3489 + $0x660] sm:$0xff]
        %v3695 = vld [vmem:[%s3489 + $0x668] sm:$0xff]
        %v3696 = vld [vmem:[%s3489 + $0x670] sm:$0xff]
        %v3697 = vld [vmem:[%s3489 + $0x678] sm:$0xff]
        %v3698 = vld [vmem:[%s3489 + $0x680] sm:$0xff]
        %v3699 = vld [vmem:[%s3489 + $0x688] sm:$0xff]
        %v3700 = vld [vmem:[%s3489 + $0x690] sm:$0xff]
        %v3701 = vld [vmem:[%s3489 + $0x698] sm:$0xff]
        %v3702 = vld [vmem:[%s3489 + $0x6a0] sm:$0xff]
        %v3703 = vld [vmem:[%s3489 + $0x6a8] sm:$0xff]
        %v3704 = vld [vmem:[%s3489 + $0x6b0] sm:$0xff]
        %v3705 = vld [vmem:[%s3489 + $0x6b8] sm:$0xff]
        %v3706 = vld [vmem:[%s3489 + $0x6c0] sm:$0xff]
        %v3707 = vld [vmem:[%s3489 + $0x6c8] sm:$0xff]
        %v3708 = vld [vmem:[%s3489 + $0x6d0] sm:$0xff]
        %v3709 = vld [vmem:[%s3489 + $0x6d8] sm:$0xff]
        %v3710 = vld [vmem:[%s3489 + $0x6e0] sm:$0xff]
        %v3711 = vld [vmem:[%s3489 + $0x6e8] sm:$0xff]
        %v3712 = vld [vmem:[%s3489 + $0x6f0] sm:$0xff]
        %v3713 = vld [vmem:[%s3489 + $0x6f8] sm:$0xff]
        %v3714 = vld [vmem:[%s3489 + $0x700] sm:$0xff]
        %v3715 = vld [vmem:[%s3489 + $0x708] sm:$0xff]
        %v3716 = vld [vmem:[%s3489 + $0x710] sm:$0xff]
        %v3717 = vld [vmem:[%s3489 + $0x718] sm:$0xff]
        %v3718 = vld [vmem:[%s3489 + $0x720] sm:$0xff]
        %v3719 = vld [vmem:[%s3489 + $0x728] sm:$0xff]
        %v3720 = vld [vmem:[%s3489 + $0x730] sm:$0xff]
        %v3721 = vld [vmem:[%s3489 + $0x738] sm:$0xff]
        %v3722 = vld [vmem:[%s3489 + $0x740] sm:$0xff]
        %v3723 = vld [vmem:[%s3489 + $0x748] sm:$0xff]
        %v3724 = vld [vmem:[%s3489 + $0x750] sm:$0xff]
        %v3725 = vld [vmem:[%s3489 + $0x758] sm:$0xff]
        %v3726 = vld [vmem:[%s3489 + $0x760] sm:$0xff]
        %v3727 = vld [vmem:[%s3489 + $0x768] sm:$0xff]
        %v3728 = vld [vmem:[%s3489 + $0x770] sm:$0xff]
        %v3729 = vld [vmem:[%s3489 + $0x778] sm:$0xff]
        %v3730 = vld [vmem:[%s3489 + $0x780] sm:$0xff]
        %v3731 = vld [vmem:[%s3489 + $0x788] sm:$0xff]
        %v3732 = vld [vmem:[%s3489 + $0x790] sm:$0xff]
        %v3733 = vld [vmem:[%s3489 + $0x798] sm:$0xff]
        %v3734 = vld [vmem:[%s3489 + $0x7a0] sm:$0xff]
        %v3735 = vld [vmem:[%s3489 + $0x7a8] sm:$0xff]
        %v3736 = vld [vmem:[%s3489 + $0x7b0] sm:$0xff]
        %v3737 = vld [vmem:[%s3489 + $0x7b8] sm:$0xff]
        %v3738 = vld [vmem:[%s3489 + $0x7c0] sm:$0xff]
        %v3739 = vld [vmem:[%s3489 + $0x7c8] sm:$0xff]
        %v3740 = vld [vmem:[%s3489 + $0x7d0] sm:$0xff]
        %v3741 = vld [vmem:[%s3489 + $0x7d8] sm:$0xff]
        %v3742 = vld [vmem:[%s3489 + $0x7e0] sm:$0xff]
        %v3743 = vld [vmem:[%s3489 + $0x7e8] sm:$0xff]
        %v3744 = vld [vmem:[%s3489 + $0x7f0] sm:$0xff]
        %v3745 = vld [vmem:[%s3489 + $0x7f8] sm:$0xff]
        %v3746 = vld [vmem:[%s3489 + $0x800] sm:$0xff]
        %v3747 = vld [vmem:[%s3489 + $0x808] sm:$0xff]
        %v3748 = vld [vmem:[%s3489 + $0x810] sm:$0xff]
        %v3749 = vld [vmem:[%s3489 + $0x818] sm:$0xff]
        %v3750 = vld [vmem:[%s3489 + $0x820] sm:$0xff]
        %v3751 = vld [vmem:[%s3489 + $0x828] sm:$0xff]
        %v3752 = vld [vmem:[%s3489 + $0x830] sm:$0xff]
        %v3753 = vld [vmem:[%s3489 + $0x838] sm:$0xff]
        %v3754 = vld [vmem:[%s3489 + $0x840] sm:$0xff]
        %v3755 = vld [vmem:[%s3489 + $0x848] sm:$0xff]
        %v3756 = vld [vmem:[%s3489 + $0x850] sm:$0xff]
        %v3757 = vld [vmem:[%s3489 + $0x858] sm:$0xff]
        %v3758 = vld [vmem:[%s3489 + $0x860] sm:$0xff]
        %v3759 = vld [vmem:[%s3489 + $0x868] sm:$0xff]
        %v3760 = vld [vmem:[%s3489 + $0x870] sm:$0xff]
        %v3761 = vld [vmem:[%s3489 + $0x878] sm:$0xff]
        %v3762 = vld [vmem:[%s3489 + $0x880] sm:$0xff]
        %v3763 = vld [vmem:[%s3489 + $0x888] sm:$0xff]
        %v3764 = vld [vmem:[%s3489 + $0x890] sm:$0xff]
        %v3765 = vld [vmem:[%s3489 + $0x898] sm:$0xff]
        %v3766 = vld [vmem:[%s3489 + $0x8a0] sm:$0xff]
        %v3767 = vld [vmem:[%s3489 + $0x8a8] sm:$0xff]
        %v3768 = vld [vmem:[%s3489 + $0x8b0] sm:$0xff]
        %v3769 = vld [vmem:[%s3489 + $0x8b8] sm:$0xff]
        %v3770 = vld [vmem:[%s3489 + $0x8c0] sm:$0xff]
        %v3771 = vld [vmem:[%s3489 + $0x8c8] sm:$0xff]
        %v3772 = vld [vmem:[%s3489 + $0x8d0] sm:$0xff]
        %v3773 = vld [vmem:[%s3489 + $0x8d8] sm:$0xff]
        %v3774 = vld [vmem:[%s3489 + $0x8e0] sm:$0xff]
        %v3775 = vld [vmem:[%s3489 + $0x8e8] sm:$0xff]
        %v3776 = vld [vmem:[%s3489 + $0x8f0] sm:$0xff]
        %v3777 = vld [vmem:[%s3489 + $0x8f8] sm:$0xff]
        %v3778 = vld [vmem:[%s3489 + $0x900] sm:$0xff]
        %v3779 = vld [vmem:[%s3489 + $0x908] sm:$0xff]
        %v3780 = vld [vmem:[%s3489 + $0x910] sm:$0xff]
        %v3781 = vld [vmem:[%s3489 + $0x918] sm:$0xff]
        %v3782 = vld [vmem:[%s3489 + $0x920] sm:$0xff]
        %v3783 = vld [vmem:[%s3489 + $0x928] sm:$0xff]
        %v3784 = vld [vmem:[%s3489 + $0x930] sm:$0xff]
        %v3785 = vld [vmem:[%s3489 + $0x938] sm:$0xff]
        %v3786 = vld [vmem:[%s3489 + $0x940] sm:$0xff]
        %v3787 = vld [vmem:[%s3489 + $0x948] sm:$0xff]
        %v3788 = vld [vmem:[%s3489 + $0x950] sm:$0xff]
        %v3789 = vld [vmem:[%s3489 + $0x958] sm:$0xff]
        %v3790 = vld [vmem:[%s3489 + $0x960] sm:$0xff]
        %v3791 = vld [vmem:[%s3489 + $0x968] sm:$0xff]
        %v3792 = vld [vmem:[%s3489 + $0x970] sm:$0xff]
        %v3793 = vld [vmem:[%s3489 + $0x978] sm:$0xff]
        %v3794 = vld [vmem:[%s3489 + $0x980] sm:$0xff]
        %v3795 = vld [vmem:[%s3489 + $0x988] sm:$0xff]
        %v3796 = vld [vmem:[%s3489 + $0x990] sm:$0xff]
        %v3797 = vld [vmem:[%s3489 + $0x998] sm:$0xff]
        %v3798 = vld [vmem:[%s3489 + $0x9a0] sm:$0xff]
        %v3799 = vld [vmem:[%s3489 + $0x9a8] sm:$0xff]
        %v3800 = vld [vmem:[%s3489 + $0x9b0] sm:$0xff]
        %v3801 = vld [vmem:[%s3489 + $0x9b8] sm:$0xff]
        %v3802 = vld [vmem:[%s3489 + $0x9c0] sm:$0xff]
        %v3803 = vld [vmem:[%s3489 + $0x9c8] sm:$0xff]
        %v3804 = vld [vmem:[%s3489 + $0x9d0] sm:$0xff]
        %v3805 = vld [vmem:[%s3489 + $0x9d8] sm:$0xff]
        %v3806 = vld [vmem:[%s3489 + $0x9e0] sm:$0xff]
        %v3807 = vld [vmem:[%s3489 + $0x9e8] sm:$0xff]
        %v3808 = vld [vmem:[%s3489 + $0x9f0] sm:$0xff]
        %v3809 = vld [vmem:[%s3489 + $0x9f8] sm:$0xff]
        %v3810 = vld [vmem:[%s3489 + $0xa00] sm:$0xff]
        %v3811 = vld [vmem:[%s3489 + $0xa08] sm:$0xff]
        %v3812 = vld [vmem:[%s3489 + $0xa10] sm:$0xff]
        %v3813 = vld [vmem:[%s3489 + $0xa18] sm:$0xff]
        %v3814 = vld [vmem:[%s3489 + $0xa20] sm:$0xff]
        %v3815 = vld [vmem:[%s3489 + $0xa28] sm:$0xff]
        %v3816 = vld [vmem:[%s3489 + $0xa30] sm:$0xff]
        %v3817 = vld [vmem:[%s3489 + $0xa38] sm:$0xff]
        %v3818 = vld [vmem:[%s3489 + $0xa40] sm:$0xff]
        %v3819 = vld [vmem:[%s3489 + $0xa48] sm:$0xff]
        %v3820 = vld [vmem:[%s3489 + $0xa50] sm:$0xff]
        %v3821 = vld [vmem:[%s3489 + $0xa58] sm:$0xff]
        %v3822 = vld [vmem:[%s3489 + $0xa60] sm:$0xff]
        %v3823 = vld [vmem:[%s3489 + $0xa68] sm:$0xff]
        %v3824 = vld [vmem:[%s3489 + $0xa70] sm:$0xff]
        %v3825 = vld [vmem:[%s3489 + $0xa78] sm:$0xff]
        %v3826 = vld [vmem:[%s3489 + $0xa80] sm:$0xff]
        %v3827 = vld [vmem:[%s3489 + $0xa88] sm:$0xff]
        %v3828 = vld [vmem:[%s3489 + $0xa90] sm:$0xff]
        %v3829 = vld [vmem:[%s3489 + $0xa98] sm:$0xff]
        %v3830 = vld [vmem:[%s3489 + $0xaa0] sm:$0xff]
        %v3831 = vld [vmem:[%s3489 + $0xaa8] sm:$0xff]
        %v3832 = vld [vmem:[%s3489 + $0xab0] sm:$0xff]
        %v3833 = vld [vmem:[%s3489 + $0xab8] sm:$0xff]
        %v3834 = vld [vmem:[%s3489 + $0xac0] sm:$0xff]
        %v3835 = vld [vmem:[%s3489 + $0xac8] sm:$0xff]
        %v3836 = vld [vmem:[%s3489 + $0xad0] sm:$0xff]
        %v3837 = vld [vmem:[%s3489 + $0xad8] sm:$0xff]
        %v3838 = vld [vmem:[%s3489 + $0xae0] sm:$0xff]
        %v3839 = vld [vmem:[%s3489 + $0xae8] sm:$0xff]
        %v3840 = vld [vmem:[%s3489 + $0xaf0] sm:$0xff]
        %v3841 = vld [vmem:[%s3489 + $0xaf8] sm:$0xff]
        %v3842 = vld [vmem:[%s3489 + $0xb00] sm:$0xff]
        %v3843 = vld [vmem:[%s3489 + $0xb08] sm:$0xff]
        %v3844 = vld [vmem:[%s3489 + $0xb10] sm:$0xff]
        %v3845 = vld [vmem:[%s3489 + $0xb18] sm:$0xff]
        %v3846 = vld [vmem:[%s3489 + $0xb20] sm:$0xff]
        %v3847 = vld [vmem:[%s3489 + $0xb28] sm:$0xff]
        %v3848 = vld [vmem:[%s3489 + $0xb30] sm:$0xff]
        %v3849 = vld [vmem:[%s3489 + $0xb38] sm:$0xff]
        %v3850 = vld [vmem:[%s3489 + $0xb40] sm:$0xff]
        %v3851 = vld [vmem:[%s3489 + $0xb48] sm:$0xff]
        %v3852 = vld [vmem:[%s3489 + $0xb50] sm:$0xff]
        %v3853 = vld [vmem:[%s3489 + $0xb58] sm:$0xff]
        %v3854 = vld [vmem:[%s3489 + $0xb60] sm:$0xff]
        %v3855 = vld [vmem:[%s3489 + $0xb68] sm:$0xff]
        %v3856 = vld [vmem:[%s3489 + $0xb70] sm:$0xff]
        %v3857 = vld [vmem:[%s3489 + $0xb78] sm:$0xff]
        %v3858 = vld [vmem:[%s3489 + $0xb80] sm:$0xff]
        %v3859 = vld [vmem:[%s3489 + $0xb88] sm:$0xff]
        %v3860 = vld [vmem:[%s3489 + $0xb90] sm:$0xff]
        %v3861 = vld [vmem:[%s3489 + $0xb98] sm:$0xff]
        %v3862 = vld [vmem:[%s3489 + $0xba0] sm:$0xff]
        %v3863 = vld [vmem:[%s3489 + $0xba8] sm:$0xff]
        %v3864 = vld [vmem:[%s3489 + $0xbb0] sm:$0xff]
        %v3865 = vld [vmem:[%s3489 + $0xbb8] sm:$0xff]
        %v3866 = vld [vmem:[%s3489 + $0xbc0] sm:$0xff]
        %v3867 = vld [vmem:[%s3489 + $0xbc8] sm:$0xff]
        %v3868 = vld [vmem:[%s3489 + $0xbd0] sm:$0xff]
        %v3869 = vld [vmem:[%s3489 + $0xbd8] sm:$0xff]
        %v3870 = vld [vmem:[%s3489 + $0xbe0] sm:$0xff]
        %v3871 = vld [vmem:[%s3489 + $0xbe8] sm:$0xff]
        %v3872 = vld [vmem:[%s3489 + $0xbf0] sm:$0xff]
        %v3873 = vld [vmem:[%s3489 + $0xbf8] sm:$0xff]
        %3874 = vmatprep.subr.mxu0 %v3521
        %3875 = vmatpush1.msra.mxu0 %v3520
        %3876 = vmatprep.subr.mxu0 %v3519
        %3877 = vmatpush1.msra.mxu0 %v3518
        %3878 = vmatprep.subr.mxu0 %v3517
        %3879 = vmatpush1.msra.mxu0 %v3516
        %3880 = vmatprep.subr.mxu0 %v3515
        %3881 = vmatpush1.msra.mxu0 %v3514
        %3882 = vmatprep.subr.mxu0 %v3513
        %3883 = vmatpush1.msra.mxu0 %v3512
        %3884 = vmatprep.subr.mxu0 %v3511
        %3885 = vmatpush1.msra.mxu0 %v3510
        %3886 = vmatprep.subr.mxu0 %v3509
        %3887 = vmatpush1.msra.mxu0 %v3508
        %3888 = vmatprep.subr.mxu0 %v3507
        %3889 = vmatpush1.msra.mxu0 %v3506
        %3890 = vmatprep.subr.mxu0 %v3505
        %3891 = vmatpush1.msra.mxu0 %v3504
        %3892 = vmatprep.subr.mxu0 %v3503
        %3893 = vmatpush1.msra.mxu0 %v3502
        %3894 = vmatprep.subr.mxu0 %v3501
        %3895 = vmatpush1.msra.mxu0 %v3500
        %3896 = vmatprep.subr.mxu0 %v3499
        %3897 = vmatpush1.msra.mxu0 %v3498
        %3898 = vmatprep.subr.mxu0 %v3497
        %3899 = vmatpush1.msra.mxu0 %v3496
        %3900 = vmatprep.subr.mxu0 %v3495
        %3901 = vmatpush1.msra.mxu0 %v3494
        %3902 = vmatprep.subr.mxu0 %v3493
        %3903 = vmatpush1.msra.mxu0 %v3492
        %3904 = vmatprep.subr.mxu0 %v3491
        %3905 = vmatpush1.msra.mxu0 %v3490
        %3906 = vmatprep.subr.mxu0 %v3553
        %3907 = vmatpush2.msra.mxu0 %v3552
        %3908 = vmatprep.subr.mxu0 %v3551
        %3909 = vmatpush2.msra.mxu0 %v3550
        %3910 = vmatprep.subr.mxu0 %v3549
        %3911 = vmatpush2.msra.mxu0 %v3548
        %3912 = vmatprep.subr.mxu0 %v3547
        %3913 = vmatpush2.msra.mxu0 %v3546
        %3914 = vmatprep.subr.mxu0 %v3545
        %3915 = vmatpush2.msra.mxu0 %v3544
        %3916 = vmatprep.subr.mxu0 %v3543
        %3917 = vmatpush2.msra.mxu0 %v3542
        %3918 = vmatprep.subr.mxu0 %v3541
        %3919 = vmatpush2.msra.mxu0 %v3540
        %3920 = vmatprep.subr.mxu0 %v3539
        %3921 = vmatpush2.msra.mxu0 %v3538
        %3922 = vmatprep.subr.mxu0 %v3537
        %3923 = vmatpush2.msra.mxu0 %v3536
        %3924 = vmatprep.subr.mxu0 %v3535
        %3925 = vmatpush2.msra.mxu0 %v3534
        %3926 = vmatprep.subr.mxu0 %v3533
        %3927 = vmatpush2.msra.mxu0 %v3532
        %3928 = vmatprep.subr.mxu0 %v3531
        %3929 = vmatpush2.msra.mxu0 %v3530
        %3930 = vmatprep.subr.mxu0 %v3529
        %3931 = vmatpush2.msra.mxu0 %v3528
        %3932 = vmatprep.subr.mxu0 %v3527
        %3933 = vmatpush2.msra.mxu0 %v3526
        %3934 = vmatprep.subr.mxu0 %v3525
        %3935 = vmatpush2.msra.mxu0 %v3524
        %3936 = vmatprep.subr.mxu0 %v3523
        %3937 = vmatpush2.msra.mxu0 %v3522
        %3938 = vmatprep.mubr.f32.mxu0 %v3106
        %3939 = vmatmul.mubr.f32.gmra.mxu0 %v3105
        %v3940 = vpop.f32.mrf.mxu0
        %v3941 = vadd.f32 0.0, %v3940
        %v3942 = vpop.f32.mrf.mxu0
        %v3943 = vadd.f32 0.0, %v3942
        %3944 = vmatprep.mubr.f32.mxu0 %v3118
        %3945 = vmatmul.mubr.f32.gmra.mxu0 %v3117
        %v3946 = vpop.f32.mrf.mxu0
        %v3947 = vadd.f32 0.0, %v3946
        %v3948 = vpop.f32.mrf.mxu0
        %v3949 = vadd.f32 0.0, %v3948
        %3950 = vmatprep.mubr.f32.mxu0 %v3130
        %3951 = vmatmul.mubr.f32.gmra.mxu0 %v3129
        %v3952 = vpop.f32.mrf.mxu0
        %v3953 = vadd.f32 0.0, %v3952
        %v3954 = vpop.f32.mrf.mxu0
        %v3955 = vadd.f32 0.0, %v3954
        %3956 = vmatprep.mubr.f32.mxu0 %v3142
        %3957 = vmatmul.mubr.f32.gmra.mxu0 %v3141
        %v3958 = vpop.f32.mrf.mxu0
        %v3959 = vadd.f32 0.0, %v3958
        %v3960 = vpop.f32.mrf.mxu0
        %v3961 = vadd.f32 0.0, %v3960
        %3962 = vmatprep.mubr.f32.mxu0 %v3154
        %3963 = vmatmul.mubr.f32.gmra.mxu0 %v3153
        %v3964 = vpop.f32.mrf.mxu0
        %v3965 = vadd.f32 0.0, %v3964
        %v3966 = vpop.f32.mrf.mxu0
        %v3967 = vadd.f32 0.0, %v3966
        %3968 = vmatprep.mubr.f32.mxu0 %v3166
        %3969 = vmatmul.mubr.f32.gmra.mxu0 %v3165
        %v3970 = vpop.f32.mrf.mxu0
        %v3971 = vadd.f32 0.0, %v3970
        %v3972 = vpop.f32.mrf.mxu0
        %v3973 = vadd.f32 0.0, %v3972
        %3974 = vmatprep.mubr.f32.mxu0 %v3178
        %3975 = vmatmul.mubr.f32.gmra.mxu0 %v3177
        %v3976 = vpop.f32.mrf.mxu0
        %v3977 = vadd.f32 0.0, %v3976
        %v3978 = vpop.f32.mrf.mxu0
        %v3979 = vadd.f32 0.0, %v3978
        %3980 = vmatprep.mubr.f32.mxu0 %v3190
        %3981 = vmatmul.mubr.f32.gmra.mxu0 %v3189
        %v3982 = vpop.f32.mrf.mxu0
        %v3983 = vadd.f32 0.0, %v3982
        %v3984 = vpop.f32.mrf.mxu0
        %v3985 = vadd.f32 0.0, %v3984
        %3986 = vmatprep.mubr.f32.mxu0 %v3202
        %3987 = vmatmul.mubr.f32.gmra.mxu0 %v3201
        %v3988 = vpop.f32.mrf.mxu0
        %v3989 = vadd.f32 0.0, %v3988
        %v3990 = vpop.f32.mrf.mxu0
        %v3991 = vadd.f32 0.0, %v3990
        %3992 = vmatprep.mubr.f32.mxu0 %v3214
        %3993 = vmatmul.mubr.f32.gmra.mxu0 %v3213
        %v3994 = vpop.f32.mrf.mxu0
        %v3995 = vadd.f32 0.0, %v3994
        %v3996 = vpop.f32.mrf.mxu0
        %v3997 = vadd.f32 0.0, %v3996
        %3998 = vmatprep.mubr.f32.mxu0 %v3226
        %3999 = vmatmul.mubr.f32.gmra.mxu0 %v3225
        %v4000 = vpop.f32.mrf.mxu0
        %v4001 = vadd.f32 0.0, %v4000
        %v4002 = vpop.f32.mrf.mxu0
        %v4003 = vadd.f32 0.0, %v4002
        %4004 = vmatprep.mubr.f32.mxu0 %v3238
        %4005 = vmatmul.mubr.f32.gmra.mxu0 %v3237
        %v4006 = vpop.f32.mrf.mxu0
        %v4007 = vadd.f32 0.0, %v4006
        %v4008 = vpop.f32.mrf.mxu0
        %v4009 = vadd.f32 0.0, %v4008
        %4010 = vmatprep.mubr.f32.mxu0 %v3250
        %4011 = vmatmul.mubr.f32.gmra.mxu0 %v3249
        %v4012 = vpop.f32.mrf.mxu0
        %v4013 = vadd.f32 0.0, %v4012
        %v4014 = vpop.f32.mrf.mxu0
        %v4015 = vadd.f32 0.0, %v4014
        %4016 = vmatprep.mubr.f32.mxu0 %v3262
        %4017 = vmatmul.mubr.f32.gmra.mxu0 %v3261
        %v4018 = vpop.f32.mrf.mxu0
        %v4019 = vadd.f32 0.0, %v4018
        %v4020 = vpop.f32.mrf.mxu0
        %v4021 = vadd.f32 0.0, %v4020
        %4022 = vmatprep.mubr.f32.mxu0 %v3274
        %4023 = vmatmul.mubr.f32.gmra.mxu0 %v3273
        %v4024 = vpop.f32.mrf.mxu0
        %v4025 = vadd.f32 0.0, %v4024
        %v4026 = vpop.f32.mrf.mxu0
        %v4027 = vadd.f32 0.0, %v4026
        %4028 = vmatprep.mubr.f32.mxu0 %v3286
        %4029 = vmatmul.mubr.f32.gmra.mxu0 %v3285
        %v4030 = vpop.f32.mrf.mxu0
        %v4031 = vadd.f32 0.0, %v4030
        %v4032 = vpop.f32.mrf.mxu0
        %v4033 = vadd.f32 0.0, %v4032
        %4034 = vmatprep.mubr.f32.mxu0 %v3298
        %4035 = vmatmul.mubr.f32.gmra.mxu0 %v3297
        %v4036 = vpop.f32.mrf.mxu0
        %v4037 = vadd.f32 0.0, %v4036
        %v4038 = vpop.f32.mrf.mxu0
        %v4039 = vadd.f32 0.0, %v4038
        %4040 = vmatprep.mubr.f32.mxu0 %v3310
        %4041 = vmatmul.mubr.f32.gmra.mxu0 %v3309
        %v4042 = vpop.f32.mrf.mxu0
        %v4043 = vadd.f32 0.0, %v4042
        %v4044 = vpop.f32.mrf.mxu0
        %v4045 = vadd.f32 0.0, %v4044
        %4046 = vmatprep.mubr.f32.mxu0 %v3322
        %4047 = vmatmul.mubr.f32.gmra.mxu0 %v3321
        %v4048 = vpop.f32.mrf.mxu0
        %v4049 = vadd.f32 0.0, %v4048
        %v4050 = vpop.f32.mrf.mxu0
        %v4051 = vadd.f32 0.0, %v4050
        %4052 = vmatprep.mubr.f32.mxu0 %v3334
        %4053 = vmatmul.mubr.f32.gmra.mxu0 %v3333
        %v4054 = vpop.f32.mrf.mxu0
        %v4055 = vadd.f32 0.0, %v4054
        %v4056 = vpop.f32.mrf.mxu0
        %v4057 = vadd.f32 0.0, %v4056
        %4058 = vmatprep.mubr.f32.mxu0 %v3346
        %4059 = vmatmul.mubr.f32.gmra.mxu0 %v3345
        %v4060 = vpop.f32.mrf.mxu0
        %v4061 = vadd.f32 0.0, %v4060
        %v4062 = vpop.f32.mrf.mxu0
        %v4063 = vadd.f32 0.0, %v4062
        %4064 = vmatprep.mubr.f32.mxu0 %v3358
        %4065 = vmatmul.mubr.f32.gmra.mxu0 %v3357
        %v4066 = vpop.f32.mrf.mxu0
        %v4067 = vadd.f32 0.0, %v4066
        %v4068 = vpop.f32.mrf.mxu0
        %v4069 = vadd.f32 0.0, %v4068
        %4070 = vmatprep.mubr.f32.mxu0 %v3370
        %4071 = vmatmul.mubr.f32.gmra.mxu0 %v3369
        %v4072 = vpop.f32.mrf.mxu0
        %v4073 = vadd.f32 0.0, %v4072
        %v4074 = vpop.f32.mrf.mxu0
        %v4075 = vadd.f32 0.0, %v4074
        %4076 = vmatprep.mubr.f32.mxu0 %v3382
        %4077 = vmatmul.mubr.f32.gmra.mxu0 %v3381
        %v4078 = vpop.f32.mrf.mxu0
        %v4079 = vadd.f32 0.0, %v4078
        %v4080 = vpop.f32.mrf.mxu0
        %v4081 = vadd.f32 0.0, %v4080
        %4082 = vmatprep.mubr.f32.mxu0 %v3394
        %4083 = vmatmul.mubr.f32.gmra.mxu0 %v3393
        %v4084 = vpop.f32.mrf.mxu0
        %v4085 = vadd.f32 0.0, %v4084
        %v4086 = vpop.f32.mrf.mxu0
        %v4087 = vadd.f32 0.0, %v4086
        %4088 = vmatprep.mubr.f32.mxu0 %v3406
        %4089 = vmatmul.mubr.f32.gmra.mxu0 %v3405
        %v4090 = vpop.f32.mrf.mxu0
        %v4091 = vadd.f32 0.0, %v4090
        %v4092 = vpop.f32.mrf.mxu0
        %v4093 = vadd.f32 0.0, %v4092
        %4094 = vmatprep.mubr.f32.mxu0 %v3418
        %4095 = vmatmul.mubr.f32.gmra.mxu0 %v3417
        %v4096 = vpop.f32.mrf.mxu0
        %v4097 = vadd.f32 0.0, %v4096
        %v4098 = vpop.f32.mrf.mxu0
        %v4099 = vadd.f32 0.0, %v4098
        %4100 = vmatprep.mubr.f32.mxu0 %v3430
        %4101 = vmatmul.mubr.f32.gmra.mxu0 %v3429
        %v4102 = vpop.f32.mrf.mxu0
        %v4103 = vadd.f32 0.0, %v4102
        %v4104 = vpop.f32.mrf.mxu0
        %v4105 = vadd.f32 0.0, %v4104
        %4106 = vmatprep.mubr.f32.mxu0 %v3442
        %4107 = vmatmul.mubr.f32.gmra.mxu0 %v3441
        %v4108 = vpop.f32.mrf.mxu0
        %v4109 = vadd.f32 0.0, %v4108
        %v4110 = vpop.f32.mrf.mxu0
        %v4111 = vadd.f32 0.0, %v4110
        %4112 = vmatprep.mubr.f32.mxu0 %v3454
        %4113 = vmatmul.mubr.f32.gmra.mxu0 %v3453
        %v4114 = vpop.f32.mrf.mxu0
        %v4115 = vadd.f32 0.0, %v4114
        %v4116 = vpop.f32.mrf.mxu0
        %v4117 = vadd.f32 0.0, %v4116
        %4118 = vmatprep.mubr.f32.mxu0 %v3466
        %4119 = vmatmul.mubr.f32.gmra.mxu0 %v3465
        %v4120 = vpop.f32.mrf.mxu0
        %v4121 = vadd.f32 0.0, %v4120
        %v4122 = vpop.f32.mrf.mxu0
        %v4123 = vadd.f32 0.0, %v4122
        %4124 = vmatprep.mubr.f32.mxu0 %v3478
        %4125 = vmatmul.mubr.f32.gmra.mxu0 %v3477
        %v4126 = vpop.f32.mrf.mxu0
        %v4127 = vadd.f32 0.0, %v4126
        %v4128 = vpop.f32.mrf.mxu0
        %v4129 = vadd.f32 0.0, %v4128
        %4130 = vdwg.mxu0
        %4131 = vmatprep.subr.mxu0 %v3585
        %4132 = vmatpush1.msra.mxu0 %v3584
        %4133 = vmatprep.subr.mxu0 %v3583
        %4134 = vmatpush1.msra.mxu0 %v3582
        %4135 = vmatprep.subr.mxu0 %v3581
        %4136 = vmatpush1.msra.mxu0 %v3580
        %4137 = vmatprep.subr.mxu0 %v3579
        %4138 = vmatpush1.msra.mxu0 %v3578
        %4139 = vmatprep.subr.mxu0 %v3577
        %4140 = vmatpush1.msra.mxu0 %v3576
        %4141 = vmatprep.subr.mxu0 %v3575
        %4142 = vmatpush1.msra.mxu0 %v3574
        %4143 = vmatprep.subr.mxu0 %v3573
        %4144 = vmatpush1.msra.mxu0 %v3572
        %4145 = vmatprep.subr.mxu0 %v3571
        %4146 = vmatpush1.msra.mxu0 %v3570
        %4147 = vmatprep.subr.mxu0 %v3569
        %4148 = vmatpush1.msra.mxu0 %v3568
        %4149 = vmatprep.subr.mxu0 %v3567
        %4150 = vmatpush1.msra.mxu0 %v3566
        %4151 = vmatprep.subr.mxu0 %v3565
        %4152 = vmatpush1.msra.mxu0 %v3564
        %4153 = vmatprep.subr.mxu0 %v3563
        %4154 = vmatpush1.msra.mxu0 %v3562
        %4155 = vmatprep.subr.mxu0 %v3561
        %4156 = vmatpush1.msra.mxu0 %v3560
        %4157 = vmatprep.subr.mxu0 %v3559
        %4158 = vmatpush1.msra.mxu0 %v3558
        %4159 = vmatprep.subr.mxu0 %v3557
        %4160 = vmatpush1.msra.mxu0 %v3556
        %4161 = vmatprep.subr.mxu0 %v3555
        %4162 = vmatpush1.msra.mxu0 %v3554
        %4163 = vmatprep.subr.mxu0 %v3617
        %4164 = vmatpush2.msra.mxu0 %v3616
        %4165 = vmatprep.subr.mxu0 %v3615
        %4166 = vmatpush2.msra.mxu0 %v3614
        %4167 = vmatprep.subr.mxu0 %v3613
        %4168 = vmatpush2.msra.mxu0 %v3612
        %4169 = vmatprep.subr.mxu0 %v3611
        %4170 = vmatpush2.msra.mxu0 %v3610
        %4171 = vmatprep.subr.mxu0 %v3609
        %4172 = vmatpush2.msra.mxu0 %v3608
        %4173 = vmatprep.subr.mxu0 %v3607
        %4174 = vmatpush2.msra.mxu0 %v3606
        %4175 = vmatprep.subr.mxu0 %v3605
        %4176 = vmatpush2.msra.mxu0 %v3604
        %4177 = vmatprep.subr.mxu0 %v3603
        %4178 = vmatpush2.msra.mxu0 %v3602
        %4179 = vmatprep.subr.mxu0 %v3601
        %4180 = vmatpush2.msra.mxu0 %v3600
        %4181 = vmatprep.subr.mxu0 %v3599
        %4182 = vmatpush2.msra.mxu0 %v3598
        %4183 = vmatprep.subr.mxu0 %v3597
        %4184 = vmatpush2.msra.mxu0 %v3596
        %4185 = vmatprep.subr.mxu0 %v3595
        %4186 = vmatpush2.msra.mxu0 %v3594
        %4187 = vmatprep.subr.mxu0 %v3593
        %4188 = vmatpush2.msra.mxu0 %v3592
        %4189 = vmatprep.subr.mxu0 %v3591
        %4190 = vmatpush2.msra.mxu0 %v3590
        %4191 = vmatprep.subr.mxu0 %v3589
        %4192 = vmatpush2.msra.mxu0 %v3588
        %4193 = vmatprep.subr.mxu0 %v3587
        %4194 = vmatpush2.msra.mxu0 %v3586
        %4195 = vmatprep.mubr.f32.mxu0 %v3108
        %4196 = vmatmul.mubr.f32.gmra.mxu0 %v3107
        %v4197 = vpop.f32.mrf.mxu0
        %v4198 = vadd.f32 %v3941, %v4197
        %v4199 = vpop.f32.mrf.mxu0
        %v4200 = vadd.f32 %v3943, %v4199
        %4201 = vmatprep.mubr.f32.mxu0 %v3120
        %4202 = vmatmul.mubr.f32.gmra.mxu0 %v3119
        %v4203 = vpop.f32.mrf.mxu0
        %v4204 = vadd.f32 %v3947, %v4203
        %v4205 = vpop.f32.mrf.mxu0
        %v4206 = vadd.f32 %v3949, %v4205
        %4207 = vmatprep.mubr.f32.mxu0 %v3132
        %4208 = vmatmul.mubr.f32.gmra.mxu0 %v3131
        %v4209 = vpop.f32.mrf.mxu0
        %v4210 = vadd.f32 %v3953, %v4209
        %v4211 = vpop.f32.mrf.mxu0
        %v4212 = vadd.f32 %v3955, %v4211
        %4213 = vmatprep.mubr.f32.mxu0 %v3144
        %4214 = vmatmul.mubr.f32.gmra.mxu0 %v3143
        %v4215 = vpop.f32.mrf.mxu0
        %v4216 = vadd.f32 %v3959, %v4215
        %v4217 = vpop.f32.mrf.mxu0
        %v4218 = vadd.f32 %v3961, %v4217
        %4219 = vmatprep.mubr.f32.mxu0 %v3156
        %4220 = vmatmul.mubr.f32.gmra.mxu0 %v3155
        %v4221 = vpop.f32.mrf.mxu0
        %v4222 = vadd.f32 %v3965, %v4221
        %v4223 = vpop.f32.mrf.mxu0
        %v4224 = vadd.f32 %v3967, %v4223
        %4225 = vmatprep.mubr.f32.mxu0 %v3168
        %4226 = vmatmul.mubr.f32.gmra.mxu0 %v3167
        %v4227 = vpop.f32.mrf.mxu0
        %v4228 = vadd.f32 %v3971, %v4227
        %v4229 = vpop.f32.mrf.mxu0
        %v4230 = vadd.f32 %v3973, %v4229
        %4231 = vmatprep.mubr.f32.mxu0 %v3180
        %4232 = vmatmul.mubr.f32.gmra.mxu0 %v3179
        %v4233 = vpop.f32.mrf.mxu0
        %v4234 = vadd.f32 %v3977, %v4233
        %v4235 = vpop.f32.mrf.mxu0
        %v4236 = vadd.f32 %v3979, %v4235
        %4237 = vmatprep.mubr.f32.mxu0 %v3192
        %4238 = vmatmul.mubr.f32.gmra.mxu0 %v3191
        %v4239 = vpop.f32.mrf.mxu0
        %v4240 = vadd.f32 %v3983, %v4239
        %v4241 = vpop.f32.mrf.mxu0
        %v4242 = vadd.f32 %v3985, %v4241
        %4243 = vmatprep.mubr.f32.mxu0 %v3204
        %4244 = vmatmul.mubr.f32.gmra.mxu0 %v3203
        %v4245 = vpop.f32.mrf.mxu0
        %v4246 = vadd.f32 %v3989, %v4245
        %v4247 = vpop.f32.mrf.mxu0
        %v4248 = vadd.f32 %v3991, %v4247
        %4249 = vmatprep.mubr.f32.mxu0 %v3216
        %4250 = vmatmul.mubr.f32.gmra.mxu0 %v3215
        %v4251 = vpop.f32.mrf.mxu0
        %v4252 = vadd.f32 %v3995, %v4251
        %v4253 = vpop.f32.mrf.mxu0
        %v4254 = vadd.f32 %v3997, %v4253
        %4255 = vmatprep.mubr.f32.mxu0 %v3228
        %4256 = vmatmul.mubr.f32.gmra.mxu0 %v3227
        %v4257 = vpop.f32.mrf.mxu0
        %v4258 = vadd.f32 %v4001, %v4257
        %v4259 = vpop.f32.mrf.mxu0
        %v4260 = vadd.f32 %v4003, %v4259
        %4261 = vmatprep.mubr.f32.mxu0 %v3240
        %4262 = vmatmul.mubr.f32.gmra.mxu0 %v3239
        %v4263 = vpop.f32.mrf.mxu0
        %v4264 = vadd.f32 %v4007, %v4263
        %v4265 = vpop.f32.mrf.mxu0
        %v4266 = vadd.f32 %v4009, %v4265
        %4267 = vmatprep.mubr.f32.mxu0 %v3252
        %4268 = vmatmul.mubr.f32.gmra.mxu0 %v3251
        %v4269 = vpop.f32.mrf.mxu0
        %v4270 = vadd.f32 %v4013, %v4269
        %v4271 = vpop.f32.mrf.mxu0
        %v4272 = vadd.f32 %v4015, %v4271
        %4273 = vmatprep.mubr.f32.mxu0 %v3264
        %4274 = vmatmul.mubr.f32.gmra.mxu0 %v3263
        %v4275 = vpop.f32.mrf.mxu0
        %v4276 = vadd.f32 %v4019, %v4275
        %v4277 = vpop.f32.mrf.mxu0
        %v4278 = vadd.f32 %v4021, %v4277
        %4279 = vmatprep.mubr.f32.mxu0 %v3276
        %4280 = vmatmul.mubr.f32.gmra.mxu0 %v3275
        %v4281 = vpop.f32.mrf.mxu0
        %v4282 = vadd.f32 %v4025, %v4281
        %v4283 = vpop.f32.mrf.mxu0
        %v4284 = vadd.f32 %v4027, %v4283
        %4285 = vmatprep.mubr.f32.mxu0 %v3288
        %4286 = vmatmul.mubr.f32.gmra.mxu0 %v3287
        %v4287 = vpop.f32.mrf.mxu0
        %v4288 = vadd.f32 %v4031, %v4287
        %v4289 = vpop.f32.mrf.mxu0
        %v4290 = vadd.f32 %v4033, %v4289
        %4291 = vmatprep.mubr.f32.mxu0 %v3300
        %4292 = vmatmul.mubr.f32.gmra.mxu0 %v3299
        %v4293 = vpop.f32.mrf.mxu0
        %v4294 = vadd.f32 %v4037, %v4293
        %v4295 = vpop.f32.mrf.mxu0
        %v4296 = vadd.f32 %v4039, %v4295
        %4297 = vmatprep.mubr.f32.mxu0 %v3312
        %4298 = vmatmul.mubr.f32.gmra.mxu0 %v3311
        %v4299 = vpop.f32.mrf.mxu0
        %v4300 = vadd.f32 %v4043, %v4299
        %v4301 = vpop.f32.mrf.mxu0
        %v4302 = vadd.f32 %v4045, %v4301
        %4303 = vmatprep.mubr.f32.mxu0 %v3324
        %4304 = vmatmul.mubr.f32.gmra.mxu0 %v3323
        %v4305 = vpop.f32.mrf.mxu0
        %v4306 = vadd.f32 %v4049, %v4305
        %v4307 = vpop.f32.mrf.mxu0
        %v4308 = vadd.f32 %v4051, %v4307
        %4309 = vmatprep.mubr.f32.mxu0 %v3336
        %4310 = vmatmul.mubr.f32.gmra.mxu0 %v3335
        %v4311 = vpop.f32.mrf.mxu0
        %v4312 = vadd.f32 %v4055, %v4311
        %v4313 = vpop.f32.mrf.mxu0
        %v4314 = vadd.f32 %v4057, %v4313
        %4315 = vmatprep.mubr.f32.mxu0 %v3348
        %4316 = vmatmul.mubr.f32.gmra.mxu0 %v3347
        %v4317 = vpop.f32.mrf.mxu0
        %v4318 = vadd.f32 %v4061, %v4317
        %v4319 = vpop.f32.mrf.mxu0
        %v4320 = vadd.f32 %v4063, %v4319
        %4321 = vmatprep.mubr.f32.mxu0 %v3360
        %4322 = vmatmul.mubr.f32.gmra.mxu0 %v3359
        %v4323 = vpop.f32.mrf.mxu0
        %v4324 = vadd.f32 %v4067, %v4323
        %v4325 = vpop.f32.mrf.mxu0
        %v4326 = vadd.f32 %v4069, %v4325
        %4327 = vmatprep.mubr.f32.mxu0 %v3372
        %4328 = vmatmul.mubr.f32.gmra.mxu0 %v3371
        %v4329 = vpop.f32.mrf.mxu0
        %v4330 = vadd.f32 %v4073, %v4329
        %v4331 = vpop.f32.mrf.mxu0
        %v4332 = vadd.f32 %v4075, %v4331
        %4333 = vmatprep.mubr.f32.mxu0 %v3384
        %4334 = vmatmul.mubr.f32.gmra.mxu0 %v3383
        %v4335 = vpop.f32.mrf.mxu0
        %v4336 = vadd.f32 %v4079, %v4335
        %v4337 = vpop.f32.mrf.mxu0
        %v4338 = vadd.f32 %v4081, %v4337
        %4339 = vmatprep.mubr.f32.mxu0 %v3396
        %4340 = vmatmul.mubr.f32.gmra.mxu0 %v3395
        %v4341 = vpop.f32.mrf.mxu0
        %v4342 = vadd.f32 %v4085, %v4341
        %v4343 = vpop.f32.mrf.mxu0
        %v4344 = vadd.f32 %v4087, %v4343
        %4345 = vmatprep.mubr.f32.mxu0 %v3408
        %4346 = vmatmul.mubr.f32.gmra.mxu0 %v3407
        %v4347 = vpop.f32.mrf.mxu0
        %v4348 = vadd.f32 %v4091, %v4347
        %v4349 = vpop.f32.mrf.mxu0
        %v4350 = vadd.f32 %v4093, %v4349
        %4351 = vmatprep.mubr.f32.mxu0 %v3420
        %4352 = vmatmul.mubr.f32.gmra.mxu0 %v3419
        %v4353 = vpop.f32.mrf.mxu0
        %v4354 = vadd.f32 %v4097, %v4353
        %v4355 = vpop.f32.mrf.mxu0
        %v4356 = vadd.f32 %v4099, %v4355
        %4357 = vmatprep.mubr.f32.mxu0 %v3432
        %4358 = vmatmul.mubr.f32.gmra.mxu0 %v3431
        %v4359 = vpop.f32.mrf.mxu0
        %v4360 = vadd.f32 %v4103, %v4359
        %v4361 = vpop.f32.mrf.mxu0
        %v4362 = vadd.f32 %v4105, %v4361
        %4363 = vmatprep.mubr.f32.mxu0 %v3444
        %4364 = vmatmul.mubr.f32.gmra.mxu0 %v3443
        %v4365 = vpop.f32.mrf.mxu0
        %v4366 = vadd.f32 %v4109, %v4365
        %v4367 = vpop.f32.mrf.mxu0
        %v4368 = vadd.f32 %v4111, %v4367
        %4369 = vmatprep.mubr.f32.mxu0 %v3456
        %4370 = vmatmul.mubr.f32.gmra.mxu0 %v3455
        %v4371 = vpop.f32.mrf.mxu0
        %v4372 = vadd.f32 %v4115, %v4371
        %v4373 = vpop.f32.mrf.mxu0
        %v4374 = vadd.f32 %v4117, %v4373
        %4375 = vmatprep.mubr.f32.mxu0 %v3468
        %4376 = vmatmul.mubr.f32.gmra.mxu0 %v3467
        %v4377 = vpop.f32.mrf.mxu0
        %v4378 = vadd.f32 %v4121, %v4377
        %v4379 = vpop.f32.mrf.mxu0
        %v4380 = vadd.f32 %v4123, %v4379
        %4381 = vmatprep.mubr.f32.mxu0 %v3480
        %4382 = vmatmul.mubr.f32.gmra.mxu0 %v3479
        %v4383 = vpop.f32.mrf.mxu0
        %v4384 = vadd.f32 %v4127, %v4383
        %v4385 = vpop.f32.mrf.mxu0
        %v4386 = vadd.f32 %v4129, %v4385
        %4387 = vdwg.mxu0
        %4388 = vmatprep.subr.mxu0 %v3649
        %4389 = vmatpush1.msra.mxu0 %v3648
        %4390 = vmatprep.subr.mxu0 %v3647
        %4391 = vmatpush1.msra.mxu0 %v3646
        %4392 = vmatprep.subr.mxu0 %v3645
        %4393 = vmatpush1.msra.mxu0 %v3644
        %4394 = vmatprep.subr.mxu0 %v3643
        %4395 = vmatpush1.msra.mxu0 %v3642
        %4396 = vmatprep.subr.mxu0 %v3641
        %4397 = vmatpush1.msra.mxu0 %v3640
        %4398 = vmatprep.subr.mxu0 %v3639
        %4399 = vmatpush1.msra.mxu0 %v3638
        %4400 = vmatprep.subr.mxu0 %v3637
        %4401 = vmatpush1.msra.mxu0 %v3636
        %4402 = vmatprep.subr.mxu0 %v3635
        %4403 = vmatpush1.msra.mxu0 %v3634
        %4404 = vmatprep.subr.mxu0 %v3633
        %4405 = vmatpush1.msra.mxu0 %v3632
        %4406 = vmatprep.subr.mxu0 %v3631
        %4407 = vmatpush1.msra.mxu0 %v3630
        %4408 = vmatprep.subr.mxu0 %v3629
        %4409 = vmatpush1.msra.mxu0 %v3628
        %4410 = vmatprep.subr.mxu0 %v3627
        %4411 = vmatpush1.msra.mxu0 %v3626
        %4412 = vmatprep.subr.mxu0 %v3625
        %4413 = vmatpush1.msra.mxu0 %v3624
        %4414 = vmatprep.subr.mxu0 %v3623
        %4415 = vmatpush1.msra.mxu0 %v3622
        %4416 = vmatprep.subr.mxu0 %v3621
        %4417 = vmatpush1.msra.mxu0 %v3620
        %4418 = vmatprep.subr.mxu0 %v3619
        %4419 = vmatpush1.msra.mxu0 %v3618
        %4420 = vmatprep.subr.mxu0 %v3681
        %4421 = vmatpush2.msra.mxu0 %v3680
        %4422 = vmatprep.subr.mxu0 %v3679
        %4423 = vmatpush2.msra.mxu0 %v3678
        %4424 = vmatprep.subr.mxu0 %v3677
        %4425 = vmatpush2.msra.mxu0 %v3676
        %4426 = vmatprep.subr.mxu0 %v3675
        %4427 = vmatpush2.msra.mxu0 %v3674
        %4428 = vmatprep.subr.mxu0 %v3673
        %4429 = vmatpush2.msra.mxu0 %v3672
        %4430 = vmatprep.subr.mxu0 %v3671
        %4431 = vmatpush2.msra.mxu0 %v3670
        %4432 = vmatprep.subr.mxu0 %v3669
        %4433 = vmatpush2.msra.mxu0 %v3668
        %4434 = vmatprep.subr.mxu0 %v3667
        %4435 = vmatpush2.msra.mxu0 %v3666
        %4436 = vmatprep.subr.mxu0 %v3665
        %4437 = vmatpush2.msra.mxu0 %v3664
        %4438 = vmatprep.subr.mxu0 %v3663
        %4439 = vmatpush2.msra.mxu0 %v3662
        %4440 = vmatprep.subr.mxu0 %v3661
        %4441 = vmatpush2.msra.mxu0 %v3660
        %4442 = vmatprep.subr.mxu0 %v3659
        %4443 = vmatpush2.msra.mxu0 %v3658
        %4444 = vmatprep.subr.mxu0 %v3657
        %4445 = vmatpush2.msra.mxu0 %v3656
        %4446 = vmatprep.subr.mxu0 %v3655
        %4447 = vmatpush2.msra.mxu0 %v3654
        %4448 = vmatprep.subr.mxu0 %v3653
        %4449 = vmatpush2.msra.mxu0 %v3652
        %4450 = vmatprep.subr.mxu0 %v3651
        %4451 = vmatpush2.msra.mxu0 %v3650
        %4452 = vmatprep.mubr.f32.mxu0 %v3110
        %4453 = vmatmul.mubr.f32.gmra.mxu0 %v3109
        %v4454 = vpop.f32.mrf.mxu0
        %v4455 = vadd.f32 %v4198, %v4454
        %v4456 = vpop.f32.mrf.mxu0
        %v4457 = vadd.f32 %v4200, %v4456
        %4458 = vmatprep.mubr.f32.mxu0 %v3122
        %4459 = vmatmul.mubr.f32.gmra.mxu0 %v3121
        %v4460 = vpop.f32.mrf.mxu0
        %v4461 = vadd.f32 %v4204, %v4460
        %v4462 = vpop.f32.mrf.mxu0
        %v4463 = vadd.f32 %v4206, %v4462
        %4464 = vmatprep.mubr.f32.mxu0 %v3134
        %4465 = vmatmul.mubr.f32.gmra.mxu0 %v3133
        %v4466 = vpop.f32.mrf.mxu0
        %v4467 = vadd.f32 %v4210, %v4466
        %v4468 = vpop.f32.mrf.mxu0
        %v4469 = vadd.f32 %v4212, %v4468
        %4470 = vmatprep.mubr.f32.mxu0 %v3146
        %4471 = vmatmul.mubr.f32.gmra.mxu0 %v3145
        %v4472 = vpop.f32.mrf.mxu0
        %v4473 = vadd.f32 %v4216, %v4472
        %v4474 = vpop.f32.mrf.mxu0
        %v4475 = vadd.f32 %v4218, %v4474
        %4476 = vmatprep.mubr.f32.mxu0 %v3158
        %4477 = vmatmul.mubr.f32.gmra.mxu0 %v3157
        %v4478 = vpop.f32.mrf.mxu0
        %v4479 = vadd.f32 %v4222, %v4478
        %v4480 = vpop.f32.mrf.mxu0
        %v4481 = vadd.f32 %v4224, %v4480
        %4482 = vmatprep.mubr.f32.mxu0 %v3170
        %4483 = vmatmul.mubr.f32.gmra.mxu0 %v3169
        %v4484 = vpop.f32.mrf.mxu0
        %v4485 = vadd.f32 %v4228, %v4484
        %v4486 = vpop.f32.mrf.mxu0
        %v4487 = vadd.f32 %v4230, %v4486
        %4488 = vmatprep.mubr.f32.mxu0 %v3182
        %4489 = vmatmul.mubr.f32.gmra.mxu0 %v3181
        %v4490 = vpop.f32.mrf.mxu0
        %v4491 = vadd.f32 %v4234, %v4490
        %v4492 = vpop.f32.mrf.mxu0
        %v4493 = vadd.f32 %v4236, %v4492
        %4494 = vmatprep.mubr.f32.mxu0 %v3194
        %4495 = vmatmul.mubr.f32.gmra.mxu0 %v3193
        %v4496 = vpop.f32.mrf.mxu0
        %v4497 = vadd.f32 %v4240, %v4496
        %v4498 = vpop.f32.mrf.mxu0
        %v4499 = vadd.f32 %v4242, %v4498
        %4500 = vmatprep.mubr.f32.mxu0 %v3206
        %4501 = vmatmul.mubr.f32.gmra.mxu0 %v3205
        %v4502 = vpop.f32.mrf.mxu0
        %v4503 = vadd.f32 %v4246, %v4502
        %v4504 = vpop.f32.mrf.mxu0
        %v4505 = vadd.f32 %v4248, %v4504
        %4506 = vmatprep.mubr.f32.mxu0 %v3218
        %4507 = vmatmul.mubr.f32.gmra.mxu0 %v3217
        %v4508 = vpop.f32.mrf.mxu0
        %v4509 = vadd.f32 %v4252, %v4508
        %v4510 = vpop.f32.mrf.mxu0
        %v4511 = vadd.f32 %v4254, %v4510
        %4512 = vmatprep.mubr.f32.mxu0 %v3230
        %4513 = vmatmul.mubr.f32.gmra.mxu0 %v3229
        %v4514 = vpop.f32.mrf.mxu0
        %v4515 = vadd.f32 %v4258, %v4514
        %v4516 = vpop.f32.mrf.mxu0
        %v4517 = vadd.f32 %v4260, %v4516
        %4518 = vmatprep.mubr.f32.mxu0 %v3242
        %4519 = vmatmul.mubr.f32.gmra.mxu0 %v3241
        %v4520 = vpop.f32.mrf.mxu0
        %v4521 = vadd.f32 %v4264, %v4520
        %v4522 = vpop.f32.mrf.mxu0
        %v4523 = vadd.f32 %v4266, %v4522
        %4524 = vmatprep.mubr.f32.mxu0 %v3254
        %4525 = vmatmul.mubr.f32.gmra.mxu0 %v3253
        %v4526 = vpop.f32.mrf.mxu0
        %v4527 = vadd.f32 %v4270, %v4526
        %v4528 = vpop.f32.mrf.mxu0
        %v4529 = vadd.f32 %v4272, %v4528
        %4530 = vmatprep.mubr.f32.mxu0 %v3266
        %4531 = vmatmul.mubr.f32.gmra.mxu0 %v3265
        %v4532 = vpop.f32.mrf.mxu0
        %v4533 = vadd.f32 %v4276, %v4532
        %v4534 = vpop.f32.mrf.mxu0
        %v4535 = vadd.f32 %v4278, %v4534
        %4536 = vmatprep.mubr.f32.mxu0 %v3278
        %4537 = vmatmul.mubr.f32.gmra.mxu0 %v3277
        %v4538 = vpop.f32.mrf.mxu0
        %v4539 = vadd.f32 %v4282, %v4538
        %v4540 = vpop.f32.mrf.mxu0
        %v4541 = vadd.f32 %v4284, %v4540
        %4542 = vmatprep.mubr.f32.mxu0 %v3290
        %4543 = vmatmul.mubr.f32.gmra.mxu0 %v3289
        %v4544 = vpop.f32.mrf.mxu0
        %v4545 = vadd.f32 %v4288, %v4544
        %v4546 = vpop.f32.mrf.mxu0
        %v4547 = vadd.f32 %v4290, %v4546
        %4548 = vmatprep.mubr.f32.mxu0 %v3302
        %4549 = vmatmul.mubr.f32.gmra.mxu0 %v3301
        %v4550 = vpop.f32.mrf.mxu0
        %v4551 = vadd.f32 %v4294, %v4550
        %v4552 = vpop.f32.mrf.mxu0
        %v4553 = vadd.f32 %v4296, %v4552
        %4554 = vmatprep.mubr.f32.mxu0 %v3314
        %4555 = vmatmul.mubr.f32.gmra.mxu0 %v3313
        %v4556 = vpop.f32.mrf.mxu0
        %v4557 = vadd.f32 %v4300, %v4556
        %v4558 = vpop.f32.mrf.mxu0
        %v4559 = vadd.f32 %v4302, %v4558
        %4560 = vmatprep.mubr.f32.mxu0 %v3326
        %4561 = vmatmul.mubr.f32.gmra.mxu0 %v3325
        %v4562 = vpop.f32.mrf.mxu0
        %v4563 = vadd.f32 %v4306, %v4562
        %v4564 = vpop.f32.mrf.mxu0
        %v4565 = vadd.f32 %v4308, %v4564
        %4566 = vmatprep.mubr.f32.mxu0 %v3338
        %4567 = vmatmul.mubr.f32.gmra.mxu0 %v3337
        %v4568 = vpop.f32.mrf.mxu0
        %v4569 = vadd.f32 %v4312, %v4568
        %v4570 = vpop.f32.mrf.mxu0
        %v4571 = vadd.f32 %v4314, %v4570
        %4572 = vmatprep.mubr.f32.mxu0 %v3350
        %4573 = vmatmul.mubr.f32.gmra.mxu0 %v3349
        %v4574 = vpop.f32.mrf.mxu0
        %v4575 = vadd.f32 %v4318, %v4574
        %v4576 = vpop.f32.mrf.mxu0
        %v4577 = vadd.f32 %v4320, %v4576
        %4578 = vmatprep.mubr.f32.mxu0 %v3362
        %4579 = vmatmul.mubr.f32.gmra.mxu0 %v3361
        %v4580 = vpop.f32.mrf.mxu0
        %v4581 = vadd.f32 %v4324, %v4580
        %v4582 = vpop.f32.mrf.mxu0
        %v4583 = vadd.f32 %v4326, %v4582
        %4584 = vmatprep.mubr.f32.mxu0 %v3374
        %4585 = vmatmul.mubr.f32.gmra.mxu0 %v3373
        %v4586 = vpop.f32.mrf.mxu0
        %v4587 = vadd.f32 %v4330, %v4586
        %v4588 = vpop.f32.mrf.mxu0
        %v4589 = vadd.f32 %v4332, %v4588
        %4590 = vmatprep.mubr.f32.mxu0 %v3386
        %4591 = vmatmul.mubr.f32.gmra.mxu0 %v3385
        %v4592 = vpop.f32.mrf.mxu0
        %v4593 = vadd.f32 %v4336, %v4592
        %v4594 = vpop.f32.mrf.mxu0
        %v4595 = vadd.f32 %v4338, %v4594
        %4596 = vmatprep.mubr.f32.mxu0 %v3398
        %4597 = vmatmul.mubr.f32.gmra.mxu0 %v3397
        %v4598 = vpop.f32.mrf.mxu0
        %v4599 = vadd.f32 %v4342, %v4598
        %v4600 = vpop.f32.mrf.mxu0
        %v4601 = vadd.f32 %v4344, %v4600
        %4602 = vmatprep.mubr.f32.mxu0 %v3410
        %4603 = vmatmul.mubr.f32.gmra.mxu0 %v3409
        %v4604 = vpop.f32.mrf.mxu0
        %v4605 = vadd.f32 %v4348, %v4604
        %v4606 = vpop.f32.mrf.mxu0
        %v4607 = vadd.f32 %v4350, %v4606
        %4608 = vmatprep.mubr.f32.mxu0 %v3422
        %4609 = vmatmul.mubr.f32.gmra.mxu0 %v3421
        %v4610 = vpop.f32.mrf.mxu0
        %v4611 = vadd.f32 %v4354, %v4610
        %v4612 = vpop.f32.mrf.mxu0
        %v4613 = vadd.f32 %v4356, %v4612
        %4614 = vmatprep.mubr.f32.mxu0 %v3434
        %4615 = vmatmul.mubr.f32.gmra.mxu0 %v3433
        %v4616 = vpop.f32.mrf.mxu0
        %v4617 = vadd.f32 %v4360, %v4616
        %v4618 = vpop.f32.mrf.mxu0
        %v4619 = vadd.f32 %v4362, %v4618
        %4620 = vmatprep.mubr.f32.mxu0 %v3446
        %4621 = vmatmul.mubr.f32.gmra.mxu0 %v3445
        %v4622 = vpop.f32.mrf.mxu0
        %v4623 = vadd.f32 %v4366, %v4622
        %v4624 = vpop.f32.mrf.mxu0
        %v4625 = vadd.f32 %v4368, %v4624
        %4626 = vmatprep.mubr.f32.mxu0 %v3458
        %4627 = vmatmul.mubr.f32.gmra.mxu0 %v3457
        %v4628 = vpop.f32.mrf.mxu0
        %v4629 = vadd.f32 %v4372, %v4628
        %v4630 = vpop.f32.mrf.mxu0
        %v4631 = vadd.f32 %v4374, %v4630
        %4632 = vmatprep.mubr.f32.mxu0 %v3470
        %4633 = vmatmul.mubr.f32.gmra.mxu0 %v3469
        %v4634 = vpop.f32.mrf.mxu0
        %v4635 = vadd.f32 %v4378, %v4634
        %v4636 = vpop.f32.mrf.mxu0
        %v4637 = vadd.f32 %v4380, %v4636
        %4638 = vmatprep.mubr.f32.mxu0 %v3482
        %4639 = vmatmul.mubr.f32.gmra.mxu0 %v3481
        %v4640 = vpop.f32.mrf.mxu0
        %v4641 = vadd.f32 %v4384, %v4640
        %v4642 = vpop.f32.mrf.mxu0
        %v4643 = vadd.f32 %v4386, %v4642
        %4644 = vdwg.mxu0
        %4645 = vmatprep.subr.mxu0 %v3713
        %4646 = vmatpush1.msra.mxu0 %v3712
        %4647 = vmatprep.subr.mxu0 %v3711
        %4648 = vmatpush1.msra.mxu0 %v3710
        %4649 = vmatprep.subr.mxu0 %v3709
        %4650 = vmatpush1.msra.mxu0 %v3708
        %4651 = vmatprep.subr.mxu0 %v3707
        %4652 = vmatpush1.msra.mxu0 %v3706
        %4653 = vmatprep.subr.mxu0 %v3705
        %4654 = vmatpush1.msra.mxu0 %v3704
        %4655 = vmatprep.subr.mxu0 %v3703
        %4656 = vmatpush1.msra.mxu0 %v3702
        %4657 = vmatprep.subr.mxu0 %v3701
        %4658 = vmatpush1.msra.mxu0 %v3700
        %4659 = vmatprep.subr.mxu0 %v3699
        %4660 = vmatpush1.msra.mxu0 %v3698
        %4661 = vmatprep.subr.mxu0 %v3697
        %4662 = vmatpush1.msra.mxu0 %v3696
        %4663 = vmatprep.subr.mxu0 %v3695
        %4664 = vmatpush1.msra.mxu0 %v3694
        %4665 = vmatprep.subr.mxu0 %v3693
        %4666 = vmatpush1.msra.mxu0 %v3692
        %4667 = vmatprep.subr.mxu0 %v3691
        %4668 = vmatpush1.msra.mxu0 %v3690
        %4669 = vmatprep.subr.mxu0 %v3689
        %4670 = vmatpush1.msra.mxu0 %v3688
        %4671 = vmatprep.subr.mxu0 %v3687
        %4672 = vmatpush1.msra.mxu0 %v3686
        %4673 = vmatprep.subr.mxu0 %v3685
        %4674 = vmatpush1.msra.mxu0 %v3684
        %4675 = vmatprep.subr.mxu0 %v3683
        %4676 = vmatpush1.msra.mxu0 %v3682
        %4677 = vmatprep.subr.mxu0 %v3745
        %4678 = vmatpush2.msra.mxu0 %v3744
        %4679 = vmatprep.subr.mxu0 %v3743
        %4680 = vmatpush2.msra.mxu0 %v3742
        %4681 = vmatprep.subr.mxu0 %v3741
        %4682 = vmatpush2.msra.mxu0 %v3740
        %4683 = vmatprep.subr.mxu0 %v3739
        %4684 = vmatpush2.msra.mxu0 %v3738
        %4685 = vmatprep.subr.mxu0 %v3737
        %4686 = vmatpush2.msra.mxu0 %v3736
        %4687 = vmatprep.subr.mxu0 %v3735
        %4688 = vmatpush2.msra.mxu0 %v3734
        %4689 = vmatprep.subr.mxu0 %v3733
        %4690 = vmatpush2.msra.mxu0 %v3732
        %4691 = vmatprep.subr.mxu0 %v3731
        %4692 = vmatpush2.msra.mxu0 %v3730
        %4693 = vmatprep.subr.mxu0 %v3729
        %4694 = vmatpush2.msra.mxu0 %v3728
        %4695 = vmatprep.subr.mxu0 %v3727
        %4696 = vmatpush2.msra.mxu0 %v3726
        %4697 = vmatprep.subr.mxu0 %v3725
        %4698 = vmatpush2.msra.mxu0 %v3724
        %4699 = vmatprep.subr.mxu0 %v3723
        %4700 = vmatpush2.msra.mxu0 %v3722
        %4701 = vmatprep.subr.mxu0 %v3721
        %4702 = vmatpush2.msra.mxu0 %v3720
        %4703 = vmatprep.subr.mxu0 %v3719
        %4704 = vmatpush2.msra.mxu0 %v3718
        %4705 = vmatprep.subr.mxu0 %v3717
        %4706 = vmatpush2.msra.mxu0 %v3716
        %4707 = vmatprep.subr.mxu0 %v3715
        %4708 = vmatpush2.msra.mxu0 %v3714
        %4709 = vmatprep.mubr.f32.mxu0 %v3112
        %4710 = vmatmul.mubr.f32.gmra.mxu0 %v3111
        %v4711 = vpop.f32.mrf.mxu0
        %v4712 = vadd.f32 %v4455, %v4711
        %v4713 = vpop.f32.mrf.mxu0
        %v4714 = vadd.f32 %v4457, %v4713
        %4715 = vmatprep.mubr.f32.mxu0 %v3124
        %4716 = vmatmul.mubr.f32.gmra.mxu0 %v3123
        %v4717 = vpop.f32.mrf.mxu0
        %v4718 = vadd.f32 %v4461, %v4717
        %v4719 = vpop.f32.mrf.mxu0
        %v4720 = vadd.f32 %v4463, %v4719
        %4721 = vmatprep.mubr.f32.mxu0 %v3136
        %4722 = vmatmul.mubr.f32.gmra.mxu0 %v3135
        %v4723 = vpop.f32.mrf.mxu0
        %v4724 = vadd.f32 %v4467, %v4723
        %v4725 = vpop.f32.mrf.mxu0
        %v4726 = vadd.f32 %v4469, %v4725
        %4727 = vmatprep.mubr.f32.mxu0 %v3148
        %4728 = vmatmul.mubr.f32.gmra.mxu0 %v3147
        %v4729 = vpop.f32.mrf.mxu0
        %v4730 = vadd.f32 %v4473, %v4729
        %v4731 = vpop.f32.mrf.mxu0
        %v4732 = vadd.f32 %v4475, %v4731
        %4733 = vmatprep.mubr.f32.mxu0 %v3160
        %4734 = vmatmul.mubr.f32.gmra.mxu0 %v3159
        %v4735 = vpop.f32.mrf.mxu0
        %v4736 = vadd.f32 %v4479, %v4735
        %v4737 = vpop.f32.mrf.mxu0
        %v4738 = vadd.f32 %v4481, %v4737
        %4739 = vmatprep.mubr.f32.mxu0 %v3172
        %4740 = vmatmul.mubr.f32.gmra.mxu0 %v3171
        %v4741 = vpop.f32.mrf.mxu0
        %v4742 = vadd.f32 %v4485, %v4741
        %v4743 = vpop.f32.mrf.mxu0
        %v4744 = vadd.f32 %v4487, %v4743
        %4745 = vmatprep.mubr.f32.mxu0 %v3184
        %4746 = vmatmul.mubr.f32.gmra.mxu0 %v3183
        %v4747 = vpop.f32.mrf.mxu0
        %v4748 = vadd.f32 %v4491, %v4747
        %v4749 = vpop.f32.mrf.mxu0
        %v4750 = vadd.f32 %v4493, %v4749
        %4751 = vmatprep.mubr.f32.mxu0 %v3196
        %4752 = vmatmul.mubr.f32.gmra.mxu0 %v3195
        %v4753 = vpop.f32.mrf.mxu0
        %v4754 = vadd.f32 %v4497, %v4753
        %v4755 = vpop.f32.mrf.mxu0
        %v4756 = vadd.f32 %v4499, %v4755
        %4757 = vmatprep.mubr.f32.mxu0 %v3208
        %4758 = vmatmul.mubr.f32.gmra.mxu0 %v3207
        %v4759 = vpop.f32.mrf.mxu0
        %v4760 = vadd.f32 %v4503, %v4759
        %v4761 = vpop.f32.mrf.mxu0
        %v4762 = vadd.f32 %v4505, %v4761
        %4763 = vmatprep.mubr.f32.mxu0 %v3220
        %4764 = vmatmul.mubr.f32.gmra.mxu0 %v3219
        %v4765 = vpop.f32.mrf.mxu0
        %v4766 = vadd.f32 %v4509, %v4765
        %v4767 = vpop.f32.mrf.mxu0
        %v4768 = vadd.f32 %v4511, %v4767
        %4769 = vmatprep.mubr.f32.mxu0 %v3232
        %4770 = vmatmul.mubr.f32.gmra.mxu0 %v3231
        %v4771 = vpop.f32.mrf.mxu0
        %v4772 = vadd.f32 %v4515, %v4771
        %v4773 = vpop.f32.mrf.mxu0
        %v4774 = vadd.f32 %v4517, %v4773
        %4775 = vmatprep.mubr.f32.mxu0 %v3244
        %4776 = vmatmul.mubr.f32.gmra.mxu0 %v3243
        %v4777 = vpop.f32.mrf.mxu0
        %v4778 = vadd.f32 %v4521, %v4777
        %v4779 = vpop.f32.mrf.mxu0
        %v4780 = vadd.f32 %v4523, %v4779
        %4781 = vmatprep.mubr.f32.mxu0 %v3256
        %4782 = vmatmul.mubr.f32.gmra.mxu0 %v3255
        %v4783 = vpop.f32.mrf.mxu0
        %v4784 = vadd.f32 %v4527, %v4783
        %v4785 = vpop.f32.mrf.mxu0
        %v4786 = vadd.f32 %v4529, %v4785
        %4787 = vmatprep.mubr.f32.mxu0 %v3268
        %4788 = vmatmul.mubr.f32.gmra.mxu0 %v3267
        %v4789 = vpop.f32.mrf.mxu0
        %v4790 = vadd.f32 %v4533, %v4789
        %v4791 = vpop.f32.mrf.mxu0
        %v4792 = vadd.f32 %v4535, %v4791
        %4793 = vmatprep.mubr.f32.mxu0 %v3280
        %4794 = vmatmul.mubr.f32.gmra.mxu0 %v3279
        %v4795 = vpop.f32.mrf.mxu0
        %v4796 = vadd.f32 %v4539, %v4795
        %v4797 = vpop.f32.mrf.mxu0
        %v4798 = vadd.f32 %v4541, %v4797
        %4799 = vmatprep.mubr.f32.mxu0 %v3292
        %4800 = vmatmul.mubr.f32.gmra.mxu0 %v3291
        %v4801 = vpop.f32.mrf.mxu0
        %v4802 = vadd.f32 %v4545, %v4801
        %v4803 = vpop.f32.mrf.mxu0
        %v4804 = vadd.f32 %v4547, %v4803
        %4805 = vmatprep.mubr.f32.mxu0 %v3304
        %4806 = vmatmul.mubr.f32.gmra.mxu0 %v3303
        %v4807 = vpop.f32.mrf.mxu0
        %v4808 = vadd.f32 %v4551, %v4807
        %v4809 = vpop.f32.mrf.mxu0
        %v4810 = vadd.f32 %v4553, %v4809
        %4811 = vmatprep.mubr.f32.mxu0 %v3316
        %4812 = vmatmul.mubr.f32.gmra.mxu0 %v3315
        %v4813 = vpop.f32.mrf.mxu0
        %v4814 = vadd.f32 %v4557, %v4813
        %v4815 = vpop.f32.mrf.mxu0
        %v4816 = vadd.f32 %v4559, %v4815
        %4817 = vmatprep.mubr.f32.mxu0 %v3328
        %4818 = vmatmul.mubr.f32.gmra.mxu0 %v3327
        %v4819 = vpop.f32.mrf.mxu0
        %v4820 = vadd.f32 %v4563, %v4819
        %v4821 = vpop.f32.mrf.mxu0
        %v4822 = vadd.f32 %v4565, %v4821
        %4823 = vmatprep.mubr.f32.mxu0 %v3340
        %4824 = vmatmul.mubr.f32.gmra.mxu0 %v3339
        %v4825 = vpop.f32.mrf.mxu0
        %v4826 = vadd.f32 %v4569, %v4825
        %v4827 = vpop.f32.mrf.mxu0
        %v4828 = vadd.f32 %v4571, %v4827
        %4829 = vmatprep.mubr.f32.mxu0 %v3352
        %4830 = vmatmul.mubr.f32.gmra.mxu0 %v3351
        %v4831 = vpop.f32.mrf.mxu0
        %v4832 = vadd.f32 %v4575, %v4831
        %v4833 = vpop.f32.mrf.mxu0
        %v4834 = vadd.f32 %v4577, %v4833
        %4835 = vmatprep.mubr.f32.mxu0 %v3364
        %4836 = vmatmul.mubr.f32.gmra.mxu0 %v3363
        %v4837 = vpop.f32.mrf.mxu0
        %v4838 = vadd.f32 %v4581, %v4837
        %v4839 = vpop.f32.mrf.mxu0
        %v4840 = vadd.f32 %v4583, %v4839
        %4841 = vmatprep.mubr.f32.mxu0 %v3376
        %4842 = vmatmul.mubr.f32.gmra.mxu0 %v3375
        %v4843 = vpop.f32.mrf.mxu0
        %v4844 = vadd.f32 %v4587, %v4843
        %v4845 = vpop.f32.mrf.mxu0
        %v4846 = vadd.f32 %v4589, %v4845
        %4847 = vmatprep.mubr.f32.mxu0 %v3388
        %4848 = vmatmul.mubr.f32.gmra.mxu0 %v3387
        %v4849 = vpop.f32.mrf.mxu0
        %v4850 = vadd.f32 %v4593, %v4849
        %v4851 = vpop.f32.mrf.mxu0
        %v4852 = vadd.f32 %v4595, %v4851
        %4853 = vmatprep.mubr.f32.mxu0 %v3400
        %4854 = vmatmul.mubr.f32.gmra.mxu0 %v3399
        %v4855 = vpop.f32.mrf.mxu0
        %v4856 = vadd.f32 %v4599, %v4855
        %v4857 = vpop.f32.mrf.mxu0
        %v4858 = vadd.f32 %v4601, %v4857
        %4859 = vmatprep.mubr.f32.mxu0 %v3412
        %4860 = vmatmul.mubr.f32.gmra.mxu0 %v3411
        %v4861 = vpop.f32.mrf.mxu0
        %v4862 = vadd.f32 %v4605, %v4861
        %v4863 = vpop.f32.mrf.mxu0
        %v4864 = vadd.f32 %v4607, %v4863
        %4865 = vmatprep.mubr.f32.mxu0 %v3424
        %4866 = vmatmul.mubr.f32.gmra.mxu0 %v3423
        %v4867 = vpop.f32.mrf.mxu0
        %v4868 = vadd.f32 %v4611, %v4867
        %v4869 = vpop.f32.mrf.mxu0
        %v4870 = vadd.f32 %v4613, %v4869
        %4871 = vmatprep.mubr.f32.mxu0 %v3436
        %4872 = vmatmul.mubr.f32.gmra.mxu0 %v3435
        %v4873 = vpop.f32.mrf.mxu0
        %v4874 = vadd.f32 %v4617, %v4873
        %v4875 = vpop.f32.mrf.mxu0
        %v4876 = vadd.f32 %v4619, %v4875
        %4877 = vmatprep.mubr.f32.mxu0 %v3448
        %4878 = vmatmul.mubr.f32.gmra.mxu0 %v3447
        %v4879 = vpop.f32.mrf.mxu0
        %v4880 = vadd.f32 %v4623, %v4879
        %v4881 = vpop.f32.mrf.mxu0
        %v4882 = vadd.f32 %v4625, %v4881
        %4883 = vmatprep.mubr.f32.mxu0 %v3460
        %4884 = vmatmul.mubr.f32.gmra.mxu0 %v3459
        %v4885 = vpop.f32.mrf.mxu0
        %v4886 = vadd.f32 %v4629, %v4885
        %v4887 = vpop.f32.mrf.mxu0
        %v4888 = vadd.f32 %v4631, %v4887
        %4889 = vmatprep.mubr.f32.mxu0 %v3472
        %4890 = vmatmul.mubr.f32.gmra.mxu0 %v3471
        %v4891 = vpop.f32.mrf.mxu0
        %v4892 = vadd.f32 %v4635, %v4891
        %v4893 = vpop.f32.mrf.mxu0
        %v4894 = vadd.f32 %v4637, %v4893
        %4895 = vmatprep.mubr.f32.mxu0 %v3484
        %4896 = vmatmul.mubr.f32.gmra.mxu0 %v3483
        %v4897 = vpop.f32.mrf.mxu0
        %v4898 = vadd.f32 %v4641, %v4897
        %v4899 = vpop.f32.mrf.mxu0
        %v4900 = vadd.f32 %v4643, %v4899
        %4901 = vdwg.mxu0
        %4902 = vmatprep.subr.mxu0 %v3777
        %4903 = vmatpush1.msra.mxu0 %v3776
        %4904 = vmatprep.subr.mxu0 %v3775
        %4905 = vmatpush1.msra.mxu0 %v3774
        %4906 = vmatprep.subr.mxu0 %v3773
        %4907 = vmatpush1.msra.mxu0 %v3772
        %4908 = vmatprep.subr.mxu0 %v3771
        %4909 = vmatpush1.msra.mxu0 %v3770
        %4910 = vmatprep.subr.mxu0 %v3769
        %4911 = vmatpush1.msra.mxu0 %v3768
        %4912 = vmatprep.subr.mxu0 %v3767
        %4913 = vmatpush1.msra.mxu0 %v3766
        %4914 = vmatprep.subr.mxu0 %v3765
        %4915 = vmatpush1.msra.mxu0 %v3764
        %4916 = vmatprep.subr.mxu0 %v3763
        %4917 = vmatpush1.msra.mxu0 %v3762
        %4918 = vmatprep.subr.mxu0 %v3761
        %4919 = vmatpush1.msra.mxu0 %v3760
        %4920 = vmatprep.subr.mxu0 %v3759
        %4921 = vmatpush1.msra.mxu0 %v3758
        %4922 = vmatprep.subr.mxu0 %v3757
        %4923 = vmatpush1.msra.mxu0 %v3756
        %4924 = vmatprep.subr.mxu0 %v3755
        %4925 = vmatpush1.msra.mxu0 %v3754
        %4926 = vmatprep.subr.mxu0 %v3753
        %4927 = vmatpush1.msra.mxu0 %v3752
        %4928 = vmatprep.subr.mxu0 %v3751
        %4929 = vmatpush1.msra.mxu0 %v3750
        %4930 = vmatprep.subr.mxu0 %v3749
        %4931 = vmatpush1.msra.mxu0 %v3748
        %4932 = vmatprep.subr.mxu0 %v3747
        %4933 = vmatpush1.msra.mxu0 %v3746
        %4934 = vmatprep.subr.mxu0 %v3809
        %4935 = vmatpush2.msra.mxu0 %v3808
        %4936 = vmatprep.subr.mxu0 %v3807
        %4937 = vmatpush2.msra.mxu0 %v3806
        %4938 = vmatprep.subr.mxu0 %v3805
        %4939 = vmatpush2.msra.mxu0 %v3804
        %4940 = vmatprep.subr.mxu0 %v3803
        %4941 = vmatpush2.msra.mxu0 %v3802
        %4942 = vmatprep.subr.mxu0 %v3801
        %4943 = vmatpush2.msra.mxu0 %v3800
        %4944 = vmatprep.subr.mxu0 %v3799
        %4945 = vmatpush2.msra.mxu0 %v3798
        %4946 = vmatprep.subr.mxu0 %v3797
        %4947 = vmatpush2.msra.mxu0 %v3796
        %4948 = vmatprep.subr.mxu0 %v3795
        %4949 = vmatpush2.msra.mxu0 %v3794
        %4950 = vmatprep.subr.mxu0 %v3793
        %4951 = vmatpush2.msra.mxu0 %v3792
        %4952 = vmatprep.subr.mxu0 %v3791
        %4953 = vmatpush2.msra.mxu0 %v3790
        %4954 = vmatprep.subr.mxu0 %v3789
        %4955 = vmatpush2.msra.mxu0 %v3788
        %4956 = vmatprep.subr.mxu0 %v3787
        %4957 = vmatpush2.msra.mxu0 %v3786
        %4958 = vmatprep.subr.mxu0 %v3785
        %4959 = vmatpush2.msra.mxu0 %v3784
        %4960 = vmatprep.subr.mxu0 %v3783
        %4961 = vmatpush2.msra.mxu0 %v3782
        %4962 = vmatprep.subr.mxu0 %v3781
        %4963 = vmatpush2.msra.mxu0 %v3780
        %4964 = vmatprep.subr.mxu0 %v3779
        %4965 = vmatpush2.msra.mxu0 %v3778
        %4966 = vmatprep.mubr.f32.mxu0 %v3114
        %4967 = vmatmul.mubr.f32.gmra.mxu0 %v3113
        %v4968 = vpop.f32.mrf.mxu0
        %v4969 = vadd.f32 %v4712, %v4968
        %v4970 = vpop.f32.mrf.mxu0
        %v4971 = vadd.f32 %v4714, %v4970
        %4972 = vmatprep.mubr.f32.mxu0 %v3126
        %4973 = vmatmul.mubr.f32.gmra.mxu0 %v3125
        %v4974 = vpop.f32.mrf.mxu0
        %v4975 = vadd.f32 %v4718, %v4974
        %v4976 = vpop.f32.mrf.mxu0
        %v4977 = vadd.f32 %v4720, %v4976
        %4978 = vmatprep.mubr.f32.mxu0 %v3138
        %4979 = vmatmul.mubr.f32.gmra.mxu0 %v3137
        %v4980 = vpop.f32.mrf.mxu0
        %v4981 = vadd.f32 %v4724, %v4980
        %v4982 = vpop.f32.mrf.mxu0
        %v4983 = vadd.f32 %v4726, %v4982
        %4984 = vmatprep.mubr.f32.mxu0 %v3150
        %4985 = vmatmul.mubr.f32.gmra.mxu0 %v3149
        %v4986 = vpop.f32.mrf.mxu0
        %v4987 = vadd.f32 %v4730, %v4986
        %v4988 = vpop.f32.mrf.mxu0
        %v4989 = vadd.f32 %v4732, %v4988
        %4990 = vmatprep.mubr.f32.mxu0 %v3162
        %4991 = vmatmul.mubr.f32.gmra.mxu0 %v3161
        %v4992 = vpop.f32.mrf.mxu0
        %v4993 = vadd.f32 %v4736, %v4992
        %v4994 = vpop.f32.mrf.mxu0
        %v4995 = vadd.f32 %v4738, %v4994
        %4996 = vmatprep.mubr.f32.mxu0 %v3174
        %4997 = vmatmul.mubr.f32.gmra.mxu0 %v3173
        %v4998 = vpop.f32.mrf.mxu0
        %v4999 = vadd.f32 %v4742, %v4998
        %v5000 = vpop.f32.mrf.mxu0
        %v5001 = vadd.f32 %v4744, %v5000
        %5002 = vmatprep.mubr.f32.mxu0 %v3186
        %5003 = vmatmul.mubr.f32.gmra.mxu0 %v3185
        %v5004 = vpop.f32.mrf.mxu0
        %v5005 = vadd.f32 %v4748, %v5004
        %v5006 = vpop.f32.mrf.mxu0
        %v5007 = vadd.f32 %v4750, %v5006
        %5008 = vmatprep.mubr.f32.mxu0 %v3198
        %5009 = vmatmul.mubr.f32.gmra.mxu0 %v3197
        %v5010 = vpop.f32.mrf.mxu0
        %v5011 = vadd.f32 %v4754, %v5010
        %v5012 = vpop.f32.mrf.mxu0
        %v5013 = vadd.f32 %v4756, %v5012
        %5014 = vmatprep.mubr.f32.mxu0 %v3210
        %5015 = vmatmul.mubr.f32.gmra.mxu0 %v3209
        %v5016 = vpop.f32.mrf.mxu0
        %v5017 = vadd.f32 %v4760, %v5016
        %v5018 = vpop.f32.mrf.mxu0
        %v5019 = vadd.f32 %v4762, %v5018
        %5020 = vmatprep.mubr.f32.mxu0 %v3222
        %5021 = vmatmul.mubr.f32.gmra.mxu0 %v3221
        %v5022 = vpop.f32.mrf.mxu0
        %v5023 = vadd.f32 %v4766, %v5022
        %v5024 = vpop.f32.mrf.mxu0
        %v5025 = vadd.f32 %v4768, %v5024
        %5026 = vmatprep.mubr.f32.mxu0 %v3234
        %5027 = vmatmul.mubr.f32.gmra.mxu0 %v3233
        %v5028 = vpop.f32.mrf.mxu0
        %v5029 = vadd.f32 %v4772, %v5028
        %v5030 = vpop.f32.mrf.mxu0
        %v5031 = vadd.f32 %v4774, %v5030
        %5032 = vmatprep.mubr.f32.mxu0 %v3246
        %5033 = vmatmul.mubr.f32.gmra.mxu0 %v3245
        %v5034 = vpop.f32.mrf.mxu0
        %v5035 = vadd.f32 %v4778, %v5034
        %v5036 = vpop.f32.mrf.mxu0
        %v5037 = vadd.f32 %v4780, %v5036
        %5038 = vmatprep.mubr.f32.mxu0 %v3258
        %5039 = vmatmul.mubr.f32.gmra.mxu0 %v3257
        %v5040 = vpop.f32.mrf.mxu0
        %v5041 = vadd.f32 %v4784, %v5040
        %v5042 = vpop.f32.mrf.mxu0
        %v5043 = vadd.f32 %v4786, %v5042
        %5044 = vmatprep.mubr.f32.mxu0 %v3270
        %5045 = vmatmul.mubr.f32.gmra.mxu0 %v3269
        %v5046 = vpop.f32.mrf.mxu0
        %v5047 = vadd.f32 %v4790, %v5046
        %v5048 = vpop.f32.mrf.mxu0
        %v5049 = vadd.f32 %v4792, %v5048
        %5050 = vmatprep.mubr.f32.mxu0 %v3282
        %5051 = vmatmul.mubr.f32.gmra.mxu0 %v3281
        %v5052 = vpop.f32.mrf.mxu0
        %v5053 = vadd.f32 %v4796, %v5052
        %v5054 = vpop.f32.mrf.mxu0
        %v5055 = vadd.f32 %v4798, %v5054
        %5056 = vmatprep.mubr.f32.mxu0 %v3294
        %5057 = vmatmul.mubr.f32.gmra.mxu0 %v3293
        %v5058 = vpop.f32.mrf.mxu0
        %v5059 = vadd.f32 %v4802, %v5058
        %v5060 = vpop.f32.mrf.mxu0
        %v5061 = vadd.f32 %v4804, %v5060
        %5062 = vmatprep.mubr.f32.mxu0 %v3306
        %5063 = vmatmul.mubr.f32.gmra.mxu0 %v3305
        %v5064 = vpop.f32.mrf.mxu0
        %v5065 = vadd.f32 %v4808, %v5064
        %v5066 = vpop.f32.mrf.mxu0
        %v5067 = vadd.f32 %v4810, %v5066
        %5068 = vmatprep.mubr.f32.mxu0 %v3318
        %5069 = vmatmul.mubr.f32.gmra.mxu0 %v3317
        %v5070 = vpop.f32.mrf.mxu0
        %v5071 = vadd.f32 %v4814, %v5070
        %v5072 = vpop.f32.mrf.mxu0
        %v5073 = vadd.f32 %v4816, %v5072
        %5074 = vmatprep.mubr.f32.mxu0 %v3330
        %5075 = vmatmul.mubr.f32.gmra.mxu0 %v3329
        %v5076 = vpop.f32.mrf.mxu0
        %v5077 = vadd.f32 %v4820, %v5076
        %v5078 = vpop.f32.mrf.mxu0
        %v5079 = vadd.f32 %v4822, %v5078
        %5080 = vmatprep.mubr.f32.mxu0 %v3342
        %5081 = vmatmul.mubr.f32.gmra.mxu0 %v3341
        %v5082 = vpop.f32.mrf.mxu0
        %v5083 = vadd.f32 %v4826, %v5082
        %v5084 = vpop.f32.mrf.mxu0
        %v5085 = vadd.f32 %v4828, %v5084
        %5086 = vmatprep.mubr.f32.mxu0 %v3354
        %5087 = vmatmul.mubr.f32.gmra.mxu0 %v3353
        %v5088 = vpop.f32.mrf.mxu0
        %v5089 = vadd.f32 %v4832, %v5088
        %v5090 = vpop.f32.mrf.mxu0
        %v5091 = vadd.f32 %v4834, %v5090
        %5092 = vmatprep.mubr.f32.mxu0 %v3366
        %5093 = vmatmul.mubr.f32.gmra.mxu0 %v3365
        %v5094 = vpop.f32.mrf.mxu0
        %v5095 = vadd.f32 %v4838, %v5094
        %v5096 = vpop.f32.mrf.mxu0
        %v5097 = vadd.f32 %v4840, %v5096
        %5098 = vmatprep.mubr.f32.mxu0 %v3378
        %5099 = vmatmul.mubr.f32.gmra.mxu0 %v3377
        %v5100 = vpop.f32.mrf.mxu0
        %v5101 = vadd.f32 %v4844, %v5100
        %v5102 = vpop.f32.mrf.mxu0
        %v5103 = vadd.f32 %v4846, %v5102
        %5104 = vmatprep.mubr.f32.mxu0 %v3390
        %5105 = vmatmul.mubr.f32.gmra.mxu0 %v3389
        %v5106 = vpop.f32.mrf.mxu0
        %v5107 = vadd.f32 %v4850, %v5106
        %v5108 = vpop.f32.mrf.mxu0
        %v5109 = vadd.f32 %v4852, %v5108
        %5110 = vmatprep.mubr.f32.mxu0 %v3402
        %5111 = vmatmul.mubr.f32.gmra.mxu0 %v3401
        %v5112 = vpop.f32.mrf.mxu0
        %v5113 = vadd.f32 %v4856, %v5112
        %v5114 = vpop.f32.mrf.mxu0
        %v5115 = vadd.f32 %v4858, %v5114
        %5116 = vmatprep.mubr.f32.mxu0 %v3414
        %5117 = vmatmul.mubr.f32.gmra.mxu0 %v3413
        %v5118 = vpop.f32.mrf.mxu0
        %v5119 = vadd.f32 %v4862, %v5118
        %v5120 = vpop.f32.mrf.mxu0
        %v5121 = vadd.f32 %v4864, %v5120
        %5122 = vmatprep.mubr.f32.mxu0 %v3426
        %5123 = vmatmul.mubr.f32.gmra.mxu0 %v3425
        %v5124 = vpop.f32.mrf.mxu0
        %v5125 = vadd.f32 %v4868, %v5124
        %v5126 = vpop.f32.mrf.mxu0
        %v5127 = vadd.f32 %v4870, %v5126
        %5128 = vmatprep.mubr.f32.mxu0 %v3438
        %5129 = vmatmul.mubr.f32.gmra.mxu0 %v3437
        %v5130 = vpop.f32.mrf.mxu0
        %v5131 = vadd.f32 %v4874, %v5130
        %v5132 = vpop.f32.mrf.mxu0
        %v5133 = vadd.f32 %v4876, %v5132
        %5134 = vmatprep.mubr.f32.mxu0 %v3450
        %5135 = vmatmul.mubr.f32.gmra.mxu0 %v3449
        %v5136 = vpop.f32.mrf.mxu0
        %v5137 = vadd.f32 %v4880, %v5136
        %v5138 = vpop.f32.mrf.mxu0
        %v5139 = vadd.f32 %v4882, %v5138
        %5140 = vmatprep.mubr.f32.mxu0 %v3462
        %5141 = vmatmul.mubr.f32.gmra.mxu0 %v3461
        %v5142 = vpop.f32.mrf.mxu0
        %v5143 = vadd.f32 %v4886, %v5142
        %v5144 = vpop.f32.mrf.mxu0
        %v5145 = vadd.f32 %v4888, %v5144
        %5146 = vmatprep.mubr.f32.mxu0 %v3474
        %5147 = vmatmul.mubr.f32.gmra.mxu0 %v3473
        %v5148 = vpop.f32.mrf.mxu0
        %v5149 = vadd.f32 %v4892, %v5148
        %v5150 = vpop.f32.mrf.mxu0
        %v5151 = vadd.f32 %v4894, %v5150
        %5152 = vmatprep.mubr.f32.mxu0 %v3486
        %5153 = vmatmul.mubr.f32.gmra.mxu0 %v3485
        %v5154 = vpop.f32.mrf.mxu0
        %v5155 = vadd.f32 %v4898, %v5154
        %v5156 = vpop.f32.mrf.mxu0
        %v5157 = vadd.f32 %v4900, %v5156
        %5158 = vdwg.mxu0
        %5159 = vmatprep.subr.mxu0 %v3841
        %5160 = vmatpush1.msra.mxu0 %v3840
        %5161 = vmatprep.subr.mxu0 %v3839
        %5162 = vmatpush1.msra.mxu0 %v3838
        %5163 = vmatprep.subr.mxu0 %v3837
        %5164 = vmatpush1.msra.mxu0 %v3836
        %5165 = vmatprep.subr.mxu0 %v3835
        %5166 = vmatpush1.msra.mxu0 %v3834
        %5167 = vmatprep.subr.mxu0 %v3833
        %5168 = vmatpush1.msra.mxu0 %v3832
        %5169 = vmatprep.subr.mxu0 %v3831
        %5170 = vmatpush1.msra.mxu0 %v3830
        %5171 = vmatprep.subr.mxu0 %v3829
        %5172 = vmatpush1.msra.mxu0 %v3828
        %5173 = vmatprep.subr.mxu0 %v3827
        %5174 = vmatpush1.msra.mxu0 %v3826
        %5175 = vmatprep.subr.mxu0 %v3825
        %5176 = vmatpush1.msra.mxu0 %v3824
        %5177 = vmatprep.subr.mxu0 %v3823
        %5178 = vmatpush1.msra.mxu0 %v3822
        %5179 = vmatprep.subr.mxu0 %v3821
        %5180 = vmatpush1.msra.mxu0 %v3820
        %5181 = vmatprep.subr.mxu0 %v3819
        %5182 = vmatpush1.msra.mxu0 %v3818
        %5183 = vmatprep.subr.mxu0 %v3817
        %5184 = vmatpush1.msra.mxu0 %v3816
        %5185 = vmatprep.subr.mxu0 %v3815
        %5186 = vmatpush1.msra.mxu0 %v3814
        %5187 = vmatprep.subr.mxu0 %v3813
        %5188 = vmatpush1.msra.mxu0 %v3812
        %5189 = vmatprep.subr.mxu0 %v3811
        %5190 = vmatpush1.msra.mxu0 %v3810
        %5191 = vmatprep.subr.mxu0 %v3873
        %5192 = vmatpush2.msra.mxu0 %v3872
        %5193 = vmatprep.subr.mxu0 %v3871
        %5194 = vmatpush2.msra.mxu0 %v3870
        %5195 = vmatprep.subr.mxu0 %v3869
        %5196 = vmatpush2.msra.mxu0 %v3868
        %5197 = vmatprep.subr.mxu0 %v3867
        %5198 = vmatpush2.msra.mxu0 %v3866
        %5199 = vmatprep.subr.mxu0 %v3865
        %5200 = vmatpush2.msra.mxu0 %v3864
        %5201 = vmatprep.subr.mxu0 %v3863
        %5202 = vmatpush2.msra.mxu0 %v3862
        %5203 = vmatprep.subr.mxu0 %v3861
        %5204 = vmatpush2.msra.mxu0 %v3860
        %5205 = vmatprep.subr.mxu0 %v3859
        %5206 = vmatpush2.msra.mxu0 %v3858
        %5207 = vmatprep.subr.mxu0 %v3857
        %5208 = vmatpush2.msra.mxu0 %v3856
        %5209 = vmatprep.subr.mxu0 %v3855
        %5210 = vmatpush2.msra.mxu0 %v3854
        %5211 = vmatprep.subr.mxu0 %v3853
        %5212 = vmatpush2.msra.mxu0 %v3852
        %5213 = vmatprep.subr.mxu0 %v3851
        %5214 = vmatpush2.msra.mxu0 %v3850
        %5215 = vmatprep.subr.mxu0 %v3849
        %5216 = vmatpush2.msra.mxu0 %v3848
        %5217 = vmatprep.subr.mxu0 %v3847
        %5218 = vmatpush2.msra.mxu0 %v3846
        %5219 = vmatprep.subr.mxu0 %v3845
        %5220 = vmatpush2.msra.mxu0 %v3844
        %5221 = vmatprep.subr.mxu0 %v3843
        %5222 = vmatpush2.msra.mxu0 %v3842
        %5223 = vmatprep.mubr.f32.mxu0 %v3116
        %5224 = vmatmul.mubr.f32.gmra.mxu0 %v3115
        %v5225 = vpop.f32.mrf.mxu0
        %v5226 = vadd.f32 %v4969, %v5225
        %v5227 = vpop.f32.mrf.mxu0
        %v5228 = vadd.f32 %v4971, %v5227
        %5229 = vmatprep.mubr.f32.mxu0 %v3128
        %5230 = vmatmul.mubr.f32.gmra.mxu0 %v3127
        %v5231 = vpop.f32.mrf.mxu0
        %v5232 = vadd.f32 %v4975, %v5231
        %v5233 = vpop.f32.mrf.mxu0
        %v5234 = vadd.f32 %v4977, %v5233
        %5235 = vmatprep.mubr.f32.mxu0 %v3140
        %5236 = vmatmul.mubr.f32.gmra.mxu0 %v3139
        %v5237 = vpop.f32.mrf.mxu0
        %v5238 = vadd.f32 %v4981, %v5237
        %v5239 = vpop.f32.mrf.mxu0
        %v5240 = vadd.f32 %v4983, %v5239
        %5241 = vmatprep.mubr.f32.mxu0 %v3152
        %5242 = vmatmul.mubr.f32.gmra.mxu0 %v3151
        %v5243 = vpop.f32.mrf.mxu0
        %v5244 = vadd.f32 %v4987, %v5243
        %v5245 = vpop.f32.mrf.mxu0
        %v5246 = vadd.f32 %v4989, %v5245
        %5247 = vmatprep.mubr.f32.mxu0 %v3164
        %5248 = vmatmul.mubr.f32.gmra.mxu0 %v3163
        %v5249 = vpop.f32.mrf.mxu0
        %v5250 = vadd.f32 %v4993, %v5249
        %v5251 = vpop.f32.mrf.mxu0
        %v5252 = vadd.f32 %v4995, %v5251
        %5253 = vmatprep.mubr.f32.mxu0 %v3176
        %5254 = vmatmul.mubr.f32.gmra.mxu0 %v3175
        %v5255 = vpop.f32.mrf.mxu0
        %v5256 = vadd.f32 %v4999, %v5255
        %v5257 = vpop.f32.mrf.mxu0
        %v5258 = vadd.f32 %v5001, %v5257
        %5259 = vmatprep.mubr.f32.mxu0 %v3188
        %5260 = vmatmul.mubr.f32.gmra.mxu0 %v3187
        %v5261 = vpop.f32.mrf.mxu0
        %v5262 = vadd.f32 %v5005, %v5261
        %v5263 = vpop.f32.mrf.mxu0
        %v5264 = vadd.f32 %v5007, %v5263
        %5265 = vmatprep.mubr.f32.mxu0 %v3200
        %5266 = vmatmul.mubr.f32.gmra.mxu0 %v3199
        %v5267 = vpop.f32.mrf.mxu0
        %v5268 = vadd.f32 %v5011, %v5267
        %v5269 = vpop.f32.mrf.mxu0
        %v5270 = vadd.f32 %v5013, %v5269
        %5271 = vmatprep.mubr.f32.mxu0 %v3212
        %5272 = vmatmul.mubr.f32.gmra.mxu0 %v3211
        %v5273 = vpop.f32.mrf.mxu0
        %v5274 = vadd.f32 %v5017, %v5273
        %v5275 = vpop.f32.mrf.mxu0
        %v5276 = vadd.f32 %v5019, %v5275
        %5277 = vmatprep.mubr.f32.mxu0 %v3224
        %5278 = vmatmul.mubr.f32.gmra.mxu0 %v3223
        %v5279 = vpop.f32.mrf.mxu0
        %v5280 = vadd.f32 %v5023, %v5279
        %v5281 = vpop.f32.mrf.mxu0
        %v5282 = vadd.f32 %v5025, %v5281
        %5283 = vmatprep.mubr.f32.mxu0 %v3236
        %5284 = vmatmul.mubr.f32.gmra.mxu0 %v3235
        %v5285 = vpop.f32.mrf.mxu0
        %v5286 = vadd.f32 %v5029, %v5285
        %v5287 = vpop.f32.mrf.mxu0
        %v5288 = vadd.f32 %v5031, %v5287
        %5289 = vmatprep.mubr.f32.mxu0 %v3248
        %5290 = vmatmul.mubr.f32.gmra.mxu0 %v3247
        %v5291 = vpop.f32.mrf.mxu0
        %v5292 = vadd.f32 %v5035, %v5291
        %v5293 = vpop.f32.mrf.mxu0
        %v5294 = vadd.f32 %v5037, %v5293
        %5295 = vmatprep.mubr.f32.mxu0 %v3260
        %5296 = vmatmul.mubr.f32.gmra.mxu0 %v3259
        %v5297 = vpop.f32.mrf.mxu0
        %v5298 = vadd.f32 %v5041, %v5297
        %v5299 = vpop.f32.mrf.mxu0
        %v5300 = vadd.f32 %v5043, %v5299
        %5301 = vmatprep.mubr.f32.mxu0 %v3272
        %5302 = vmatmul.mubr.f32.gmra.mxu0 %v3271
        %v5303 = vpop.f32.mrf.mxu0
        %v5304 = vadd.f32 %v5047, %v5303
        %v5305 = vpop.f32.mrf.mxu0
        %v5306 = vadd.f32 %v5049, %v5305
        %5307 = vmatprep.mubr.f32.mxu0 %v3284
        %5308 = vmatmul.mubr.f32.gmra.mxu0 %v3283
        %v5309 = vpop.f32.mrf.mxu0
        %v5310 = vadd.f32 %v5053, %v5309
        %v5311 = vpop.f32.mrf.mxu0
        %v5312 = vadd.f32 %v5055, %v5311
        %5313 = vmatprep.mubr.f32.mxu0 %v3296
        %5314 = vmatmul.mubr.f32.gmra.mxu0 %v3295
        %v5315 = vpop.f32.mrf.mxu0
        %v5316 = vadd.f32 %v5059, %v5315
        %v5317 = vpop.f32.mrf.mxu0
        %v5318 = vadd.f32 %v5061, %v5317
        %5319 = vmatprep.mubr.f32.mxu0 %v3308
        %5320 = vmatmul.mubr.f32.gmra.mxu0 %v3307
        %v5321 = vpop.f32.mrf.mxu0
        %v5322 = vadd.f32 %v5065, %v5321
        %v5323 = vpop.f32.mrf.mxu0
        %v5324 = vadd.f32 %v5067, %v5323
        %5325 = vmatprep.mubr.f32.mxu0 %v3320
        %5326 = vmatmul.mubr.f32.gmra.mxu0 %v3319
        %v5327 = vpop.f32.mrf.mxu0
        %v5328 = vadd.f32 %v5071, %v5327
        %v5329 = vpop.f32.mrf.mxu0
        %v5330 = vadd.f32 %v5073, %v5329
        %5331 = vmatprep.mubr.f32.mxu0 %v3332
        %5332 = vmatmul.mubr.f32.gmra.mxu0 %v3331
        %v5333 = vpop.f32.mrf.mxu0
        %v5334 = vadd.f32 %v5077, %v5333
        %v5335 = vpop.f32.mrf.mxu0
        %v5336 = vadd.f32 %v5079, %v5335
        %5337 = vmatprep.mubr.f32.mxu0 %v3344
        %5338 = vmatmul.mubr.f32.gmra.mxu0 %v3343
        %v5339 = vpop.f32.mrf.mxu0
        %v5340 = vadd.f32 %v5083, %v5339
        %v5341 = vpop.f32.mrf.mxu0
        %v5342 = vadd.f32 %v5085, %v5341
        %5343 = vmatprep.mubr.f32.mxu0 %v3356
        %5344 = vmatmul.mubr.f32.gmra.mxu0 %v3355
        %v5345 = vpop.f32.mrf.mxu0
        %v5346 = vadd.f32 %v5089, %v5345
        %v5347 = vpop.f32.mrf.mxu0
        %v5348 = vadd.f32 %v5091, %v5347
        %5349 = vmatprep.mubr.f32.mxu0 %v3368
        %5350 = vmatmul.mubr.f32.gmra.mxu0 %v3367
        %v5351 = vpop.f32.mrf.mxu0
        %v5352 = vadd.f32 %v5095, %v5351
        %v5353 = vpop.f32.mrf.mxu0
        %v5354 = vadd.f32 %v5097, %v5353
        %5355 = vmatprep.mubr.f32.mxu0 %v3380
        %5356 = vmatmul.mubr.f32.gmra.mxu0 %v3379
        %v5357 = vpop.f32.mrf.mxu0
        %v5358 = vadd.f32 %v5101, %v5357
        %v5359 = vpop.f32.mrf.mxu0
        %v5360 = vadd.f32 %v5103, %v5359
        %5361 = vmatprep.mubr.f32.mxu0 %v3392
        %5362 = vmatmul.mubr.f32.gmra.mxu0 %v3391
        %v5363 = vpop.f32.mrf.mxu0
        %v5364 = vadd.f32 %v5107, %v5363
        %v5365 = vpop.f32.mrf.mxu0
        %v5366 = vadd.f32 %v5109, %v5365
        %5367 = vmatprep.mubr.f32.mxu0 %v3404
        %5368 = vmatmul.mubr.f32.gmra.mxu0 %v3403
        %v5369 = vpop.f32.mrf.mxu0
        %v5370 = vadd.f32 %v5113, %v5369
        %v5371 = vpop.f32.mrf.mxu0
        %v5372 = vadd.f32 %v5115, %v5371
        %5373 = vmatprep.mubr.f32.mxu0 %v3416
        %5374 = vmatmul.mubr.f32.gmra.mxu0 %v3415
        %v5375 = vpop.f32.mrf.mxu0
        %v5376 = vadd.f32 %v5119, %v5375
        %v5377 = vpop.f32.mrf.mxu0
        %v5378 = vadd.f32 %v5121, %v5377
        %5379 = vmatprep.mubr.f32.mxu0 %v3428
        %5380 = vmatmul.mubr.f32.gmra.mxu0 %v3427
        %v5381 = vpop.f32.mrf.mxu0
        %v5382 = vadd.f32 %v5125, %v5381
        %v5383 = vpop.f32.mrf.mxu0
        %v5384 = vadd.f32 %v5127, %v5383
        %5385 = vmatprep.mubr.f32.mxu0 %v3440
        %5386 = vmatmul.mubr.f32.gmra.mxu0 %v3439
        %v5387 = vpop.f32.mrf.mxu0
        %v5388 = vadd.f32 %v5131, %v5387
        %v5389 = vpop.f32.mrf.mxu0
        %v5390 = vadd.f32 %v5133, %v5389
        %5391 = vmatprep.mubr.f32.mxu0 %v3452
        %5392 = vmatmul.mubr.f32.gmra.mxu0 %v3451
        %v5393 = vpop.f32.mrf.mxu0
        %v5394 = vadd.f32 %v5137, %v5393
        %v5395 = vpop.f32.mrf.mxu0
        %v5396 = vadd.f32 %v5139, %v5395
        %5397 = vmatprep.mubr.f32.mxu0 %v3464
        %5398 = vmatmul.mubr.f32.gmra.mxu0 %v3463
        %v5399 = vpop.f32.mrf.mxu0
        %v5400 = vadd.f32 %v5143, %v5399
        %v5401 = vpop.f32.mrf.mxu0
        %v5402 = vadd.f32 %v5145, %v5401
        %5403 = vmatprep.mubr.f32.mxu0 %v3476
        %5404 = vmatmul.mubr.f32.gmra.mxu0 %v3475
        %v5405 = vpop.f32.mrf.mxu0
        %v5406 = vadd.f32 %v5149, %v5405
        %v5407 = vpop.f32.mrf.mxu0
        %v5408 = vadd.f32 %v5151, %v5407
        %5409 = vmatprep.mubr.f32.mxu0 %v3488
        %5410 = vmatmul.mubr.f32.gmra.mxu0 %v3487
        %v5411 = vpop.f32.mrf.mxu0
        %v5412 = vadd.f32 %v5155, %v5411
        %v5413 = vpop.f32.mrf.mxu0
        %v5414 = vadd.f32 %v5157, %v5413
        %5415 = vdwg.mxu0
        %5416 = vmatprep.subr.mxu0 %v2752
        %5417 = vmatpush1.msra.mxu0 %v2751
        %5418 = vmatprep.subr.mxu0 %v2750
        %5419 = vmatpush1.msra.mxu0 %v2749
        %5420 = vmatprep.subr.mxu0 %v2748
        %5421 = vmatpush1.msra.mxu0 %v2747
        %5422 = vmatprep.subr.mxu0 %v2746
        %5423 = vmatpush1.msra.mxu0 %v2745
        %5424 = vmatprep.subr.mxu0 %v2744
        %5425 = vmatpush1.msra.mxu0 %v2743
        %5426 = vmatprep.subr.mxu0 %v2742
        %5427 = vmatpush1.msra.mxu0 %v2741
        %5428 = vmatprep.subr.mxu0 %v2740
        %5429 = vmatpush1.msra.mxu0 %v2739
        %5430 = vmatprep.subr.mxu0 %v2738
        %5431 = vmatpush1.msra.mxu0 %v2737
        %5432 = vmatprep.subr.mxu0 %v2736
        %5433 = vmatpush1.msra.mxu0 %v2735
        %5434 = vmatprep.subr.mxu0 %v2734
        %5435 = vmatpush1.msra.mxu0 %v2733
        %5436 = vmatprep.subr.mxu0 %v2732
        %5437 = vmatpush1.msra.mxu0 %v2731
        %5438 = vmatprep.subr.mxu0 %v2730
        %5439 = vmatpush1.msra.mxu0 %v2729
        %5440 = vmatprep.subr.mxu0 %v2728
        %5441 = vmatpush1.msra.mxu0 %v2727
        %5442 = vmatprep.subr.mxu0 %v2726
        %5443 = vmatpush1.msra.mxu0 %v2725
        %5444 = vmatprep.subr.mxu0 %v2724
        %5445 = vmatpush1.msra.mxu0 %v2723
        %5446 = vmatprep.subr.mxu0 %v2722
        %5447 = vmatpush1.msra.mxu0 %v2721
        %5448 = vmatprep.subr.mxu0 %v2784
        %5449 = vmatpush2.msra.mxu0 %v2783
        %5450 = vmatprep.subr.mxu0 %v2782
        %5451 = vmatpush2.msra.mxu0 %v2781
        %5452 = vmatprep.subr.mxu0 %v2780
        %5453 = vmatpush2.msra.mxu0 %v2779
        %5454 = vmatprep.subr.mxu0 %v2778
        %5455 = vmatpush2.msra.mxu0 %v2777
        %5456 = vmatprep.subr.mxu0 %v2776
        %5457 = vmatpush2.msra.mxu0 %v2775
        %5458 = vmatprep.subr.mxu0 %v2774
        %5459 = vmatpush2.msra.mxu0 %v2773
        %5460 = vmatprep.subr.mxu0 %v2772
        %5461 = vmatpush2.msra.mxu0 %v2771
        %5462 = vmatprep.subr.mxu0 %v2770
        %5463 = vmatpush2.msra.mxu0 %v2769
        %5464 = vmatprep.subr.mxu0 %v2768
        %5465 = vmatpush2.msra.mxu0 %v2767
        %5466 = vmatprep.subr.mxu0 %v2766
        %5467 = vmatpush2.msra.mxu0 %v2765
        %5468 = vmatprep.subr.mxu0 %v2764
        %5469 = vmatpush2.msra.mxu0 %v2763
        %5470 = vmatprep.subr.mxu0 %v2762
        %5471 = vmatpush2.msra.mxu0 %v2761
        %5472 = vmatprep.subr.mxu0 %v2760
        %5473 = vmatpush2.msra.mxu0 %v2759
        %5474 = vmatprep.subr.mxu0 %v2758
        %5475 = vmatpush2.msra.mxu0 %v2757
        %5476 = vmatprep.subr.mxu0 %v2756
        %5477 = vmatpush2.msra.mxu0 %v2755
        %5478 = vmatprep.subr.mxu0 %v2754
        %5479 = vmatpush2.msra.mxu0 %v2753
        %5480 = vmatprep.mubr.f32.mxu0 %v2338
        %5481 = vmatmul.mubr.f32.gmra.mxu0 %v2337
        %v5482 = vpop.f32.mrf.mxu0
        %v5483 = vadd.f32 %v5226, %v5482
        %v5484 = vpop.f32.mrf.mxu0
        %v5485 = vadd.f32 %v5228, %v5484
        %5486 = vmatprep.mubr.f32.mxu0 %v2350
        %5487 = vmatmul.mubr.f32.gmra.mxu0 %v2349
        %v5488 = vpop.f32.mrf.mxu0
        %v5489 = vadd.f32 %v5232, %v5488
        %v5490 = vpop.f32.mrf.mxu0
        %v5491 = vadd.f32 %v5234, %v5490
        %5492 = vmatprep.mubr.f32.mxu0 %v2362
        %5493 = vmatmul.mubr.f32.gmra.mxu0 %v2361
        %v5494 = vpop.f32.mrf.mxu0
        %v5495 = vadd.f32 %v5238, %v5494
        %v5496 = vpop.f32.mrf.mxu0
        %v5497 = vadd.f32 %v5240, %v5496
        %5498 = vmatprep.mubr.f32.mxu0 %v2374
        %5499 = vmatmul.mubr.f32.gmra.mxu0 %v2373
        %v5500 = vpop.f32.mrf.mxu0
        %v5501 = vadd.f32 %v5244, %v5500
        %v5502 = vpop.f32.mrf.mxu0
        %v5503 = vadd.f32 %v5246, %v5502
        %5504 = vmatprep.mubr.f32.mxu0 %v2386
        %5505 = vmatmul.mubr.f32.gmra.mxu0 %v2385
        %v5506 = vpop.f32.mrf.mxu0
        %v5507 = vadd.f32 %v5250, %v5506
        %v5508 = vpop.f32.mrf.mxu0
        %v5509 = vadd.f32 %v5252, %v5508
        %5510 = vmatprep.mubr.f32.mxu0 %v2398
        %5511 = vmatmul.mubr.f32.gmra.mxu0 %v2397
        %v5512 = vpop.f32.mrf.mxu0
        %v5513 = vadd.f32 %v5256, %v5512
        %v5514 = vpop.f32.mrf.mxu0
        %v5515 = vadd.f32 %v5258, %v5514
        %5516 = vmatprep.mubr.f32.mxu0 %v2410
        %5517 = vmatmul.mubr.f32.gmra.mxu0 %v2409
        %v5518 = vpop.f32.mrf.mxu0
        %v5519 = vadd.f32 %v5262, %v5518
        %v5520 = vpop.f32.mrf.mxu0
        %v5521 = vadd.f32 %v5264, %v5520
        %5522 = vmatprep.mubr.f32.mxu0 %v2422
        %5523 = vmatmul.mubr.f32.gmra.mxu0 %v2421
        %v5524 = vpop.f32.mrf.mxu0
        %v5525 = vadd.f32 %v5268, %v5524
        %v5526 = vpop.f32.mrf.mxu0
        %v5527 = vadd.f32 %v5270, %v5526
        %5528 = vmatprep.mubr.f32.mxu0 %v2434
        %5529 = vmatmul.mubr.f32.gmra.mxu0 %v2433
        %v5530 = vpop.f32.mrf.mxu0
        %v5531 = vadd.f32 %v5274, %v5530
        %v5532 = vpop.f32.mrf.mxu0
        %v5533 = vadd.f32 %v5276, %v5532
        %5534 = vmatprep.mubr.f32.mxu0 %v2446
        %5535 = vmatmul.mubr.f32.gmra.mxu0 %v2445
        %v5536 = vpop.f32.mrf.mxu0
        %v5537 = vadd.f32 %v5280, %v5536
        %v5538 = vpop.f32.mrf.mxu0
        %v5539 = vadd.f32 %v5282, %v5538
        %5540 = vmatprep.mubr.f32.mxu0 %v2458
        %5541 = vmatmul.mubr.f32.gmra.mxu0 %v2457
        %v5542 = vpop.f32.mrf.mxu0
        %v5543 = vadd.f32 %v5286, %v5542
        %v5544 = vpop.f32.mrf.mxu0
        %v5545 = vadd.f32 %v5288, %v5544
        %5546 = vmatprep.mubr.f32.mxu0 %v2470
        %5547 = vmatmul.mubr.f32.gmra.mxu0 %v2469
        %v5548 = vpop.f32.mrf.mxu0
        %v5549 = vadd.f32 %v5292, %v5548
        %v5550 = vpop.f32.mrf.mxu0
        %v5551 = vadd.f32 %v5294, %v5550
        %5552 = vmatprep.mubr.f32.mxu0 %v2482
        %5553 = vmatmul.mubr.f32.gmra.mxu0 %v2481
        %v5554 = vpop.f32.mrf.mxu0
        %v5555 = vadd.f32 %v5298, %v5554
        %v5556 = vpop.f32.mrf.mxu0
        %v5557 = vadd.f32 %v5300, %v5556
        %5558 = vmatprep.mubr.f32.mxu0 %v2494
        %5559 = vmatmul.mubr.f32.gmra.mxu0 %v2493
        %v5560 = vpop.f32.mrf.mxu0
        %v5561 = vadd.f32 %v5304, %v5560
        %v5562 = vpop.f32.mrf.mxu0
        %v5563 = vadd.f32 %v5306, %v5562
        %5564 = vmatprep.mubr.f32.mxu0 %v2506
        %5565 = vmatmul.mubr.f32.gmra.mxu0 %v2505
        %v5566 = vpop.f32.mrf.mxu0
        %v5567 = vadd.f32 %v5310, %v5566
        %v5568 = vpop.f32.mrf.mxu0
        %v5569 = vadd.f32 %v5312, %v5568
        %5570 = vmatprep.mubr.f32.mxu0 %v2518
        %5571 = vmatmul.mubr.f32.gmra.mxu0 %v2517
        %v5572 = vpop.f32.mrf.mxu0
        %v5573 = vadd.f32 %v5316, %v5572
        %v5574 = vpop.f32.mrf.mxu0
        %v5575 = vadd.f32 %v5318, %v5574
        %5576 = vmatprep.mubr.f32.mxu0 %v2530
        %5577 = vmatmul.mubr.f32.gmra.mxu0 %v2529
        %v5578 = vpop.f32.mrf.mxu0
        %v5579 = vadd.f32 %v5322, %v5578
        %v5580 = vpop.f32.mrf.mxu0
        %v5581 = vadd.f32 %v5324, %v5580
        %5582 = vmatprep.mubr.f32.mxu0 %v2542
        %5583 = vmatmul.mubr.f32.gmra.mxu0 %v2541
        %v5584 = vpop.f32.mrf.mxu0
        %v5585 = vadd.f32 %v5328, %v5584
        %v5586 = vpop.f32.mrf.mxu0
        %v5587 = vadd.f32 %v5330, %v5586
        %5588 = vmatprep.mubr.f32.mxu0 %v2554
        %5589 = vmatmul.mubr.f32.gmra.mxu0 %v2553
        %v5590 = vpop.f32.mrf.mxu0
        %v5591 = vadd.f32 %v5334, %v5590
        %v5592 = vpop.f32.mrf.mxu0
        %v5593 = vadd.f32 %v5336, %v5592
        %5594 = vmatprep.mubr.f32.mxu0 %v2566
        %5595 = vmatmul.mubr.f32.gmra.mxu0 %v2565
        %v5596 = vpop.f32.mrf.mxu0
        %v5597 = vadd.f32 %v5340, %v5596
        %v5598 = vpop.f32.mrf.mxu0
        %v5599 = vadd.f32 %v5342, %v5598
        %5600 = vmatprep.mubr.f32.mxu0 %v2578
        %5601 = vmatmul.mubr.f32.gmra.mxu0 %v2577
        %v5602 = vpop.f32.mrf.mxu0
        %v5603 = vadd.f32 %v5346, %v5602
        %v5604 = vpop.f32.mrf.mxu0
        %v5605 = vadd.f32 %v5348, %v5604
        %5606 = vmatprep.mubr.f32.mxu0 %v2590
        %5607 = vmatmul.mubr.f32.gmra.mxu0 %v2589
        %v5608 = vpop.f32.mrf.mxu0
        %v5609 = vadd.f32 %v5352, %v5608
        %v5610 = vpop.f32.mrf.mxu0
        %v5611 = vadd.f32 %v5354, %v5610
        %5612 = vmatprep.mubr.f32.mxu0 %v2602
        %5613 = vmatmul.mubr.f32.gmra.mxu0 %v2601
        %v5614 = vpop.f32.mrf.mxu0
        %v5615 = vadd.f32 %v5358, %v5614
        %v5616 = vpop.f32.mrf.mxu0
        %v5617 = vadd.f32 %v5360, %v5616
        %5618 = vmatprep.mubr.f32.mxu0 %v2614
        %5619 = vmatmul.mubr.f32.gmra.mxu0 %v2613
        %v5620 = vpop.f32.mrf.mxu0
        %v5621 = vadd.f32 %v5364, %v5620
        %v5622 = vpop.f32.mrf.mxu0
        %v5623 = vadd.f32 %v5366, %v5622
        %5624 = vmatprep.mubr.f32.mxu0 %v2626
        %5625 = vmatmul.mubr.f32.gmra.mxu0 %v2625
        %v5626 = vpop.f32.mrf.mxu0
        %v5627 = vadd.f32 %v5370, %v5626
        %v5628 = vpop.f32.mrf.mxu0
        %v5629 = vadd.f32 %v5372, %v5628
        %5630 = vmatprep.mubr.f32.mxu0 %v2638
        %5631 = vmatmul.mubr.f32.gmra.mxu0 %v2637
        %v5632 = vpop.f32.mrf.mxu0
        %v5633 = vadd.f32 %v5376, %v5632
        %v5634 = vpop.f32.mrf.mxu0
        %v5635 = vadd.f32 %v5378, %v5634
        %5636 = vmatprep.mubr.f32.mxu0 %v2650
        %5637 = vmatmul.mubr.f32.gmra.mxu0 %v2649
        %v5638 = vpop.f32.mrf.mxu0
        %v5639 = vadd.f32 %v5382, %v5638
        %v5640 = vpop.f32.mrf.mxu0
        %v5641 = vadd.f32 %v5384, %v5640
        %5642 = vmatprep.mubr.f32.mxu0 %v2662
        %5643 = vmatmul.mubr.f32.gmra.mxu0 %v2661
        %v5644 = vpop.f32.mrf.mxu0
        %v5645 = vadd.f32 %v5388, %v5644
        %v5646 = vpop.f32.mrf.mxu0
        %v5647 = vadd.f32 %v5390, %v5646
        %5648 = vmatprep.mubr.f32.mxu0 %v2674
        %5649 = vmatmul.mubr.f32.gmra.mxu0 %v2673
        %v5650 = vpop.f32.mrf.mxu0
        %v5651 = vadd.f32 %v5394, %v5650
        %v5652 = vpop.f32.mrf.mxu0
        %v5653 = vadd.f32 %v5396, %v5652
        %5654 = vmatprep.mubr.f32.mxu0 %v2686
        %5655 = vmatmul.mubr.f32.gmra.mxu0 %v2685
        %v5656 = vpop.f32.mrf.mxu0
        %v5657 = vadd.f32 %v5400, %v5656
        %v5658 = vpop.f32.mrf.mxu0
        %v5659 = vadd.f32 %v5402, %v5658
        %5660 = vmatprep.mubr.f32.mxu0 %v2698
        %5661 = vmatmul.mubr.f32.gmra.mxu0 %v2697
        %v5662 = vpop.f32.mrf.mxu0
        %v5663 = vadd.f32 %v5406, %v5662
        %v5664 = vpop.f32.mrf.mxu0
        %v5665 = vadd.f32 %v5408, %v5664
        %5666 = vmatprep.mubr.f32.mxu0 %v2710
        %5667 = vmatmul.mubr.f32.gmra.mxu0 %v2709
        %v5668 = vpop.f32.mrf.mxu0
        %v5669 = vadd.f32 %v5412, %v5668
        %v5670 = vpop.f32.mrf.mxu0
        %v5671 = vadd.f32 %v5414, %v5670
        %5672 = vdwg.mxu0
        %5673 = vmatprep.subr.mxu0 %v2816
        %5674 = vmatpush1.msra.mxu0 %v2815
        %5675 = vmatprep.subr.mxu0 %v2814
        %5676 = vmatpush1.msra.mxu0 %v2813
        %5677 = vmatprep.subr.mxu0 %v2812
        %5678 = vmatpush1.msra.mxu0 %v2811
        %5679 = vmatprep.subr.mxu0 %v2810
        %5680 = vmatpush1.msra.mxu0 %v2809
        %5681 = vmatprep.subr.mxu0 %v2808
        %5682 = vmatpush1.msra.mxu0 %v2807
        %5683 = vmatprep.subr.mxu0 %v2806
        %5684 = vmatpush1.msra.mxu0 %v2805
        %5685 = vmatprep.subr.mxu0 %v2804
        %5686 = vmatpush1.msra.mxu0 %v2803
        %5687 = vmatprep.subr.mxu0 %v2802
        %5688 = vmatpush1.msra.mxu0 %v2801
        %5689 = vmatprep.subr.mxu0 %v2800
        %5690 = vmatpush1.msra.mxu0 %v2799
        %5691 = vmatprep.subr.mxu0 %v2798
        %5692 = vmatpush1.msra.mxu0 %v2797
        %5693 = vmatprep.subr.mxu0 %v2796
        %5694 = vmatpush1.msra.mxu0 %v2795
        %5695 = vmatprep.subr.mxu0 %v2794
        %5696 = vmatpush1.msra.mxu0 %v2793
        %5697 = vmatprep.subr.mxu0 %v2792
        %5698 = vmatpush1.msra.mxu0 %v2791
        %5699 = vmatprep.subr.mxu0 %v2790
        %5700 = vmatpush1.msra.mxu0 %v2789
        %5701 = vmatprep.subr.mxu0 %v2788
        %5702 = vmatpush1.msra.mxu0 %v2787
        %5703 = vmatprep.subr.mxu0 %v2786
        %5704 = vmatpush1.msra.mxu0 %v2785
        %5705 = vmatprep.subr.mxu0 %v2848
        %5706 = vmatpush2.msra.mxu0 %v2847
        %5707 = vmatprep.subr.mxu0 %v2846
        %5708 = vmatpush2.msra.mxu0 %v2845
        %5709 = vmatprep.subr.mxu0 %v2844
        %5710 = vmatpush2.msra.mxu0 %v2843
        %5711 = vmatprep.subr.mxu0 %v2842
        %5712 = vmatpush2.msra.mxu0 %v2841
        %5713 = vmatprep.subr.mxu0 %v2840
        %5714 = vmatpush2.msra.mxu0 %v2839
        %5715 = vmatprep.subr.mxu0 %v2838
        %5716 = vmatpush2.msra.mxu0 %v2837
        %5717 = vmatprep.subr.mxu0 %v2836
        %5718 = vmatpush2.msra.mxu0 %v2835
        %5719 = vmatprep.subr.mxu0 %v2834
        %5720 = vmatpush2.msra.mxu0 %v2833
        %5721 = vmatprep.subr.mxu0 %v2832
        %5722 = vmatpush2.msra.mxu0 %v2831
        %5723 = vmatprep.subr.mxu0 %v2830
        %5724 = vmatpush2.msra.mxu0 %v2829
        %5725 = vmatprep.subr.mxu0 %v2828
        %5726 = vmatpush2.msra.mxu0 %v2827
        %5727 = vmatprep.subr.mxu0 %v2826
        %5728 = vmatpush2.msra.mxu0 %v2825
        %5729 = vmatprep.subr.mxu0 %v2824
        %5730 = vmatpush2.msra.mxu0 %v2823
        %5731 = vmatprep.subr.mxu0 %v2822
        %5732 = vmatpush2.msra.mxu0 %v2821
        %5733 = vmatprep.subr.mxu0 %v2820
        %5734 = vmatpush2.msra.mxu0 %v2819
        %5735 = vmatprep.subr.mxu0 %v2818
        %5736 = vmatpush2.msra.mxu0 %v2817
        %5737 = vmatprep.mubr.f32.mxu0 %v2340
        %5738 = vmatmul.mubr.f32.gmra.mxu0 %v2339
        %v5739 = vpop.f32.mrf.mxu0
        %v5740 = vadd.f32 %v5483, %v5739
        %v5741 = vpop.f32.mrf.mxu0
        %v5742 = vadd.f32 %v5485, %v5741
        %5743 = vmatprep.mubr.f32.mxu0 %v2352
        %5744 = vmatmul.mubr.f32.gmra.mxu0 %v2351
        %v5745 = vpop.f32.mrf.mxu0
        %v5746 = vadd.f32 %v5489, %v5745
        %v5747 = vpop.f32.mrf.mxu0
        %v5748 = vadd.f32 %v5491, %v5747
        %5749 = vmatprep.mubr.f32.mxu0 %v2364
        %5750 = vmatmul.mubr.f32.gmra.mxu0 %v2363
        %v5751 = vpop.f32.mrf.mxu0
        %v5752 = vadd.f32 %v5495, %v5751
        %v5753 = vpop.f32.mrf.mxu0
        %v5754 = vadd.f32 %v5497, %v5753
        %5755 = vmatprep.mubr.f32.mxu0 %v2376
        %5756 = vmatmul.mubr.f32.gmra.mxu0 %v2375
        %v5757 = vpop.f32.mrf.mxu0
        %v5758 = vadd.f32 %v5501, %v5757
        %v5759 = vpop.f32.mrf.mxu0
        %v5760 = vadd.f32 %v5503, %v5759
        %5761 = vmatprep.mubr.f32.mxu0 %v2388
        %5762 = vmatmul.mubr.f32.gmra.mxu0 %v2387
        %v5763 = vpop.f32.mrf.mxu0
        %v5764 = vadd.f32 %v5507, %v5763
        %v5765 = vpop.f32.mrf.mxu0
        %v5766 = vadd.f32 %v5509, %v5765
        %5767 = vmatprep.mubr.f32.mxu0 %v2400
        %5768 = vmatmul.mubr.f32.gmra.mxu0 %v2399
        %v5769 = vpop.f32.mrf.mxu0
        %v5770 = vadd.f32 %v5513, %v5769
        %v5771 = vpop.f32.mrf.mxu0
        %v5772 = vadd.f32 %v5515, %v5771
        %5773 = vmatprep.mubr.f32.mxu0 %v2412
        %5774 = vmatmul.mubr.f32.gmra.mxu0 %v2411
        %v5775 = vpop.f32.mrf.mxu0
        %v5776 = vadd.f32 %v5519, %v5775
        %v5777 = vpop.f32.mrf.mxu0
        %v5778 = vadd.f32 %v5521, %v5777
        %5779 = vmatprep.mubr.f32.mxu0 %v2424
        %5780 = vmatmul.mubr.f32.gmra.mxu0 %v2423
        %v5781 = vpop.f32.mrf.mxu0
        %v5782 = vadd.f32 %v5525, %v5781
        %v5783 = vpop.f32.mrf.mxu0
        %v5784 = vadd.f32 %v5527, %v5783
        %5785 = vmatprep.mubr.f32.mxu0 %v2436
        %5786 = vmatmul.mubr.f32.gmra.mxu0 %v2435
        %v5787 = vpop.f32.mrf.mxu0
        %v5788 = vadd.f32 %v5531, %v5787
        %v5789 = vpop.f32.mrf.mxu0
        %v5790 = vadd.f32 %v5533, %v5789
        %5791 = vmatprep.mubr.f32.mxu0 %v2448
        %5792 = vmatmul.mubr.f32.gmra.mxu0 %v2447
        %v5793 = vpop.f32.mrf.mxu0
        %v5794 = vadd.f32 %v5537, %v5793
        %v5795 = vpop.f32.mrf.mxu0
        %v5796 = vadd.f32 %v5539, %v5795
        %5797 = vmatprep.mubr.f32.mxu0 %v2460
        %5798 = vmatmul.mubr.f32.gmra.mxu0 %v2459
        %v5799 = vpop.f32.mrf.mxu0
        %v5800 = vadd.f32 %v5543, %v5799
        %v5801 = vpop.f32.mrf.mxu0
        %v5802 = vadd.f32 %v5545, %v5801
        %5803 = vmatprep.mubr.f32.mxu0 %v2472
        %5804 = vmatmul.mubr.f32.gmra.mxu0 %v2471
        %v5805 = vpop.f32.mrf.mxu0
        %v5806 = vadd.f32 %v5549, %v5805
        %v5807 = vpop.f32.mrf.mxu0
        %v5808 = vadd.f32 %v5551, %v5807
        %5809 = vmatprep.mubr.f32.mxu0 %v2484
        %5810 = vmatmul.mubr.f32.gmra.mxu0 %v2483
        %v5811 = vpop.f32.mrf.mxu0
        %v5812 = vadd.f32 %v5555, %v5811
        %v5813 = vpop.f32.mrf.mxu0
        %v5814 = vadd.f32 %v5557, %v5813
        %5815 = vmatprep.mubr.f32.mxu0 %v2496
        %5816 = vmatmul.mubr.f32.gmra.mxu0 %v2495
        %v5817 = vpop.f32.mrf.mxu0
        %v5818 = vadd.f32 %v5561, %v5817
        %v5819 = vpop.f32.mrf.mxu0
        %v5820 = vadd.f32 %v5563, %v5819
        %5821 = vmatprep.mubr.f32.mxu0 %v2508
        %5822 = vmatmul.mubr.f32.gmra.mxu0 %v2507
        %v5823 = vpop.f32.mrf.mxu0
        %v5824 = vadd.f32 %v5567, %v5823
        %v5825 = vpop.f32.mrf.mxu0
        %v5826 = vadd.f32 %v5569, %v5825
        %5827 = vmatprep.mubr.f32.mxu0 %v2520
        %5828 = vmatmul.mubr.f32.gmra.mxu0 %v2519
        %v5829 = vpop.f32.mrf.mxu0
        %v5830 = vadd.f32 %v5573, %v5829
        %v5831 = vpop.f32.mrf.mxu0
        %v5832 = vadd.f32 %v5575, %v5831
        %5833 = vmatprep.mubr.f32.mxu0 %v2532
        %5834 = vmatmul.mubr.f32.gmra.mxu0 %v2531
        %v5835 = vpop.f32.mrf.mxu0
        %v5836 = vadd.f32 %v5579, %v5835
        %v5837 = vpop.f32.mrf.mxu0
        %v5838 = vadd.f32 %v5581, %v5837
        %5839 = vmatprep.mubr.f32.mxu0 %v2544
        %5840 = vmatmul.mubr.f32.gmra.mxu0 %v2543
        %v5841 = vpop.f32.mrf.mxu0
        %v5842 = vadd.f32 %v5585, %v5841
        %v5843 = vpop.f32.mrf.mxu0
        %v5844 = vadd.f32 %v5587, %v5843
        %5845 = vmatprep.mubr.f32.mxu0 %v2556
        %5846 = vmatmul.mubr.f32.gmra.mxu0 %v2555
        %v5847 = vpop.f32.mrf.mxu0
        %v5848 = vadd.f32 %v5591, %v5847
        %v5849 = vpop.f32.mrf.mxu0
        %v5850 = vadd.f32 %v5593, %v5849
        %5851 = vmatprep.mubr.f32.mxu0 %v2568
        %5852 = vmatmul.mubr.f32.gmra.mxu0 %v2567
        %v5853 = vpop.f32.mrf.mxu0
        %v5854 = vadd.f32 %v5597, %v5853
        %v5855 = vpop.f32.mrf.mxu0
        %v5856 = vadd.f32 %v5599, %v5855
        %5857 = vmatprep.mubr.f32.mxu0 %v2580
        %5858 = vmatmul.mubr.f32.gmra.mxu0 %v2579
        %v5859 = vpop.f32.mrf.mxu0
        %v5860 = vadd.f32 %v5603, %v5859
        %v5861 = vpop.f32.mrf.mxu0
        %v5862 = vadd.f32 %v5605, %v5861
        %5863 = vmatprep.mubr.f32.mxu0 %v2592
        %5864 = vmatmul.mubr.f32.gmra.mxu0 %v2591
        %v5865 = vpop.f32.mrf.mxu0
        %v5866 = vadd.f32 %v5609, %v5865
        %v5867 = vpop.f32.mrf.mxu0
        %v5868 = vadd.f32 %v5611, %v5867
        %5869 = vmatprep.mubr.f32.mxu0 %v2604
        %5870 = vmatmul.mubr.f32.gmra.mxu0 %v2603
        %v5871 = vpop.f32.mrf.mxu0
        %v5872 = vadd.f32 %v5615, %v5871
        %v5873 = vpop.f32.mrf.mxu0
        %v5874 = vadd.f32 %v5617, %v5873
        %5875 = vmatprep.mubr.f32.mxu0 %v2616
        %5876 = vmatmul.mubr.f32.gmra.mxu0 %v2615
        %v5877 = vpop.f32.mrf.mxu0
        %v5878 = vadd.f32 %v5621, %v5877
        %v5879 = vpop.f32.mrf.mxu0
        %v5880 = vadd.f32 %v5623, %v5879
        %5881 = vmatprep.mubr.f32.mxu0 %v2628
        %5882 = vmatmul.mubr.f32.gmra.mxu0 %v2627
        %v5883 = vpop.f32.mrf.mxu0
        %v5884 = vadd.f32 %v5627, %v5883
        %v5885 = vpop.f32.mrf.mxu0
        %v5886 = vadd.f32 %v5629, %v5885
        %5887 = vmatprep.mubr.f32.mxu0 %v2640
        %5888 = vmatmul.mubr.f32.gmra.mxu0 %v2639
        %v5889 = vpop.f32.mrf.mxu0
        %v5890 = vadd.f32 %v5633, %v5889
        %v5891 = vpop.f32.mrf.mxu0
        %v5892 = vadd.f32 %v5635, %v5891
        %5893 = vmatprep.mubr.f32.mxu0 %v2652
        %5894 = vmatmul.mubr.f32.gmra.mxu0 %v2651
        %v5895 = vpop.f32.mrf.mxu0
        %v5896 = vadd.f32 %v5639, %v5895
        %v5897 = vpop.f32.mrf.mxu0
        %v5898 = vadd.f32 %v5641, %v5897
        %5899 = vmatprep.mubr.f32.mxu0 %v2664
        %5900 = vmatmul.mubr.f32.gmra.mxu0 %v2663
        %v5901 = vpop.f32.mrf.mxu0
        %v5902 = vadd.f32 %v5645, %v5901
        %v5903 = vpop.f32.mrf.mxu0
        %v5904 = vadd.f32 %v5647, %v5903
        %5905 = vmatprep.mubr.f32.mxu0 %v2676
        %5906 = vmatmul.mubr.f32.gmra.mxu0 %v2675
        %v5907 = vpop.f32.mrf.mxu0
        %v5908 = vadd.f32 %v5651, %v5907
        %v5909 = vpop.f32.mrf.mxu0
        %v5910 = vadd.f32 %v5653, %v5909
        %5911 = vmatprep.mubr.f32.mxu0 %v2688
        %5912 = vmatmul.mubr.f32.gmra.mxu0 %v2687
        %v5913 = vpop.f32.mrf.mxu0
        %v5914 = vadd.f32 %v5657, %v5913
        %v5915 = vpop.f32.mrf.mxu0
        %v5916 = vadd.f32 %v5659, %v5915
        %5917 = vmatprep.mubr.f32.mxu0 %v2700
        %5918 = vmatmul.mubr.f32.gmra.mxu0 %v2699
        %v5919 = vpop.f32.mrf.mxu0
        %v5920 = vadd.f32 %v5663, %v5919
        %v5921 = vpop.f32.mrf.mxu0
        %v5922 = vadd.f32 %v5665, %v5921
        %5923 = vmatprep.mubr.f32.mxu0 %v2712
        %5924 = vmatmul.mubr.f32.gmra.mxu0 %v2711
        %v5925 = vpop.f32.mrf.mxu0
        %v5926 = vadd.f32 %v5669, %v5925
        %v5927 = vpop.f32.mrf.mxu0
        %v5928 = vadd.f32 %v5671, %v5927
        %5929 = vdwg.mxu0
        %5930 = vmatprep.subr.mxu0 %v2880
        %5931 = vmatpush1.msra.mxu0 %v2879
        %5932 = vmatprep.subr.mxu0 %v2878
        %5933 = vmatpush1.msra.mxu0 %v2877
        %5934 = vmatprep.subr.mxu0 %v2876
        %5935 = vmatpush1.msra.mxu0 %v2875
        %5936 = vmatprep.subr.mxu0 %v2874
        %5937 = vmatpush1.msra.mxu0 %v2873
        %5938 = vmatprep.subr.mxu0 %v2872
        %5939 = vmatpush1.msra.mxu0 %v2871
        %5940 = vmatprep.subr.mxu0 %v2870
        %5941 = vmatpush1.msra.mxu0 %v2869
        %5942 = vmatprep.subr.mxu0 %v2868
        %5943 = vmatpush1.msra.mxu0 %v2867
        %5944 = vmatprep.subr.mxu0 %v2866
        %5945 = vmatpush1.msra.mxu0 %v2865
        %5946 = vmatprep.subr.mxu0 %v2864
        %5947 = vmatpush1.msra.mxu0 %v2863
        %5948 = vmatprep.subr.mxu0 %v2862
        %5949 = vmatpush1.msra.mxu0 %v2861
        %5950 = vmatprep.subr.mxu0 %v2860
        %5951 = vmatpush1.msra.mxu0 %v2859
        %5952 = vmatprep.subr.mxu0 %v2858
        %5953 = vmatpush1.msra.mxu0 %v2857
        %5954 = vmatprep.subr.mxu0 %v2856
        %5955 = vmatpush1.msra.mxu0 %v2855
        %5956 = vmatprep.subr.mxu0 %v2854
        %5957 = vmatpush1.msra.mxu0 %v2853
        %5958 = vmatprep.subr.mxu0 %v2852
        %5959 = vmatpush1.msra.mxu0 %v2851
        %5960 = vmatprep.subr.mxu0 %v2850
        %5961 = vmatpush1.msra.mxu0 %v2849
        %5962 = vmatprep.subr.mxu0 %v2912
        %5963 = vmatpush2.msra.mxu0 %v2911
        %5964 = vmatprep.subr.mxu0 %v2910
        %5965 = vmatpush2.msra.mxu0 %v2909
        %5966 = vmatprep.subr.mxu0 %v2908
        %5967 = vmatpush2.msra.mxu0 %v2907
        %5968 = vmatprep.subr.mxu0 %v2906
        %5969 = vmatpush2.msra.mxu0 %v2905
        %5970 = vmatprep.subr.mxu0 %v2904
        %5971 = vmatpush2.msra.mxu0 %v2903
        %5972 = vmatprep.subr.mxu0 %v2902
        %5973 = vmatpush2.msra.mxu0 %v2901
        %5974 = vmatprep.subr.mxu0 %v2900
        %5975 = vmatpush2.msra.mxu0 %v2899
        %5976 = vmatprep.subr.mxu0 %v2898
        %5977 = vmatpush2.msra.mxu0 %v2897
        %5978 = vmatprep.subr.mxu0 %v2896
        %5979 = vmatpush2.msra.mxu0 %v2895
        %5980 = vmatprep.subr.mxu0 %v2894
        %5981 = vmatpush2.msra.mxu0 %v2893
        %5982 = vmatprep.subr.mxu0 %v2892
        %5983 = vmatpush2.msra.mxu0 %v2891
        %5984 = vmatprep.subr.mxu0 %v2890
        %5985 = vmatpush2.msra.mxu0 %v2889
        %5986 = vmatprep.subr.mxu0 %v2888
        %5987 = vmatpush2.msra.mxu0 %v2887
        %5988 = vmatprep.subr.mxu0 %v2886
        %5989 = vmatpush2.msra.mxu0 %v2885
        %5990 = vmatprep.subr.mxu0 %v2884
        %5991 = vmatpush2.msra.mxu0 %v2883
        %5992 = vmatprep.subr.mxu0 %v2882
        %5993 = vmatpush2.msra.mxu0 %v2881
        %5994 = vmatprep.mubr.f32.mxu0 %v2342
        %5995 = vmatmul.mubr.f32.gmra.mxu0 %v2341
        %v5996 = vpop.f32.mrf.mxu0
        %v5997 = vadd.f32 %v5740, %v5996
        %v5998 = vpop.f32.mrf.mxu0
        %v5999 = vadd.f32 %v5742, %v5998
        %6000 = vmatprep.mubr.f32.mxu0 %v2354
        %6001 = vmatmul.mubr.f32.gmra.mxu0 %v2353
        %v6002 = vpop.f32.mrf.mxu0
        %v6003 = vadd.f32 %v5746, %v6002
        %v6004 = vpop.f32.mrf.mxu0
        %v6005 = vadd.f32 %v5748, %v6004
        %6006 = vmatprep.mubr.f32.mxu0 %v2366
        %6007 = vmatmul.mubr.f32.gmra.mxu0 %v2365
        %v6008 = vpop.f32.mrf.mxu0
        %v6009 = vadd.f32 %v5752, %v6008
        %v6010 = vpop.f32.mrf.mxu0
        %v6011 = vadd.f32 %v5754, %v6010
        %6012 = vmatprep.mubr.f32.mxu0 %v2378
        %6013 = vmatmul.mubr.f32.gmra.mxu0 %v2377
        %v6014 = vpop.f32.mrf.mxu0
        %v6015 = vadd.f32 %v5758, %v6014
        %v6016 = vpop.f32.mrf.mxu0
        %v6017 = vadd.f32 %v5760, %v6016
        %6018 = vmatprep.mubr.f32.mxu0 %v2390
        %6019 = vmatmul.mubr.f32.gmra.mxu0 %v2389
        %v6020 = vpop.f32.mrf.mxu0
        %v6021 = vadd.f32 %v5764, %v6020
        %v6022 = vpop.f32.mrf.mxu0
        %v6023 = vadd.f32 %v5766, %v6022
        %6024 = vmatprep.mubr.f32.mxu0 %v2402
        %6025 = vmatmul.mubr.f32.gmra.mxu0 %v2401
        %v6026 = vpop.f32.mrf.mxu0
        %v6027 = vadd.f32 %v5770, %v6026
        %v6028 = vpop.f32.mrf.mxu0
        %v6029 = vadd.f32 %v5772, %v6028
        %6030 = vmatprep.mubr.f32.mxu0 %v2414
        %6031 = vmatmul.mubr.f32.gmra.mxu0 %v2413
        %v6032 = vpop.f32.mrf.mxu0
        %v6033 = vadd.f32 %v5776, %v6032
        %v6034 = vpop.f32.mrf.mxu0
        %v6035 = vadd.f32 %v5778, %v6034
        %6036 = vmatprep.mubr.f32.mxu0 %v2426
        %6037 = vmatmul.mubr.f32.gmra.mxu0 %v2425
        %v6038 = vpop.f32.mrf.mxu0
        %v6039 = vadd.f32 %v5782, %v6038
        %v6040 = vpop.f32.mrf.mxu0
        %v6041 = vadd.f32 %v5784, %v6040
        %6042 = vmatprep.mubr.f32.mxu0 %v2438
        %6043 = vmatmul.mubr.f32.gmra.mxu0 %v2437
        %v6044 = vpop.f32.mrf.mxu0
        %v6045 = vadd.f32 %v5788, %v6044
        %v6046 = vpop.f32.mrf.mxu0
        %v6047 = vadd.f32 %v5790, %v6046
        %6048 = vmatprep.mubr.f32.mxu0 %v2450
        %6049 = vmatmul.mubr.f32.gmra.mxu0 %v2449
        %v6050 = vpop.f32.mrf.mxu0
        %v6051 = vadd.f32 %v5794, %v6050
        %v6052 = vpop.f32.mrf.mxu0
        %v6053 = vadd.f32 %v5796, %v6052
        %6054 = vmatprep.mubr.f32.mxu0 %v2462
        %6055 = vmatmul.mubr.f32.gmra.mxu0 %v2461
        %v6056 = vpop.f32.mrf.mxu0
        %v6057 = vadd.f32 %v5800, %v6056
        %v6058 = vpop.f32.mrf.mxu0
        %v6059 = vadd.f32 %v5802, %v6058
        %6060 = vmatprep.mubr.f32.mxu0 %v2474
        %6061 = vmatmul.mubr.f32.gmra.mxu0 %v2473
        %v6062 = vpop.f32.mrf.mxu0
        %v6063 = vadd.f32 %v5806, %v6062
        %v6064 = vpop.f32.mrf.mxu0
        %v6065 = vadd.f32 %v5808, %v6064
        %6066 = vmatprep.mubr.f32.mxu0 %v2486
        %6067 = vmatmul.mubr.f32.gmra.mxu0 %v2485
        %v6068 = vpop.f32.mrf.mxu0
        %v6069 = vadd.f32 %v5812, %v6068
        %v6070 = vpop.f32.mrf.mxu0
        %v6071 = vadd.f32 %v5814, %v6070
        %6072 = vmatprep.mubr.f32.mxu0 %v2498
        %6073 = vmatmul.mubr.f32.gmra.mxu0 %v2497
        %v6074 = vpop.f32.mrf.mxu0
        %v6075 = vadd.f32 %v5818, %v6074
        %v6076 = vpop.f32.mrf.mxu0
        %v6077 = vadd.f32 %v5820, %v6076
        %6078 = vmatprep.mubr.f32.mxu0 %v2510
        %6079 = vmatmul.mubr.f32.gmra.mxu0 %v2509
        %v6080 = vpop.f32.mrf.mxu0
        %v6081 = vadd.f32 %v5824, %v6080
        %v6082 = vpop.f32.mrf.mxu0
        %v6083 = vadd.f32 %v5826, %v6082
        %6084 = vmatprep.mubr.f32.mxu0 %v2522
        %6085 = vmatmul.mubr.f32.gmra.mxu0 %v2521
        %v6086 = vpop.f32.mrf.mxu0
        %v6087 = vadd.f32 %v5830, %v6086
        %v6088 = vpop.f32.mrf.mxu0
        %v6089 = vadd.f32 %v5832, %v6088
        %6090 = vmatprep.mubr.f32.mxu0 %v2534
        %6091 = vmatmul.mubr.f32.gmra.mxu0 %v2533
        %v6092 = vpop.f32.mrf.mxu0
        %v6093 = vadd.f32 %v5836, %v6092
        %v6094 = vpop.f32.mrf.mxu0
        %v6095 = vadd.f32 %v5838, %v6094
        %6096 = vmatprep.mubr.f32.mxu0 %v2546
        %6097 = vmatmul.mubr.f32.gmra.mxu0 %v2545
        %v6098 = vpop.f32.mrf.mxu0
        %v6099 = vadd.f32 %v5842, %v6098
        %v6100 = vpop.f32.mrf.mxu0
        %v6101 = vadd.f32 %v5844, %v6100
        %6102 = vmatprep.mubr.f32.mxu0 %v2558
        %6103 = vmatmul.mubr.f32.gmra.mxu0 %v2557
        %v6104 = vpop.f32.mrf.mxu0
        %v6105 = vadd.f32 %v5848, %v6104
        %v6106 = vpop.f32.mrf.mxu0
        %v6107 = vadd.f32 %v5850, %v6106
        %6108 = vmatprep.mubr.f32.mxu0 %v2570
        %6109 = vmatmul.mubr.f32.gmra.mxu0 %v2569
        %v6110 = vpop.f32.mrf.mxu0
        %v6111 = vadd.f32 %v5854, %v6110
        %v6112 = vpop.f32.mrf.mxu0
        %v6113 = vadd.f32 %v5856, %v6112
        %6114 = vmatprep.mubr.f32.mxu0 %v2582
        %6115 = vmatmul.mubr.f32.gmra.mxu0 %v2581
        %v6116 = vpop.f32.mrf.mxu0
        %v6117 = vadd.f32 %v5860, %v6116
        %v6118 = vpop.f32.mrf.mxu0
        %v6119 = vadd.f32 %v5862, %v6118
        %6120 = vmatprep.mubr.f32.mxu0 %v2594
        %6121 = vmatmul.mubr.f32.gmra.mxu0 %v2593
        %v6122 = vpop.f32.mrf.mxu0
        %v6123 = vadd.f32 %v5866, %v6122
        %v6124 = vpop.f32.mrf.mxu0
        %v6125 = vadd.f32 %v5868, %v6124
        %6126 = vmatprep.mubr.f32.mxu0 %v2606
        %6127 = vmatmul.mubr.f32.gmra.mxu0 %v2605
        %v6128 = vpop.f32.mrf.mxu0
        %v6129 = vadd.f32 %v5872, %v6128
        %v6130 = vpop.f32.mrf.mxu0
        %v6131 = vadd.f32 %v5874, %v6130
        %6132 = vmatprep.mubr.f32.mxu0 %v2618
        %6133 = vmatmul.mubr.f32.gmra.mxu0 %v2617
        %v6134 = vpop.f32.mrf.mxu0
        %v6135 = vadd.f32 %v5878, %v6134
        %v6136 = vpop.f32.mrf.mxu0
        %v6137 = vadd.f32 %v5880, %v6136
        %6138 = vmatprep.mubr.f32.mxu0 %v2630
        %6139 = vmatmul.mubr.f32.gmra.mxu0 %v2629
        %v6140 = vpop.f32.mrf.mxu0
        %v6141 = vadd.f32 %v5884, %v6140
        %v6142 = vpop.f32.mrf.mxu0
        %v6143 = vadd.f32 %v5886, %v6142
        %6144 = vmatprep.mubr.f32.mxu0 %v2642
        %6145 = vmatmul.mubr.f32.gmra.mxu0 %v2641
        %v6146 = vpop.f32.mrf.mxu0
        %v6147 = vadd.f32 %v5890, %v6146
        %v6148 = vpop.f32.mrf.mxu0
        %v6149 = vadd.f32 %v5892, %v6148
        %6150 = vmatprep.mubr.f32.mxu0 %v2654
        %6151 = vmatmul.mubr.f32.gmra.mxu0 %v2653
        %v6152 = vpop.f32.mrf.mxu0
        %v6153 = vadd.f32 %v5896, %v6152
        %v6154 = vpop.f32.mrf.mxu0
        %v6155 = vadd.f32 %v5898, %v6154
        %6156 = vmatprep.mubr.f32.mxu0 %v2666
        %6157 = vmatmul.mubr.f32.gmra.mxu0 %v2665
        %v6158 = vpop.f32.mrf.mxu0
        %v6159 = vadd.f32 %v5902, %v6158
        %v6160 = vpop.f32.mrf.mxu0
        %v6161 = vadd.f32 %v5904, %v6160
        %6162 = vmatprep.mubr.f32.mxu0 %v2678
        %6163 = vmatmul.mubr.f32.gmra.mxu0 %v2677
        %v6164 = vpop.f32.mrf.mxu0
        %v6165 = vadd.f32 %v5908, %v6164
        %v6166 = vpop.f32.mrf.mxu0
        %v6167 = vadd.f32 %v5910, %v6166
        %6168 = vmatprep.mubr.f32.mxu0 %v2690
        %6169 = vmatmul.mubr.f32.gmra.mxu0 %v2689
        %v6170 = vpop.f32.mrf.mxu0
        %v6171 = vadd.f32 %v5914, %v6170
        %v6172 = vpop.f32.mrf.mxu0
        %v6173 = vadd.f32 %v5916, %v6172
        %6174 = vmatprep.mubr.f32.mxu0 %v2702
        %6175 = vmatmul.mubr.f32.gmra.mxu0 %v2701
        %v6176 = vpop.f32.mrf.mxu0
        %v6177 = vadd.f32 %v5920, %v6176
        %v6178 = vpop.f32.mrf.mxu0
        %v6179 = vadd.f32 %v5922, %v6178
        %6180 = vmatprep.mubr.f32.mxu0 %v2714
        %6181 = vmatmul.mubr.f32.gmra.mxu0 %v2713
        %v6182 = vpop.f32.mrf.mxu0
        %v6183 = vadd.f32 %v5926, %v6182
        %v6184 = vpop.f32.mrf.mxu0
        %v6185 = vadd.f32 %v5928, %v6184
        %6186 = vdwg.mxu0
        %6187 = vmatprep.subr.mxu0 %v2944
        %6188 = vmatpush1.msra.mxu0 %v2943
        %6189 = vmatprep.subr.mxu0 %v2942
        %6190 = vmatpush1.msra.mxu0 %v2941
        %6191 = vmatprep.subr.mxu0 %v2940
        %6192 = vmatpush1.msra.mxu0 %v2939
        %6193 = vmatprep.subr.mxu0 %v2938
        %6194 = vmatpush1.msra.mxu0 %v2937
        %6195 = vmatprep.subr.mxu0 %v2936
        %6196 = vmatpush1.msra.mxu0 %v2935
        %6197 = vmatprep.subr.mxu0 %v2934
        %6198 = vmatpush1.msra.mxu0 %v2933
        %6199 = vmatprep.subr.mxu0 %v2932
        %6200 = vmatpush1.msra.mxu0 %v2931
        %6201 = vmatprep.subr.mxu0 %v2930
        %6202 = vmatpush1.msra.mxu0 %v2929
        %6203 = vmatprep.subr.mxu0 %v2928
        %6204 = vmatpush1.msra.mxu0 %v2927
        %6205 = vmatprep.subr.mxu0 %v2926
        %6206 = vmatpush1.msra.mxu0 %v2925
        %6207 = vmatprep.subr.mxu0 %v2924
        %6208 = vmatpush1.msra.mxu0 %v2923
        %6209 = vmatprep.subr.mxu0 %v2922
        %6210 = vmatpush1.msra.mxu0 %v2921
        %6211 = vmatprep.subr.mxu0 %v2920
        %6212 = vmatpush1.msra.mxu0 %v2919
        %6213 = vmatprep.subr.mxu0 %v2918
        %6214 = vmatpush1.msra.mxu0 %v2917
        %6215 = vmatprep.subr.mxu0 %v2916
        %6216 = vmatpush1.msra.mxu0 %v2915
        %6217 = vmatprep.subr.mxu0 %v2914
        %6218 = vmatpush1.msra.mxu0 %v2913
        %6219 = vmatprep.subr.mxu0 %v2976
        %6220 = vmatpush2.msra.mxu0 %v2975
        %6221 = vmatprep.subr.mxu0 %v2974
        %6222 = vmatpush2.msra.mxu0 %v2973
        %6223 = vmatprep.subr.mxu0 %v2972
        %6224 = vmatpush2.msra.mxu0 %v2971
        %6225 = vmatprep.subr.mxu0 %v2970
        %6226 = vmatpush2.msra.mxu0 %v2969
        %6227 = vmatprep.subr.mxu0 %v2968
        %6228 = vmatpush2.msra.mxu0 %v2967
        %6229 = vmatprep.subr.mxu0 %v2966
        %6230 = vmatpush2.msra.mxu0 %v2965
        %6231 = vmatprep.subr.mxu0 %v2964
        %6232 = vmatpush2.msra.mxu0 %v2963
        %6233 = vmatprep.subr.mxu0 %v2962
        %6234 = vmatpush2.msra.mxu0 %v2961
        %6235 = vmatprep.subr.mxu0 %v2960
        %6236 = vmatpush2.msra.mxu0 %v2959
        %6237 = vmatprep.subr.mxu0 %v2958
        %6238 = vmatpush2.msra.mxu0 %v2957
        %6239 = vmatprep.subr.mxu0 %v2956
        %6240 = vmatpush2.msra.mxu0 %v2955
        %6241 = vmatprep.subr.mxu0 %v2954
        %6242 = vmatpush2.msra.mxu0 %v2953
        %6243 = vmatprep.subr.mxu0 %v2952
        %6244 = vmatpush2.msra.mxu0 %v2951
        %6245 = vmatprep.subr.mxu0 %v2950
        %6246 = vmatpush2.msra.mxu0 %v2949
        %6247 = vmatprep.subr.mxu0 %v2948
        %6248 = vmatpush2.msra.mxu0 %v2947
        %6249 = vmatprep.subr.mxu0 %v2946
        %6250 = vmatpush2.msra.mxu0 %v2945
        %6251 = vmatprep.mubr.f32.mxu0 %v2344
        %6252 = vmatmul.mubr.f32.gmra.mxu0 %v2343
        %v6253 = vpop.f32.mrf.mxu0
        %v6254 = vadd.f32 %v5997, %v6253
        %v6255 = vpop.f32.mrf.mxu0
        %v6256 = vadd.f32 %v5999, %v6255
        %6257 = vmatprep.mubr.f32.mxu0 %v2356
        %6258 = vmatmul.mubr.f32.gmra.mxu0 %v2355
        %v6259 = vpop.f32.mrf.mxu0
        %v6260 = vadd.f32 %v6003, %v6259
        %v6261 = vpop.f32.mrf.mxu0
        %v6262 = vadd.f32 %v6005, %v6261
        %6263 = vmatprep.mubr.f32.mxu0 %v2368
        %6264 = vmatmul.mubr.f32.gmra.mxu0 %v2367
        %v6265 = vpop.f32.mrf.mxu0
        %v6266 = vadd.f32 %v6009, %v6265
        %v6267 = vpop.f32.mrf.mxu0
        %v6268 = vadd.f32 %v6011, %v6267
        %6269 = vmatprep.mubr.f32.mxu0 %v2380
        %6270 = vmatmul.mubr.f32.gmra.mxu0 %v2379
        %v6271 = vpop.f32.mrf.mxu0
        %v6272 = vadd.f32 %v6015, %v6271
        %v6273 = vpop.f32.mrf.mxu0
        %v6274 = vadd.f32 %v6017, %v6273
        %6275 = vmatprep.mubr.f32.mxu0 %v2392
        %6276 = vmatmul.mubr.f32.gmra.mxu0 %v2391
        %v6277 = vpop.f32.mrf.mxu0
        %v6278 = vadd.f32 %v6021, %v6277
        %v6279 = vpop.f32.mrf.mxu0
        %v6280 = vadd.f32 %v6023, %v6279
        %6281 = vmatprep.mubr.f32.mxu0 %v2404
        %6282 = vmatmul.mubr.f32.gmra.mxu0 %v2403
        %v6283 = vpop.f32.mrf.mxu0
        %v6284 = vadd.f32 %v6027, %v6283
        %v6285 = vpop.f32.mrf.mxu0
        %v6286 = vadd.f32 %v6029, %v6285
        %6287 = vmatprep.mubr.f32.mxu0 %v2416
        %6288 = vmatmul.mubr.f32.gmra.mxu0 %v2415
        %v6289 = vpop.f32.mrf.mxu0
        %v6290 = vadd.f32 %v6033, %v6289
        %v6291 = vpop.f32.mrf.mxu0
        %v6292 = vadd.f32 %v6035, %v6291
        %6293 = vmatprep.mubr.f32.mxu0 %v2428
        %6294 = vmatmul.mubr.f32.gmra.mxu0 %v2427
        %v6295 = vpop.f32.mrf.mxu0
        %v6296 = vadd.f32 %v6039, %v6295
        %v6297 = vpop.f32.mrf.mxu0
        %v6298 = vadd.f32 %v6041, %v6297
        %6299 = vmatprep.mubr.f32.mxu0 %v2440
        %6300 = vmatmul.mubr.f32.gmra.mxu0 %v2439
        %v6301 = vpop.f32.mrf.mxu0
        %v6302 = vadd.f32 %v6045, %v6301
        %v6303 = vpop.f32.mrf.mxu0
        %v6304 = vadd.f32 %v6047, %v6303
        %6305 = vmatprep.mubr.f32.mxu0 %v2452
        %6306 = vmatmul.mubr.f32.gmra.mxu0 %v2451
        %v6307 = vpop.f32.mrf.mxu0
        %v6308 = vadd.f32 %v6051, %v6307
        %v6309 = vpop.f32.mrf.mxu0
        %v6310 = vadd.f32 %v6053, %v6309
        %6311 = vmatprep.mubr.f32.mxu0 %v2464
        %6312 = vmatmul.mubr.f32.gmra.mxu0 %v2463
        %v6313 = vpop.f32.mrf.mxu0
        %v6314 = vadd.f32 %v6057, %v6313
        %v6315 = vpop.f32.mrf.mxu0
        %v6316 = vadd.f32 %v6059, %v6315
        %6317 = vmatprep.mubr.f32.mxu0 %v2476
        %6318 = vmatmul.mubr.f32.gmra.mxu0 %v2475
        %v6319 = vpop.f32.mrf.mxu0
        %v6320 = vadd.f32 %v6063, %v6319
        %v6321 = vpop.f32.mrf.mxu0
        %v6322 = vadd.f32 %v6065, %v6321
        %6323 = vmatprep.mubr.f32.mxu0 %v2488
        %6324 = vmatmul.mubr.f32.gmra.mxu0 %v2487
        %v6325 = vpop.f32.mrf.mxu0
        %v6326 = vadd.f32 %v6069, %v6325
        %v6327 = vpop.f32.mrf.mxu0
        %v6328 = vadd.f32 %v6071, %v6327
        %6329 = vmatprep.mubr.f32.mxu0 %v2500
        %6330 = vmatmul.mubr.f32.gmra.mxu0 %v2499
        %v6331 = vpop.f32.mrf.mxu0
        %v6332 = vadd.f32 %v6075, %v6331
        %v6333 = vpop.f32.mrf.mxu0
        %v6334 = vadd.f32 %v6077, %v6333
        %6335 = vmatprep.mubr.f32.mxu0 %v2512
        %6336 = vmatmul.mubr.f32.gmra.mxu0 %v2511
        %v6337 = vpop.f32.mrf.mxu0
        %v6338 = vadd.f32 %v6081, %v6337
        %v6339 = vpop.f32.mrf.mxu0
        %v6340 = vadd.f32 %v6083, %v6339
        %6341 = vmatprep.mubr.f32.mxu0 %v2524
        %6342 = vmatmul.mubr.f32.gmra.mxu0 %v2523
        %v6343 = vpop.f32.mrf.mxu0
        %v6344 = vadd.f32 %v6087, %v6343
        %v6345 = vpop.f32.mrf.mxu0
        %v6346 = vadd.f32 %v6089, %v6345
        %6347 = vmatprep.mubr.f32.mxu0 %v2536
        %6348 = vmatmul.mubr.f32.gmra.mxu0 %v2535
        %v6349 = vpop.f32.mrf.mxu0
        %v6350 = vadd.f32 %v6093, %v6349
        %v6351 = vpop.f32.mrf.mxu0
        %v6352 = vadd.f32 %v6095, %v6351
        %6353 = vmatprep.mubr.f32.mxu0 %v2548
        %6354 = vmatmul.mubr.f32.gmra.mxu0 %v2547
        %v6355 = vpop.f32.mrf.mxu0
        %v6356 = vadd.f32 %v6099, %v6355
        %v6357 = vpop.f32.mrf.mxu0
        %v6358 = vadd.f32 %v6101, %v6357
        %6359 = vmatprep.mubr.f32.mxu0 %v2560
        %6360 = vmatmul.mubr.f32.gmra.mxu0 %v2559
        %v6361 = vpop.f32.mrf.mxu0
        %v6362 = vadd.f32 %v6105, %v6361
        %v6363 = vpop.f32.mrf.mxu0
        %v6364 = vadd.f32 %v6107, %v6363
        %6365 = vmatprep.mubr.f32.mxu0 %v2572
        %6366 = vmatmul.mubr.f32.gmra.mxu0 %v2571
        %v6367 = vpop.f32.mrf.mxu0
        %v6368 = vadd.f32 %v6111, %v6367
        %v6369 = vpop.f32.mrf.mxu0
        %v6370 = vadd.f32 %v6113, %v6369
        %6371 = vmatprep.mubr.f32.mxu0 %v2584
        %6372 = vmatmul.mubr.f32.gmra.mxu0 %v2583
        %v6373 = vpop.f32.mrf.mxu0
        %v6374 = vadd.f32 %v6117, %v6373
        %v6375 = vpop.f32.mrf.mxu0
        %v6376 = vadd.f32 %v6119, %v6375
        %6377 = vmatprep.mubr.f32.mxu0 %v2596
        %6378 = vmatmul.mubr.f32.gmra.mxu0 %v2595
        %v6379 = vpop.f32.mrf.mxu0
        %v6380 = vadd.f32 %v6123, %v6379
        %v6381 = vpop.f32.mrf.mxu0
        %v6382 = vadd.f32 %v6125, %v6381
        %6383 = vmatprep.mubr.f32.mxu0 %v2608
        %6384 = vmatmul.mubr.f32.gmra.mxu0 %v2607
        %v6385 = vpop.f32.mrf.mxu0
        %v6386 = vadd.f32 %v6129, %v6385
        %v6387 = vpop.f32.mrf.mxu0
        %v6388 = vadd.f32 %v6131, %v6387
        %6389 = vmatprep.mubr.f32.mxu0 %v2620
        %6390 = vmatmul.mubr.f32.gmra.mxu0 %v2619
        %v6391 = vpop.f32.mrf.mxu0
        %v6392 = vadd.f32 %v6135, %v6391
        %v6393 = vpop.f32.mrf.mxu0
        %v6394 = vadd.f32 %v6137, %v6393
        %6395 = vmatprep.mubr.f32.mxu0 %v2632
        %6396 = vmatmul.mubr.f32.gmra.mxu0 %v2631
        %v6397 = vpop.f32.mrf.mxu0
        %v6398 = vadd.f32 %v6141, %v6397
        %v6399 = vpop.f32.mrf.mxu0
        %v6400 = vadd.f32 %v6143, %v6399
        %6401 = vmatprep.mubr.f32.mxu0 %v2644
        %6402 = vmatmul.mubr.f32.gmra.mxu0 %v2643
        %v6403 = vpop.f32.mrf.mxu0
        %v6404 = vadd.f32 %v6147, %v6403
        %v6405 = vpop.f32.mrf.mxu0
        %v6406 = vadd.f32 %v6149, %v6405
        %6407 = vmatprep.mubr.f32.mxu0 %v2656
        %6408 = vmatmul.mubr.f32.gmra.mxu0 %v2655
        %v6409 = vpop.f32.mrf.mxu0
        %v6410 = vadd.f32 %v6153, %v6409
        %v6411 = vpop.f32.mrf.mxu0
        %v6412 = vadd.f32 %v6155, %v6411
        %6413 = vmatprep.mubr.f32.mxu0 %v2668
        %6414 = vmatmul.mubr.f32.gmra.mxu0 %v2667
        %v6415 = vpop.f32.mrf.mxu0
        %v6416 = vadd.f32 %v6159, %v6415
        %v6417 = vpop.f32.mrf.mxu0
        %v6418 = vadd.f32 %v6161, %v6417
        %6419 = vmatprep.mubr.f32.mxu0 %v2680
        %6420 = vmatmul.mubr.f32.gmra.mxu0 %v2679
        %v6421 = vpop.f32.mrf.mxu0
        %v6422 = vadd.f32 %v6165, %v6421
        %v6423 = vpop.f32.mrf.mxu0
        %v6424 = vadd.f32 %v6167, %v6423
        %6425 = vmatprep.mubr.f32.mxu0 %v2692
        %6426 = vmatmul.mubr.f32.gmra.mxu0 %v2691
        %v6427 = vpop.f32.mrf.mxu0
        %v6428 = vadd.f32 %v6171, %v6427
        %v6429 = vpop.f32.mrf.mxu0
        %v6430 = vadd.f32 %v6173, %v6429
        %6431 = vmatprep.mubr.f32.mxu0 %v2704
        %6432 = vmatmul.mubr.f32.gmra.mxu0 %v2703
        %v6433 = vpop.f32.mrf.mxu0
        %v6434 = vadd.f32 %v6177, %v6433
        %v6435 = vpop.f32.mrf.mxu0
        %v6436 = vadd.f32 %v6179, %v6435
        %6437 = vmatprep.mubr.f32.mxu0 %v2716
        %6438 = vmatmul.mubr.f32.gmra.mxu0 %v2715
        %v6439 = vpop.f32.mrf.mxu0
        %v6440 = vadd.f32 %v6183, %v6439
        %v6441 = vpop.f32.mrf.mxu0
        %v6442 = vadd.f32 %v6185, %v6441
        %6443 = vdwg.mxu0
        %6444 = vmatprep.subr.mxu0 %v3008
        %6445 = vmatpush1.msra.mxu0 %v3007
        %6446 = vmatprep.subr.mxu0 %v3006
        %6447 = vmatpush1.msra.mxu0 %v3005
        %6448 = vmatprep.subr.mxu0 %v3004
        %6449 = vmatpush1.msra.mxu0 %v3003
        %6450 = vmatprep.subr.mxu0 %v3002
        %6451 = vmatpush1.msra.mxu0 %v3001
        %6452 = vmatprep.subr.mxu0 %v3000
        %6453 = vmatpush1.msra.mxu0 %v2999
        %6454 = vmatprep.subr.mxu0 %v2998
        %6455 = vmatpush1.msra.mxu0 %v2997
        %6456 = vmatprep.subr.mxu0 %v2996
        %6457 = vmatpush1.msra.mxu0 %v2995
        %6458 = vmatprep.subr.mxu0 %v2994
        %6459 = vmatpush1.msra.mxu0 %v2993
        %6460 = vmatprep.subr.mxu0 %v2992
        %6461 = vmatpush1.msra.mxu0 %v2991
        %6462 = vmatprep.subr.mxu0 %v2990
        %6463 = vmatpush1.msra.mxu0 %v2989
        %6464 = vmatprep.subr.mxu0 %v2988
        %6465 = vmatpush1.msra.mxu0 %v2987
        %6466 = vmatprep.subr.mxu0 %v2986
        %6467 = vmatpush1.msra.mxu0 %v2985
        %6468 = vmatprep.subr.mxu0 %v2984
        %6469 = vmatpush1.msra.mxu0 %v2983
        %6470 = vmatprep.subr.mxu0 %v2982
        %6471 = vmatpush1.msra.mxu0 %v2981
        %6472 = vmatprep.subr.mxu0 %v2980
        %6473 = vmatpush1.msra.mxu0 %v2979
        %6474 = vmatprep.subr.mxu0 %v2978
        %6475 = vmatpush1.msra.mxu0 %v2977
        %6476 = vmatprep.subr.mxu0 %v3040
        %6477 = vmatpush2.msra.mxu0 %v3039
        %6478 = vmatprep.subr.mxu0 %v3038
        %6479 = vmatpush2.msra.mxu0 %v3037
        %6480 = vmatprep.subr.mxu0 %v3036
        %6481 = vmatpush2.msra.mxu0 %v3035
        %6482 = vmatprep.subr.mxu0 %v3034
        %6483 = vmatpush2.msra.mxu0 %v3033
        %6484 = vmatprep.subr.mxu0 %v3032
        %6485 = vmatpush2.msra.mxu0 %v3031
        %6486 = vmatprep.subr.mxu0 %v3030
        %6487 = vmatpush2.msra.mxu0 %v3029
        %6488 = vmatprep.subr.mxu0 %v3028
        %6489 = vmatpush2.msra.mxu0 %v3027
        %6490 = vmatprep.subr.mxu0 %v3026
        %6491 = vmatpush2.msra.mxu0 %v3025
        %6492 = vmatprep.subr.mxu0 %v3024
        %6493 = vmatpush2.msra.mxu0 %v3023
        %6494 = vmatprep.subr.mxu0 %v3022
        %6495 = vmatpush2.msra.mxu0 %v3021
        %6496 = vmatprep.subr.mxu0 %v3020
        %6497 = vmatpush2.msra.mxu0 %v3019
        %6498 = vmatprep.subr.mxu0 %v3018
        %6499 = vmatpush2.msra.mxu0 %v3017
        %6500 = vmatprep.subr.mxu0 %v3016
        %6501 = vmatpush2.msra.mxu0 %v3015
        %6502 = vmatprep.subr.mxu0 %v3014
        %6503 = vmatpush2.msra.mxu0 %v3013
        %6504 = vmatprep.subr.mxu0 %v3012
        %6505 = vmatpush2.msra.mxu0 %v3011
        %6506 = vmatprep.subr.mxu0 %v3010
        %6507 = vmatpush2.msra.mxu0 %v3009
        %6508 = vmatprep.mubr.f32.mxu0 %v2346
        %6509 = vmatmul.mubr.f32.gmra.mxu0 %v2345
        %v6510 = vpop.f32.mrf.mxu0
        %v6511 = vadd.f32 %v6254, %v6510
        %v6512 = vpop.f32.mrf.mxu0
        %v6513 = vadd.f32 %v6256, %v6512
        %6514 = vmatprep.mubr.f32.mxu0 %v2358
        %6515 = vmatmul.mubr.f32.gmra.mxu0 %v2357
        %v6516 = vpop.f32.mrf.mxu0
        %v6517 = vadd.f32 %v6260, %v6516
        %v6518 = vpop.f32.mrf.mxu0
        %v6519 = vadd.f32 %v6262, %v6518
        %6520 = vmatprep.mubr.f32.mxu0 %v2370
        %6521 = vmatmul.mubr.f32.gmra.mxu0 %v2369
        %v6522 = vpop.f32.mrf.mxu0
        %v6523 = vadd.f32 %v6266, %v6522
        %v6524 = vpop.f32.mrf.mxu0
        %v6525 = vadd.f32 %v6268, %v6524
        %6526 = vmatprep.mubr.f32.mxu0 %v2382
        %6527 = vmatmul.mubr.f32.gmra.mxu0 %v2381
        %v6528 = vpop.f32.mrf.mxu0
        %v6529 = vadd.f32 %v6272, %v6528
        %v6530 = vpop.f32.mrf.mxu0
        %v6531 = vadd.f32 %v6274, %v6530
        %6532 = vmatprep.mubr.f32.mxu0 %v2394
        %6533 = vmatmul.mubr.f32.gmra.mxu0 %v2393
        %v6534 = vpop.f32.mrf.mxu0
        %v6535 = vadd.f32 %v6278, %v6534
        %v6536 = vpop.f32.mrf.mxu0
        %v6537 = vadd.f32 %v6280, %v6536
        %6538 = vmatprep.mubr.f32.mxu0 %v2406
        %6539 = vmatmul.mubr.f32.gmra.mxu0 %v2405
        %v6540 = vpop.f32.mrf.mxu0
        %v6541 = vadd.f32 %v6284, %v6540
        %v6542 = vpop.f32.mrf.mxu0
        %v6543 = vadd.f32 %v6286, %v6542
        %6544 = vmatprep.mubr.f32.mxu0 %v2418
        %6545 = vmatmul.mubr.f32.gmra.mxu0 %v2417
        %v6546 = vpop.f32.mrf.mxu0
        %v6547 = vadd.f32 %v6290, %v6546
        %v6548 = vpop.f32.mrf.mxu0
        %v6549 = vadd.f32 %v6292, %v6548
        %6550 = vmatprep.mubr.f32.mxu0 %v2430
        %6551 = vmatmul.mubr.f32.gmra.mxu0 %v2429
        %v6552 = vpop.f32.mrf.mxu0
        %v6553 = vadd.f32 %v6296, %v6552
        %v6554 = vpop.f32.mrf.mxu0
        %v6555 = vadd.f32 %v6298, %v6554
        %6556 = vmatprep.mubr.f32.mxu0 %v2442
        %6557 = vmatmul.mubr.f32.gmra.mxu0 %v2441
        %v6558 = vpop.f32.mrf.mxu0
        %v6559 = vadd.f32 %v6302, %v6558
        %v6560 = vpop.f32.mrf.mxu0
        %v6561 = vadd.f32 %v6304, %v6560
        %6562 = vmatprep.mubr.f32.mxu0 %v2454
        %6563 = vmatmul.mubr.f32.gmra.mxu0 %v2453
        %v6564 = vpop.f32.mrf.mxu0
        %v6565 = vadd.f32 %v6308, %v6564
        %v6566 = vpop.f32.mrf.mxu0
        %v6567 = vadd.f32 %v6310, %v6566
        %6568 = vmatprep.mubr.f32.mxu0 %v2466
        %6569 = vmatmul.mubr.f32.gmra.mxu0 %v2465
        %v6570 = vpop.f32.mrf.mxu0
        %v6571 = vadd.f32 %v6314, %v6570
        %v6572 = vpop.f32.mrf.mxu0
        %v6573 = vadd.f32 %v6316, %v6572
        %6574 = vmatprep.mubr.f32.mxu0 %v2478
        %6575 = vmatmul.mubr.f32.gmra.mxu0 %v2477
        %v6576 = vpop.f32.mrf.mxu0
        %v6577 = vadd.f32 %v6320, %v6576
        %v6578 = vpop.f32.mrf.mxu0
        %v6579 = vadd.f32 %v6322, %v6578
        %6580 = vmatprep.mubr.f32.mxu0 %v2490
        %6581 = vmatmul.mubr.f32.gmra.mxu0 %v2489
        %v6582 = vpop.f32.mrf.mxu0
        %v6583 = vadd.f32 %v6326, %v6582
        %v6584 = vpop.f32.mrf.mxu0
        %v6585 = vadd.f32 %v6328, %v6584
        %6586 = vmatprep.mubr.f32.mxu0 %v2502
        %6587 = vmatmul.mubr.f32.gmra.mxu0 %v2501
        %v6588 = vpop.f32.mrf.mxu0
        %v6589 = vadd.f32 %v6332, %v6588
        %v6590 = vpop.f32.mrf.mxu0
        %v6591 = vadd.f32 %v6334, %v6590
        %6592 = vmatprep.mubr.f32.mxu0 %v2514
        %6593 = vmatmul.mubr.f32.gmra.mxu0 %v2513
        %v6594 = vpop.f32.mrf.mxu0
        %v6595 = vadd.f32 %v6338, %v6594
        %v6596 = vpop.f32.mrf.mxu0
        %v6597 = vadd.f32 %v6340, %v6596
        %6598 = vmatprep.mubr.f32.mxu0 %v2526
        %6599 = vmatmul.mubr.f32.gmra.mxu0 %v2525
        %v6600 = vpop.f32.mrf.mxu0
        %v6601 = vadd.f32 %v6344, %v6600
        %v6602 = vpop.f32.mrf.mxu0
        %v6603 = vadd.f32 %v6346, %v6602
        %6604 = vmatprep.mubr.f32.mxu0 %v2538
        %6605 = vmatmul.mubr.f32.gmra.mxu0 %v2537
        %v6606 = vpop.f32.mrf.mxu0
        %v6607 = vadd.f32 %v6350, %v6606
        %v6608 = vpop.f32.mrf.mxu0
        %v6609 = vadd.f32 %v6352, %v6608
        %6610 = vmatprep.mubr.f32.mxu0 %v2550
        %6611 = vmatmul.mubr.f32.gmra.mxu0 %v2549
        %v6612 = vpop.f32.mrf.mxu0
        %v6613 = vadd.f32 %v6356, %v6612
        %v6614 = vpop.f32.mrf.mxu0
        %v6615 = vadd.f32 %v6358, %v6614
        %6616 = vmatprep.mubr.f32.mxu0 %v2562
        %6617 = vmatmul.mubr.f32.gmra.mxu0 %v2561
        %v6618 = vpop.f32.mrf.mxu0
        %v6619 = vadd.f32 %v6362, %v6618
        %v6620 = vpop.f32.mrf.mxu0
        %v6621 = vadd.f32 %v6364, %v6620
        %6622 = vmatprep.mubr.f32.mxu0 %v2574
        %6623 = vmatmul.mubr.f32.gmra.mxu0 %v2573
        %v6624 = vpop.f32.mrf.mxu0
        %v6625 = vadd.f32 %v6368, %v6624
        %v6626 = vpop.f32.mrf.mxu0
        %v6627 = vadd.f32 %v6370, %v6626
        %6628 = vmatprep.mubr.f32.mxu0 %v2586
        %6629 = vmatmul.mubr.f32.gmra.mxu0 %v2585
        %v6630 = vpop.f32.mrf.mxu0
        %v6631 = vadd.f32 %v6374, %v6630
        %v6632 = vpop.f32.mrf.mxu0
        %v6633 = vadd.f32 %v6376, %v6632
        %6634 = vmatprep.mubr.f32.mxu0 %v2598
        %6635 = vmatmul.mubr.f32.gmra.mxu0 %v2597
        %v6636 = vpop.f32.mrf.mxu0
        %v6637 = vadd.f32 %v6380, %v6636
        %v6638 = vpop.f32.mrf.mxu0
        %v6639 = vadd.f32 %v6382, %v6638
        %6640 = vmatprep.mubr.f32.mxu0 %v2610
        %6641 = vmatmul.mubr.f32.gmra.mxu0 %v2609
        %v6642 = vpop.f32.mrf.mxu0
        %v6643 = vadd.f32 %v6386, %v6642
        %v6644 = vpop.f32.mrf.mxu0
        %v6645 = vadd.f32 %v6388, %v6644
        %6646 = vmatprep.mubr.f32.mxu0 %v2622
        %6647 = vmatmul.mubr.f32.gmra.mxu0 %v2621
        %v6648 = vpop.f32.mrf.mxu0
        %v6649 = vadd.f32 %v6392, %v6648
        %v6650 = vpop.f32.mrf.mxu0
        %v6651 = vadd.f32 %v6394, %v6650
        %6652 = vmatprep.mubr.f32.mxu0 %v2634
        %6653 = vmatmul.mubr.f32.gmra.mxu0 %v2633
        %v6654 = vpop.f32.mrf.mxu0
        %v6655 = vadd.f32 %v6398, %v6654
        %v6656 = vpop.f32.mrf.mxu0
        %v6657 = vadd.f32 %v6400, %v6656
        %6658 = vmatprep.mubr.f32.mxu0 %v2646
        %6659 = vmatmul.mubr.f32.gmra.mxu0 %v2645
        %v6660 = vpop.f32.mrf.mxu0
        %v6661 = vadd.f32 %v6404, %v6660
        %v6662 = vpop.f32.mrf.mxu0
        %v6663 = vadd.f32 %v6406, %v6662
        %6664 = vmatprep.mubr.f32.mxu0 %v2658
        %6665 = vmatmul.mubr.f32.gmra.mxu0 %v2657
        %v6666 = vpop.f32.mrf.mxu0
        %v6667 = vadd.f32 %v6410, %v6666
        %v6668 = vpop.f32.mrf.mxu0
        %v6669 = vadd.f32 %v6412, %v6668
        %6670 = vmatprep.mubr.f32.mxu0 %v2670
        %6671 = vmatmul.mubr.f32.gmra.mxu0 %v2669
        %v6672 = vpop.f32.mrf.mxu0
        %v6673 = vadd.f32 %v6416, %v6672
        %v6674 = vpop.f32.mrf.mxu0
        %v6675 = vadd.f32 %v6418, %v6674
        %6676 = vmatprep.mubr.f32.mxu0 %v2682
        %6677 = vmatmul.mubr.f32.gmra.mxu0 %v2681
        %v6678 = vpop.f32.mrf.mxu0
        %v6679 = vadd.f32 %v6422, %v6678
        %v6680 = vpop.f32.mrf.mxu0
        %v6681 = vadd.f32 %v6424, %v6680
        %6682 = vmatprep.mubr.f32.mxu0 %v2694
        %6683 = vmatmul.mubr.f32.gmra.mxu0 %v2693
        %v6684 = vpop.f32.mrf.mxu0
        %v6685 = vadd.f32 %v6428, %v6684
        %v6686 = vpop.f32.mrf.mxu0
        %v6687 = vadd.f32 %v6430, %v6686
        %6688 = vmatprep.mubr.f32.mxu0 %v2706
        %6689 = vmatmul.mubr.f32.gmra.mxu0 %v2705
        %v6690 = vpop.f32.mrf.mxu0
        %v6691 = vadd.f32 %v6434, %v6690
        %v6692 = vpop.f32.mrf.mxu0
        %v6693 = vadd.f32 %v6436, %v6692
        %6694 = vmatprep.mubr.f32.mxu0 %v2718
        %6695 = vmatmul.mubr.f32.gmra.mxu0 %v2717
        %v6696 = vpop.f32.mrf.mxu0
        %v6697 = vadd.f32 %v6440, %v6696
        %v6698 = vpop.f32.mrf.mxu0
        %v6699 = vadd.f32 %v6442, %v6698
        %6700 = vdwg.mxu0
        %6701 = vmatprep.subr.mxu0 %v3072
        %6702 = vmatpush1.msra.mxu0 %v3071
        %6703 = vmatprep.subr.mxu0 %v3070
        %6704 = vmatpush1.msra.mxu0 %v3069
        %6705 = vmatprep.subr.mxu0 %v3068
        %6706 = vmatpush1.msra.mxu0 %v3067
        %6707 = vmatprep.subr.mxu0 %v3066
        %6708 = vmatpush1.msra.mxu0 %v3065
        %6709 = vmatprep.subr.mxu0 %v3064
        %6710 = vmatpush1.msra.mxu0 %v3063
        %6711 = vmatprep.subr.mxu0 %v3062
        %6712 = vmatpush1.msra.mxu0 %v3061
        %6713 = vmatprep.subr.mxu0 %v3060
        %6714 = vmatpush1.msra.mxu0 %v3059
        %6715 = vmatprep.subr.mxu0 %v3058
        %6716 = vmatpush1.msra.mxu0 %v3057
        %6717 = vmatprep.subr.mxu0 %v3056
        %6718 = vmatpush1.msra.mxu0 %v3055
        %6719 = vmatprep.subr.mxu0 %v3054
        %6720 = vmatpush1.msra.mxu0 %v3053
        %6721 = vmatprep.subr.mxu0 %v3052
        %6722 = vmatpush1.msra.mxu0 %v3051
        %6723 = vmatprep.subr.mxu0 %v3050
        %6724 = vmatpush1.msra.mxu0 %v3049
        %6725 = vmatprep.subr.mxu0 %v3048
        %6726 = vmatpush1.msra.mxu0 %v3047
        %6727 = vmatprep.subr.mxu0 %v3046
        %6728 = vmatpush1.msra.mxu0 %v3045
        %6729 = vmatprep.subr.mxu0 %v3044
        %6730 = vmatpush1.msra.mxu0 %v3043
        %6731 = vmatprep.subr.mxu0 %v3042
        %6732 = vmatpush1.msra.mxu0 %v3041
        %6733 = vmatprep.subr.mxu0 %v3104
        %6734 = vmatpush2.msra.mxu0 %v3103
        %6735 = vmatprep.subr.mxu0 %v3102
        %6736 = vmatpush2.msra.mxu0 %v3101
        %6737 = vmatprep.subr.mxu0 %v3100
        %6738 = vmatpush2.msra.mxu0 %v3099
        %6739 = vmatprep.subr.mxu0 %v3098
        %6740 = vmatpush2.msra.mxu0 %v3097
        %6741 = vmatprep.subr.mxu0 %v3096
        %6742 = vmatpush2.msra.mxu0 %v3095
        %6743 = vmatprep.subr.mxu0 %v3094
        %6744 = vmatpush2.msra.mxu0 %v3093
        %6745 = vmatprep.subr.mxu0 %v3092
        %6746 = vmatpush2.msra.mxu0 %v3091
        %6747 = vmatprep.subr.mxu0 %v3090
        %6748 = vmatpush2.msra.mxu0 %v3089
        %6749 = vmatprep.subr.mxu0 %v3088
        %6750 = vmatpush2.msra.mxu0 %v3087
        %6751 = vmatprep.subr.mxu0 %v3086
        %6752 = vmatpush2.msra.mxu0 %v3085
        %6753 = vmatprep.subr.mxu0 %v3084
        %6754 = vmatpush2.msra.mxu0 %v3083
        %6755 = vmatprep.subr.mxu0 %v3082
        %6756 = vmatpush2.msra.mxu0 %v3081
        %6757 = vmatprep.subr.mxu0 %v3080
        %6758 = vmatpush2.msra.mxu0 %v3079
        %6759 = vmatprep.subr.mxu0 %v3078
        %6760 = vmatpush2.msra.mxu0 %v3077
        %6761 = vmatprep.subr.mxu0 %v3076
        %6762 = vmatpush2.msra.mxu0 %v3075
        %6763 = vmatprep.subr.mxu0 %v3074
        %6764 = vmatpush2.msra.mxu0 %v3073
        %6765 = vmatprep.mubr.f32.mxu0 %v2348
        %6766 = vmatmul.mubr.f32.gmra.mxu0 %v2347
        %v6767 = vpop.f32.mrf.mxu0
        %v6768 = vadd.f32 %v6511, %v6767
        %v6769 = vpop.f32.mrf.mxu0
        %v6770 = vadd.f32 %v6513, %v6769
        %6771 = vmatprep.mubr.f32.mxu0 %v2360
        %6772 = vmatmul.mubr.f32.gmra.mxu0 %v2359
        %v6773 = vpop.f32.mrf.mxu0
        %v6774 = vadd.f32 %v6517, %v6773
        %v6775 = vpop.f32.mrf.mxu0
        %v6776 = vadd.f32 %v6519, %v6775
        %6777 = vmatprep.mubr.f32.mxu0 %v2372
        %6778 = vmatmul.mubr.f32.gmra.mxu0 %v2371
        %v6779 = vpop.f32.mrf.mxu0
        %v6780 = vadd.f32 %v6523, %v6779
        %v6781 = vpop.f32.mrf.mxu0
        %v6782 = vadd.f32 %v6525, %v6781
        %6783 = vmatprep.mubr.f32.mxu0 %v2384
        %6784 = vmatmul.mubr.f32.gmra.mxu0 %v2383
        %v6785 = vpop.f32.mrf.mxu0
        %v6786 = vadd.f32 %v6529, %v6785
        %v6787 = vpop.f32.mrf.mxu0
        %v6788 = vadd.f32 %v6531, %v6787
        %6789 = vmatprep.mubr.f32.mxu0 %v2396
        %6790 = vmatmul.mubr.f32.gmra.mxu0 %v2395
        %v6791 = vpop.f32.mrf.mxu0
        %v6792 = vadd.f32 %v6535, %v6791
        %v6793 = vpop.f32.mrf.mxu0
        %v6794 = vadd.f32 %v6537, %v6793
        %6795 = vmatprep.mubr.f32.mxu0 %v2408
        %6796 = vmatmul.mubr.f32.gmra.mxu0 %v2407
        %v6797 = vpop.f32.mrf.mxu0
        %v6798 = vadd.f32 %v6541, %v6797
        %v6799 = vpop.f32.mrf.mxu0
        %v6800 = vadd.f32 %v6543, %v6799
        %6801 = vmatprep.mubr.f32.mxu0 %v2420
        %6802 = vmatmul.mubr.f32.gmra.mxu0 %v2419
        %v6803 = vpop.f32.mrf.mxu0
        %v6804 = vadd.f32 %v6547, %v6803
        %v6805 = vpop.f32.mrf.mxu0
        %v6806 = vadd.f32 %v6549, %v6805
        %6807 = vmatprep.mubr.f32.mxu0 %v2432
        %6808 = vmatmul.mubr.f32.gmra.mxu0 %v2431
        %v6809 = vpop.f32.mrf.mxu0
        %v6810 = vadd.f32 %v6553, %v6809
        %v6811 = vpop.f32.mrf.mxu0
        %v6812 = vadd.f32 %v6555, %v6811
        %6813 = vmatprep.mubr.f32.mxu0 %v2444
        %6814 = vmatmul.mubr.f32.gmra.mxu0 %v2443
        %v6815 = vpop.f32.mrf.mxu0
        %v6816 = vadd.f32 %v6559, %v6815
        %v6817 = vpop.f32.mrf.mxu0
        %v6818 = vadd.f32 %v6561, %v6817
        %6819 = vmatprep.mubr.f32.mxu0 %v2456
        %6820 = vmatmul.mubr.f32.gmra.mxu0 %v2455
        %v6821 = vpop.f32.mrf.mxu0
        %v6822 = vadd.f32 %v6565, %v6821
        %v6823 = vpop.f32.mrf.mxu0
        %v6824 = vadd.f32 %v6567, %v6823
        %6825 = vmatprep.mubr.f32.mxu0 %v2468
        %6826 = vmatmul.mubr.f32.gmra.mxu0 %v2467
        %v6827 = vpop.f32.mrf.mxu0
        %v6828 = vadd.f32 %v6571, %v6827
        %v6829 = vpop.f32.mrf.mxu0
        %v6830 = vadd.f32 %v6573, %v6829
        %6831 = vmatprep.mubr.f32.mxu0 %v2480
        %6832 = vmatmul.mubr.f32.gmra.mxu0 %v2479
        %v6833 = vpop.f32.mrf.mxu0
        %v6834 = vadd.f32 %v6577, %v6833
        %v6835 = vpop.f32.mrf.mxu0
        %v6836 = vadd.f32 %v6579, %v6835
        %6837 = vmatprep.mubr.f32.mxu0 %v2492
        %6838 = vmatmul.mubr.f32.gmra.mxu0 %v2491
        %v6839 = vpop.f32.mrf.mxu0
        %v6840 = vadd.f32 %v6583, %v6839
        %v6841 = vpop.f32.mrf.mxu0
        %v6842 = vadd.f32 %v6585, %v6841
        %6843 = vmatprep.mubr.f32.mxu0 %v2504
        %6844 = vmatmul.mubr.f32.gmra.mxu0 %v2503
        %v6845 = vpop.f32.mrf.mxu0
        %v6846 = vadd.f32 %v6589, %v6845
        %v6847 = vpop.f32.mrf.mxu0
        %v6848 = vadd.f32 %v6591, %v6847
        %6849 = vmatprep.mubr.f32.mxu0 %v2516
        %6850 = vmatmul.mubr.f32.gmra.mxu0 %v2515
        %v6851 = vpop.f32.mrf.mxu0
        %v6852 = vadd.f32 %v6595, %v6851
        %v6853 = vpop.f32.mrf.mxu0
        %v6854 = vadd.f32 %v6597, %v6853
        %6855 = vmatprep.mubr.f32.mxu0 %v2528
        %6856 = vmatmul.mubr.f32.gmra.mxu0 %v2527
        %v6857 = vpop.f32.mrf.mxu0
        %v6858 = vadd.f32 %v6601, %v6857
        %v6859 = vpop.f32.mrf.mxu0
        %v6860 = vadd.f32 %v6603, %v6859
        %6861 = vmatprep.mubr.f32.mxu0 %v2540
        %6862 = vmatmul.mubr.f32.gmra.mxu0 %v2539
        %v6863 = vpop.f32.mrf.mxu0
        %v6864 = vadd.f32 %v6607, %v6863
        %v6865 = vpop.f32.mrf.mxu0
        %v6866 = vadd.f32 %v6609, %v6865
        %6867 = vmatprep.mubr.f32.mxu0 %v2552
        %6868 = vmatmul.mubr.f32.gmra.mxu0 %v2551
        %v6869 = vpop.f32.mrf.mxu0
        %v6870 = vadd.f32 %v6613, %v6869
        %v6871 = vpop.f32.mrf.mxu0
        %v6872 = vadd.f32 %v6615, %v6871
        %6873 = vmatprep.mubr.f32.mxu0 %v2564
        %6874 = vmatmul.mubr.f32.gmra.mxu0 %v2563
        %v6875 = vpop.f32.mrf.mxu0
        %v6876 = vadd.f32 %v6619, %v6875
        %v6877 = vpop.f32.mrf.mxu0
        %v6878 = vadd.f32 %v6621, %v6877
        %6879 = vmatprep.mubr.f32.mxu0 %v2576
        %6880 = vmatmul.mubr.f32.gmra.mxu0 %v2575
        %v6881 = vpop.f32.mrf.mxu0
        %v6882 = vadd.f32 %v6625, %v6881
        %v6883 = vpop.f32.mrf.mxu0
        %v6884 = vadd.f32 %v6627, %v6883
        %6885 = vmatprep.mubr.f32.mxu0 %v2588
        %6886 = vmatmul.mubr.f32.gmra.mxu0 %v2587
        %v6887 = vpop.f32.mrf.mxu0
        %v6888 = vadd.f32 %v6631, %v6887
        %v6889 = vpop.f32.mrf.mxu0
        %v6890 = vadd.f32 %v6633, %v6889
        %6891 = vmatprep.mubr.f32.mxu0 %v2600
        %6892 = vmatmul.mubr.f32.gmra.mxu0 %v2599
        %v6893 = vpop.f32.mrf.mxu0
        %v6894 = vadd.f32 %v6637, %v6893
        %v6895 = vpop.f32.mrf.mxu0
        %v6896 = vadd.f32 %v6639, %v6895
        %6897 = vmatprep.mubr.f32.mxu0 %v2612
        %6898 = vmatmul.mubr.f32.gmra.mxu0 %v2611
        %v6899 = vpop.f32.mrf.mxu0
        %v6900 = vadd.f32 %v6643, %v6899
        %v6901 = vpop.f32.mrf.mxu0
        %v6902 = vadd.f32 %v6645, %v6901
        %6903 = vmatprep.mubr.f32.mxu0 %v2624
        %6904 = vmatmul.mubr.f32.gmra.mxu0 %v2623
        %v6905 = vpop.f32.mrf.mxu0
        %v6906 = vadd.f32 %v6649, %v6905
        %v6907 = vpop.f32.mrf.mxu0
        %v6908 = vadd.f32 %v6651, %v6907
        %6909 = vmatprep.mubr.f32.mxu0 %v2636
        %6910 = vmatmul.mubr.f32.gmra.mxu0 %v2635
        %v6911 = vpop.f32.mrf.mxu0
        %v6912 = vadd.f32 %v6655, %v6911
        %v6913 = vpop.f32.mrf.mxu0
        %v6914 = vadd.f32 %v6657, %v6913
        %6915 = vmatprep.mubr.f32.mxu0 %v2648
        %6916 = vmatmul.mubr.f32.gmra.mxu0 %v2647
        %v6917 = vpop.f32.mrf.mxu0
        %v6918 = vadd.f32 %v6661, %v6917
        %v6919 = vpop.f32.mrf.mxu0
        %v6920 = vadd.f32 %v6663, %v6919
        %6921 = vmatprep.mubr.f32.mxu0 %v2660
        %6922 = vmatmul.mubr.f32.gmra.mxu0 %v2659
        %v6923 = vpop.f32.mrf.mxu0
        %v6924 = vadd.f32 %v6667, %v6923
        %v6925 = vpop.f32.mrf.mxu0
        %v6926 = vadd.f32 %v6669, %v6925
        %6927 = vmatprep.mubr.f32.mxu0 %v2672
        %6928 = vmatmul.mubr.f32.gmra.mxu0 %v2671
        %v6929 = vpop.f32.mrf.mxu0
        %v6930 = vadd.f32 %v6673, %v6929
        %v6931 = vpop.f32.mrf.mxu0
        %v6932 = vadd.f32 %v6675, %v6931
        %6933 = vmatprep.mubr.f32.mxu0 %v2684
        %6934 = vmatmul.mubr.f32.gmra.mxu0 %v2683
        %v6935 = vpop.f32.mrf.mxu0
        %v6936 = vadd.f32 %v6679, %v6935
        %v6937 = vpop.f32.mrf.mxu0
        %v6938 = vadd.f32 %v6681, %v6937
        %6939 = vmatprep.mubr.f32.mxu0 %v2696
        %6940 = vmatmul.mubr.f32.gmra.mxu0 %v2695
        %v6941 = vpop.f32.mrf.mxu0
        %v6942 = vadd.f32 %v6685, %v6941
        %v6943 = vpop.f32.mrf.mxu0
        %v6944 = vadd.f32 %v6687, %v6943
        %6945 = vmatprep.mubr.f32.mxu0 %v2708
        %6946 = vmatmul.mubr.f32.gmra.mxu0 %v2707
        %v6947 = vpop.f32.mrf.mxu0
        %v6948 = vadd.f32 %v6691, %v6947
        %v6949 = vpop.f32.mrf.mxu0
        %v6950 = vadd.f32 %v6693, %v6949
        %6951 = vmatprep.mubr.f32.mxu0 %v2720
        %6952 = vmatmul.mubr.f32.gmra.mxu0 %v2719
        %v6953 = vpop.f32.mrf.mxu0
        %v6954 = vadd.f32 %v6697, %v6953
        %v6955 = vpop.f32.mrf.mxu0
        %v6956 = vadd.f32 %v6699, %v6955
        %6957 = vdwg.mxu0
        %s6958 = scalar_lea.vmem [#allocation2], 384
        %v6959 = vld [vmem:[%s6958] sm:$0xff]
        %v6960 = vld [vmem:[%s6958 + $0x8] sm:$0xff]
        %v6961 = vld [vmem:[%s6958 + $0x10] sm:$0xff]
        %v6962 = vld [vmem:[%s6958 + $0x18] sm:$0xff]
        %v6963 = vld [vmem:[%s6958 + $0x20] sm:$0xff]
        %v6964 = vld [vmem:[%s6958 + $0x28] sm:$0xff]
        %v6965 = vld [vmem:[%s6958 + $0x30] sm:$0xff]
        %v6966 = vld [vmem:[%s6958 + $0x38] sm:$0xff]
        %v6967 = vld [vmem:[%s6958 + $0x40] sm:$0xff]
        %v6968 = vld [vmem:[%s6958 + $0x48] sm:$0xff]
        %v6969 = vld [vmem:[%s6958 + $0x50] sm:$0xff]
        %v6970 = vld [vmem:[%s6958 + $0x58] sm:$0xff]
        %v6971 = vld [vmem:[%s6958 + $0x60] sm:$0xff]
        %v6972 = vld [vmem:[%s6958 + $0x68] sm:$0xff]
        %v6973 = vld [vmem:[%s6958 + $0x70] sm:$0xff]
        %v6974 = vld [vmem:[%s6958 + $0x78] sm:$0xff]
        %v6975 = vld [vmem:[%s6958 + $0x80] sm:$0xff]
        %v6976 = vld [vmem:[%s6958 + $0x88] sm:$0xff]
        %v6977 = vld [vmem:[%s6958 + $0x90] sm:$0xff]
        %v6978 = vld [vmem:[%s6958 + $0x98] sm:$0xff]
        %v6979 = vld [vmem:[%s6958 + $0xa0] sm:$0xff]
        %v6980 = vld [vmem:[%s6958 + $0xa8] sm:$0xff]
        %v6981 = vld [vmem:[%s6958 + $0xb0] sm:$0xff]
        %v6982 = vld [vmem:[%s6958 + $0xb8] sm:$0xff]
        %v6983 = vld [vmem:[%s6958 + $0xc0] sm:$0xff]
        %v6984 = vld [vmem:[%s6958 + $0xc8] sm:$0xff]
        %v6985 = vld [vmem:[%s6958 + $0xd0] sm:$0xff]
        %v6986 = vld [vmem:[%s6958 + $0xd8] sm:$0xff]
        %v6987 = vld [vmem:[%s6958 + $0xe0] sm:$0xff]
        %v6988 = vld [vmem:[%s6958 + $0xe8] sm:$0xff]
        %v6989 = vld [vmem:[%s6958 + $0xf0] sm:$0xff]
        %v6990 = vld [vmem:[%s6958 + $0xf8] sm:$0xff]
        %v6991 = vld [vmem:[%s6958 + $0x100] sm:$0xff]
        %v6992 = vld [vmem:[%s6958 + $0x108] sm:$0xff]
        %v6993 = vld [vmem:[%s6958 + $0x110] sm:$0xff]
        %v6994 = vld [vmem:[%s6958 + $0x118] sm:$0xff]
        %v6995 = vld [vmem:[%s6958 + $0x120] sm:$0xff]
        %v6996 = vld [vmem:[%s6958 + $0x128] sm:$0xff]
        %v6997 = vld [vmem:[%s6958 + $0x130] sm:$0xff]
        %v6998 = vld [vmem:[%s6958 + $0x138] sm:$0xff]
        %v6999 = vld [vmem:[%s6958 + $0x140] sm:$0xff]
        %v7000 = vld [vmem:[%s6958 + $0x148] sm:$0xff]
        %v7001 = vld [vmem:[%s6958 + $0x150] sm:$0xff]
        %v7002 = vld [vmem:[%s6958 + $0x158] sm:$0xff]
        %v7003 = vld [vmem:[%s6958 + $0x160] sm:$0xff]
        %v7004 = vld [vmem:[%s6958 + $0x168] sm:$0xff]
        %v7005 = vld [vmem:[%s6958 + $0x170] sm:$0xff]
        %v7006 = vld [vmem:[%s6958 + $0x178] sm:$0xff]
        %v7007 = vld [vmem:[%s6958 + $0x180] sm:$0xff]
        %v7008 = vld [vmem:[%s6958 + $0x188] sm:$0xff]
        %v7009 = vld [vmem:[%s6958 + $0x190] sm:$0xff]
        %v7010 = vld [vmem:[%s6958 + $0x198] sm:$0xff]
        %v7011 = vld [vmem:[%s6958 + $0x1a0] sm:$0xff]
        %v7012 = vld [vmem:[%s6958 + $0x1a8] sm:$0xff]
        %v7013 = vld [vmem:[%s6958 + $0x1b0] sm:$0xff]
        %v7014 = vld [vmem:[%s6958 + $0x1b8] sm:$0xff]
        %v7015 = vld [vmem:[%s6958 + $0x1c0] sm:$0xff]
        %v7016 = vld [vmem:[%s6958 + $0x1c8] sm:$0xff]
        %v7017 = vld [vmem:[%s6958 + $0x1d0] sm:$0xff]
        %v7018 = vld [vmem:[%s6958 + $0x1d8] sm:$0xff]
        %v7019 = vld [vmem:[%s6958 + $0x1e0] sm:$0xff]
        %v7020 = vld [vmem:[%s6958 + $0x1e8] sm:$0xff]
        %v7021 = vld [vmem:[%s6958 + $0x1f0] sm:$0xff]
        %v7022 = vld [vmem:[%s6958 + $0x1f8] sm:$0xff]
        %v7023 = vld [vmem:[%s6958 + $0x200] sm:$0xff]
        %v7024 = vld [vmem:[%s6958 + $0x208] sm:$0xff]
        %v7025 = vld [vmem:[%s6958 + $0x210] sm:$0xff]
        %v7026 = vld [vmem:[%s6958 + $0x218] sm:$0xff]
        %v7027 = vld [vmem:[%s6958 + $0x220] sm:$0xff]
        %v7028 = vld [vmem:[%s6958 + $0x228] sm:$0xff]
        %v7029 = vld [vmem:[%s6958 + $0x230] sm:$0xff]
        %v7030 = vld [vmem:[%s6958 + $0x238] sm:$0xff]
        %v7031 = vld [vmem:[%s6958 + $0x240] sm:$0xff]
        %v7032 = vld [vmem:[%s6958 + $0x248] sm:$0xff]
        %v7033 = vld [vmem:[%s6958 + $0x250] sm:$0xff]
        %v7034 = vld [vmem:[%s6958 + $0x258] sm:$0xff]
        %v7035 = vld [vmem:[%s6958 + $0x260] sm:$0xff]
        %v7036 = vld [vmem:[%s6958 + $0x268] sm:$0xff]
        %v7037 = vld [vmem:[%s6958 + $0x270] sm:$0xff]
        %v7038 = vld [vmem:[%s6958 + $0x278] sm:$0xff]
        %v7039 = vld [vmem:[%s6958 + $0x280] sm:$0xff]
        %v7040 = vld [vmem:[%s6958 + $0x288] sm:$0xff]
        %v7041 = vld [vmem:[%s6958 + $0x290] sm:$0xff]
        %v7042 = vld [vmem:[%s6958 + $0x298] sm:$0xff]
        %v7043 = vld [vmem:[%s6958 + $0x2a0] sm:$0xff]
        %v7044 = vld [vmem:[%s6958 + $0x2a8] sm:$0xff]
        %v7045 = vld [vmem:[%s6958 + $0x2b0] sm:$0xff]
        %v7046 = vld [vmem:[%s6958 + $0x2b8] sm:$0xff]
        %v7047 = vld [vmem:[%s6958 + $0x2c0] sm:$0xff]
        %v7048 = vld [vmem:[%s6958 + $0x2c8] sm:$0xff]
        %v7049 = vld [vmem:[%s6958 + $0x2d0] sm:$0xff]
        %v7050 = vld [vmem:[%s6958 + $0x2d8] sm:$0xff]
        %v7051 = vld [vmem:[%s6958 + $0x2e0] sm:$0xff]
        %v7052 = vld [vmem:[%s6958 + $0x2e8] sm:$0xff]
        %v7053 = vld [vmem:[%s6958 + $0x2f0] sm:$0xff]
        %v7054 = vld [vmem:[%s6958 + $0x2f8] sm:$0xff]
        %v7055 = vld [vmem:[%s6958 + $0x300] sm:$0xff]
        %v7056 = vld [vmem:[%s6958 + $0x308] sm:$0xff]
        %v7057 = vld [vmem:[%s6958 + $0x310] sm:$0xff]
        %v7058 = vld [vmem:[%s6958 + $0x318] sm:$0xff]
        %v7059 = vld [vmem:[%s6958 + $0x320] sm:$0xff]
        %v7060 = vld [vmem:[%s6958 + $0x328] sm:$0xff]
        %v7061 = vld [vmem:[%s6958 + $0x330] sm:$0xff]
        %v7062 = vld [vmem:[%s6958 + $0x338] sm:$0xff]
        %v7063 = vld [vmem:[%s6958 + $0x340] sm:$0xff]
        %v7064 = vld [vmem:[%s6958 + $0x348] sm:$0xff]
        %v7065 = vld [vmem:[%s6958 + $0x350] sm:$0xff]
        %v7066 = vld [vmem:[%s6958 + $0x358] sm:$0xff]
        %v7067 = vld [vmem:[%s6958 + $0x360] sm:$0xff]
        %v7068 = vld [vmem:[%s6958 + $0x368] sm:$0xff]
        %v7069 = vld [vmem:[%s6958 + $0x370] sm:$0xff]
        %v7070 = vld [vmem:[%s6958 + $0x378] sm:$0xff]
        %v7071 = vld [vmem:[%s6958 + $0x380] sm:$0xff]
        %v7072 = vld [vmem:[%s6958 + $0x388] sm:$0xff]
        %v7073 = vld [vmem:[%s6958 + $0x390] sm:$0xff]
        %v7074 = vld [vmem:[%s6958 + $0x398] sm:$0xff]
        %v7075 = vld [vmem:[%s6958 + $0x3a0] sm:$0xff]
        %v7076 = vld [vmem:[%s6958 + $0x3a8] sm:$0xff]
        %v7077 = vld [vmem:[%s6958 + $0x3b0] sm:$0xff]
        %v7078 = vld [vmem:[%s6958 + $0x3b8] sm:$0xff]
        %v7079 = vld [vmem:[%s6958 + $0x3c0] sm:$0xff]
        %v7080 = vld [vmem:[%s6958 + $0x3c8] sm:$0xff]
        %v7081 = vld [vmem:[%s6958 + $0x3d0] sm:$0xff]
        %v7082 = vld [vmem:[%s6958 + $0x3d8] sm:$0xff]
        %v7083 = vld [vmem:[%s6958 + $0x3e0] sm:$0xff]
        %v7084 = vld [vmem:[%s6958 + $0x3e8] sm:$0xff]
        %v7085 = vld [vmem:[%s6958 + $0x3f0] sm:$0xff]
        %v7086 = vld [vmem:[%s6958 + $0x3f8] sm:$0xff]
        %v7087 = vld [vmem:[%s6958 + $0x400] sm:$0xff]
        %v7088 = vld [vmem:[%s6958 + $0x408] sm:$0xff]
        %v7089 = vld [vmem:[%s6958 + $0x410] sm:$0xff]
        %v7090 = vld [vmem:[%s6958 + $0x418] sm:$0xff]
        %v7091 = vld [vmem:[%s6958 + $0x420] sm:$0xff]
        %v7092 = vld [vmem:[%s6958 + $0x428] sm:$0xff]
        %v7093 = vld [vmem:[%s6958 + $0x430] sm:$0xff]
        %v7094 = vld [vmem:[%s6958 + $0x438] sm:$0xff]
        %v7095 = vld [vmem:[%s6958 + $0x440] sm:$0xff]
        %v7096 = vld [vmem:[%s6958 + $0x448] sm:$0xff]
        %v7097 = vld [vmem:[%s6958 + $0x450] sm:$0xff]
        %v7098 = vld [vmem:[%s6958 + $0x458] sm:$0xff]
        %v7099 = vld [vmem:[%s6958 + $0x460] sm:$0xff]
        %v7100 = vld [vmem:[%s6958 + $0x468] sm:$0xff]
        %v7101 = vld [vmem:[%s6958 + $0x470] sm:$0xff]
        %v7102 = vld [vmem:[%s6958 + $0x478] sm:$0xff]
        %v7103 = vld [vmem:[%s6958 + $0x480] sm:$0xff]
        %v7104 = vld [vmem:[%s6958 + $0x488] sm:$0xff]
        %v7105 = vld [vmem:[%s6958 + $0x490] sm:$0xff]
        %v7106 = vld [vmem:[%s6958 + $0x498] sm:$0xff]
        %v7107 = vld [vmem:[%s6958 + $0x4a0] sm:$0xff]
        %v7108 = vld [vmem:[%s6958 + $0x4a8] sm:$0xff]
        %v7109 = vld [vmem:[%s6958 + $0x4b0] sm:$0xff]
        %v7110 = vld [vmem:[%s6958 + $0x4b8] sm:$0xff]
        %v7111 = vld [vmem:[%s6958 + $0x4c0] sm:$0xff]
        %v7112 = vld [vmem:[%s6958 + $0x4c8] sm:$0xff]
        %v7113 = vld [vmem:[%s6958 + $0x4d0] sm:$0xff]
        %v7114 = vld [vmem:[%s6958 + $0x4d8] sm:$0xff]
        %v7115 = vld [vmem:[%s6958 + $0x4e0] sm:$0xff]
        %v7116 = vld [vmem:[%s6958 + $0x4e8] sm:$0xff]
        %v7117 = vld [vmem:[%s6958 + $0x4f0] sm:$0xff]
        %v7118 = vld [vmem:[%s6958 + $0x4f8] sm:$0xff]
        %v7119 = vld [vmem:[%s6958 + $0x500] sm:$0xff]
        %v7120 = vld [vmem:[%s6958 + $0x508] sm:$0xff]
        %v7121 = vld [vmem:[%s6958 + $0x510] sm:$0xff]
        %v7122 = vld [vmem:[%s6958 + $0x518] sm:$0xff]
        %v7123 = vld [vmem:[%s6958 + $0x520] sm:$0xff]
        %v7124 = vld [vmem:[%s6958 + $0x528] sm:$0xff]
        %v7125 = vld [vmem:[%s6958 + $0x530] sm:$0xff]
        %v7126 = vld [vmem:[%s6958 + $0x538] sm:$0xff]
        %v7127 = vld [vmem:[%s6958 + $0x540] sm:$0xff]
        %v7128 = vld [vmem:[%s6958 + $0x548] sm:$0xff]
        %v7129 = vld [vmem:[%s6958 + $0x550] sm:$0xff]
        %v7130 = vld [vmem:[%s6958 + $0x558] sm:$0xff]
        %v7131 = vld [vmem:[%s6958 + $0x560] sm:$0xff]
        %v7132 = vld [vmem:[%s6958 + $0x568] sm:$0xff]
        %v7133 = vld [vmem:[%s6958 + $0x570] sm:$0xff]
        %v7134 = vld [vmem:[%s6958 + $0x578] sm:$0xff]
        %v7135 = vld [vmem:[%s6958 + $0x580] sm:$0xff]
        %v7136 = vld [vmem:[%s6958 + $0x588] sm:$0xff]
        %v7137 = vld [vmem:[%s6958 + $0x590] sm:$0xff]
        %v7138 = vld [vmem:[%s6958 + $0x598] sm:$0xff]
        %v7139 = vld [vmem:[%s6958 + $0x5a0] sm:$0xff]
        %v7140 = vld [vmem:[%s6958 + $0x5a8] sm:$0xff]
        %v7141 = vld [vmem:[%s6958 + $0x5b0] sm:$0xff]
        %v7142 = vld [vmem:[%s6958 + $0x5b8] sm:$0xff]
        %v7143 = vld [vmem:[%s6958 + $0x5c0] sm:$0xff]
        %v7144 = vld [vmem:[%s6958 + $0x5c8] sm:$0xff]
        %v7145 = vld [vmem:[%s6958 + $0x5d0] sm:$0xff]
        %v7146 = vld [vmem:[%s6958 + $0x5d8] sm:$0xff]
        %v7147 = vld [vmem:[%s6958 + $0x5e0] sm:$0xff]
        %v7148 = vld [vmem:[%s6958 + $0x5e8] sm:$0xff]
        %v7149 = vld [vmem:[%s6958 + $0x5f0] sm:$0xff]
        %v7150 = vld [vmem:[%s6958 + $0x5f8] sm:$0xff]
        %v7151 = vld [vmem:[%s6958 + $0x600] sm:$0xff]
        %v7152 = vld [vmem:[%s6958 + $0x608] sm:$0xff]
        %v7153 = vld [vmem:[%s6958 + $0x610] sm:$0xff]
        %v7154 = vld [vmem:[%s6958 + $0x618] sm:$0xff]
        %v7155 = vld [vmem:[%s6958 + $0x620] sm:$0xff]
        %v7156 = vld [vmem:[%s6958 + $0x628] sm:$0xff]
        %v7157 = vld [vmem:[%s6958 + $0x630] sm:$0xff]
        %v7158 = vld [vmem:[%s6958 + $0x638] sm:$0xff]
        %v7159 = vld [vmem:[%s6958 + $0x640] sm:$0xff]
        %v7160 = vld [vmem:[%s6958 + $0x648] sm:$0xff]
        %v7161 = vld [vmem:[%s6958 + $0x650] sm:$0xff]
        %v7162 = vld [vmem:[%s6958 + $0x658] sm:$0xff]
        %v7163 = vld [vmem:[%s6958 + $0x660] sm:$0xff]
        %v7164 = vld [vmem:[%s6958 + $0x668] sm:$0xff]
        %v7165 = vld [vmem:[%s6958 + $0x670] sm:$0xff]
        %v7166 = vld [vmem:[%s6958 + $0x678] sm:$0xff]
        %v7167 = vld [vmem:[%s6958 + $0x680] sm:$0xff]
        %v7168 = vld [vmem:[%s6958 + $0x688] sm:$0xff]
        %v7169 = vld [vmem:[%s6958 + $0x690] sm:$0xff]
        %v7170 = vld [vmem:[%s6958 + $0x698] sm:$0xff]
        %v7171 = vld [vmem:[%s6958 + $0x6a0] sm:$0xff]
        %v7172 = vld [vmem:[%s6958 + $0x6a8] sm:$0xff]
        %v7173 = vld [vmem:[%s6958 + $0x6b0] sm:$0xff]
        %v7174 = vld [vmem:[%s6958 + $0x6b8] sm:$0xff]
        %v7175 = vld [vmem:[%s6958 + $0x6c0] sm:$0xff]
        %v7176 = vld [vmem:[%s6958 + $0x6c8] sm:$0xff]
        %v7177 = vld [vmem:[%s6958 + $0x6d0] sm:$0xff]
        %v7178 = vld [vmem:[%s6958 + $0x6d8] sm:$0xff]
        %v7179 = vld [vmem:[%s6958 + $0x6e0] sm:$0xff]
        %v7180 = vld [vmem:[%s6958 + $0x6e8] sm:$0xff]
        %v7181 = vld [vmem:[%s6958 + $0x6f0] sm:$0xff]
        %v7182 = vld [vmem:[%s6958 + $0x6f8] sm:$0xff]
        %v7183 = vld [vmem:[%s6958 + $0x700] sm:$0xff]
        %v7184 = vld [vmem:[%s6958 + $0x708] sm:$0xff]
        %v7185 = vld [vmem:[%s6958 + $0x710] sm:$0xff]
        %v7186 = vld [vmem:[%s6958 + $0x718] sm:$0xff]
        %v7187 = vld [vmem:[%s6958 + $0x720] sm:$0xff]
        %v7188 = vld [vmem:[%s6958 + $0x728] sm:$0xff]
        %v7189 = vld [vmem:[%s6958 + $0x730] sm:$0xff]
        %v7190 = vld [vmem:[%s6958 + $0x738] sm:$0xff]
        %v7191 = vld [vmem:[%s6958 + $0x740] sm:$0xff]
        %v7192 = vld [vmem:[%s6958 + $0x748] sm:$0xff]
        %v7193 = vld [vmem:[%s6958 + $0x750] sm:$0xff]
        %v7194 = vld [vmem:[%s6958 + $0x758] sm:$0xff]
        %v7195 = vld [vmem:[%s6958 + $0x760] sm:$0xff]
        %v7196 = vld [vmem:[%s6958 + $0x768] sm:$0xff]
        %v7197 = vld [vmem:[%s6958 + $0x770] sm:$0xff]
        %v7198 = vld [vmem:[%s6958 + $0x778] sm:$0xff]
        %v7199 = vld [vmem:[%s6958 + $0x780] sm:$0xff]
        %v7200 = vld [vmem:[%s6958 + $0x788] sm:$0xff]
        %v7201 = vld [vmem:[%s6958 + $0x790] sm:$0xff]
        %v7202 = vld [vmem:[%s6958 + $0x798] sm:$0xff]
        %v7203 = vld [vmem:[%s6958 + $0x7a0] sm:$0xff]
        %v7204 = vld [vmem:[%s6958 + $0x7a8] sm:$0xff]
        %v7205 = vld [vmem:[%s6958 + $0x7b0] sm:$0xff]
        %v7206 = vld [vmem:[%s6958 + $0x7b8] sm:$0xff]
        %v7207 = vld [vmem:[%s6958 + $0x7c0] sm:$0xff]
        %v7208 = vld [vmem:[%s6958 + $0x7c8] sm:$0xff]
        %v7209 = vld [vmem:[%s6958 + $0x7d0] sm:$0xff]
        %v7210 = vld [vmem:[%s6958 + $0x7d8] sm:$0xff]
        %v7211 = vld [vmem:[%s6958 + $0x7e0] sm:$0xff]
        %v7212 = vld [vmem:[%s6958 + $0x7e8] sm:$0xff]
        %v7213 = vld [vmem:[%s6958 + $0x7f0] sm:$0xff]
        %v7214 = vld [vmem:[%s6958 + $0x7f8] sm:$0xff]
        %v7215 = vld [vmem:[%s6958 + $0x800] sm:$0xff]
        %v7216 = vld [vmem:[%s6958 + $0x808] sm:$0xff]
        %v7217 = vld [vmem:[%s6958 + $0x810] sm:$0xff]
        %v7218 = vld [vmem:[%s6958 + $0x818] sm:$0xff]
        %v7219 = vld [vmem:[%s6958 + $0x820] sm:$0xff]
        %v7220 = vld [vmem:[%s6958 + $0x828] sm:$0xff]
        %v7221 = vld [vmem:[%s6958 + $0x830] sm:$0xff]
        %v7222 = vld [vmem:[%s6958 + $0x838] sm:$0xff]
        %v7223 = vld [vmem:[%s6958 + $0x840] sm:$0xff]
        %v7224 = vld [vmem:[%s6958 + $0x848] sm:$0xff]
        %v7225 = vld [vmem:[%s6958 + $0x850] sm:$0xff]
        %v7226 = vld [vmem:[%s6958 + $0x858] sm:$0xff]
        %v7227 = vld [vmem:[%s6958 + $0x860] sm:$0xff]
        %v7228 = vld [vmem:[%s6958 + $0x868] sm:$0xff]
        %v7229 = vld [vmem:[%s6958 + $0x870] sm:$0xff]
        %v7230 = vld [vmem:[%s6958 + $0x878] sm:$0xff]
        %v7231 = vld [vmem:[%s6958 + $0x880] sm:$0xff]
        %v7232 = vld [vmem:[%s6958 + $0x888] sm:$0xff]
        %v7233 = vld [vmem:[%s6958 + $0x890] sm:$0xff]
        %v7234 = vld [vmem:[%s6958 + $0x898] sm:$0xff]
        %v7235 = vld [vmem:[%s6958 + $0x8a0] sm:$0xff]
        %v7236 = vld [vmem:[%s6958 + $0x8a8] sm:$0xff]
        %v7237 = vld [vmem:[%s6958 + $0x8b0] sm:$0xff]
        %v7238 = vld [vmem:[%s6958 + $0x8b8] sm:$0xff]
        %v7239 = vld [vmem:[%s6958 + $0x8c0] sm:$0xff]
        %v7240 = vld [vmem:[%s6958 + $0x8c8] sm:$0xff]
        %v7241 = vld [vmem:[%s6958 + $0x8d0] sm:$0xff]
        %v7242 = vld [vmem:[%s6958 + $0x8d8] sm:$0xff]
        %v7243 = vld [vmem:[%s6958 + $0x8e0] sm:$0xff]
        %v7244 = vld [vmem:[%s6958 + $0x8e8] sm:$0xff]
        %v7245 = vld [vmem:[%s6958 + $0x8f0] sm:$0xff]
        %v7246 = vld [vmem:[%s6958 + $0x8f8] sm:$0xff]
        %v7247 = vld [vmem:[%s6958 + $0x900] sm:$0xff]
        %v7248 = vld [vmem:[%s6958 + $0x908] sm:$0xff]
        %v7249 = vld [vmem:[%s6958 + $0x910] sm:$0xff]
        %v7250 = vld [vmem:[%s6958 + $0x918] sm:$0xff]
        %v7251 = vld [vmem:[%s6958 + $0x920] sm:$0xff]
        %v7252 = vld [vmem:[%s6958 + $0x928] sm:$0xff]
        %v7253 = vld [vmem:[%s6958 + $0x930] sm:$0xff]
        %v7254 = vld [vmem:[%s6958 + $0x938] sm:$0xff]
        %v7255 = vld [vmem:[%s6958 + $0x940] sm:$0xff]
        %v7256 = vld [vmem:[%s6958 + $0x948] sm:$0xff]
        %v7257 = vld [vmem:[%s6958 + $0x950] sm:$0xff]
        %v7258 = vld [vmem:[%s6958 + $0x958] sm:$0xff]
        %v7259 = vld [vmem:[%s6958 + $0x960] sm:$0xff]
        %v7260 = vld [vmem:[%s6958 + $0x968] sm:$0xff]
        %v7261 = vld [vmem:[%s6958 + $0x970] sm:$0xff]
        %v7262 = vld [vmem:[%s6958 + $0x978] sm:$0xff]
        %v7263 = vld [vmem:[%s6958 + $0x980] sm:$0xff]
        %v7264 = vld [vmem:[%s6958 + $0x988] sm:$0xff]
        %v7265 = vld [vmem:[%s6958 + $0x990] sm:$0xff]
        %v7266 = vld [vmem:[%s6958 + $0x998] sm:$0xff]
        %v7267 = vld [vmem:[%s6958 + $0x9a0] sm:$0xff]
        %v7268 = vld [vmem:[%s6958 + $0x9a8] sm:$0xff]
        %v7269 = vld [vmem:[%s6958 + $0x9b0] sm:$0xff]
        %v7270 = vld [vmem:[%s6958 + $0x9b8] sm:$0xff]
        %v7271 = vld [vmem:[%s6958 + $0x9c0] sm:$0xff]
        %v7272 = vld [vmem:[%s6958 + $0x9c8] sm:$0xff]
        %v7273 = vld [vmem:[%s6958 + $0x9d0] sm:$0xff]
        %v7274 = vld [vmem:[%s6958 + $0x9d8] sm:$0xff]
        %v7275 = vld [vmem:[%s6958 + $0x9e0] sm:$0xff]
        %v7276 = vld [vmem:[%s6958 + $0x9e8] sm:$0xff]
        %v7277 = vld [vmem:[%s6958 + $0x9f0] sm:$0xff]
        %v7278 = vld [vmem:[%s6958 + $0x9f8] sm:$0xff]
        %v7279 = vld [vmem:[%s6958 + $0xa00] sm:$0xff]
        %v7280 = vld [vmem:[%s6958 + $0xa08] sm:$0xff]
        %v7281 = vld [vmem:[%s6958 + $0xa10] sm:$0xff]
        %v7282 = vld [vmem:[%s6958 + $0xa18] sm:$0xff]
        %v7283 = vld [vmem:[%s6958 + $0xa20] sm:$0xff]
        %v7284 = vld [vmem:[%s6958 + $0xa28] sm:$0xff]
        %v7285 = vld [vmem:[%s6958 + $0xa30] sm:$0xff]
        %v7286 = vld [vmem:[%s6958 + $0xa38] sm:$0xff]
        %v7287 = vld [vmem:[%s6958 + $0xa40] sm:$0xff]
        %v7288 = vld [vmem:[%s6958 + $0xa48] sm:$0xff]
        %v7289 = vld [vmem:[%s6958 + $0xa50] sm:$0xff]
        %v7290 = vld [vmem:[%s6958 + $0xa58] sm:$0xff]
        %v7291 = vld [vmem:[%s6958 + $0xa60] sm:$0xff]
        %v7292 = vld [vmem:[%s6958 + $0xa68] sm:$0xff]
        %v7293 = vld [vmem:[%s6958 + $0xa70] sm:$0xff]
        %v7294 = vld [vmem:[%s6958 + $0xa78] sm:$0xff]
        %v7295 = vld [vmem:[%s6958 + $0xa80] sm:$0xff]
        %v7296 = vld [vmem:[%s6958 + $0xa88] sm:$0xff]
        %v7297 = vld [vmem:[%s6958 + $0xa90] sm:$0xff]
        %v7298 = vld [vmem:[%s6958 + $0xa98] sm:$0xff]
        %v7299 = vld [vmem:[%s6958 + $0xaa0] sm:$0xff]
        %v7300 = vld [vmem:[%s6958 + $0xaa8] sm:$0xff]
        %v7301 = vld [vmem:[%s6958 + $0xab0] sm:$0xff]
        %v7302 = vld [vmem:[%s6958 + $0xab8] sm:$0xff]
        %v7303 = vld [vmem:[%s6958 + $0xac0] sm:$0xff]
        %v7304 = vld [vmem:[%s6958 + $0xac8] sm:$0xff]
        %v7305 = vld [vmem:[%s6958 + $0xad0] sm:$0xff]
        %v7306 = vld [vmem:[%s6958 + $0xad8] sm:$0xff]
        %v7307 = vld [vmem:[%s6958 + $0xae0] sm:$0xff]
        %v7308 = vld [vmem:[%s6958 + $0xae8] sm:$0xff]
        %v7309 = vld [vmem:[%s6958 + $0xaf0] sm:$0xff]
        %v7310 = vld [vmem:[%s6958 + $0xaf8] sm:$0xff]
        %v7311 = vld [vmem:[%s6958 + $0xb00] sm:$0xff]
        %v7312 = vld [vmem:[%s6958 + $0xb08] sm:$0xff]
        %v7313 = vld [vmem:[%s6958 + $0xb10] sm:$0xff]
        %v7314 = vld [vmem:[%s6958 + $0xb18] sm:$0xff]
        %v7315 = vld [vmem:[%s6958 + $0xb20] sm:$0xff]
        %v7316 = vld [vmem:[%s6958 + $0xb28] sm:$0xff]
        %v7317 = vld [vmem:[%s6958 + $0xb30] sm:$0xff]
        %v7318 = vld [vmem:[%s6958 + $0xb38] sm:$0xff]
        %v7319 = vld [vmem:[%s6958 + $0xb40] sm:$0xff]
        %v7320 = vld [vmem:[%s6958 + $0xb48] sm:$0xff]
        %v7321 = vld [vmem:[%s6958 + $0xb50] sm:$0xff]
        %v7322 = vld [vmem:[%s6958 + $0xb58] sm:$0xff]
        %v7323 = vld [vmem:[%s6958 + $0xb60] sm:$0xff]
        %v7324 = vld [vmem:[%s6958 + $0xb68] sm:$0xff]
        %v7325 = vld [vmem:[%s6958 + $0xb70] sm:$0xff]
        %v7326 = vld [vmem:[%s6958 + $0xb78] sm:$0xff]
        %v7327 = vld [vmem:[%s6958 + $0xb80] sm:$0xff]
        %v7328 = vld [vmem:[%s6958 + $0xb88] sm:$0xff]
        %v7329 = vld [vmem:[%s6958 + $0xb90] sm:$0xff]
        %v7330 = vld [vmem:[%s6958 + $0xb98] sm:$0xff]
        %v7331 = vld [vmem:[%s6958 + $0xba0] sm:$0xff]
        %v7332 = vld [vmem:[%s6958 + $0xba8] sm:$0xff]
        %v7333 = vld [vmem:[%s6958 + $0xbb0] sm:$0xff]
        %v7334 = vld [vmem:[%s6958 + $0xbb8] sm:$0xff]
        %v7335 = vld [vmem:[%s6958 + $0xbc0] sm:$0xff]
        %v7336 = vld [vmem:[%s6958 + $0xbc8] sm:$0xff]
        %v7337 = vld [vmem:[%s6958 + $0xbd0] sm:$0xff]
        %v7338 = vld [vmem:[%s6958 + $0xbd8] sm:$0xff]
        %v7339 = vld [vmem:[%s6958 + $0xbe0] sm:$0xff]
        %v7340 = vld [vmem:[%s6958 + $0xbe8] sm:$0xff]
        %v7341 = vld [vmem:[%s6958 + $0xbf0] sm:$0xff]
        %v7342 = vld [vmem:[%s6958 + $0xbf8] sm:$0xff]
        %s7343 = scalar_lea.vmem [#allocation8], 6144
        %v7344 = vld [vmem:[%s7343] sm:$0xff]
        %v7345 = vld [vmem:[%s7343 + $0x8] sm:$0xff]
        %v7346 = vld [vmem:[%s7343 + $0x10] sm:$0xff]
        %v7347 = vld [vmem:[%s7343 + $0x18] sm:$0xff]
        %v7348 = vld [vmem:[%s7343 + $0x20] sm:$0xff]
        %v7349 = vld [vmem:[%s7343 + $0x28] sm:$0xff]
        %v7350 = vld [vmem:[%s7343 + $0x30] sm:$0xff]
        %v7351 = vld [vmem:[%s7343 + $0x38] sm:$0xff]
        %v7352 = vld [vmem:[%s7343 + $0x40] sm:$0xff]
        %v7353 = vld [vmem:[%s7343 + $0x48] sm:$0xff]
        %v7354 = vld [vmem:[%s7343 + $0x50] sm:$0xff]
        %v7355 = vld [vmem:[%s7343 + $0x58] sm:$0xff]
        %v7356 = vld [vmem:[%s7343 + $0x60] sm:$0xff]
        %v7357 = vld [vmem:[%s7343 + $0x68] sm:$0xff]
        %v7358 = vld [vmem:[%s7343 + $0x70] sm:$0xff]
        %v7359 = vld [vmem:[%s7343 + $0x78] sm:$0xff]
        %v7360 = vld [vmem:[%s7343 + $0x80] sm:$0xff]
        %v7361 = vld [vmem:[%s7343 + $0x88] sm:$0xff]
        %v7362 = vld [vmem:[%s7343 + $0x90] sm:$0xff]
        %v7363 = vld [vmem:[%s7343 + $0x98] sm:$0xff]
        %v7364 = vld [vmem:[%s7343 + $0xa0] sm:$0xff]
        %v7365 = vld [vmem:[%s7343 + $0xa8] sm:$0xff]
        %v7366 = vld [vmem:[%s7343 + $0xb0] sm:$0xff]
        %v7367 = vld [vmem:[%s7343 + $0xb8] sm:$0xff]
        %v7368 = vld [vmem:[%s7343 + $0xc0] sm:$0xff]
        %v7369 = vld [vmem:[%s7343 + $0xc8] sm:$0xff]
        %v7370 = vld [vmem:[%s7343 + $0xd0] sm:$0xff]
        %v7371 = vld [vmem:[%s7343 + $0xd8] sm:$0xff]
        %v7372 = vld [vmem:[%s7343 + $0xe0] sm:$0xff]
        %v7373 = vld [vmem:[%s7343 + $0xe8] sm:$0xff]
        %v7374 = vld [vmem:[%s7343 + $0xf0] sm:$0xff]
        %v7375 = vld [vmem:[%s7343 + $0xf8] sm:$0xff]
        %v7376 = vld [vmem:[%s7343 + $0x100] sm:$0xff]
        %v7377 = vld [vmem:[%s7343 + $0x108] sm:$0xff]
        %v7378 = vld [vmem:[%s7343 + $0x110] sm:$0xff]
        %v7379 = vld [vmem:[%s7343 + $0x118] sm:$0xff]
        %v7380 = vld [vmem:[%s7343 + $0x120] sm:$0xff]
        %v7381 = vld [vmem:[%s7343 + $0x128] sm:$0xff]
        %v7382 = vld [vmem:[%s7343 + $0x130] sm:$0xff]
        %v7383 = vld [vmem:[%s7343 + $0x138] sm:$0xff]
        %v7384 = vld [vmem:[%s7343 + $0x140] sm:$0xff]
        %v7385 = vld [vmem:[%s7343 + $0x148] sm:$0xff]
        %v7386 = vld [vmem:[%s7343 + $0x150] sm:$0xff]
        %v7387 = vld [vmem:[%s7343 + $0x158] sm:$0xff]
        %v7388 = vld [vmem:[%s7343 + $0x160] sm:$0xff]
        %v7389 = vld [vmem:[%s7343 + $0x168] sm:$0xff]
        %v7390 = vld [vmem:[%s7343 + $0x170] sm:$0xff]
        %v7391 = vld [vmem:[%s7343 + $0x178] sm:$0xff]
        %v7392 = vld [vmem:[%s7343 + $0x180] sm:$0xff]
        %v7393 = vld [vmem:[%s7343 + $0x188] sm:$0xff]
        %v7394 = vld [vmem:[%s7343 + $0x190] sm:$0xff]
        %v7395 = vld [vmem:[%s7343 + $0x198] sm:$0xff]
        %v7396 = vld [vmem:[%s7343 + $0x1a0] sm:$0xff]
        %v7397 = vld [vmem:[%s7343 + $0x1a8] sm:$0xff]
        %v7398 = vld [vmem:[%s7343 + $0x1b0] sm:$0xff]
        %v7399 = vld [vmem:[%s7343 + $0x1b8] sm:$0xff]
        %v7400 = vld [vmem:[%s7343 + $0x1c0] sm:$0xff]
        %v7401 = vld [vmem:[%s7343 + $0x1c8] sm:$0xff]
        %v7402 = vld [vmem:[%s7343 + $0x1d0] sm:$0xff]
        %v7403 = vld [vmem:[%s7343 + $0x1d8] sm:$0xff]
        %v7404 = vld [vmem:[%s7343 + $0x1e0] sm:$0xff]
        %v7405 = vld [vmem:[%s7343 + $0x1e8] sm:$0xff]
        %v7406 = vld [vmem:[%s7343 + $0x1f0] sm:$0xff]
        %v7407 = vld [vmem:[%s7343 + $0x1f8] sm:$0xff]
        %v7408 = vld [vmem:[%s7343 + $0x200] sm:$0xff]
        %v7409 = vld [vmem:[%s7343 + $0x208] sm:$0xff]
        %v7410 = vld [vmem:[%s7343 + $0x210] sm:$0xff]
        %v7411 = vld [vmem:[%s7343 + $0x218] sm:$0xff]
        %v7412 = vld [vmem:[%s7343 + $0x220] sm:$0xff]
        %v7413 = vld [vmem:[%s7343 + $0x228] sm:$0xff]
        %v7414 = vld [vmem:[%s7343 + $0x230] sm:$0xff]
        %v7415 = vld [vmem:[%s7343 + $0x238] sm:$0xff]
        %v7416 = vld [vmem:[%s7343 + $0x240] sm:$0xff]
        %v7417 = vld [vmem:[%s7343 + $0x248] sm:$0xff]
        %v7418 = vld [vmem:[%s7343 + $0x250] sm:$0xff]
        %v7419 = vld [vmem:[%s7343 + $0x258] sm:$0xff]
        %v7420 = vld [vmem:[%s7343 + $0x260] sm:$0xff]
        %v7421 = vld [vmem:[%s7343 + $0x268] sm:$0xff]
        %v7422 = vld [vmem:[%s7343 + $0x270] sm:$0xff]
        %v7423 = vld [vmem:[%s7343 + $0x278] sm:$0xff]
        %v7424 = vld [vmem:[%s7343 + $0x280] sm:$0xff]
        %v7425 = vld [vmem:[%s7343 + $0x288] sm:$0xff]
        %v7426 = vld [vmem:[%s7343 + $0x290] sm:$0xff]
        %v7427 = vld [vmem:[%s7343 + $0x298] sm:$0xff]
        %v7428 = vld [vmem:[%s7343 + $0x2a0] sm:$0xff]
        %v7429 = vld [vmem:[%s7343 + $0x2a8] sm:$0xff]
        %v7430 = vld [vmem:[%s7343 + $0x2b0] sm:$0xff]
        %v7431 = vld [vmem:[%s7343 + $0x2b8] sm:$0xff]
        %v7432 = vld [vmem:[%s7343 + $0x2c0] sm:$0xff]
        %v7433 = vld [vmem:[%s7343 + $0x2c8] sm:$0xff]
        %v7434 = vld [vmem:[%s7343 + $0x2d0] sm:$0xff]
        %v7435 = vld [vmem:[%s7343 + $0x2d8] sm:$0xff]
        %v7436 = vld [vmem:[%s7343 + $0x2e0] sm:$0xff]
        %v7437 = vld [vmem:[%s7343 + $0x2e8] sm:$0xff]
        %v7438 = vld [vmem:[%s7343 + $0x2f0] sm:$0xff]
        %v7439 = vld [vmem:[%s7343 + $0x2f8] sm:$0xff]
        %v7440 = vld [vmem:[%s7343 + $0x300] sm:$0xff]
        %v7441 = vld [vmem:[%s7343 + $0x308] sm:$0xff]
        %v7442 = vld [vmem:[%s7343 + $0x310] sm:$0xff]
        %v7443 = vld [vmem:[%s7343 + $0x318] sm:$0xff]
        %v7444 = vld [vmem:[%s7343 + $0x320] sm:$0xff]
        %v7445 = vld [vmem:[%s7343 + $0x328] sm:$0xff]
        %v7446 = vld [vmem:[%s7343 + $0x330] sm:$0xff]
        %v7447 = vld [vmem:[%s7343 + $0x338] sm:$0xff]
        %v7448 = vld [vmem:[%s7343 + $0x340] sm:$0xff]
        %v7449 = vld [vmem:[%s7343 + $0x348] sm:$0xff]
        %v7450 = vld [vmem:[%s7343 + $0x350] sm:$0xff]
        %v7451 = vld [vmem:[%s7343 + $0x358] sm:$0xff]
        %v7452 = vld [vmem:[%s7343 + $0x360] sm:$0xff]
        %v7453 = vld [vmem:[%s7343 + $0x368] sm:$0xff]
        %v7454 = vld [vmem:[%s7343 + $0x370] sm:$0xff]
        %v7455 = vld [vmem:[%s7343 + $0x378] sm:$0xff]
        %v7456 = vld [vmem:[%s7343 + $0x380] sm:$0xff]
        %v7457 = vld [vmem:[%s7343 + $0x388] sm:$0xff]
        %v7458 = vld [vmem:[%s7343 + $0x390] sm:$0xff]
        %v7459 = vld [vmem:[%s7343 + $0x398] sm:$0xff]
        %v7460 = vld [vmem:[%s7343 + $0x3a0] sm:$0xff]
        %v7461 = vld [vmem:[%s7343 + $0x3a8] sm:$0xff]
        %v7462 = vld [vmem:[%s7343 + $0x3b0] sm:$0xff]
        %v7463 = vld [vmem:[%s7343 + $0x3b8] sm:$0xff]
        %v7464 = vld [vmem:[%s7343 + $0x3c0] sm:$0xff]
        %v7465 = vld [vmem:[%s7343 + $0x3c8] sm:$0xff]
        %v7466 = vld [vmem:[%s7343 + $0x3d0] sm:$0xff]
        %v7467 = vld [vmem:[%s7343 + $0x3d8] sm:$0xff]
        %v7468 = vld [vmem:[%s7343 + $0x3e0] sm:$0xff]
        %v7469 = vld [vmem:[%s7343 + $0x3e8] sm:$0xff]
        %v7470 = vld [vmem:[%s7343 + $0x3f0] sm:$0xff]
        %v7471 = vld [vmem:[%s7343 + $0x3f8] sm:$0xff]
        %v7472 = vld [vmem:[%s7343 + $0x400] sm:$0xff]
        %v7473 = vld [vmem:[%s7343 + $0x408] sm:$0xff]
        %v7474 = vld [vmem:[%s7343 + $0x410] sm:$0xff]
        %v7475 = vld [vmem:[%s7343 + $0x418] sm:$0xff]
        %v7476 = vld [vmem:[%s7343 + $0x420] sm:$0xff]
        %v7477 = vld [vmem:[%s7343 + $0x428] sm:$0xff]
        %v7478 = vld [vmem:[%s7343 + $0x430] sm:$0xff]
        %v7479 = vld [vmem:[%s7343 + $0x438] sm:$0xff]
        %v7480 = vld [vmem:[%s7343 + $0x440] sm:$0xff]
        %v7481 = vld [vmem:[%s7343 + $0x448] sm:$0xff]
        %v7482 = vld [vmem:[%s7343 + $0x450] sm:$0xff]
        %v7483 = vld [vmem:[%s7343 + $0x458] sm:$0xff]
        %v7484 = vld [vmem:[%s7343 + $0x460] sm:$0xff]
        %v7485 = vld [vmem:[%s7343 + $0x468] sm:$0xff]
        %v7486 = vld [vmem:[%s7343 + $0x470] sm:$0xff]
        %v7487 = vld [vmem:[%s7343 + $0x478] sm:$0xff]
        %v7488 = vld [vmem:[%s7343 + $0x480] sm:$0xff]
        %v7489 = vld [vmem:[%s7343 + $0x488] sm:$0xff]
        %v7490 = vld [vmem:[%s7343 + $0x490] sm:$0xff]
        %v7491 = vld [vmem:[%s7343 + $0x498] sm:$0xff]
        %v7492 = vld [vmem:[%s7343 + $0x4a0] sm:$0xff]
        %v7493 = vld [vmem:[%s7343 + $0x4a8] sm:$0xff]
        %v7494 = vld [vmem:[%s7343 + $0x4b0] sm:$0xff]
        %v7495 = vld [vmem:[%s7343 + $0x4b8] sm:$0xff]
        %v7496 = vld [vmem:[%s7343 + $0x4c0] sm:$0xff]
        %v7497 = vld [vmem:[%s7343 + $0x4c8] sm:$0xff]
        %v7498 = vld [vmem:[%s7343 + $0x4d0] sm:$0xff]
        %v7499 = vld [vmem:[%s7343 + $0x4d8] sm:$0xff]
        %v7500 = vld [vmem:[%s7343 + $0x4e0] sm:$0xff]
        %v7501 = vld [vmem:[%s7343 + $0x4e8] sm:$0xff]
        %v7502 = vld [vmem:[%s7343 + $0x4f0] sm:$0xff]
        %v7503 = vld [vmem:[%s7343 + $0x4f8] sm:$0xff]
        %v7504 = vld [vmem:[%s7343 + $0x500] sm:$0xff]
        %v7505 = vld [vmem:[%s7343 + $0x508] sm:$0xff]
        %v7506 = vld [vmem:[%s7343 + $0x510] sm:$0xff]
        %v7507 = vld [vmem:[%s7343 + $0x518] sm:$0xff]
        %v7508 = vld [vmem:[%s7343 + $0x520] sm:$0xff]
        %v7509 = vld [vmem:[%s7343 + $0x528] sm:$0xff]
        %v7510 = vld [vmem:[%s7343 + $0x530] sm:$0xff]
        %v7511 = vld [vmem:[%s7343 + $0x538] sm:$0xff]
        %v7512 = vld [vmem:[%s7343 + $0x540] sm:$0xff]
        %v7513 = vld [vmem:[%s7343 + $0x548] sm:$0xff]
        %v7514 = vld [vmem:[%s7343 + $0x550] sm:$0xff]
        %v7515 = vld [vmem:[%s7343 + $0x558] sm:$0xff]
        %v7516 = vld [vmem:[%s7343 + $0x560] sm:$0xff]
        %v7517 = vld [vmem:[%s7343 + $0x568] sm:$0xff]
        %v7518 = vld [vmem:[%s7343 + $0x570] sm:$0xff]
        %v7519 = vld [vmem:[%s7343 + $0x578] sm:$0xff]
        %v7520 = vld [vmem:[%s7343 + $0x580] sm:$0xff]
        %v7521 = vld [vmem:[%s7343 + $0x588] sm:$0xff]
        %v7522 = vld [vmem:[%s7343 + $0x590] sm:$0xff]
        %v7523 = vld [vmem:[%s7343 + $0x598] sm:$0xff]
        %v7524 = vld [vmem:[%s7343 + $0x5a0] sm:$0xff]
        %v7525 = vld [vmem:[%s7343 + $0x5a8] sm:$0xff]
        %v7526 = vld [vmem:[%s7343 + $0x5b0] sm:$0xff]
        %v7527 = vld [vmem:[%s7343 + $0x5b8] sm:$0xff]
        %v7528 = vld [vmem:[%s7343 + $0x5c0] sm:$0xff]
        %v7529 = vld [vmem:[%s7343 + $0x5c8] sm:$0xff]
        %v7530 = vld [vmem:[%s7343 + $0x5d0] sm:$0xff]
        %v7531 = vld [vmem:[%s7343 + $0x5d8] sm:$0xff]
        %v7532 = vld [vmem:[%s7343 + $0x5e0] sm:$0xff]
        %v7533 = vld [vmem:[%s7343 + $0x5e8] sm:$0xff]
        %v7534 = vld [vmem:[%s7343 + $0x5f0] sm:$0xff]
        %v7535 = vld [vmem:[%s7343 + $0x5f8] sm:$0xff]
        %v7536 = vld [vmem:[%s7343 + $0x600] sm:$0xff]
        %v7537 = vld [vmem:[%s7343 + $0x608] sm:$0xff]
        %v7538 = vld [vmem:[%s7343 + $0x610] sm:$0xff]
        %v7539 = vld [vmem:[%s7343 + $0x618] sm:$0xff]
        %v7540 = vld [vmem:[%s7343 + $0x620] sm:$0xff]
        %v7541 = vld [vmem:[%s7343 + $0x628] sm:$0xff]
        %v7542 = vld [vmem:[%s7343 + $0x630] sm:$0xff]
        %v7543 = vld [vmem:[%s7343 + $0x638] sm:$0xff]
        %v7544 = vld [vmem:[%s7343 + $0x640] sm:$0xff]
        %v7545 = vld [vmem:[%s7343 + $0x648] sm:$0xff]
        %v7546 = vld [vmem:[%s7343 + $0x650] sm:$0xff]
        %v7547 = vld [vmem:[%s7343 + $0x658] sm:$0xff]
        %v7548 = vld [vmem:[%s7343 + $0x660] sm:$0xff]
        %v7549 = vld [vmem:[%s7343 + $0x668] sm:$0xff]
        %v7550 = vld [vmem:[%s7343 + $0x670] sm:$0xff]
        %v7551 = vld [vmem:[%s7343 + $0x678] sm:$0xff]
        %v7552 = vld [vmem:[%s7343 + $0x680] sm:$0xff]
        %v7553 = vld [vmem:[%s7343 + $0x688] sm:$0xff]
        %v7554 = vld [vmem:[%s7343 + $0x690] sm:$0xff]
        %v7555 = vld [vmem:[%s7343 + $0x698] sm:$0xff]
        %v7556 = vld [vmem:[%s7343 + $0x6a0] sm:$0xff]
        %v7557 = vld [vmem:[%s7343 + $0x6a8] sm:$0xff]
        %v7558 = vld [vmem:[%s7343 + $0x6b0] sm:$0xff]
        %v7559 = vld [vmem:[%s7343 + $0x6b8] sm:$0xff]
        %v7560 = vld [vmem:[%s7343 + $0x6c0] sm:$0xff]
        %v7561 = vld [vmem:[%s7343 + $0x6c8] sm:$0xff]
        %v7562 = vld [vmem:[%s7343 + $0x6d0] sm:$0xff]
        %v7563 = vld [vmem:[%s7343 + $0x6d8] sm:$0xff]
        %v7564 = vld [vmem:[%s7343 + $0x6e0] sm:$0xff]
        %v7565 = vld [vmem:[%s7343 + $0x6e8] sm:$0xff]
        %v7566 = vld [vmem:[%s7343 + $0x6f0] sm:$0xff]
        %v7567 = vld [vmem:[%s7343 + $0x6f8] sm:$0xff]
        %v7568 = vld [vmem:[%s7343 + $0x700] sm:$0xff]
        %v7569 = vld [vmem:[%s7343 + $0x708] sm:$0xff]
        %v7570 = vld [vmem:[%s7343 + $0x710] sm:$0xff]
        %v7571 = vld [vmem:[%s7343 + $0x718] sm:$0xff]
        %v7572 = vld [vmem:[%s7343 + $0x720] sm:$0xff]
        %v7573 = vld [vmem:[%s7343 + $0x728] sm:$0xff]
        %v7574 = vld [vmem:[%s7343 + $0x730] sm:$0xff]
        %v7575 = vld [vmem:[%s7343 + $0x738] sm:$0xff]
        %v7576 = vld [vmem:[%s7343 + $0x740] sm:$0xff]
        %v7577 = vld [vmem:[%s7343 + $0x748] sm:$0xff]
        %v7578 = vld [vmem:[%s7343 + $0x750] sm:$0xff]
        %v7579 = vld [vmem:[%s7343 + $0x758] sm:$0xff]
        %v7580 = vld [vmem:[%s7343 + $0x760] sm:$0xff]
        %v7581 = vld [vmem:[%s7343 + $0x768] sm:$0xff]
        %v7582 = vld [vmem:[%s7343 + $0x770] sm:$0xff]
        %v7583 = vld [vmem:[%s7343 + $0x778] sm:$0xff]
        %v7584 = vld [vmem:[%s7343 + $0x780] sm:$0xff]
        %v7585 = vld [vmem:[%s7343 + $0x788] sm:$0xff]
        %v7586 = vld [vmem:[%s7343 + $0x790] sm:$0xff]
        %v7587 = vld [vmem:[%s7343 + $0x798] sm:$0xff]
        %v7588 = vld [vmem:[%s7343 + $0x7a0] sm:$0xff]
        %v7589 = vld [vmem:[%s7343 + $0x7a8] sm:$0xff]
        %v7590 = vld [vmem:[%s7343 + $0x7b0] sm:$0xff]
        %v7591 = vld [vmem:[%s7343 + $0x7b8] sm:$0xff]
        %v7592 = vld [vmem:[%s7343 + $0x7c0] sm:$0xff]
        %v7593 = vld [vmem:[%s7343 + $0x7c8] sm:$0xff]
        %v7594 = vld [vmem:[%s7343 + $0x7d0] sm:$0xff]
        %v7595 = vld [vmem:[%s7343 + $0x7d8] sm:$0xff]
        %v7596 = vld [vmem:[%s7343 + $0x7e0] sm:$0xff]
        %v7597 = vld [vmem:[%s7343 + $0x7e8] sm:$0xff]
        %v7598 = vld [vmem:[%s7343 + $0x7f0] sm:$0xff]
        %v7599 = vld [vmem:[%s7343 + $0x7f8] sm:$0xff]
        %v7600 = vld [vmem:[%s7343 + $0x800] sm:$0xff]
        %v7601 = vld [vmem:[%s7343 + $0x808] sm:$0xff]
        %v7602 = vld [vmem:[%s7343 + $0x810] sm:$0xff]
        %v7603 = vld [vmem:[%s7343 + $0x818] sm:$0xff]
        %v7604 = vld [vmem:[%s7343 + $0x820] sm:$0xff]
        %v7605 = vld [vmem:[%s7343 + $0x828] sm:$0xff]
        %v7606 = vld [vmem:[%s7343 + $0x830] sm:$0xff]
        %v7607 = vld [vmem:[%s7343 + $0x838] sm:$0xff]
        %v7608 = vld [vmem:[%s7343 + $0x840] sm:$0xff]
        %v7609 = vld [vmem:[%s7343 + $0x848] sm:$0xff]
        %v7610 = vld [vmem:[%s7343 + $0x850] sm:$0xff]
        %v7611 = vld [vmem:[%s7343 + $0x858] sm:$0xff]
        %v7612 = vld [vmem:[%s7343 + $0x860] sm:$0xff]
        %v7613 = vld [vmem:[%s7343 + $0x868] sm:$0xff]
        %v7614 = vld [vmem:[%s7343 + $0x870] sm:$0xff]
        %v7615 = vld [vmem:[%s7343 + $0x878] sm:$0xff]
        %v7616 = vld [vmem:[%s7343 + $0x880] sm:$0xff]
        %v7617 = vld [vmem:[%s7343 + $0x888] sm:$0xff]
        %v7618 = vld [vmem:[%s7343 + $0x890] sm:$0xff]
        %v7619 = vld [vmem:[%s7343 + $0x898] sm:$0xff]
        %v7620 = vld [vmem:[%s7343 + $0x8a0] sm:$0xff]
        %v7621 = vld [vmem:[%s7343 + $0x8a8] sm:$0xff]
        %v7622 = vld [vmem:[%s7343 + $0x8b0] sm:$0xff]
        %v7623 = vld [vmem:[%s7343 + $0x8b8] sm:$0xff]
        %v7624 = vld [vmem:[%s7343 + $0x8c0] sm:$0xff]
        %v7625 = vld [vmem:[%s7343 + $0x8c8] sm:$0xff]
        %v7626 = vld [vmem:[%s7343 + $0x8d0] sm:$0xff]
        %v7627 = vld [vmem:[%s7343 + $0x8d8] sm:$0xff]
        %v7628 = vld [vmem:[%s7343 + $0x8e0] sm:$0xff]
        %v7629 = vld [vmem:[%s7343 + $0x8e8] sm:$0xff]
        %v7630 = vld [vmem:[%s7343 + $0x8f0] sm:$0xff]
        %v7631 = vld [vmem:[%s7343 + $0x8f8] sm:$0xff]
        %v7632 = vld [vmem:[%s7343 + $0x900] sm:$0xff]
        %v7633 = vld [vmem:[%s7343 + $0x908] sm:$0xff]
        %v7634 = vld [vmem:[%s7343 + $0x910] sm:$0xff]
        %v7635 = vld [vmem:[%s7343 + $0x918] sm:$0xff]
        %v7636 = vld [vmem:[%s7343 + $0x920] sm:$0xff]
        %v7637 = vld [vmem:[%s7343 + $0x928] sm:$0xff]
        %v7638 = vld [vmem:[%s7343 + $0x930] sm:$0xff]
        %v7639 = vld [vmem:[%s7343 + $0x938] sm:$0xff]
        %v7640 = vld [vmem:[%s7343 + $0x940] sm:$0xff]
        %v7641 = vld [vmem:[%s7343 + $0x948] sm:$0xff]
        %v7642 = vld [vmem:[%s7343 + $0x950] sm:$0xff]
        %v7643 = vld [vmem:[%s7343 + $0x958] sm:$0xff]
        %v7644 = vld [vmem:[%s7343 + $0x960] sm:$0xff]
        %v7645 = vld [vmem:[%s7343 + $0x968] sm:$0xff]
        %v7646 = vld [vmem:[%s7343 + $0x970] sm:$0xff]
        %v7647 = vld [vmem:[%s7343 + $0x978] sm:$0xff]
        %v7648 = vld [vmem:[%s7343 + $0x980] sm:$0xff]
        %v7649 = vld [vmem:[%s7343 + $0x988] sm:$0xff]
        %v7650 = vld [vmem:[%s7343 + $0x990] sm:$0xff]
        %v7651 = vld [vmem:[%s7343 + $0x998] sm:$0xff]
        %v7652 = vld [vmem:[%s7343 + $0x9a0] sm:$0xff]
        %v7653 = vld [vmem:[%s7343 + $0x9a8] sm:$0xff]
        %v7654 = vld [vmem:[%s7343 + $0x9b0] sm:$0xff]
        %v7655 = vld [vmem:[%s7343 + $0x9b8] sm:$0xff]
        %v7656 = vld [vmem:[%s7343 + $0x9c0] sm:$0xff]
        %v7657 = vld [vmem:[%s7343 + $0x9c8] sm:$0xff]
        %v7658 = vld [vmem:[%s7343 + $0x9d0] sm:$0xff]
        %v7659 = vld [vmem:[%s7343 + $0x9d8] sm:$0xff]
        %v7660 = vld [vmem:[%s7343 + $0x9e0] sm:$0xff]
        %v7661 = vld [vmem:[%s7343 + $0x9e8] sm:$0xff]
        %v7662 = vld [vmem:[%s7343 + $0x9f0] sm:$0xff]
        %v7663 = vld [vmem:[%s7343 + $0x9f8] sm:$0xff]
        %v7664 = vld [vmem:[%s7343 + $0xa00] sm:$0xff]
        %v7665 = vld [vmem:[%s7343 + $0xa08] sm:$0xff]
        %v7666 = vld [vmem:[%s7343 + $0xa10] sm:$0xff]
        %v7667 = vld [vmem:[%s7343 + $0xa18] sm:$0xff]
        %v7668 = vld [vmem:[%s7343 + $0xa20] sm:$0xff]
        %v7669 = vld [vmem:[%s7343 + $0xa28] sm:$0xff]
        %v7670 = vld [vmem:[%s7343 + $0xa30] sm:$0xff]
        %v7671 = vld [vmem:[%s7343 + $0xa38] sm:$0xff]
        %v7672 = vld [vmem:[%s7343 + $0xa40] sm:$0xff]
        %v7673 = vld [vmem:[%s7343 + $0xa48] sm:$0xff]
        %v7674 = vld [vmem:[%s7343 + $0xa50] sm:$0xff]
        %v7675 = vld [vmem:[%s7343 + $0xa58] sm:$0xff]
        %v7676 = vld [vmem:[%s7343 + $0xa60] sm:$0xff]
        %v7677 = vld [vmem:[%s7343 + $0xa68] sm:$0xff]
        %v7678 = vld [vmem:[%s7343 + $0xa70] sm:$0xff]
        %v7679 = vld [vmem:[%s7343 + $0xa78] sm:$0xff]
        %v7680 = vld [vmem:[%s7343 + $0xa80] sm:$0xff]
        %v7681 = vld [vmem:[%s7343 + $0xa88] sm:$0xff]
        %v7682 = vld [vmem:[%s7343 + $0xa90] sm:$0xff]
        %v7683 = vld [vmem:[%s7343 + $0xa98] sm:$0xff]
        %v7684 = vld [vmem:[%s7343 + $0xaa0] sm:$0xff]
        %v7685 = vld [vmem:[%s7343 + $0xaa8] sm:$0xff]
        %v7686 = vld [vmem:[%s7343 + $0xab0] sm:$0xff]
        %v7687 = vld [vmem:[%s7343 + $0xab8] sm:$0xff]
        %v7688 = vld [vmem:[%s7343 + $0xac0] sm:$0xff]
        %v7689 = vld [vmem:[%s7343 + $0xac8] sm:$0xff]
        %v7690 = vld [vmem:[%s7343 + $0xad0] sm:$0xff]
        %v7691 = vld [vmem:[%s7343 + $0xad8] sm:$0xff]
        %v7692 = vld [vmem:[%s7343 + $0xae0] sm:$0xff]
        %v7693 = vld [vmem:[%s7343 + $0xae8] sm:$0xff]
        %v7694 = vld [vmem:[%s7343 + $0xaf0] sm:$0xff]
        %v7695 = vld [vmem:[%s7343 + $0xaf8] sm:$0xff]
        %v7696 = vld [vmem:[%s7343 + $0xb00] sm:$0xff]
        %v7697 = vld [vmem:[%s7343 + $0xb08] sm:$0xff]
        %v7698 = vld [vmem:[%s7343 + $0xb10] sm:$0xff]
        %v7699 = vld [vmem:[%s7343 + $0xb18] sm:$0xff]
        %v7700 = vld [vmem:[%s7343 + $0xb20] sm:$0xff]
        %v7701 = vld [vmem:[%s7343 + $0xb28] sm:$0xff]
        %v7702 = vld [vmem:[%s7343 + $0xb30] sm:$0xff]
        %v7703 = vld [vmem:[%s7343 + $0xb38] sm:$0xff]
        %v7704 = vld [vmem:[%s7343 + $0xb40] sm:$0xff]
        %v7705 = vld [vmem:[%s7343 + $0xb48] sm:$0xff]
        %v7706 = vld [vmem:[%s7343 + $0xb50] sm:$0xff]
        %v7707 = vld [vmem:[%s7343 + $0xb58] sm:$0xff]
        %v7708 = vld [vmem:[%s7343 + $0xb60] sm:$0xff]
        %v7709 = vld [vmem:[%s7343 + $0xb68] sm:$0xff]
        %v7710 = vld [vmem:[%s7343 + $0xb70] sm:$0xff]
        %v7711 = vld [vmem:[%s7343 + $0xb78] sm:$0xff]
        %v7712 = vld [vmem:[%s7343 + $0xb80] sm:$0xff]
        %v7713 = vld [vmem:[%s7343 + $0xb88] sm:$0xff]
        %v7714 = vld [vmem:[%s7343 + $0xb90] sm:$0xff]
        %v7715 = vld [vmem:[%s7343 + $0xb98] sm:$0xff]
        %v7716 = vld [vmem:[%s7343 + $0xba0] sm:$0xff]
        %v7717 = vld [vmem:[%s7343 + $0xba8] sm:$0xff]
        %v7718 = vld [vmem:[%s7343 + $0xbb0] sm:$0xff]
        %v7719 = vld [vmem:[%s7343 + $0xbb8] sm:$0xff]
        %v7720 = vld [vmem:[%s7343 + $0xbc0] sm:$0xff]
        %v7721 = vld [vmem:[%s7343 + $0xbc8] sm:$0xff]
        %v7722 = vld [vmem:[%s7343 + $0xbd0] sm:$0xff]
        %v7723 = vld [vmem:[%s7343 + $0xbd8] sm:$0xff]
        %v7724 = vld [vmem:[%s7343 + $0xbe0] sm:$0xff]
        %v7725 = vld [vmem:[%s7343 + $0xbe8] sm:$0xff]
        %v7726 = vld [vmem:[%s7343 + $0xbf0] sm:$0xff]
        %v7727 = vld [vmem:[%s7343 + $0xbf8] sm:$0xff]
        %7728 = vmatprep.subr.mxu0 %v7375
        %7729 = vmatpush1.msra.mxu0 %v7374
        %7730 = vmatprep.subr.mxu0 %v7373
        %7731 = vmatpush1.msra.mxu0 %v7372
        %7732 = vmatprep.subr.mxu0 %v7371
        %7733 = vmatpush1.msra.mxu0 %v7370
        %7734 = vmatprep.subr.mxu0 %v7369
        %7735 = vmatpush1.msra.mxu0 %v7368
        %7736 = vmatprep.subr.mxu0 %v7367
        %7737 = vmatpush1.msra.mxu0 %v7366
        %7738 = vmatprep.subr.mxu0 %v7365
        %7739 = vmatpush1.msra.mxu0 %v7364
        %7740 = vmatprep.subr.mxu0 %v7363
        %7741 = vmatpush1.msra.mxu0 %v7362
        %7742 = vmatprep.subr.mxu0 %v7361
        %7743 = vmatpush1.msra.mxu0 %v7360
        %7744 = vmatprep.subr.mxu0 %v7359
        %7745 = vmatpush1.msra.mxu0 %v7358
        %7746 = vmatprep.subr.mxu0 %v7357
        %7747 = vmatpush1.msra.mxu0 %v7356
        %7748 = vmatprep.subr.mxu0 %v7355
        %7749 = vmatpush1.msra.mxu0 %v7354
        %7750 = vmatprep.subr.mxu0 %v7353
        %7751 = vmatpush1.msra.mxu0 %v7352
        %7752 = vmatprep.subr.mxu0 %v7351
        %7753 = vmatpush1.msra.mxu0 %v7350
        %7754 = vmatprep.subr.mxu0 %v7349
        %7755 = vmatpush1.msra.mxu0 %v7348
        %7756 = vmatprep.subr.mxu0 %v7347
        %7757 = vmatpush1.msra.mxu0 %v7346
        %7758 = vmatprep.subr.mxu0 %v7345
        %7759 = vmatpush1.msra.mxu0 %v7344
        %7760 = vmatprep.subr.mxu0 %v7407
        %7761 = vmatpush2.msra.mxu0 %v7406
        %7762 = vmatprep.subr.mxu0 %v7405
        %7763 = vmatpush2.msra.mxu0 %v7404
        %7764 = vmatprep.subr.mxu0 %v7403
        %7765 = vmatpush2.msra.mxu0 %v7402
        %7766 = vmatprep.subr.mxu0 %v7401
        %7767 = vmatpush2.msra.mxu0 %v7400
        %7768 = vmatprep.subr.mxu0 %v7399
        %7769 = vmatpush2.msra.mxu0 %v7398
        %7770 = vmatprep.subr.mxu0 %v7397
        %7771 = vmatpush2.msra.mxu0 %v7396
        %7772 = vmatprep.subr.mxu0 %v7395
        %7773 = vmatpush2.msra.mxu0 %v7394
        %7774 = vmatprep.subr.mxu0 %v7393
        %7775 = vmatpush2.msra.mxu0 %v7392
        %7776 = vmatprep.subr.mxu0 %v7391
        %7777 = vmatpush2.msra.mxu0 %v7390
        %7778 = vmatprep.subr.mxu0 %v7389
        %7779 = vmatpush2.msra.mxu0 %v7388
        %7780 = vmatprep.subr.mxu0 %v7387
        %7781 = vmatpush2.msra.mxu0 %v7386
        %7782 = vmatprep.subr.mxu0 %v7385
        %7783 = vmatpush2.msra.mxu0 %v7384
        %7784 = vmatprep.subr.mxu0 %v7383
        %7785 = vmatpush2.msra.mxu0 %v7382
        %7786 = vmatprep.subr.mxu0 %v7381
        %7787 = vmatpush2.msra.mxu0 %v7380
        %7788 = vmatprep.subr.mxu0 %v7379
        %7789 = vmatpush2.msra.mxu0 %v7378
        %7790 = vmatprep.subr.mxu0 %v7377
        %7791 = vmatpush2.msra.mxu0 %v7376
        %7792 = vmatprep.mubr.f32.mxu0 %v6960
        %7793 = vmatmul.mubr.f32.gmra.mxu0 %v6959
        %v7794 = vpop.f32.mrf.mxu0
        %v7795 = vadd.f32 0.0, %v7794
        %v7796 = vpop.f32.mrf.mxu0
        %v7797 = vadd.f32 0.0, %v7796
        %7798 = vmatprep.mubr.f32.mxu0 %v6972
        %7799 = vmatmul.mubr.f32.gmra.mxu0 %v6971
        %v7800 = vpop.f32.mrf.mxu0
        %v7801 = vadd.f32 0.0, %v7800
        %v7802 = vpop.f32.mrf.mxu0
        %v7803 = vadd.f32 0.0, %v7802
        %7804 = vmatprep.mubr.f32.mxu0 %v6984
        %7805 = vmatmul.mubr.f32.gmra.mxu0 %v6983
        %v7806 = vpop.f32.mrf.mxu0
        %v7807 = vadd.f32 0.0, %v7806
        %v7808 = vpop.f32.mrf.mxu0
        %v7809 = vadd.f32 0.0, %v7808
        %7810 = vmatprep.mubr.f32.mxu0 %v6996
        %7811 = vmatmul.mubr.f32.gmra.mxu0 %v6995
        %v7812 = vpop.f32.mrf.mxu0
        %v7813 = vadd.f32 0.0, %v7812
        %v7814 = vpop.f32.mrf.mxu0
        %v7815 = vadd.f32 0.0, %v7814
        %7816 = vmatprep.mubr.f32.mxu0 %v7008
        %7817 = vmatmul.mubr.f32.gmra.mxu0 %v7007
        %v7818 = vpop.f32.mrf.mxu0
        %v7819 = vadd.f32 0.0, %v7818
        %v7820 = vpop.f32.mrf.mxu0
        %v7821 = vadd.f32 0.0, %v7820
        %7822 = vmatprep.mubr.f32.mxu0 %v7020
        %7823 = vmatmul.mubr.f32.gmra.mxu0 %v7019
        %v7824 = vpop.f32.mrf.mxu0
        %v7825 = vadd.f32 0.0, %v7824
        %v7826 = vpop.f32.mrf.mxu0
        %v7827 = vadd.f32 0.0, %v7826
        %7828 = vmatprep.mubr.f32.mxu0 %v7032
        %7829 = vmatmul.mubr.f32.gmra.mxu0 %v7031
        %v7830 = vpop.f32.mrf.mxu0
        %v7831 = vadd.f32 0.0, %v7830
        %v7832 = vpop.f32.mrf.mxu0
        %v7833 = vadd.f32 0.0, %v7832
        %7834 = vmatprep.mubr.f32.mxu0 %v7044
        %7835 = vmatmul.mubr.f32.gmra.mxu0 %v7043
        %v7836 = vpop.f32.mrf.mxu0
        %v7837 = vadd.f32 0.0, %v7836
        %v7838 = vpop.f32.mrf.mxu0
        %v7839 = vadd.f32 0.0, %v7838
        %7840 = vmatprep.mubr.f32.mxu0 %v7056
        %7841 = vmatmul.mubr.f32.gmra.mxu0 %v7055
        %v7842 = vpop.f32.mrf.mxu0
        %v7843 = vadd.f32 0.0, %v7842
        %v7844 = vpop.f32.mrf.mxu0
        %v7845 = vadd.f32 0.0, %v7844
        %7846 = vmatprep.mubr.f32.mxu0 %v7068
        %7847 = vmatmul.mubr.f32.gmra.mxu0 %v7067
        %v7848 = vpop.f32.mrf.mxu0
        %v7849 = vadd.f32 0.0, %v7848
        %v7850 = vpop.f32.mrf.mxu0
        %v7851 = vadd.f32 0.0, %v7850
        %7852 = vmatprep.mubr.f32.mxu0 %v7080
        %7853 = vmatmul.mubr.f32.gmra.mxu0 %v7079
        %v7854 = vpop.f32.mrf.mxu0
        %v7855 = vadd.f32 0.0, %v7854
        %v7856 = vpop.f32.mrf.mxu0
        %v7857 = vadd.f32 0.0, %v7856
        %7858 = vmatprep.mubr.f32.mxu0 %v7092
        %7859 = vmatmul.mubr.f32.gmra.mxu0 %v7091
        %v7860 = vpop.f32.mrf.mxu0
        %v7861 = vadd.f32 0.0, %v7860
        %v7862 = vpop.f32.mrf.mxu0
        %v7863 = vadd.f32 0.0, %v7862
        %7864 = vmatprep.mubr.f32.mxu0 %v7104
        %7865 = vmatmul.mubr.f32.gmra.mxu0 %v7103
        %v7866 = vpop.f32.mrf.mxu0
        %v7867 = vadd.f32 0.0, %v7866
        %v7868 = vpop.f32.mrf.mxu0
        %v7869 = vadd.f32 0.0, %v7868
        %7870 = vmatprep.mubr.f32.mxu0 %v7116
        %7871 = vmatmul.mubr.f32.gmra.mxu0 %v7115
        %v7872 = vpop.f32.mrf.mxu0
        %v7873 = vadd.f32 0.0, %v7872
        %v7874 = vpop.f32.mrf.mxu0
        %v7875 = vadd.f32 0.0, %v7874
        %7876 = vmatprep.mubr.f32.mxu0 %v7128
        %7877 = vmatmul.mubr.f32.gmra.mxu0 %v7127
        %v7878 = vpop.f32.mrf.mxu0
        %v7879 = vadd.f32 0.0, %v7878
        %v7880 = vpop.f32.mrf.mxu0
        %v7881 = vadd.f32 0.0, %v7880
        %7882 = vmatprep.mubr.f32.mxu0 %v7140
        %7883 = vmatmul.mubr.f32.gmra.mxu0 %v7139
        %v7884 = vpop.f32.mrf.mxu0
        %v7885 = vadd.f32 0.0, %v7884
        %v7886 = vpop.f32.mrf.mxu0
        %v7887 = vadd.f32 0.0, %v7886
        %7888 = vmatprep.mubr.f32.mxu0 %v7152
        %7889 = vmatmul.mubr.f32.gmra.mxu0 %v7151
        %v7890 = vpop.f32.mrf.mxu0
        %v7891 = vadd.f32 0.0, %v7890
        %v7892 = vpop.f32.mrf.mxu0
        %v7893 = vadd.f32 0.0, %v7892
        %7894 = vmatprep.mubr.f32.mxu0 %v7164
        %7895 = vmatmul.mubr.f32.gmra.mxu0 %v7163
        %v7896 = vpop.f32.mrf.mxu0
        %v7897 = vadd.f32 0.0, %v7896
        %v7898 = vpop.f32.mrf.mxu0
        %v7899 = vadd.f32 0.0, %v7898
        %7900 = vmatprep.mubr.f32.mxu0 %v7176
        %7901 = vmatmul.mubr.f32.gmra.mxu0 %v7175
        %v7902 = vpop.f32.mrf.mxu0
        %v7903 = vadd.f32 0.0, %v7902
        %v7904 = vpop.f32.mrf.mxu0
        %v7905 = vadd.f32 0.0, %v7904
        %7906 = vmatprep.mubr.f32.mxu0 %v7188
        %7907 = vmatmul.mubr.f32.gmra.mxu0 %v7187
        %v7908 = vpop.f32.mrf.mxu0
        %v7909 = vadd.f32 0.0, %v7908
        %v7910 = vpop.f32.mrf.mxu0
        %v7911 = vadd.f32 0.0, %v7910
        %7912 = vmatprep.mubr.f32.mxu0 %v7200
        %7913 = vmatmul.mubr.f32.gmra.mxu0 %v7199
        %v7914 = vpop.f32.mrf.mxu0
        %v7915 = vadd.f32 0.0, %v7914
        %v7916 = vpop.f32.mrf.mxu0
        %v7917 = vadd.f32 0.0, %v7916
        %7918 = vmatprep.mubr.f32.mxu0 %v7212
        %7919 = vmatmul.mubr.f32.gmra.mxu0 %v7211
        %v7920 = vpop.f32.mrf.mxu0
        %v7921 = vadd.f32 0.0, %v7920
        %v7922 = vpop.f32.mrf.mxu0
        %v7923 = vadd.f32 0.0, %v7922
        %7924 = vmatprep.mubr.f32.mxu0 %v7224
        %7925 = vmatmul.mubr.f32.gmra.mxu0 %v7223
        %v7926 = vpop.f32.mrf.mxu0
        %v7927 = vadd.f32 0.0, %v7926
        %v7928 = vpop.f32.mrf.mxu0
        %v7929 = vadd.f32 0.0, %v7928
        %7930 = vmatprep.mubr.f32.mxu0 %v7236
        %7931 = vmatmul.mubr.f32.gmra.mxu0 %v7235
        %v7932 = vpop.f32.mrf.mxu0
        %v7933 = vadd.f32 0.0, %v7932
        %v7934 = vpop.f32.mrf.mxu0
        %v7935 = vadd.f32 0.0, %v7934
        %7936 = vmatprep.mubr.f32.mxu0 %v7248
        %7937 = vmatmul.mubr.f32.gmra.mxu0 %v7247
        %v7938 = vpop.f32.mrf.mxu0
        %v7939 = vadd.f32 0.0, %v7938
        %v7940 = vpop.f32.mrf.mxu0
        %v7941 = vadd.f32 0.0, %v7940
        %7942 = vmatprep.mubr.f32.mxu0 %v7260
        %7943 = vmatmul.mubr.f32.gmra.mxu0 %v7259
        %v7944 = vpop.f32.mrf.mxu0
        %v7945 = vadd.f32 0.0, %v7944
        %v7946 = vpop.f32.mrf.mxu0
        %v7947 = vadd.f32 0.0, %v7946
        %7948 = vmatprep.mubr.f32.mxu0 %v7272
        %7949 = vmatmul.mubr.f32.gmra.mxu0 %v7271
        %v7950 = vpop.f32.mrf.mxu0
        %v7951 = vadd.f32 0.0, %v7950
        %v7952 = vpop.f32.mrf.mxu0
        %v7953 = vadd.f32 0.0, %v7952
        %7954 = vmatprep.mubr.f32.mxu0 %v7284
        %7955 = vmatmul.mubr.f32.gmra.mxu0 %v7283
        %v7956 = vpop.f32.mrf.mxu0
        %v7957 = vadd.f32 0.0, %v7956
        %v7958 = vpop.f32.mrf.mxu0
        %v7959 = vadd.f32 0.0, %v7958
        %7960 = vmatprep.mubr.f32.mxu0 %v7296
        %7961 = vmatmul.mubr.f32.gmra.mxu0 %v7295
        %v7962 = vpop.f32.mrf.mxu0
        %v7963 = vadd.f32 0.0, %v7962
        %v7964 = vpop.f32.mrf.mxu0
        %v7965 = vadd.f32 0.0, %v7964
        %7966 = vmatprep.mubr.f32.mxu0 %v7308
        %7967 = vmatmul.mubr.f32.gmra.mxu0 %v7307
        %v7968 = vpop.f32.mrf.mxu0
        %v7969 = vadd.f32 0.0, %v7968
        %v7970 = vpop.f32.mrf.mxu0
        %v7971 = vadd.f32 0.0, %v7970
        %7972 = vmatprep.mubr.f32.mxu0 %v7320
        %7973 = vmatmul.mubr.f32.gmra.mxu0 %v7319
        %v7974 = vpop.f32.mrf.mxu0
        %v7975 = vadd.f32 0.0, %v7974
        %v7976 = vpop.f32.mrf.mxu0
        %v7977 = vadd.f32 0.0, %v7976
        %7978 = vmatprep.mubr.f32.mxu0 %v7332
        %7979 = vmatmul.mubr.f32.gmra.mxu0 %v7331
        %v7980 = vpop.f32.mrf.mxu0
        %v7981 = vadd.f32 0.0, %v7980
        %v7982 = vpop.f32.mrf.mxu0
        %v7983 = vadd.f32 0.0, %v7982
        %7984 = vdwg.mxu0
        %7985 = vmatprep.subr.mxu0 %v7439
        %7986 = vmatpush1.msra.mxu0 %v7438
        %7987 = vmatprep.subr.mxu0 %v7437
        %7988 = vmatpush1.msra.mxu0 %v7436
        %7989 = vmatprep.subr.mxu0 %v7435
        %7990 = vmatpush1.msra.mxu0 %v7434
        %7991 = vmatprep.subr.mxu0 %v7433
        %7992 = vmatpush1.msra.mxu0 %v7432
        %7993 = vmatprep.subr.mxu0 %v7431
        %7994 = vmatpush1.msra.mxu0 %v7430
        %7995 = vmatprep.subr.mxu0 %v7429
        %7996 = vmatpush1.msra.mxu0 %v7428
        %7997 = vmatprep.subr.mxu0 %v7427
        %7998 = vmatpush1.msra.mxu0 %v7426
        %7999 = vmatprep.subr.mxu0 %v7425
        %8000 = vmatpush1.msra.mxu0 %v7424
        %8001 = vmatprep.subr.mxu0 %v7423
        %8002 = vmatpush1.msra.mxu0 %v7422
        %8003 = vmatprep.subr.mxu0 %v7421
        %8004 = vmatpush1.msra.mxu0 %v7420
        %8005 = vmatprep.subr.mxu0 %v7419
        %8006 = vmatpush1.msra.mxu0 %v7418
        %8007 = vmatprep.subr.mxu0 %v7417
        %8008 = vmatpush1.msra.mxu0 %v7416
        %8009 = vmatprep.subr.mxu0 %v7415
        %8010 = vmatpush1.msra.mxu0 %v7414
        %8011 = vmatprep.subr.mxu0 %v7413
        %8012 = vmatpush1.msra.mxu0 %v7412
        %8013 = vmatprep.subr.mxu0 %v7411
        %8014 = vmatpush1.msra.mxu0 %v7410
        %8015 = vmatprep.subr.mxu0 %v7409
        %8016 = vmatpush1.msra.mxu0 %v7408
        %8017 = vmatprep.subr.mxu0 %v7471
        %8018 = vmatpush2.msra.mxu0 %v7470
        %8019 = vmatprep.subr.mxu0 %v7469
        %8020 = vmatpush2.msra.mxu0 %v7468
        %8021 = vmatprep.subr.mxu0 %v7467
        %8022 = vmatpush2.msra.mxu0 %v7466
        %8023 = vmatprep.subr.mxu0 %v7465
        %8024 = vmatpush2.msra.mxu0 %v7464
        %8025 = vmatprep.subr.mxu0 %v7463
        %8026 = vmatpush2.msra.mxu0 %v7462
        %8027 = vmatprep.subr.mxu0 %v7461
        %8028 = vmatpush2.msra.mxu0 %v7460
        %8029 = vmatprep.subr.mxu0 %v7459
        %8030 = vmatpush2.msra.mxu0 %v7458
        %8031 = vmatprep.subr.mxu0 %v7457
        %8032 = vmatpush2.msra.mxu0 %v7456
        %8033 = vmatprep.subr.mxu0 %v7455
        %8034 = vmatpush2.msra.mxu0 %v7454
        %8035 = vmatprep.subr.mxu0 %v7453
        %8036 = vmatpush2.msra.mxu0 %v7452
        %8037 = vmatprep.subr.mxu0 %v7451
        %8038 = vmatpush2.msra.mxu0 %v7450
        %8039 = vmatprep.subr.mxu0 %v7449
        %8040 = vmatpush2.msra.mxu0 %v7448
        %8041 = vmatprep.subr.mxu0 %v7447
        %8042 = vmatpush2.msra.mxu0 %v7446
        %8043 = vmatprep.subr.mxu0 %v7445
        %8044 = vmatpush2.msra.mxu0 %v7444
        %8045 = vmatprep.subr.mxu0 %v7443
        %8046 = vmatpush2.msra.mxu0 %v7442
        %8047 = vmatprep.subr.mxu0 %v7441
        %8048 = vmatpush2.msra.mxu0 %v7440
        %8049 = vmatprep.mubr.f32.mxu0 %v6962
        %8050 = vmatmul.mubr.f32.gmra.mxu0 %v6961
        %v8051 = vpop.f32.mrf.mxu0
        %v8052 = vadd.f32 %v7795, %v8051
        %v8053 = vpop.f32.mrf.mxu0
        %v8054 = vadd.f32 %v7797, %v8053
        %8055 = vmatprep.mubr.f32.mxu0 %v6974
        %8056 = vmatmul.mubr.f32.gmra.mxu0 %v6973
        %v8057 = vpop.f32.mrf.mxu0
        %v8058 = vadd.f32 %v7801, %v8057
        %v8059 = vpop.f32.mrf.mxu0
        %v8060 = vadd.f32 %v7803, %v8059
        %8061 = vmatprep.mubr.f32.mxu0 %v6986
        %8062 = vmatmul.mubr.f32.gmra.mxu0 %v6985
        %v8063 = vpop.f32.mrf.mxu0
        %v8064 = vadd.f32 %v7807, %v8063
        %v8065 = vpop.f32.mrf.mxu0
        %v8066 = vadd.f32 %v7809, %v8065
        %8067 = vmatprep.mubr.f32.mxu0 %v6998
        %8068 = vmatmul.mubr.f32.gmra.mxu0 %v6997
        %v8069 = vpop.f32.mrf.mxu0
        %v8070 = vadd.f32 %v7813, %v8069
        %v8071 = vpop.f32.mrf.mxu0
        %v8072 = vadd.f32 %v7815, %v8071
        %8073 = vmatprep.mubr.f32.mxu0 %v7010
        %8074 = vmatmul.mubr.f32.gmra.mxu0 %v7009
        %v8075 = vpop.f32.mrf.mxu0
        %v8076 = vadd.f32 %v7819, %v8075
        %v8077 = vpop.f32.mrf.mxu0
        %v8078 = vadd.f32 %v7821, %v8077
        %8079 = vmatprep.mubr.f32.mxu0 %v7022
        %8080 = vmatmul.mubr.f32.gmra.mxu0 %v7021
        %v8081 = vpop.f32.mrf.mxu0
        %v8082 = vadd.f32 %v7825, %v8081
        %v8083 = vpop.f32.mrf.mxu0
        %v8084 = vadd.f32 %v7827, %v8083
        %8085 = vmatprep.mubr.f32.mxu0 %v7034
        %8086 = vmatmul.mubr.f32.gmra.mxu0 %v7033
        %v8087 = vpop.f32.mrf.mxu0
        %v8088 = vadd.f32 %v7831, %v8087
        %v8089 = vpop.f32.mrf.mxu0
        %v8090 = vadd.f32 %v7833, %v8089
        %8091 = vmatprep.mubr.f32.mxu0 %v7046
        %8092 = vmatmul.mubr.f32.gmra.mxu0 %v7045
        %v8093 = vpop.f32.mrf.mxu0
        %v8094 = vadd.f32 %v7837, %v8093
        %v8095 = vpop.f32.mrf.mxu0
        %v8096 = vadd.f32 %v7839, %v8095
        %8097 = vmatprep.mubr.f32.mxu0 %v7058
        %8098 = vmatmul.mubr.f32.gmra.mxu0 %v7057
        %v8099 = vpop.f32.mrf.mxu0
        %v8100 = vadd.f32 %v7843, %v8099
        %v8101 = vpop.f32.mrf.mxu0
        %v8102 = vadd.f32 %v7845, %v8101
        %8103 = vmatprep.mubr.f32.mxu0 %v7070
        %8104 = vmatmul.mubr.f32.gmra.mxu0 %v7069
        %v8105 = vpop.f32.mrf.mxu0
        %v8106 = vadd.f32 %v7849, %v8105
        %v8107 = vpop.f32.mrf.mxu0
        %v8108 = vadd.f32 %v7851, %v8107
        %8109 = vmatprep.mubr.f32.mxu0 %v7082
        %8110 = vmatmul.mubr.f32.gmra.mxu0 %v7081
        %v8111 = vpop.f32.mrf.mxu0
        %v8112 = vadd.f32 %v7855, %v8111
        %v8113 = vpop.f32.mrf.mxu0
        %v8114 = vadd.f32 %v7857, %v8113
        %8115 = vmatprep.mubr.f32.mxu0 %v7094
        %8116 = vmatmul.mubr.f32.gmra.mxu0 %v7093
        %v8117 = vpop.f32.mrf.mxu0
        %v8118 = vadd.f32 %v7861, %v8117
        %v8119 = vpop.f32.mrf.mxu0
        %v8120 = vadd.f32 %v7863, %v8119
        %8121 = vmatprep.mubr.f32.mxu0 %v7106
        %8122 = vmatmul.mubr.f32.gmra.mxu0 %v7105
        %v8123 = vpop.f32.mrf.mxu0
        %v8124 = vadd.f32 %v7867, %v8123
        %v8125 = vpop.f32.mrf.mxu0
        %v8126 = vadd.f32 %v7869, %v8125
        %8127 = vmatprep.mubr.f32.mxu0 %v7118
        %8128 = vmatmul.mubr.f32.gmra.mxu0 %v7117
        %v8129 = vpop.f32.mrf.mxu0
        %v8130 = vadd.f32 %v7873, %v8129
        %v8131 = vpop.f32.mrf.mxu0
        %v8132 = vadd.f32 %v7875, %v8131
        %8133 = vmatprep.mubr.f32.mxu0 %v7130
        %8134 = vmatmul.mubr.f32.gmra.mxu0 %v7129
        %v8135 = vpop.f32.mrf.mxu0
        %v8136 = vadd.f32 %v7879, %v8135
        %v8137 = vpop.f32.mrf.mxu0
        %v8138 = vadd.f32 %v7881, %v8137
        %8139 = vmatprep.mubr.f32.mxu0 %v7142
        %8140 = vmatmul.mubr.f32.gmra.mxu0 %v7141
        %v8141 = vpop.f32.mrf.mxu0
        %v8142 = vadd.f32 %v7885, %v8141
        %v8143 = vpop.f32.mrf.mxu0
        %v8144 = vadd.f32 %v7887, %v8143
        %8145 = vmatprep.mubr.f32.mxu0 %v7154
        %8146 = vmatmul.mubr.f32.gmra.mxu0 %v7153
        %v8147 = vpop.f32.mrf.mxu0
        %v8148 = vadd.f32 %v7891, %v8147
        %v8149 = vpop.f32.mrf.mxu0
        %v8150 = vadd.f32 %v7893, %v8149
        %8151 = vmatprep.mubr.f32.mxu0 %v7166
        %8152 = vmatmul.mubr.f32.gmra.mxu0 %v7165
        %v8153 = vpop.f32.mrf.mxu0
        %v8154 = vadd.f32 %v7897, %v8153
        %v8155 = vpop.f32.mrf.mxu0
        %v8156 = vadd.f32 %v7899, %v8155
        %8157 = vmatprep.mubr.f32.mxu0 %v7178
        %8158 = vmatmul.mubr.f32.gmra.mxu0 %v7177
        %v8159 = vpop.f32.mrf.mxu0
        %v8160 = vadd.f32 %v7903, %v8159
        %v8161 = vpop.f32.mrf.mxu0
        %v8162 = vadd.f32 %v7905, %v8161
        %8163 = vmatprep.mubr.f32.mxu0 %v7190
        %8164 = vmatmul.mubr.f32.gmra.mxu0 %v7189
        %v8165 = vpop.f32.mrf.mxu0
        %v8166 = vadd.f32 %v7909, %v8165
        %v8167 = vpop.f32.mrf.mxu0
        %v8168 = vadd.f32 %v7911, %v8167
        %8169 = vmatprep.mubr.f32.mxu0 %v7202
        %8170 = vmatmul.mubr.f32.gmra.mxu0 %v7201
        %v8171 = vpop.f32.mrf.mxu0
        %v8172 = vadd.f32 %v7915, %v8171
        %v8173 = vpop.f32.mrf.mxu0
        %v8174 = vadd.f32 %v7917, %v8173
        %8175 = vmatprep.mubr.f32.mxu0 %v7214
        %8176 = vmatmul.mubr.f32.gmra.mxu0 %v7213
        %v8177 = vpop.f32.mrf.mxu0
        %v8178 = vadd.f32 %v7921, %v8177
        %v8179 = vpop.f32.mrf.mxu0
        %v8180 = vadd.f32 %v7923, %v8179
        %8181 = vmatprep.mubr.f32.mxu0 %v7226
        %8182 = vmatmul.mubr.f32.gmra.mxu0 %v7225
        %v8183 = vpop.f32.mrf.mxu0
        %v8184 = vadd.f32 %v7927, %v8183
        %v8185 = vpop.f32.mrf.mxu0
        %v8186 = vadd.f32 %v7929, %v8185
        %8187 = vmatprep.mubr.f32.mxu0 %v7238
        %8188 = vmatmul.mubr.f32.gmra.mxu0 %v7237
        %v8189 = vpop.f32.mrf.mxu0
        %v8190 = vadd.f32 %v7933, %v8189
        %v8191 = vpop.f32.mrf.mxu0
        %v8192 = vadd.f32 %v7935, %v8191
        %8193 = vmatprep.mubr.f32.mxu0 %v7250
        %8194 = vmatmul.mubr.f32.gmra.mxu0 %v7249
        %v8195 = vpop.f32.mrf.mxu0
        %v8196 = vadd.f32 %v7939, %v8195
        %v8197 = vpop.f32.mrf.mxu0
        %v8198 = vadd.f32 %v7941, %v8197
        %8199 = vmatprep.mubr.f32.mxu0 %v7262
        %8200 = vmatmul.mubr.f32.gmra.mxu0 %v7261
        %v8201 = vpop.f32.mrf.mxu0
        %v8202 = vadd.f32 %v7945, %v8201
        %v8203 = vpop.f32.mrf.mxu0
        %v8204 = vadd.f32 %v7947, %v8203
        %8205 = vmatprep.mubr.f32.mxu0 %v7274
        %8206 = vmatmul.mubr.f32.gmra.mxu0 %v7273
        %v8207 = vpop.f32.mrf.mxu0
        %v8208 = vadd.f32 %v7951, %v8207
        %v8209 = vpop.f32.mrf.mxu0
        %v8210 = vadd.f32 %v7953, %v8209
        %8211 = vmatprep.mubr.f32.mxu0 %v7286
        %8212 = vmatmul.mubr.f32.gmra.mxu0 %v7285
        %v8213 = vpop.f32.mrf.mxu0
        %v8214 = vadd.f32 %v7957, %v8213
        %v8215 = vpop.f32.mrf.mxu0
        %v8216 = vadd.f32 %v7959, %v8215
        %8217 = vmatprep.mubr.f32.mxu0 %v7298
        %8218 = vmatmul.mubr.f32.gmra.mxu0 %v7297
        %v8219 = vpop.f32.mrf.mxu0
        %v8220 = vadd.f32 %v7963, %v8219
        %v8221 = vpop.f32.mrf.mxu0
        %v8222 = vadd.f32 %v7965, %v8221
        %8223 = vmatprep.mubr.f32.mxu0 %v7310
        %8224 = vmatmul.mubr.f32.gmra.mxu0 %v7309
        %v8225 = vpop.f32.mrf.mxu0
        %v8226 = vadd.f32 %v7969, %v8225
        %v8227 = vpop.f32.mrf.mxu0
        %v8228 = vadd.f32 %v7971, %v8227
        %8229 = vmatprep.mubr.f32.mxu0 %v7322
        %8230 = vmatmul.mubr.f32.gmra.mxu0 %v7321
        %v8231 = vpop.f32.mrf.mxu0
        %v8232 = vadd.f32 %v7975, %v8231
        %v8233 = vpop.f32.mrf.mxu0
        %v8234 = vadd.f32 %v7977, %v8233
        %8235 = vmatprep.mubr.f32.mxu0 %v7334
        %8236 = vmatmul.mubr.f32.gmra.mxu0 %v7333
        %v8237 = vpop.f32.mrf.mxu0
        %v8238 = vadd.f32 %v7981, %v8237
        %v8239 = vpop.f32.mrf.mxu0
        %v8240 = vadd.f32 %v7983, %v8239
        %8241 = vdwg.mxu0
        %8242 = vmatprep.subr.mxu0 %v7503
        %8243 = vmatpush1.msra.mxu0 %v7502
        %8244 = vmatprep.subr.mxu0 %v7501
        %8245 = vmatpush1.msra.mxu0 %v7500
        %8246 = vmatprep.subr.mxu0 %v7499
        %8247 = vmatpush1.msra.mxu0 %v7498
        %8248 = vmatprep.subr.mxu0 %v7497
        %8249 = vmatpush1.msra.mxu0 %v7496
        %8250 = vmatprep.subr.mxu0 %v7495
        %8251 = vmatpush1.msra.mxu0 %v7494
        %8252 = vmatprep.subr.mxu0 %v7493
        %8253 = vmatpush1.msra.mxu0 %v7492
        %8254 = vmatprep.subr.mxu0 %v7491
        %8255 = vmatpush1.msra.mxu0 %v7490
        %8256 = vmatprep.subr.mxu0 %v7489
        %8257 = vmatpush1.msra.mxu0 %v7488
        %8258 = vmatprep.subr.mxu0 %v7487
        %8259 = vmatpush1.msra.mxu0 %v7486
        %8260 = vmatprep.subr.mxu0 %v7485
        %8261 = vmatpush1.msra.mxu0 %v7484
        %8262 = vmatprep.subr.mxu0 %v7483
        %8263 = vmatpush1.msra.mxu0 %v7482
        %8264 = vmatprep.subr.mxu0 %v7481
        %8265 = vmatpush1.msra.mxu0 %v7480
        %8266 = vmatprep.subr.mxu0 %v7479
        %8267 = vmatpush1.msra.mxu0 %v7478
        %8268 = vmatprep.subr.mxu0 %v7477
        %8269 = vmatpush1.msra.mxu0 %v7476
        %8270 = vmatprep.subr.mxu0 %v7475
        %8271 = vmatpush1.msra.mxu0 %v7474
        %8272 = vmatprep.subr.mxu0 %v7473
        %8273 = vmatpush1.msra.mxu0 %v7472
        %8274 = vmatprep.subr.mxu0 %v7535
        %8275 = vmatpush2.msra.mxu0 %v7534
        %8276 = vmatprep.subr.mxu0 %v7533
        %8277 = vmatpush2.msra.mxu0 %v7532
        %8278 = vmatprep.subr.mxu0 %v7531
        %8279 = vmatpush2.msra.mxu0 %v7530
        %8280 = vmatprep.subr.mxu0 %v7529
        %8281 = vmatpush2.msra.mxu0 %v7528
        %8282 = vmatprep.subr.mxu0 %v7527
        %8283 = vmatpush2.msra.mxu0 %v7526
        %8284 = vmatprep.subr.mxu0 %v7525
        %8285 = vmatpush2.msra.mxu0 %v7524
        %8286 = vmatprep.subr.mxu0 %v7523
        %8287 = vmatpush2.msra.mxu0 %v7522
        %8288 = vmatprep.subr.mxu0 %v7521
        %8289 = vmatpush2.msra.mxu0 %v7520
        %8290 = vmatprep.subr.mxu0 %v7519
        %8291 = vmatpush2.msra.mxu0 %v7518
        %8292 = vmatprep.subr.mxu0 %v7517
        %8293 = vmatpush2.msra.mxu0 %v7516
        %8294 = vmatprep.subr.mxu0 %v7515
        %8295 = vmatpush2.msra.mxu0 %v7514
        %8296 = vmatprep.subr.mxu0 %v7513
        %8297 = vmatpush2.msra.mxu0 %v7512
        %8298 = vmatprep.subr.mxu0 %v7511
        %8299 = vmatpush2.msra.mxu0 %v7510
        %8300 = vmatprep.subr.mxu0 %v7509
        %8301 = vmatpush2.msra.mxu0 %v7508
        %8302 = vmatprep.subr.mxu0 %v7507
        %8303 = vmatpush2.msra.mxu0 %v7506
        %8304 = vmatprep.subr.mxu0 %v7505
        %8305 = vmatpush2.msra.mxu0 %v7504
        %8306 = vmatprep.mubr.f32.mxu0 %v6964
        %8307 = vmatmul.mubr.f32.gmra.mxu0 %v6963
        %v8308 = vpop.f32.mrf.mxu0
        %v8309 = vadd.f32 %v8052, %v8308
        %v8310 = vpop.f32.mrf.mxu0
        %v8311 = vadd.f32 %v8054, %v8310
        %8312 = vmatprep.mubr.f32.mxu0 %v6976
        %8313 = vmatmul.mubr.f32.gmra.mxu0 %v6975
        %v8314 = vpop.f32.mrf.mxu0
        %v8315 = vadd.f32 %v8058, %v8314
        %v8316 = vpop.f32.mrf.mxu0
        %v8317 = vadd.f32 %v8060, %v8316
        %8318 = vmatprep.mubr.f32.mxu0 %v6988
        %8319 = vmatmul.mubr.f32.gmra.mxu0 %v6987
        %v8320 = vpop.f32.mrf.mxu0
        %v8321 = vadd.f32 %v8064, %v8320
        %v8322 = vpop.f32.mrf.mxu0
        %v8323 = vadd.f32 %v8066, %v8322
        %8324 = vmatprep.mubr.f32.mxu0 %v7000
        %8325 = vmatmul.mubr.f32.gmra.mxu0 %v6999
        %v8326 = vpop.f32.mrf.mxu0
        %v8327 = vadd.f32 %v8070, %v8326
        %v8328 = vpop.f32.mrf.mxu0
        %v8329 = vadd.f32 %v8072, %v8328
        %8330 = vmatprep.mubr.f32.mxu0 %v7012
        %8331 = vmatmul.mubr.f32.gmra.mxu0 %v7011
        %v8332 = vpop.f32.mrf.mxu0
        %v8333 = vadd.f32 %v8076, %v8332
        %v8334 = vpop.f32.mrf.mxu0
        %v8335 = vadd.f32 %v8078, %v8334
        %8336 = vmatprep.mubr.f32.mxu0 %v7024
        %8337 = vmatmul.mubr.f32.gmra.mxu0 %v7023
        %v8338 = vpop.f32.mrf.mxu0
        %v8339 = vadd.f32 %v8082, %v8338
        %v8340 = vpop.f32.mrf.mxu0
        %v8341 = vadd.f32 %v8084, %v8340
        %8342 = vmatprep.mubr.f32.mxu0 %v7036
        %8343 = vmatmul.mubr.f32.gmra.mxu0 %v7035
        %v8344 = vpop.f32.mrf.mxu0
        %v8345 = vadd.f32 %v8088, %v8344
        %v8346 = vpop.f32.mrf.mxu0
        %v8347 = vadd.f32 %v8090, %v8346
        %8348 = vmatprep.mubr.f32.mxu0 %v7048
        %8349 = vmatmul.mubr.f32.gmra.mxu0 %v7047
        %v8350 = vpop.f32.mrf.mxu0
        %v8351 = vadd.f32 %v8094, %v8350
        %v8352 = vpop.f32.mrf.mxu0
        %v8353 = vadd.f32 %v8096, %v8352
        %8354 = vmatprep.mubr.f32.mxu0 %v7060
        %8355 = vmatmul.mubr.f32.gmra.mxu0 %v7059
        %v8356 = vpop.f32.mrf.mxu0
        %v8357 = vadd.f32 %v8100, %v8356
        %v8358 = vpop.f32.mrf.mxu0
        %v8359 = vadd.f32 %v8102, %v8358
        %8360 = vmatprep.mubr.f32.mxu0 %v7072
        %8361 = vmatmul.mubr.f32.gmra.mxu0 %v7071
        %v8362 = vpop.f32.mrf.mxu0
        %v8363 = vadd.f32 %v8106, %v8362
        %v8364 = vpop.f32.mrf.mxu0
        %v8365 = vadd.f32 %v8108, %v8364
        %8366 = vmatprep.mubr.f32.mxu0 %v7084
        %8367 = vmatmul.mubr.f32.gmra.mxu0 %v7083
        %v8368 = vpop.f32.mrf.mxu0
        %v8369 = vadd.f32 %v8112, %v8368
        %v8370 = vpop.f32.mrf.mxu0
        %v8371 = vadd.f32 %v8114, %v8370
        %8372 = vmatprep.mubr.f32.mxu0 %v7096
        %8373 = vmatmul.mubr.f32.gmra.mxu0 %v7095
        %v8374 = vpop.f32.mrf.mxu0
        %v8375 = vadd.f32 %v8118, %v8374
        %v8376 = vpop.f32.mrf.mxu0
        %v8377 = vadd.f32 %v8120, %v8376
        %8378 = vmatprep.mubr.f32.mxu0 %v7108
        %8379 = vmatmul.mubr.f32.gmra.mxu0 %v7107
        %v8380 = vpop.f32.mrf.mxu0
        %v8381 = vadd.f32 %v8124, %v8380
        %v8382 = vpop.f32.mrf.mxu0
        %v8383 = vadd.f32 %v8126, %v8382
        %8384 = vmatprep.mubr.f32.mxu0 %v7120
        %8385 = vmatmul.mubr.f32.gmra.mxu0 %v7119
        %v8386 = vpop.f32.mrf.mxu0
        %v8387 = vadd.f32 %v8130, %v8386
        %v8388 = vpop.f32.mrf.mxu0
        %v8389 = vadd.f32 %v8132, %v8388
        %8390 = vmatprep.mubr.f32.mxu0 %v7132
        %8391 = vmatmul.mubr.f32.gmra.mxu0 %v7131
        %v8392 = vpop.f32.mrf.mxu0
        %v8393 = vadd.f32 %v8136, %v8392
        %v8394 = vpop.f32.mrf.mxu0
        %v8395 = vadd.f32 %v8138, %v8394
        %8396 = vmatprep.mubr.f32.mxu0 %v7144
        %8397 = vmatmul.mubr.f32.gmra.mxu0 %v7143
        %v8398 = vpop.f32.mrf.mxu0
        %v8399 = vadd.f32 %v8142, %v8398
        %v8400 = vpop.f32.mrf.mxu0
        %v8401 = vadd.f32 %v8144, %v8400
        %8402 = vmatprep.mubr.f32.mxu0 %v7156
        %8403 = vmatmul.mubr.f32.gmra.mxu0 %v7155
        %v8404 = vpop.f32.mrf.mxu0
        %v8405 = vadd.f32 %v8148, %v8404
        %v8406 = vpop.f32.mrf.mxu0
        %v8407 = vadd.f32 %v8150, %v8406
        %8408 = vmatprep.mubr.f32.mxu0 %v7168
        %8409 = vmatmul.mubr.f32.gmra.mxu0 %v7167
        %v8410 = vpop.f32.mrf.mxu0
        %v8411 = vadd.f32 %v8154, %v8410
        %v8412 = vpop.f32.mrf.mxu0
        %v8413 = vadd.f32 %v8156, %v8412
        %8414 = vmatprep.mubr.f32.mxu0 %v7180
        %8415 = vmatmul.mubr.f32.gmra.mxu0 %v7179
        %v8416 = vpop.f32.mrf.mxu0
        %v8417 = vadd.f32 %v8160, %v8416
        %v8418 = vpop.f32.mrf.mxu0
        %v8419 = vadd.f32 %v8162, %v8418
        %8420 = vmatprep.mubr.f32.mxu0 %v7192
        %8421 = vmatmul.mubr.f32.gmra.mxu0 %v7191
        %v8422 = vpop.f32.mrf.mxu0
        %v8423 = vadd.f32 %v8166, %v8422
        %v8424 = vpop.f32.mrf.mxu0
        %v8425 = vadd.f32 %v8168, %v8424
        %8426 = vmatprep.mubr.f32.mxu0 %v7204
        %8427 = vmatmul.mubr.f32.gmra.mxu0 %v7203
        %v8428 = vpop.f32.mrf.mxu0
        %v8429 = vadd.f32 %v8172, %v8428
        %v8430 = vpop.f32.mrf.mxu0
        %v8431 = vadd.f32 %v8174, %v8430
        %8432 = vmatprep.mubr.f32.mxu0 %v7216
        %8433 = vmatmul.mubr.f32.gmra.mxu0 %v7215
        %v8434 = vpop.f32.mrf.mxu0
        %v8435 = vadd.f32 %v8178, %v8434
        %v8436 = vpop.f32.mrf.mxu0
        %v8437 = vadd.f32 %v8180, %v8436
        %8438 = vmatprep.mubr.f32.mxu0 %v7228
        %8439 = vmatmul.mubr.f32.gmra.mxu0 %v7227
        %v8440 = vpop.f32.mrf.mxu0
        %v8441 = vadd.f32 %v8184, %v8440
        %v8442 = vpop.f32.mrf.mxu0
        %v8443 = vadd.f32 %v8186, %v8442
        %8444 = vmatprep.mubr.f32.mxu0 %v7240
        %8445 = vmatmul.mubr.f32.gmra.mxu0 %v7239
        %v8446 = vpop.f32.mrf.mxu0
        %v8447 = vadd.f32 %v8190, %v8446
        %v8448 = vpop.f32.mrf.mxu0
        %v8449 = vadd.f32 %v8192, %v8448
        %8450 = vmatprep.mubr.f32.mxu0 %v7252
        %8451 = vmatmul.mubr.f32.gmra.mxu0 %v7251
        %v8452 = vpop.f32.mrf.mxu0
        %v8453 = vadd.f32 %v8196, %v8452
        %v8454 = vpop.f32.mrf.mxu0
        %v8455 = vadd.f32 %v8198, %v8454
        %8456 = vmatprep.mubr.f32.mxu0 %v7264
        %8457 = vmatmul.mubr.f32.gmra.mxu0 %v7263
        %v8458 = vpop.f32.mrf.mxu0
        %v8459 = vadd.f32 %v8202, %v8458
        %v8460 = vpop.f32.mrf.mxu0
        %v8461 = vadd.f32 %v8204, %v8460
        %8462 = vmatprep.mubr.f32.mxu0 %v7276
        %8463 = vmatmul.mubr.f32.gmra.mxu0 %v7275
        %v8464 = vpop.f32.mrf.mxu0
        %v8465 = vadd.f32 %v8208, %v8464
        %v8466 = vpop.f32.mrf.mxu0
        %v8467 = vadd.f32 %v8210, %v8466
        %8468 = vmatprep.mubr.f32.mxu0 %v7288
        %8469 = vmatmul.mubr.f32.gmra.mxu0 %v7287
        %v8470 = vpop.f32.mrf.mxu0
        %v8471 = vadd.f32 %v8214, %v8470
        %v8472 = vpop.f32.mrf.mxu0
        %v8473 = vadd.f32 %v8216, %v8472
        %8474 = vmatprep.mubr.f32.mxu0 %v7300
        %8475 = vmatmul.mubr.f32.gmra.mxu0 %v7299
        %v8476 = vpop.f32.mrf.mxu0
        %v8477 = vadd.f32 %v8220, %v8476
        %v8478 = vpop.f32.mrf.mxu0
        %v8479 = vadd.f32 %v8222, %v8478
        %8480 = vmatprep.mubr.f32.mxu0 %v7312
        %8481 = vmatmul.mubr.f32.gmra.mxu0 %v7311
        %v8482 = vpop.f32.mrf.mxu0
        %v8483 = vadd.f32 %v8226, %v8482
        %v8484 = vpop.f32.mrf.mxu0
        %v8485 = vadd.f32 %v8228, %v8484
        %8486 = vmatprep.mubr.f32.mxu0 %v7324
        %8487 = vmatmul.mubr.f32.gmra.mxu0 %v7323
        %v8488 = vpop.f32.mrf.mxu0
        %v8489 = vadd.f32 %v8232, %v8488
        %v8490 = vpop.f32.mrf.mxu0
        %v8491 = vadd.f32 %v8234, %v8490
        %8492 = vmatprep.mubr.f32.mxu0 %v7336
        %8493 = vmatmul.mubr.f32.gmra.mxu0 %v7335
        %v8494 = vpop.f32.mrf.mxu0
        %v8495 = vadd.f32 %v8238, %v8494
        %v8496 = vpop.f32.mrf.mxu0
        %v8497 = vadd.f32 %v8240, %v8496
        %8498 = vdwg.mxu0
        %8499 = vmatprep.subr.mxu0 %v7567
        %8500 = vmatpush1.msra.mxu0 %v7566
        %8501 = vmatprep.subr.mxu0 %v7565
        %8502 = vmatpush1.msra.mxu0 %v7564
        %8503 = vmatprep.subr.mxu0 %v7563
        %8504 = vmatpush1.msra.mxu0 %v7562
        %8505 = vmatprep.subr.mxu0 %v7561
        %8506 = vmatpush1.msra.mxu0 %v7560
        %8507 = vmatprep.subr.mxu0 %v7559
        %8508 = vmatpush1.msra.mxu0 %v7558
        %8509 = vmatprep.subr.mxu0 %v7557
        %8510 = vmatpush1.msra.mxu0 %v7556
        %8511 = vmatprep.subr.mxu0 %v7555
        %8512 = vmatpush1.msra.mxu0 %v7554
        %8513 = vmatprep.subr.mxu0 %v7553
        %8514 = vmatpush1.msra.mxu0 %v7552
        %8515 = vmatprep.subr.mxu0 %v7551
        %8516 = vmatpush1.msra.mxu0 %v7550
        %8517 = vmatprep.subr.mxu0 %v7549
        %8518 = vmatpush1.msra.mxu0 %v7548
        %8519 = vmatprep.subr.mxu0 %v7547
        %8520 = vmatpush1.msra.mxu0 %v7546
        %8521 = vmatprep.subr.mxu0 %v7545
        %8522 = vmatpush1.msra.mxu0 %v7544
        %8523 = vmatprep.subr.mxu0 %v7543
        %8524 = vmatpush1.msra.mxu0 %v7542
        %8525 = vmatprep.subr.mxu0 %v7541
        %8526 = vmatpush1.msra.mxu0 %v7540
        %8527 = vmatprep.subr.mxu0 %v7539
        %8528 = vmatpush1.msra.mxu0 %v7538
        %8529 = vmatprep.subr.mxu0 %v7537
        %8530 = vmatpush1.msra.mxu0 %v7536
        %8531 = vmatprep.subr.mxu0 %v7599
        %8532 = vmatpush2.msra.mxu0 %v7598
        %8533 = vmatprep.subr.mxu0 %v7597
        %8534 = vmatpush2.msra.mxu0 %v7596
        %8535 = vmatprep.subr.mxu0 %v7595
        %8536 = vmatpush2.msra.mxu0 %v7594
        %8537 = vmatprep.subr.mxu0 %v7593
        %8538 = vmatpush2.msra.mxu0 %v7592
        %8539 = vmatprep.subr.mxu0 %v7591
        %8540 = vmatpush2.msra.mxu0 %v7590
        %8541 = vmatprep.subr.mxu0 %v7589
        %8542 = vmatpush2.msra.mxu0 %v7588
        %8543 = vmatprep.subr.mxu0 %v7587
        %8544 = vmatpush2.msra.mxu0 %v7586
        %8545 = vmatprep.subr.mxu0 %v7585
        %8546 = vmatpush2.msra.mxu0 %v7584
        %8547 = vmatprep.subr.mxu0 %v7583
        %8548 = vmatpush2.msra.mxu0 %v7582
        %8549 = vmatprep.subr.mxu0 %v7581
        %8550 = vmatpush2.msra.mxu0 %v7580
        %8551 = vmatprep.subr.mxu0 %v7579
        %8552 = vmatpush2.msra.mxu0 %v7578
        %8553 = vmatprep.subr.mxu0 %v7577
        %8554 = vmatpush2.msra.mxu0 %v7576
        %8555 = vmatprep.subr.mxu0 %v7575
        %8556 = vmatpush2.msra.mxu0 %v7574
        %8557 = vmatprep.subr.mxu0 %v7573
        %8558 = vmatpush2.msra.mxu0 %v7572
        %8559 = vmatprep.subr.mxu0 %v7571
        %8560 = vmatpush2.msra.mxu0 %v7570
        %8561 = vmatprep.subr.mxu0 %v7569
        %8562 = vmatpush2.msra.mxu0 %v7568
        %8563 = vmatprep.mubr.f32.mxu0 %v6966
        %8564 = vmatmul.mubr.f32.gmra.mxu0 %v6965
        %v8565 = vpop.f32.mrf.mxu0
        %v8566 = vadd.f32 %v8309, %v8565
        %v8567 = vpop.f32.mrf.mxu0
        %v8568 = vadd.f32 %v8311, %v8567
        %8569 = vmatprep.mubr.f32.mxu0 %v6978
        %8570 = vmatmul.mubr.f32.gmra.mxu0 %v6977
        %v8571 = vpop.f32.mrf.mxu0
        %v8572 = vadd.f32 %v8315, %v8571
        %v8573 = vpop.f32.mrf.mxu0
        %v8574 = vadd.f32 %v8317, %v8573
        %8575 = vmatprep.mubr.f32.mxu0 %v6990
        %8576 = vmatmul.mubr.f32.gmra.mxu0 %v6989
        %v8577 = vpop.f32.mrf.mxu0
        %v8578 = vadd.f32 %v8321, %v8577
        %v8579 = vpop.f32.mrf.mxu0
        %v8580 = vadd.f32 %v8323, %v8579
        %8581 = vmatprep.mubr.f32.mxu0 %v7002
        %8582 = vmatmul.mubr.f32.gmra.mxu0 %v7001
        %v8583 = vpop.f32.mrf.mxu0
        %v8584 = vadd.f32 %v8327, %v8583
        %v8585 = vpop.f32.mrf.mxu0
        %v8586 = vadd.f32 %v8329, %v8585
        %8587 = vmatprep.mubr.f32.mxu0 %v7014
        %8588 = vmatmul.mubr.f32.gmra.mxu0 %v7013
        %v8589 = vpop.f32.mrf.mxu0
        %v8590 = vadd.f32 %v8333, %v8589
        %v8591 = vpop.f32.mrf.mxu0
        %v8592 = vadd.f32 %v8335, %v8591
        %8593 = vmatprep.mubr.f32.mxu0 %v7026
        %8594 = vmatmul.mubr.f32.gmra.mxu0 %v7025
        %v8595 = vpop.f32.mrf.mxu0
        %v8596 = vadd.f32 %v8339, %v8595
        %v8597 = vpop.f32.mrf.mxu0
        %v8598 = vadd.f32 %v8341, %v8597
        %8599 = vmatprep.mubr.f32.mxu0 %v7038
        %8600 = vmatmul.mubr.f32.gmra.mxu0 %v7037
        %v8601 = vpop.f32.mrf.mxu0
        %v8602 = vadd.f32 %v8345, %v8601
        %v8603 = vpop.f32.mrf.mxu0
        %v8604 = vadd.f32 %v8347, %v8603
        %8605 = vmatprep.mubr.f32.mxu0 %v7050
        %8606 = vmatmul.mubr.f32.gmra.mxu0 %v7049
        %v8607 = vpop.f32.mrf.mxu0
        %v8608 = vadd.f32 %v8351, %v8607
        %v8609 = vpop.f32.mrf.mxu0
        %v8610 = vadd.f32 %v8353, %v8609
        %8611 = vmatprep.mubr.f32.mxu0 %v7062
        %8612 = vmatmul.mubr.f32.gmra.mxu0 %v7061
        %v8613 = vpop.f32.mrf.mxu0
        %v8614 = vadd.f32 %v8357, %v8613
        %v8615 = vpop.f32.mrf.mxu0
        %v8616 = vadd.f32 %v8359, %v8615
        %8617 = vmatprep.mubr.f32.mxu0 %v7074
        %8618 = vmatmul.mubr.f32.gmra.mxu0 %v7073
        %v8619 = vpop.f32.mrf.mxu0
        %v8620 = vadd.f32 %v8363, %v8619
        %v8621 = vpop.f32.mrf.mxu0
        %v8622 = vadd.f32 %v8365, %v8621
        %8623 = vmatprep.mubr.f32.mxu0 %v7086
        %8624 = vmatmul.mubr.f32.gmra.mxu0 %v7085
        %v8625 = vpop.f32.mrf.mxu0
        %v8626 = vadd.f32 %v8369, %v8625
        %v8627 = vpop.f32.mrf.mxu0
        %v8628 = vadd.f32 %v8371, %v8627
        %8629 = vmatprep.mubr.f32.mxu0 %v7098
        %8630 = vmatmul.mubr.f32.gmra.mxu0 %v7097
        %v8631 = vpop.f32.mrf.mxu0
        %v8632 = vadd.f32 %v8375, %v8631
        %v8633 = vpop.f32.mrf.mxu0
        %v8634 = vadd.f32 %v8377, %v8633
        %8635 = vmatprep.mubr.f32.mxu0 %v7110
        %8636 = vmatmul.mubr.f32.gmra.mxu0 %v7109
        %v8637 = vpop.f32.mrf.mxu0
        %v8638 = vadd.f32 %v8381, %v8637
        %v8639 = vpop.f32.mrf.mxu0
        %v8640 = vadd.f32 %v8383, %v8639
        %8641 = vmatprep.mubr.f32.mxu0 %v7122
        %8642 = vmatmul.mubr.f32.gmra.mxu0 %v7121
        %v8643 = vpop.f32.mrf.mxu0
        %v8644 = vadd.f32 %v8387, %v8643
        %v8645 = vpop.f32.mrf.mxu0
        %v8646 = vadd.f32 %v8389, %v8645
        %8647 = vmatprep.mubr.f32.mxu0 %v7134
        %8648 = vmatmul.mubr.f32.gmra.mxu0 %v7133
        %v8649 = vpop.f32.mrf.mxu0
        %v8650 = vadd.f32 %v8393, %v8649
        %v8651 = vpop.f32.mrf.mxu0
        %v8652 = vadd.f32 %v8395, %v8651
        %8653 = vmatprep.mubr.f32.mxu0 %v7146
        %8654 = vmatmul.mubr.f32.gmra.mxu0 %v7145
        %v8655 = vpop.f32.mrf.mxu0
        %v8656 = vadd.f32 %v8399, %v8655
        %v8657 = vpop.f32.mrf.mxu0
        %v8658 = vadd.f32 %v8401, %v8657
        %8659 = vmatprep.mubr.f32.mxu0 %v7158
        %8660 = vmatmul.mubr.f32.gmra.mxu0 %v7157
        %v8661 = vpop.f32.mrf.mxu0
        %v8662 = vadd.f32 %v8405, %v8661
        %v8663 = vpop.f32.mrf.mxu0
        %v8664 = vadd.f32 %v8407, %v8663
        %8665 = vmatprep.mubr.f32.mxu0 %v7170
        %8666 = vmatmul.mubr.f32.gmra.mxu0 %v7169
        %v8667 = vpop.f32.mrf.mxu0
        %v8668 = vadd.f32 %v8411, %v8667
        %v8669 = vpop.f32.mrf.mxu0
        %v8670 = vadd.f32 %v8413, %v8669
        %8671 = vmatprep.mubr.f32.mxu0 %v7182
        %8672 = vmatmul.mubr.f32.gmra.mxu0 %v7181
        %v8673 = vpop.f32.mrf.mxu0
        %v8674 = vadd.f32 %v8417, %v8673
        %v8675 = vpop.f32.mrf.mxu0
        %v8676 = vadd.f32 %v8419, %v8675
        %8677 = vmatprep.mubr.f32.mxu0 %v7194
        %8678 = vmatmul.mubr.f32.gmra.mxu0 %v7193
        %v8679 = vpop.f32.mrf.mxu0
        %v8680 = vadd.f32 %v8423, %v8679
        %v8681 = vpop.f32.mrf.mxu0
        %v8682 = vadd.f32 %v8425, %v8681
        %8683 = vmatprep.mubr.f32.mxu0 %v7206
        %8684 = vmatmul.mubr.f32.gmra.mxu0 %v7205
        %v8685 = vpop.f32.mrf.mxu0
        %v8686 = vadd.f32 %v8429, %v8685
        %v8687 = vpop.f32.mrf.mxu0
        %v8688 = vadd.f32 %v8431, %v8687
        %8689 = vmatprep.mubr.f32.mxu0 %v7218
        %8690 = vmatmul.mubr.f32.gmra.mxu0 %v7217
        %v8691 = vpop.f32.mrf.mxu0
        %v8692 = vadd.f32 %v8435, %v8691
        %v8693 = vpop.f32.mrf.mxu0
        %v8694 = vadd.f32 %v8437, %v8693
        %8695 = vmatprep.mubr.f32.mxu0 %v7230
        %8696 = vmatmul.mubr.f32.gmra.mxu0 %v7229
        %v8697 = vpop.f32.mrf.mxu0
        %v8698 = vadd.f32 %v8441, %v8697
        %v8699 = vpop.f32.mrf.mxu0
        %v8700 = vadd.f32 %v8443, %v8699
        %8701 = vmatprep.mubr.f32.mxu0 %v7242
        %8702 = vmatmul.mubr.f32.gmra.mxu0 %v7241
        %v8703 = vpop.f32.mrf.mxu0
        %v8704 = vadd.f32 %v8447, %v8703
        %v8705 = vpop.f32.mrf.mxu0
        %v8706 = vadd.f32 %v8449, %v8705
        %8707 = vmatprep.mubr.f32.mxu0 %v7254
        %8708 = vmatmul.mubr.f32.gmra.mxu0 %v7253
        %v8709 = vpop.f32.mrf.mxu0
        %v8710 = vadd.f32 %v8453, %v8709
        %v8711 = vpop.f32.mrf.mxu0
        %v8712 = vadd.f32 %v8455, %v8711
        %8713 = vmatprep.mubr.f32.mxu0 %v7266
        %8714 = vmatmul.mubr.f32.gmra.mxu0 %v7265
        %v8715 = vpop.f32.mrf.mxu0
        %v8716 = vadd.f32 %v8459, %v8715
        %v8717 = vpop.f32.mrf.mxu0
        %v8718 = vadd.f32 %v8461, %v8717
        %8719 = vmatprep.mubr.f32.mxu0 %v7278
        %8720 = vmatmul.mubr.f32.gmra.mxu0 %v7277
        %v8721 = vpop.f32.mrf.mxu0
        %v8722 = vadd.f32 %v8465, %v8721
        %v8723 = vpop.f32.mrf.mxu0
        %v8724 = vadd.f32 %v8467, %v8723
        %8725 = vmatprep.mubr.f32.mxu0 %v7290
        %8726 = vmatmul.mubr.f32.gmra.mxu0 %v7289
        %v8727 = vpop.f32.mrf.mxu0
        %v8728 = vadd.f32 %v8471, %v8727
        %v8729 = vpop.f32.mrf.mxu0
        %v8730 = vadd.f32 %v8473, %v8729
        %8731 = vmatprep.mubr.f32.mxu0 %v7302
        %8732 = vmatmul.mubr.f32.gmra.mxu0 %v7301
        %v8733 = vpop.f32.mrf.mxu0
        %v8734 = vadd.f32 %v8477, %v8733
        %v8735 = vpop.f32.mrf.mxu0
        %v8736 = vadd.f32 %v8479, %v8735
        %8737 = vmatprep.mubr.f32.mxu0 %v7314
        %8738 = vmatmul.mubr.f32.gmra.mxu0 %v7313
        %v8739 = vpop.f32.mrf.mxu0
        %v8740 = vadd.f32 %v8483, %v8739
        %v8741 = vpop.f32.mrf.mxu0
        %v8742 = vadd.f32 %v8485, %v8741
        %8743 = vmatprep.mubr.f32.mxu0 %v7326
        %8744 = vmatmul.mubr.f32.gmra.mxu0 %v7325
        %v8745 = vpop.f32.mrf.mxu0
        %v8746 = vadd.f32 %v8489, %v8745
        %v8747 = vpop.f32.mrf.mxu0
        %v8748 = vadd.f32 %v8491, %v8747
        %8749 = vmatprep.mubr.f32.mxu0 %v7338
        %8750 = vmatmul.mubr.f32.gmra.mxu0 %v7337
        %v8751 = vpop.f32.mrf.mxu0
        %v8752 = vadd.f32 %v8495, %v8751
        %v8753 = vpop.f32.mrf.mxu0
        %v8754 = vadd.f32 %v8497, %v8753
        %8755 = vdwg.mxu0
        %8756 = vmatprep.subr.mxu0 %v7631
        %8757 = vmatpush1.msra.mxu0 %v7630
        %8758 = vmatprep.subr.mxu0 %v7629
        %8759 = vmatpush1.msra.mxu0 %v7628
        %8760 = vmatprep.subr.mxu0 %v7627
        %8761 = vmatpush1.msra.mxu0 %v7626
        %8762 = vmatprep.subr.mxu0 %v7625
        %8763 = vmatpush1.msra.mxu0 %v7624
        %8764 = vmatprep.subr.mxu0 %v7623
        %8765 = vmatpush1.msra.mxu0 %v7622
        %8766 = vmatprep.subr.mxu0 %v7621
        %8767 = vmatpush1.msra.mxu0 %v7620
        %8768 = vmatprep.subr.mxu0 %v7619
        %8769 = vmatpush1.msra.mxu0 %v7618
        %8770 = vmatprep.subr.mxu0 %v7617
        %8771 = vmatpush1.msra.mxu0 %v7616
        %8772 = vmatprep.subr.mxu0 %v7615
        %8773 = vmatpush1.msra.mxu0 %v7614
        %8774 = vmatprep.subr.mxu0 %v7613
        %8775 = vmatpush1.msra.mxu0 %v7612
        %8776 = vmatprep.subr.mxu0 %v7611
        %8777 = vmatpush1.msra.mxu0 %v7610
        %8778 = vmatprep.subr.mxu0 %v7609
        %8779 = vmatpush1.msra.mxu0 %v7608
        %8780 = vmatprep.subr.mxu0 %v7607
        %8781 = vmatpush1.msra.mxu0 %v7606
        %8782 = vmatprep.subr.mxu0 %v7605
        %8783 = vmatpush1.msra.mxu0 %v7604
        %8784 = vmatprep.subr.mxu0 %v7603
        %8785 = vmatpush1.msra.mxu0 %v7602
        %8786 = vmatprep.subr.mxu0 %v7601
        %8787 = vmatpush1.msra.mxu0 %v7600
        %8788 = vmatprep.subr.mxu0 %v7663
        %8789 = vmatpush2.msra.mxu0 %v7662
        %8790 = vmatprep.subr.mxu0 %v7661
        %8791 = vmatpush2.msra.mxu0 %v7660
        %8792 = vmatprep.subr.mxu0 %v7659
        %8793 = vmatpush2.msra.mxu0 %v7658
        %8794 = vmatprep.subr.mxu0 %v7657
        %8795 = vmatpush2.msra.mxu0 %v7656
        %8796 = vmatprep.subr.mxu0 %v7655
        %8797 = vmatpush2.msra.mxu0 %v7654
        %8798 = vmatprep.subr.mxu0 %v7653
        %8799 = vmatpush2.msra.mxu0 %v7652
        %8800 = vmatprep.subr.mxu0 %v7651
        %8801 = vmatpush2.msra.mxu0 %v7650
        %8802 = vmatprep.subr.mxu0 %v7649
        %8803 = vmatpush2.msra.mxu0 %v7648
        %8804 = vmatprep.subr.mxu0 %v7647
        %8805 = vmatpush2.msra.mxu0 %v7646
        %8806 = vmatprep.subr.mxu0 %v7645
        %8807 = vmatpush2.msra.mxu0 %v7644
        %8808 = vmatprep.subr.mxu0 %v7643
        %8809 = vmatpush2.msra.mxu0 %v7642
        %8810 = vmatprep.subr.mxu0 %v7641
        %8811 = vmatpush2.msra.mxu0 %v7640
        %8812 = vmatprep.subr.mxu0 %v7639
        %8813 = vmatpush2.msra.mxu0 %v7638
        %8814 = vmatprep.subr.mxu0 %v7637
        %8815 = vmatpush2.msra.mxu0 %v7636
        %8816 = vmatprep.subr.mxu0 %v7635
        %8817 = vmatpush2.msra.mxu0 %v7634
        %8818 = vmatprep.subr.mxu0 %v7633
        %8819 = vmatpush2.msra.mxu0 %v7632
        %8820 = vmatprep.mubr.f32.mxu0 %v6968
        %8821 = vmatmul.mubr.f32.gmra.mxu0 %v6967
        %v8822 = vpop.f32.mrf.mxu0
        %v8823 = vadd.f32 %v8566, %v8822
        %v8824 = vpop.f32.mrf.mxu0
        %v8825 = vadd.f32 %v8568, %v8824
        %8826 = vmatprep.mubr.f32.mxu0 %v6980
        %8827 = vmatmul.mubr.f32.gmra.mxu0 %v6979
        %v8828 = vpop.f32.mrf.mxu0
        %v8829 = vadd.f32 %v8572, %v8828
        %v8830 = vpop.f32.mrf.mxu0
        %v8831 = vadd.f32 %v8574, %v8830
        %8832 = vmatprep.mubr.f32.mxu0 %v6992
        %8833 = vmatmul.mubr.f32.gmra.mxu0 %v6991
        %v8834 = vpop.f32.mrf.mxu0
        %v8835 = vadd.f32 %v8578, %v8834
        %v8836 = vpop.f32.mrf.mxu0
        %v8837 = vadd.f32 %v8580, %v8836
        %8838 = vmatprep.mubr.f32.mxu0 %v7004
        %8839 = vmatmul.mubr.f32.gmra.mxu0 %v7003
        %v8840 = vpop.f32.mrf.mxu0
        %v8841 = vadd.f32 %v8584, %v8840
        %v8842 = vpop.f32.mrf.mxu0
        %v8843 = vadd.f32 %v8586, %v8842
        %8844 = vmatprep.mubr.f32.mxu0 %v7016
        %8845 = vmatmul.mubr.f32.gmra.mxu0 %v7015
        %v8846 = vpop.f32.mrf.mxu0
        %v8847 = vadd.f32 %v8590, %v8846
        %v8848 = vpop.f32.mrf.mxu0
        %v8849 = vadd.f32 %v8592, %v8848
        %8850 = vmatprep.mubr.f32.mxu0 %v7028
        %8851 = vmatmul.mubr.f32.gmra.mxu0 %v7027
        %v8852 = vpop.f32.mrf.mxu0
        %v8853 = vadd.f32 %v8596, %v8852
        %v8854 = vpop.f32.mrf.mxu0
        %v8855 = vadd.f32 %v8598, %v8854
        %8856 = vmatprep.mubr.f32.mxu0 %v7040
        %8857 = vmatmul.mubr.f32.gmra.mxu0 %v7039
        %v8858 = vpop.f32.mrf.mxu0
        %v8859 = vadd.f32 %v8602, %v8858
        %v8860 = vpop.f32.mrf.mxu0
        %v8861 = vadd.f32 %v8604, %v8860
        %8862 = vmatprep.mubr.f32.mxu0 %v7052
        %8863 = vmatmul.mubr.f32.gmra.mxu0 %v7051
        %v8864 = vpop.f32.mrf.mxu0
        %v8865 = vadd.f32 %v8608, %v8864
        %v8866 = vpop.f32.mrf.mxu0
        %v8867 = vadd.f32 %v8610, %v8866
        %8868 = vmatprep.mubr.f32.mxu0 %v7064
        %8869 = vmatmul.mubr.f32.gmra.mxu0 %v7063
        %v8870 = vpop.f32.mrf.mxu0
        %v8871 = vadd.f32 %v8614, %v8870
        %v8872 = vpop.f32.mrf.mxu0
        %v8873 = vadd.f32 %v8616, %v8872
        %8874 = vmatprep.mubr.f32.mxu0 %v7076
        %8875 = vmatmul.mubr.f32.gmra.mxu0 %v7075
        %v8876 = vpop.f32.mrf.mxu0
        %v8877 = vadd.f32 %v8620, %v8876
        %v8878 = vpop.f32.mrf.mxu0
        %v8879 = vadd.f32 %v8622, %v8878
        %8880 = vmatprep.mubr.f32.mxu0 %v7088
        %8881 = vmatmul.mubr.f32.gmra.mxu0 %v7087
        %v8882 = vpop.f32.mrf.mxu0
        %v8883 = vadd.f32 %v8626, %v8882
        %v8884 = vpop.f32.mrf.mxu0
        %v8885 = vadd.f32 %v8628, %v8884
        %8886 = vmatprep.mubr.f32.mxu0 %v7100
        %8887 = vmatmul.mubr.f32.gmra.mxu0 %v7099
        %v8888 = vpop.f32.mrf.mxu0
        %v8889 = vadd.f32 %v8632, %v8888
        %v8890 = vpop.f32.mrf.mxu0
        %v8891 = vadd.f32 %v8634, %v8890
        %8892 = vmatprep.mubr.f32.mxu0 %v7112
        %8893 = vmatmul.mubr.f32.gmra.mxu0 %v7111
        %v8894 = vpop.f32.mrf.mxu0
        %v8895 = vadd.f32 %v8638, %v8894
        %v8896 = vpop.f32.mrf.mxu0
        %v8897 = vadd.f32 %v8640, %v8896
        %8898 = vmatprep.mubr.f32.mxu0 %v7124
        %8899 = vmatmul.mubr.f32.gmra.mxu0 %v7123
        %v8900 = vpop.f32.mrf.mxu0
        %v8901 = vadd.f32 %v8644, %v8900
        %v8902 = vpop.f32.mrf.mxu0
        %v8903 = vadd.f32 %v8646, %v8902
        %8904 = vmatprep.mubr.f32.mxu0 %v7136
        %8905 = vmatmul.mubr.f32.gmra.mxu0 %v7135
        %v8906 = vpop.f32.mrf.mxu0
        %v8907 = vadd.f32 %v8650, %v8906
        %v8908 = vpop.f32.mrf.mxu0
        %v8909 = vadd.f32 %v8652, %v8908
        %8910 = vmatprep.mubr.f32.mxu0 %v7148
        %8911 = vmatmul.mubr.f32.gmra.mxu0 %v7147
        %v8912 = vpop.f32.mrf.mxu0
        %v8913 = vadd.f32 %v8656, %v8912
        %v8914 = vpop.f32.mrf.mxu0
        %v8915 = vadd.f32 %v8658, %v8914
        %8916 = vmatprep.mubr.f32.mxu0 %v7160
        %8917 = vmatmul.mubr.f32.gmra.mxu0 %v7159
        %v8918 = vpop.f32.mrf.mxu0
        %v8919 = vadd.f32 %v8662, %v8918
        %v8920 = vpop.f32.mrf.mxu0
        %v8921 = vadd.f32 %v8664, %v8920
        %8922 = vmatprep.mubr.f32.mxu0 %v7172
        %8923 = vmatmul.mubr.f32.gmra.mxu0 %v7171
        %v8924 = vpop.f32.mrf.mxu0
        %v8925 = vadd.f32 %v8668, %v8924
        %v8926 = vpop.f32.mrf.mxu0
        %v8927 = vadd.f32 %v8670, %v8926
        %8928 = vmatprep.mubr.f32.mxu0 %v7184
        %8929 = vmatmul.mubr.f32.gmra.mxu0 %v7183
        %v8930 = vpop.f32.mrf.mxu0
        %v8931 = vadd.f32 %v8674, %v8930
        %v8932 = vpop.f32.mrf.mxu0
        %v8933 = vadd.f32 %v8676, %v8932
        %8934 = vmatprep.mubr.f32.mxu0 %v7196
        %8935 = vmatmul.mubr.f32.gmra.mxu0 %v7195
        %v8936 = vpop.f32.mrf.mxu0
        %v8937 = vadd.f32 %v8680, %v8936
        %v8938 = vpop.f32.mrf.mxu0
        %v8939 = vadd.f32 %v8682, %v8938
        %8940 = vmatprep.mubr.f32.mxu0 %v7208
        %8941 = vmatmul.mubr.f32.gmra.mxu0 %v7207
        %v8942 = vpop.f32.mrf.mxu0
        %v8943 = vadd.f32 %v8686, %v8942
        %v8944 = vpop.f32.mrf.mxu0
        %v8945 = vadd.f32 %v8688, %v8944
        %8946 = vmatprep.mubr.f32.mxu0 %v7220
        %8947 = vmatmul.mubr.f32.gmra.mxu0 %v7219
        %v8948 = vpop.f32.mrf.mxu0
        %v8949 = vadd.f32 %v8692, %v8948
        %v8950 = vpop.f32.mrf.mxu0
        %v8951 = vadd.f32 %v8694, %v8950
        %8952 = vmatprep.mubr.f32.mxu0 %v7232
        %8953 = vmatmul.mubr.f32.gmra.mxu0 %v7231
        %v8954 = vpop.f32.mrf.mxu0
        %v8955 = vadd.f32 %v8698, %v8954
        %v8956 = vpop.f32.mrf.mxu0
        %v8957 = vadd.f32 %v8700, %v8956
        %8958 = vmatprep.mubr.f32.mxu0 %v7244
        %8959 = vmatmul.mubr.f32.gmra.mxu0 %v7243
        %v8960 = vpop.f32.mrf.mxu0
        %v8961 = vadd.f32 %v8704, %v8960
        %v8962 = vpop.f32.mrf.mxu0
        %v8963 = vadd.f32 %v8706, %v8962
        %8964 = vmatprep.mubr.f32.mxu0 %v7256
        %8965 = vmatmul.mubr.f32.gmra.mxu0 %v7255
        %v8966 = vpop.f32.mrf.mxu0
        %v8967 = vadd.f32 %v8710, %v8966
        %v8968 = vpop.f32.mrf.mxu0
        %v8969 = vadd.f32 %v8712, %v8968
        %8970 = vmatprep.mubr.f32.mxu0 %v7268
        %8971 = vmatmul.mubr.f32.gmra.mxu0 %v7267
        %v8972 = vpop.f32.mrf.mxu0
        %v8973 = vadd.f32 %v8716, %v8972
        %v8974 = vpop.f32.mrf.mxu0
        %v8975 = vadd.f32 %v8718, %v8974
        %8976 = vmatprep.mubr.f32.mxu0 %v7280
        %8977 = vmatmul.mubr.f32.gmra.mxu0 %v7279
        %v8978 = vpop.f32.mrf.mxu0
        %v8979 = vadd.f32 %v8722, %v8978
        %v8980 = vpop.f32.mrf.mxu0
        %v8981 = vadd.f32 %v8724, %v8980
        %8982 = vmatprep.mubr.f32.mxu0 %v7292
        %8983 = vmatmul.mubr.f32.gmra.mxu0 %v7291
        %v8984 = vpop.f32.mrf.mxu0
        %v8985 = vadd.f32 %v8728, %v8984
        %v8986 = vpop.f32.mrf.mxu0
        %v8987 = vadd.f32 %v8730, %v8986
        %8988 = vmatprep.mubr.f32.mxu0 %v7304
        %8989 = vmatmul.mubr.f32.gmra.mxu0 %v7303
        %v8990 = vpop.f32.mrf.mxu0
        %v8991 = vadd.f32 %v8734, %v8990
        %v8992 = vpop.f32.mrf.mxu0
        %v8993 = vadd.f32 %v8736, %v8992
        %8994 = vmatprep.mubr.f32.mxu0 %v7316
        %8995 = vmatmul.mubr.f32.gmra.mxu0 %v7315
        %v8996 = vpop.f32.mrf.mxu0
        %v8997 = vadd.f32 %v8740, %v8996
        %v8998 = vpop.f32.mrf.mxu0
        %v8999 = vadd.f32 %v8742, %v8998
        %9000 = vmatprep.mubr.f32.mxu0 %v7328
        %9001 = vmatmul.mubr.f32.gmra.mxu0 %v7327
        %v9002 = vpop.f32.mrf.mxu0
        %v9003 = vadd.f32 %v8746, %v9002
        %v9004 = vpop.f32.mrf.mxu0
        %v9005 = vadd.f32 %v8748, %v9004
        %9006 = vmatprep.mubr.f32.mxu0 %v7340
        %9007 = vmatmul.mubr.f32.gmra.mxu0 %v7339
        %v9008 = vpop.f32.mrf.mxu0
        %v9009 = vadd.f32 %v8752, %v9008
        %v9010 = vpop.f32.mrf.mxu0
        %v9011 = vadd.f32 %v8754, %v9010
        %9012 = vdwg.mxu0
        %9013 = vmatprep.subr.mxu0 %v7695
        %9014 = vmatpush1.msra.mxu0 %v7694
        %9015 = vmatprep.subr.mxu0 %v7693
        %9016 = vmatpush1.msra.mxu0 %v7692
        %9017 = vmatprep.subr.mxu0 %v7691
        %9018 = vmatpush1.msra.mxu0 %v7690
        %9019 = vmatprep.subr.mxu0 %v7689
        %9020 = vmatpush1.msra.mxu0 %v7688
        %9021 = vmatprep.subr.mxu0 %v7687
        %9022 = vmatpush1.msra.mxu0 %v7686
        %9023 = vmatprep.subr.mxu0 %v7685
        %9024 = vmatpush1.msra.mxu0 %v7684
        %9025 = vmatprep.subr.mxu0 %v7683
        %9026 = vmatpush1.msra.mxu0 %v7682
        %9027 = vmatprep.subr.mxu0 %v7681
        %9028 = vmatpush1.msra.mxu0 %v7680
        %9029 = vmatprep.subr.mxu0 %v7679
        %9030 = vmatpush1.msra.mxu0 %v7678
        %9031 = vmatprep.subr.mxu0 %v7677
        %9032 = vmatpush1.msra.mxu0 %v7676
        %9033 = vmatprep.subr.mxu0 %v7675
        %9034 = vmatpush1.msra.mxu0 %v7674
        %9035 = vmatprep.subr.mxu0 %v7673
        %9036 = vmatpush1.msra.mxu0 %v7672
        %9037 = vmatprep.subr.mxu0 %v7671
        %9038 = vmatpush1.msra.mxu0 %v7670
        %9039 = vmatprep.subr.mxu0 %v7669
        %9040 = vmatpush1.msra.mxu0 %v7668
        %9041 = vmatprep.subr.mxu0 %v7667
        %9042 = vmatpush1.msra.mxu0 %v7666
        %9043 = vmatprep.subr.mxu0 %v7665
        %9044 = vmatpush1.msra.mxu0 %v7664
        %9045 = vmatprep.subr.mxu0 %v7727
        %9046 = vmatpush2.msra.mxu0 %v7726
        %9047 = vmatprep.subr.mxu0 %v7725
        %9048 = vmatpush2.msra.mxu0 %v7724
        %9049 = vmatprep.subr.mxu0 %v7723
        %9050 = vmatpush2.msra.mxu0 %v7722
        %9051 = vmatprep.subr.mxu0 %v7721
        %9052 = vmatpush2.msra.mxu0 %v7720
        %9053 = vmatprep.subr.mxu0 %v7719
        %9054 = vmatpush2.msra.mxu0 %v7718
        %9055 = vmatprep.subr.mxu0 %v7717
        %9056 = vmatpush2.msra.mxu0 %v7716
        %9057 = vmatprep.subr.mxu0 %v7715
        %9058 = vmatpush2.msra.mxu0 %v7714
        %9059 = vmatprep.subr.mxu0 %v7713
        %9060 = vmatpush2.msra.mxu0 %v7712
        %9061 = vmatprep.subr.mxu0 %v7711
        %9062 = vmatpush2.msra.mxu0 %v7710
        %9063 = vmatprep.subr.mxu0 %v7709
        %9064 = vmatpush2.msra.mxu0 %v7708
        %9065 = vmatprep.subr.mxu0 %v7707
        %9066 = vmatpush2.msra.mxu0 %v7706
        %9067 = vmatprep.subr.mxu0 %v7705
        %9068 = vmatpush2.msra.mxu0 %v7704
        %9069 = vmatprep.subr.mxu0 %v7703
        %9070 = vmatpush2.msra.mxu0 %v7702
        %9071 = vmatprep.subr.mxu0 %v7701
        %9072 = vmatpush2.msra.mxu0 %v7700
        %9073 = vmatprep.subr.mxu0 %v7699
        %9074 = vmatpush2.msra.mxu0 %v7698
        %9075 = vmatprep.subr.mxu0 %v7697
        %9076 = vmatpush2.msra.mxu0 %v7696
        %9077 = vmatprep.mubr.f32.mxu0 %v6970
        %9078 = vmatmul.mubr.f32.gmra.mxu0 %v6969
        %v9079 = vpop.f32.mrf.mxu0
        %v9080 = vadd.f32 %v8823, %v9079
        %v9081 = vpop.f32.mrf.mxu0
        %v9082 = vadd.f32 %v8825, %v9081
        %9083 = vmatprep.mubr.f32.mxu0 %v6982
        %9084 = vmatmul.mubr.f32.gmra.mxu0 %v6981
        %v9085 = vpop.f32.mrf.mxu0
        %v9086 = vadd.f32 %v8829, %v9085
        %v9087 = vpop.f32.mrf.mxu0
        %v9088 = vadd.f32 %v8831, %v9087
        %9089 = vmatprep.mubr.f32.mxu0 %v6994
        %9090 = vmatmul.mubr.f32.gmra.mxu0 %v6993
        %v9091 = vpop.f32.mrf.mxu0
        %v9092 = vadd.f32 %v8835, %v9091
        %v9093 = vpop.f32.mrf.mxu0
        %v9094 = vadd.f32 %v8837, %v9093
        %9095 = vmatprep.mubr.f32.mxu0 %v7006
        %9096 = vmatmul.mubr.f32.gmra.mxu0 %v7005
        %v9097 = vpop.f32.mrf.mxu0
        %v9098 = vadd.f32 %v8841, %v9097
        %v9099 = vpop.f32.mrf.mxu0
        %v9100 = vadd.f32 %v8843, %v9099
        %9101 = vmatprep.mubr.f32.mxu0 %v7018
        %9102 = vmatmul.mubr.f32.gmra.mxu0 %v7017
        %v9103 = vpop.f32.mrf.mxu0
        %v9104 = vadd.f32 %v8847, %v9103
        %v9105 = vpop.f32.mrf.mxu0
        %v9106 = vadd.f32 %v8849, %v9105
        %9107 = vmatprep.mubr.f32.mxu0 %v7030
        %9108 = vmatmul.mubr.f32.gmra.mxu0 %v7029
        %v9109 = vpop.f32.mrf.mxu0
        %v9110 = vadd.f32 %v8853, %v9109
        %v9111 = vpop.f32.mrf.mxu0
        %v9112 = vadd.f32 %v8855, %v9111
        %9113 = vmatprep.mubr.f32.mxu0 %v7042
        %9114 = vmatmul.mubr.f32.gmra.mxu0 %v7041
        %v9115 = vpop.f32.mrf.mxu0
        %v9116 = vadd.f32 %v8859, %v9115
        %v9117 = vpop.f32.mrf.mxu0
        %v9118 = vadd.f32 %v8861, %v9117
        %9119 = vmatprep.mubr.f32.mxu0 %v7054
        %9120 = vmatmul.mubr.f32.gmra.mxu0 %v7053
        %v9121 = vpop.f32.mrf.mxu0
        %v9122 = vadd.f32 %v8865, %v9121
        %v9123 = vpop.f32.mrf.mxu0
        %v9124 = vadd.f32 %v8867, %v9123
        %9125 = vmatprep.mubr.f32.mxu0 %v7066
        %9126 = vmatmul.mubr.f32.gmra.mxu0 %v7065
        %v9127 = vpop.f32.mrf.mxu0
        %v9128 = vadd.f32 %v8871, %v9127
        %v9129 = vpop.f32.mrf.mxu0
        %v9130 = vadd.f32 %v8873, %v9129
        %9131 = vmatprep.mubr.f32.mxu0 %v7078
        %9132 = vmatmul.mubr.f32.gmra.mxu0 %v7077
        %v9133 = vpop.f32.mrf.mxu0
        %v9134 = vadd.f32 %v8877, %v9133
        %v9135 = vpop.f32.mrf.mxu0
        %v9136 = vadd.f32 %v8879, %v9135
        %9137 = vmatprep.mubr.f32.mxu0 %v7090
        %9138 = vmatmul.mubr.f32.gmra.mxu0 %v7089
        %v9139 = vpop.f32.mrf.mxu0
        %v9140 = vadd.f32 %v8883, %v9139
        %v9141 = vpop.f32.mrf.mxu0
        %v9142 = vadd.f32 %v8885, %v9141
        %9143 = vmatprep.mubr.f32.mxu0 %v7102
        %9144 = vmatmul.mubr.f32.gmra.mxu0 %v7101
        %v9145 = vpop.f32.mrf.mxu0
        %v9146 = vadd.f32 %v8889, %v9145
        %v9147 = vpop.f32.mrf.mxu0
        %v9148 = vadd.f32 %v8891, %v9147
        %9149 = vmatprep.mubr.f32.mxu0 %v7114
        %9150 = vmatmul.mubr.f32.gmra.mxu0 %v7113
        %v9151 = vpop.f32.mrf.mxu0
        %v9152 = vadd.f32 %v8895, %v9151
        %v9153 = vpop.f32.mrf.mxu0
        %v9154 = vadd.f32 %v8897, %v9153
        %9155 = vmatprep.mubr.f32.mxu0 %v7126
        %9156 = vmatmul.mubr.f32.gmra.mxu0 %v7125
        %v9157 = vpop.f32.mrf.mxu0
        %v9158 = vadd.f32 %v8901, %v9157
        %v9159 = vpop.f32.mrf.mxu0
        %v9160 = vadd.f32 %v8903, %v9159
        %9161 = vmatprep.mubr.f32.mxu0 %v7138
        %9162 = vmatmul.mubr.f32.gmra.mxu0 %v7137
        %v9163 = vpop.f32.mrf.mxu0
        %v9164 = vadd.f32 %v8907, %v9163
        %v9165 = vpop.f32.mrf.mxu0
        %v9166 = vadd.f32 %v8909, %v9165
        %9167 = vmatprep.mubr.f32.mxu0 %v7150
        %9168 = vmatmul.mubr.f32.gmra.mxu0 %v7149
        %v9169 = vpop.f32.mrf.mxu0
        %v9170 = vadd.f32 %v8913, %v9169
        %v9171 = vpop.f32.mrf.mxu0
        %v9172 = vadd.f32 %v8915, %v9171
        %9173 = vmatprep.mubr.f32.mxu0 %v7162
        %9174 = vmatmul.mubr.f32.gmra.mxu0 %v7161
        %v9175 = vpop.f32.mrf.mxu0
        %v9176 = vadd.f32 %v8919, %v9175
        %v9177 = vpop.f32.mrf.mxu0
        %v9178 = vadd.f32 %v8921, %v9177
        %9179 = vmatprep.mubr.f32.mxu0 %v7174
        %9180 = vmatmul.mubr.f32.gmra.mxu0 %v7173
        %v9181 = vpop.f32.mrf.mxu0
        %v9182 = vadd.f32 %v8925, %v9181
        %v9183 = vpop.f32.mrf.mxu0
        %v9184 = vadd.f32 %v8927, %v9183
        %9185 = vmatprep.mubr.f32.mxu0 %v7186
        %9186 = vmatmul.mubr.f32.gmra.mxu0 %v7185
        %v9187 = vpop.f32.mrf.mxu0
        %v9188 = vadd.f32 %v8931, %v9187
        %v9189 = vpop.f32.mrf.mxu0
        %v9190 = vadd.f32 %v8933, %v9189
        %9191 = vmatprep.mubr.f32.mxu0 %v7198
        %9192 = vmatmul.mubr.f32.gmra.mxu0 %v7197
        %v9193 = vpop.f32.mrf.mxu0
        %v9194 = vadd.f32 %v8937, %v9193
        %v9195 = vpop.f32.mrf.mxu0
        %v9196 = vadd.f32 %v8939, %v9195
        %9197 = vmatprep.mubr.f32.mxu0 %v7210
        %9198 = vmatmul.mubr.f32.gmra.mxu0 %v7209
        %v9199 = vpop.f32.mrf.mxu0
        %v9200 = vadd.f32 %v8943, %v9199
        %v9201 = vpop.f32.mrf.mxu0
        %v9202 = vadd.f32 %v8945, %v9201
        %9203 = vmatprep.mubr.f32.mxu0 %v7222
        %9204 = vmatmul.mubr.f32.gmra.mxu0 %v7221
        %v9205 = vpop.f32.mrf.mxu0
        %v9206 = vadd.f32 %v8949, %v9205
        %v9207 = vpop.f32.mrf.mxu0
        %v9208 = vadd.f32 %v8951, %v9207
        %9209 = vmatprep.mubr.f32.mxu0 %v7234
        %9210 = vmatmul.mubr.f32.gmra.mxu0 %v7233
        %v9211 = vpop.f32.mrf.mxu0
        %v9212 = vadd.f32 %v8955, %v9211
        %v9213 = vpop.f32.mrf.mxu0
        %v9214 = vadd.f32 %v8957, %v9213
        %9215 = vmatprep.mubr.f32.mxu0 %v7246
        %9216 = vmatmul.mubr.f32.gmra.mxu0 %v7245
        %v9217 = vpop.f32.mrf.mxu0
        %v9218 = vadd.f32 %v8961, %v9217
        %v9219 = vpop.f32.mrf.mxu0
        %v9220 = vadd.f32 %v8963, %v9219
        %9221 = vmatprep.mubr.f32.mxu0 %v7258
        %9222 = vmatmul.mubr.f32.gmra.mxu0 %v7257
        %v9223 = vpop.f32.mrf.mxu0
        %v9224 = vadd.f32 %v8967, %v9223
        %v9225 = vpop.f32.mrf.mxu0
        %v9226 = vadd.f32 %v8969, %v9225
        %9227 = vmatprep.mubr.f32.mxu0 %v7270
        %9228 = vmatmul.mubr.f32.gmra.mxu0 %v7269
        %v9229 = vpop.f32.mrf.mxu0
        %v9230 = vadd.f32 %v8973, %v9229
        %v9231 = vpop.f32.mrf.mxu0
        %v9232 = vadd.f32 %v8975, %v9231
        %9233 = vmatprep.mubr.f32.mxu0 %v7282
        %9234 = vmatmul.mubr.f32.gmra.mxu0 %v7281
        %v9235 = vpop.f32.mrf.mxu0
        %v9236 = vadd.f32 %v8979, %v9235
        %v9237 = vpop.f32.mrf.mxu0
        %v9238 = vadd.f32 %v8981, %v9237
        %9239 = vmatprep.mubr.f32.mxu0 %v7294
        %9240 = vmatmul.mubr.f32.gmra.mxu0 %v7293
        %v9241 = vpop.f32.mrf.mxu0
        %v9242 = vadd.f32 %v8985, %v9241
        %v9243 = vpop.f32.mrf.mxu0
        %v9244 = vadd.f32 %v8987, %v9243
        %9245 = vmatprep.mubr.f32.mxu0 %v7306
        %9246 = vmatmul.mubr.f32.gmra.mxu0 %v7305
        %v9247 = vpop.f32.mrf.mxu0
        %v9248 = vadd.f32 %v8991, %v9247
        %v9249 = vpop.f32.mrf.mxu0
        %v9250 = vadd.f32 %v8993, %v9249
        %9251 = vmatprep.mubr.f32.mxu0 %v7318
        %9252 = vmatmul.mubr.f32.gmra.mxu0 %v7317
        %v9253 = vpop.f32.mrf.mxu0
        %v9254 = vadd.f32 %v8997, %v9253
        %v9255 = vpop.f32.mrf.mxu0
        %v9256 = vadd.f32 %v8999, %v9255
        %9257 = vmatprep.mubr.f32.mxu0 %v7330
        %9258 = vmatmul.mubr.f32.gmra.mxu0 %v7329
        %v9259 = vpop.f32.mrf.mxu0
        %v9260 = vadd.f32 %v9003, %v9259
        %v9261 = vpop.f32.mrf.mxu0
        %v9262 = vadd.f32 %v9005, %v9261
        %9263 = vmatprep.mubr.f32.mxu0 %v7342
        %9264 = vmatmul.mubr.f32.gmra.mxu0 %v7341
        %v9265 = vpop.f32.mrf.mxu0
        %v9266 = vadd.f32 %v9009, %v9265
        %v9267 = vpop.f32.mrf.mxu0
        %v9268 = vadd.f32 %v9011, %v9267
        %9269 = vdwg.mxu0
        %v9270 = vadd.f32 %v6768, %v9080
        %v9271 = vadd.f32 %v6770, %v9082
        %v9272 = vadd.f32 %v6774, %v9086
        %v9273 = vadd.f32 %v6776, %v9088
        %v9274 = vadd.f32 %v6780, %v9092
        %v9275 = vadd.f32 %v6782, %v9094
        %v9276 = vadd.f32 %v6786, %v9098
        %v9277 = vadd.f32 %v6788, %v9100
        %v9278 = vadd.f32 %v6792, %v9104
        %v9279 = vadd.f32 %v6794, %v9106
        %v9280 = vadd.f32 %v6798, %v9110
        %v9281 = vadd.f32 %v6800, %v9112
        %v9282 = vadd.f32 %v6804, %v9116
        %v9283 = vadd.f32 %v6806, %v9118
        %v9284 = vadd.f32 %v6810, %v9122
        %v9285 = vadd.f32 %v6812, %v9124
        %v9286 = vadd.f32 %v6816, %v9128
        %v9287 = vadd.f32 %v6818, %v9130
        %v9288 = vadd.f32 %v6822, %v9134
        %v9289 = vadd.f32 %v6824, %v9136
        %v9290 = vadd.f32 %v6828, %v9140
        %v9291 = vadd.f32 %v6830, %v9142
        %v9292 = vadd.f32 %v6834, %v9146
        %v9293 = vadd.f32 %v6836, %v9148
        %v9294 = vadd.f32 %v6840, %v9152
        %v9295 = vadd.f32 %v6842, %v9154
        %v9296 = vadd.f32 %v6846, %v9158
        %v9297 = vadd.f32 %v6848, %v9160
        %v9298 = vadd.f32 %v6852, %v9164
        %v9299 = vadd.f32 %v6854, %v9166
        %v9300 = vadd.f32 %v6858, %v9170
        %v9301 = vadd.f32 %v6860, %v9172
        %v9302 = vadd.f32 %v6864, %v9176
        %v9303 = vadd.f32 %v6866, %v9178
        %v9304 = vadd.f32 %v6870, %v9182
        %v9305 = vadd.f32 %v6872, %v9184
        %v9306 = vadd.f32 %v6876, %v9188
        %v9307 = vadd.f32 %v6878, %v9190
        %v9308 = vadd.f32 %v6882, %v9194
        %v9309 = vadd.f32 %v6884, %v9196
        %v9310 = vadd.f32 %v6888, %v9200
        %v9311 = vadd.f32 %v6890, %v9202
        %v9312 = vadd.f32 %v6894, %v9206
        %v9313 = vadd.f32 %v6896, %v9208
        %v9314 = vadd.f32 %v6900, %v9212
        %v9315 = vadd.f32 %v6902, %v9214
        %v9316 = vadd.f32 %v6906, %v9218
        %v9317 = vadd.f32 %v6908, %v9220
        %v9318 = vadd.f32 %v6912, %v9224
        %v9319 = vadd.f32 %v6914, %v9226
        %v9320 = vadd.f32 %v6918, %v9230
        %v9321 = vadd.f32 %v6920, %v9232
        %v9322 = vadd.f32 %v6924, %v9236
        %v9323 = vadd.f32 %v6926, %v9238
        %v9324 = vadd.f32 %v6930, %v9242
        %v9325 = vadd.f32 %v6932, %v9244
        %v9326 = vadd.f32 %v6936, %v9248
        %v9327 = vadd.f32 %v6938, %v9250
        %v9328 = vadd.f32 %v6942, %v9254
        %v9329 = vadd.f32 %v6944, %v9256
        %v9330 = vadd.f32 %v6948, %v9260
        %v9331 = vadd.f32 %v6950, %v9262
        %v9332 = vadd.f32 %v6954, %v9266
        %v9333 = vadd.f32 %v6956, %v9268
        %v9334 = vld [vmem:[#allocation9] sm:$0xff]
        %v9335 = vld [vmem:[#allocation9 + $0x8] sm:$0xff]
        %v9336 = vld [vmem:[#allocation9 + $0x10] sm:$0xff]
        %v9337 = vld [vmem:[#allocation9 + $0x18] sm:$0xff]
        %v9338 = vld [vmem:[#allocation9 + $0x20] sm:$0xff]
        %v9339 = vld [vmem:[#allocation9 + $0x28] sm:$0xff]
        %v9340 = vld [vmem:[#allocation9 + $0x30] sm:$0xff]
        %v9341 = vld [vmem:[#allocation9 + $0x38] sm:$0xff]
        %v9342 = vld [vmem:[#allocation9 + $0x40] sm:$0xff]
        %v9343 = vld [vmem:[#allocation9 + $0x48] sm:$0xff]
        %v9344 = vld [vmem:[#allocation9 + $0x50] sm:$0xff]
        %v9345 = vld [vmem:[#allocation9 + $0x58] sm:$0xff]
        %v9346 = vld [vmem:[#allocation9 + $0x60] sm:$0xff]
        %v9347 = vld [vmem:[#allocation9 + $0x68] sm:$0xff]
        %v9348 = vld [vmem:[#allocation9 + $0x70] sm:$0xff]
        %v9349 = vld [vmem:[#allocation9 + $0x78] sm:$0xff]
        %v9350 = vld [vmem:[#allocation9 + $0x80] sm:$0xff]
        %v9351 = vld [vmem:[#allocation9 + $0x88] sm:$0xff]
        %v9352 = vld [vmem:[#allocation9 + $0x90] sm:$0xff]
        %v9353 = vld [vmem:[#allocation9 + $0x98] sm:$0xff]
        %v9354 = vld [vmem:[#allocation9 + $0xa0] sm:$0xff]
        %v9355 = vld [vmem:[#allocation9 + $0xa8] sm:$0xff]
        %v9356 = vld [vmem:[#allocation9 + $0xb0] sm:$0xff]
        %v9357 = vld [vmem:[#allocation9 + $0xb8] sm:$0xff]
        %v9358 = vld [vmem:[#allocation9 + $0xc0] sm:$0xff]
        %v9359 = vld [vmem:[#allocation9 + $0xc8] sm:$0xff]
        %v9360 = vld [vmem:[#allocation9 + $0xd0] sm:$0xff]
        %v9361 = vld [vmem:[#allocation9 + $0xd8] sm:$0xff]
        %v9362 = vld [vmem:[#allocation9 + $0xe0] sm:$0xff]
        %v9363 = vld [vmem:[#allocation9 + $0xe8] sm:$0xff]
        %v9364 = vld [vmem:[#allocation9 + $0xf0] sm:$0xff]
        %v9365 = vld [vmem:[#allocation9 + $0xf8] sm:$0xff]
        %v9366 = vld [vmem:[#allocation11] sm:$0x1]
        %v9368 = vlaneseq
        %v9369 = vshrl.u32 %v9368, 7
        %v9370 = vsub.s32 0, %v9369
        %v9371 = vrot.slane %v9366, %v9370
        %9373 = vmatprep.subr.mxu0 0.0
        %9374 = vmatpush1.msra.mxu0 %v9349
        %9375 = vmatprep.subr.mxu0 0.0
        %9376 = vmatpush1.msra.mxu0 %v9348
        %9377 = vmatprep.subr.mxu0 0.0
        %9378 = vmatpush1.msra.mxu0 %v9347
        %9379 = vmatprep.subr.mxu0 0.0
        %9380 = vmatpush1.msra.mxu0 %v9346
        %9381 = vmatprep.subr.mxu0 0.0
        %9382 = vmatpush1.msra.mxu0 %v9345
        %9383 = vmatprep.subr.mxu0 0.0
        %9384 = vmatpush1.msra.mxu0 %v9344
        %9385 = vmatprep.subr.mxu0 0.0
        %9386 = vmatpush1.msra.mxu0 %v9343
        %9387 = vmatprep.subr.mxu0 0.0
        %9388 = vmatpush1.msra.mxu0 %v9342
        %9389 = vmatprep.subr.mxu0 0.0
        %9390 = vmatpush1.msra.mxu0 %v9341
        %9391 = vmatprep.subr.mxu0 0.0
        %9392 = vmatpush1.msra.mxu0 %v9340
        %9393 = vmatprep.subr.mxu0 0.0
        %9394 = vmatpush1.msra.mxu0 %v9339
        %9395 = vmatprep.subr.mxu0 0.0
        %9396 = vmatpush1.msra.mxu0 %v9338
        %9397 = vmatprep.subr.mxu0 0.0
        %9398 = vmatpush1.msra.mxu0 %v9337
        %9399 = vmatprep.subr.mxu0 0.0
        %9400 = vmatpush1.msra.mxu0 %v9336
        %9401 = vmatprep.subr.mxu0 0.0
        %9402 = vmatpush1.msra.mxu0 %v9335
        %9403 = vmatprep.subr.mxu0 0.0
        %9404 = vmatpush1.msra.mxu0 %v9334
        %9405 = vmatprep.subr.mxu0 0.0
        %9406 = vmatpush2.msra.mxu0 %v9365
        %9407 = vmatprep.subr.mxu0 0.0
        %9408 = vmatpush2.msra.mxu0 %v9364
        %9409 = vmatprep.subr.mxu0 0.0
        %9410 = vmatpush2.msra.mxu0 %v9363
        %9411 = vmatprep.subr.mxu0 0.0
        %9412 = vmatpush2.msra.mxu0 %v9362
        %9413 = vmatprep.subr.mxu0 0.0
        %9414 = vmatpush2.msra.mxu0 %v9361
        %9415 = vmatprep.subr.mxu0 0.0
        %9416 = vmatpush2.msra.mxu0 %v9360
        %9417 = vmatprep.subr.mxu0 0.0
        %9418 = vmatpush2.msra.mxu0 %v9359
        %9419 = vmatprep.subr.mxu0 0.0
        %9420 = vmatpush2.msra.mxu0 %v9358
        %9421 = vmatprep.subr.mxu0 0.0
        %9422 = vmatpush2.msra.mxu0 %v9357
        %9423 = vmatprep.subr.mxu0 0.0
        %9424 = vmatpush2.msra.mxu0 %v9356
        %9425 = vmatprep.subr.mxu0 0.0
        %9426 = vmatpush2.msra.mxu0 %v9355
        %9427 = vmatprep.subr.mxu0 0.0
        %9428 = vmatpush2.msra.mxu0 %v9354
        %9429 = vmatprep.subr.mxu0 0.0
        %9430 = vmatpush2.msra.mxu0 %v9353
        %9431 = vmatprep.subr.mxu0 0.0
        %9432 = vmatpush2.msra.mxu0 %v9352
        %9433 = vmatprep.subr.mxu0 0.0
        %9434 = vmatpush2.msra.mxu0 %v9351
        %9435 = vmatprep.subr.mxu0 0.0
        %9436 = vmatpush2.msra.mxu0 %v9350
        %9437 = vmatprep.mubr.f32.mxu0 %v9271
        %9438 = vmatmul.mubr.f32.gmra.mxu0 %v9270
        %v9439 = vpop.f32.mrf.mxu0
        %v9440 = vadd.f32 %v9371, %v9439
        %v9441 = vpop.f32.mrf.mxu0
        %9442 = vmatprep.mubr.f32.mxu0 %v9273
        %9443 = vmatmul.mubr.f32.gmra.mxu0 %v9272
        %v9444 = vpop.f32.mrf.mxu0
        %v9445 = vadd.f32 %v9371, %v9444
        %v9446 = vpop.f32.mrf.mxu0
        %9447 = vmatprep.mubr.f32.mxu0 %v9275
        %9448 = vmatmul.mubr.f32.gmra.mxu0 %v9274
        %v9449 = vpop.f32.mrf.mxu0
        %v9450 = vadd.f32 %v9371, %v9449
        %v9451 = vpop.f32.mrf.mxu0
        %9452 = vmatprep.mubr.f32.mxu0 %v9277
        %9453 = vmatmul.mubr.f32.gmra.mxu0 %v9276
        %v9454 = vpop.f32.mrf.mxu0
        %v9455 = vadd.f32 %v9371, %v9454
        %v9456 = vpop.f32.mrf.mxu0
        %9457 = vmatprep.mubr.f32.mxu0 %v9279
        %9458 = vmatmul.mubr.f32.gmra.mxu0 %v9278
        %v9459 = vpop.f32.mrf.mxu0
        %v9460 = vadd.f32 %v9371, %v9459
        %v9461 = vpop.f32.mrf.mxu0
        %9462 = vmatprep.mubr.f32.mxu0 %v9281
        %9463 = vmatmul.mubr.f32.gmra.mxu0 %v9280
        %v9464 = vpop.f32.mrf.mxu0
        %v9465 = vadd.f32 %v9371, %v9464
        %v9466 = vpop.f32.mrf.mxu0
        %9467 = vmatprep.mubr.f32.mxu0 %v9283
        %9468 = vmatmul.mubr.f32.gmra.mxu0 %v9282
        %v9469 = vpop.f32.mrf.mxu0
        %v9470 = vadd.f32 %v9371, %v9469
        %v9471 = vpop.f32.mrf.mxu0
        %9472 = vmatprep.mubr.f32.mxu0 %v9285
        %9473 = vmatmul.mubr.f32.gmra.mxu0 %v9284
        %v9474 = vpop.f32.mrf.mxu0
        %v9475 = vadd.f32 %v9371, %v9474
        %v9476 = vpop.f32.mrf.mxu0
        %9477 = vmatprep.mubr.f32.mxu0 %v9287
        %9478 = vmatmul.mubr.f32.gmra.mxu0 %v9286
        %v9479 = vpop.f32.mrf.mxu0
        %v9480 = vadd.f32 %v9371, %v9479
        %v9481 = vpop.f32.mrf.mxu0
        %9482 = vmatprep.mubr.f32.mxu0 %v9289
        %9483 = vmatmul.mubr.f32.gmra.mxu0 %v9288
        %v9484 = vpop.f32.mrf.mxu0
        %v9485 = vadd.f32 %v9371, %v9484
        %v9486 = vpop.f32.mrf.mxu0
        %9487 = vmatprep.mubr.f32.mxu0 %v9291
        %9488 = vmatmul.mubr.f32.gmra.mxu0 %v9290
        %v9489 = vpop.f32.mrf.mxu0
        %v9490 = vadd.f32 %v9371, %v9489
        %v9491 = vpop.f32.mrf.mxu0
        %9492 = vmatprep.mubr.f32.mxu0 %v9293
        %9493 = vmatmul.mubr.f32.gmra.mxu0 %v9292
        %v9494 = vpop.f32.mrf.mxu0
        %v9495 = vadd.f32 %v9371, %v9494
        %v9496 = vpop.f32.mrf.mxu0
        %9497 = vmatprep.mubr.f32.mxu0 %v9295
        %9498 = vmatmul.mubr.f32.gmra.mxu0 %v9294
        %v9499 = vpop.f32.mrf.mxu0
        %v9500 = vadd.f32 %v9371, %v9499
        %v9501 = vpop.f32.mrf.mxu0
        %9502 = vmatprep.mubr.f32.mxu0 %v9297
        %9503 = vmatmul.mubr.f32.gmra.mxu0 %v9296
        %v9504 = vpop.f32.mrf.mxu0
        %v9505 = vadd.f32 %v9371, %v9504
        %v9506 = vpop.f32.mrf.mxu0
        %9507 = vmatprep.mubr.f32.mxu0 %v9299
        %9508 = vmatmul.mubr.f32.gmra.mxu0 %v9298
        %v9509 = vpop.f32.mrf.mxu0
        %v9510 = vadd.f32 %v9371, %v9509
        %v9511 = vpop.f32.mrf.mxu0
        %9512 = vmatprep.mubr.f32.mxu0 %v9301
        %9513 = vmatmul.mubr.f32.gmra.mxu0 %v9300
        %v9514 = vpop.f32.mrf.mxu0
        %v9515 = vadd.f32 %v9371, %v9514
        %v9516 = vpop.f32.mrf.mxu0
        %9517 = vmatprep.mubr.f32.mxu0 %v9303
        %9518 = vmatmul.mubr.f32.gmra.mxu0 %v9302
        %v9519 = vpop.f32.mrf.mxu0
        %v9520 = vadd.f32 %v9371, %v9519
        %v9521 = vpop.f32.mrf.mxu0
        %9522 = vmatprep.mubr.f32.mxu0 %v9305
        %9523 = vmatmul.mubr.f32.gmra.mxu0 %v9304
        %v9524 = vpop.f32.mrf.mxu0
        %v9525 = vadd.f32 %v9371, %v9524
        %v9526 = vpop.f32.mrf.mxu0
        %9527 = vmatprep.mubr.f32.mxu0 %v9307
        %9528 = vmatmul.mubr.f32.gmra.mxu0 %v9306
        %v9529 = vpop.f32.mrf.mxu0
        %v9530 = vadd.f32 %v9371, %v9529
        %v9531 = vpop.f32.mrf.mxu0
        %9532 = vmatprep.mubr.f32.mxu0 %v9309
        %9533 = vmatmul.mubr.f32.gmra.mxu0 %v9308
        %v9534 = vpop.f32.mrf.mxu0
        %v9535 = vadd.f32 %v9371, %v9534
        %v9536 = vpop.f32.mrf.mxu0
        %9537 = vmatprep.mubr.f32.mxu0 %v9311
        %9538 = vmatmul.mubr.f32.gmra.mxu0 %v9310
        %v9539 = vpop.f32.mrf.mxu0
        %v9540 = vadd.f32 %v9371, %v9539
        %v9541 = vpop.f32.mrf.mxu0
        %9542 = vmatprep.mubr.f32.mxu0 %v9313
        %9543 = vmatmul.mubr.f32.gmra.mxu0 %v9312
        %v9544 = vpop.f32.mrf.mxu0
        %v9545 = vadd.f32 %v9371, %v9544
        %v9546 = vpop.f32.mrf.mxu0
        %9547 = vmatprep.mubr.f32.mxu0 %v9315
        %9548 = vmatmul.mubr.f32.gmra.mxu0 %v9314
        %v9549 = vpop.f32.mrf.mxu0
        %v9550 = vadd.f32 %v9371, %v9549
        %v9551 = vpop.f32.mrf.mxu0
        %9552 = vmatprep.mubr.f32.mxu0 %v9317
        %9553 = vmatmul.mubr.f32.gmra.mxu0 %v9316
        %v9554 = vpop.f32.mrf.mxu0
        %v9555 = vadd.f32 %v9371, %v9554
        %v9556 = vpop.f32.mrf.mxu0
        %9557 = vmatprep.mubr.f32.mxu0 %v9319
        %9558 = vmatmul.mubr.f32.gmra.mxu0 %v9318
        %v9559 = vpop.f32.mrf.mxu0
        %v9560 = vadd.f32 %v9371, %v9559
        %v9561 = vpop.f32.mrf.mxu0
        %9562 = vmatprep.mubr.f32.mxu0 %v9321
        %9563 = vmatmul.mubr.f32.gmra.mxu0 %v9320
        %v9564 = vpop.f32.mrf.mxu0
        %v9565 = vadd.f32 %v9371, %v9564
        %v9566 = vpop.f32.mrf.mxu0
        %9567 = vmatprep.mubr.f32.mxu0 %v9323
        %9568 = vmatmul.mubr.f32.gmra.mxu0 %v9322
        %v9569 = vpop.f32.mrf.mxu0
        %v9570 = vadd.f32 %v9371, %v9569
        %v9571 = vpop.f32.mrf.mxu0
        %9572 = vmatprep.mubr.f32.mxu0 %v9325
        %9573 = vmatmul.mubr.f32.gmra.mxu0 %v9324
        %v9574 = vpop.f32.mrf.mxu0
        %v9575 = vadd.f32 %v9371, %v9574
        %v9576 = vpop.f32.mrf.mxu0
        %9577 = vmatprep.mubr.f32.mxu0 %v9327
        %9578 = vmatmul.mubr.f32.gmra.mxu0 %v9326
        %v9579 = vpop.f32.mrf.mxu0
        %v9580 = vadd.f32 %v9371, %v9579
        %v9581 = vpop.f32.mrf.mxu0
        %9582 = vmatprep.mubr.f32.mxu0 %v9329
        %9583 = vmatmul.mubr.f32.gmra.mxu0 %v9328
        %v9584 = vpop.f32.mrf.mxu0
        %v9585 = vadd.f32 %v9371, %v9584
        %v9586 = vpop.f32.mrf.mxu0
        %9587 = vmatprep.mubr.f32.mxu0 %v9331
        %9588 = vmatmul.mubr.f32.gmra.mxu0 %v9330
        %v9589 = vpop.f32.mrf.mxu0
        %v9590 = vadd.f32 %v9371, %v9589
        %v9591 = vpop.f32.mrf.mxu0
        %9592 = vmatprep.mubr.f32.mxu0 %v9333
        %9593 = vmatmul.mubr.f32.gmra.mxu0 %v9332
        %v9594 = vpop.f32.mrf.mxu0
        %v9595 = vadd.f32 %v9371, %v9594
        %v9596 = vpop.f32.mrf.mxu0
        %9597 = vdwg.mxu0
        %9598 = vst [vmem:[%s346] sm:$0xff] %v9440
        %9599 = vst [vmem:[%s346 + $0x8] sm:$0xff] %v9445
        %9600 = vst [vmem:[%s346 + $0x10] sm:$0xff] %v9450
        %9601 = vst [vmem:[%s346 + $0x18] sm:$0xff] %v9455
        %9602 = vst [vmem:[%s346 + $0x20] sm:$0xff] %v9460
        %9603 = vst [vmem:[%s346 + $0x28] sm:$0xff] %v9465
        %9604 = vst [vmem:[%s346 + $0x30] sm:$0xff] %v9470
        %9605 = vst [vmem:[%s346 + $0x38] sm:$0xff] %v9475
        %9606 = vst [vmem:[%s346 + $0x40] sm:$0xff] %v9480
        %9607 = vst [vmem:[%s346 + $0x48] sm:$0xff] %v9485
        %9608 = vst [vmem:[%s346 + $0x50] sm:$0xff] %v9490
        %9609 = vst [vmem:[%s346 + $0x58] sm:$0xff] %v9495
        %9610 = vst [vmem:[%s346 + $0x60] sm:$0xff] %v9500
        %9611 = vst [vmem:[%s346 + $0x68] sm:$0xff] %v9505
        %9612 = vst [vmem:[%s346 + $0x70] sm:$0xff] %v9510
        %9613 = vst [vmem:[%s346 + $0x78] sm:$0xff] %v9515
        %9614 = vst [vmem:[%s346 + $0x80] sm:$0xff] %v9520
        %9615 = vst [vmem:[%s346 + $0x88] sm:$0xff] %v9525
        %9616 = vst [vmem:[%s346 + $0x90] sm:$0xff] %v9530
        %9617 = vst [vmem:[%s346 + $0x98] sm:$0xff] %v9535
        %9618 = vst [vmem:[%s346 + $0xa0] sm:$0xff] %v9540
        %9619 = vst [vmem:[%s346 + $0xa8] sm:$0xff] %v9545
        %9620 = vst [vmem:[%s346 + $0xb0] sm:$0xff] %v9550
        %9621 = vst [vmem:[%s346 + $0xb8] sm:$0xff] %v9555
        %9622 = vst [vmem:[%s346 + $0xc0] sm:$0xff] %v9560
        %9623 = vst [vmem:[%s346 + $0xc8] sm:$0xff] %v9565
        %9624 = vst [vmem:[%s346 + $0xd0] sm:$0xff] %v9570
        %9625 = vst [vmem:[%s346 + $0xd8] sm:$0xff] %v9575
        %9626 = vst [vmem:[%s346 + $0xe0] sm:$0xff] %v9580
        %9627 = vst [vmem:[%s346 + $0xe8] sm:$0xff] %v9585
        %9628 = vst [vmem:[%s346 + $0xf0] sm:$0xff] %v9590
        %9629 = vst [vmem:[%s346 + $0xf8] sm:$0xff] %v9595
        %s9630 = sand.u32 %s167, 1
        %s9631 = scalar_lea.sflag [#allocation5], %s9630
        %s9632 = sand.u32 %s167, 1
        %s9633 = smul.addr %s9632, 256
        %s9634 = scalar_lea.vmem [#allocation12], %s9633
        // Predicated region
        $region61: #{tpu_custom_call.1} parent=39 // pred_check
          %p9635 = pneg %p177
        $region62: #{tpu_custom_call.1} parent=39 // pred_check_branch
          %9637 = sbr.rel (%p9635) target = $region64
        $region63: #{tpu_custom_call.1} parent=39 // pred_region
          %s9638 = smul.u32 16, %s31
          %s9640 = ssub.s32 4096, 4096
          %9641 = vsyncadd %s9631, %s9640
          %s9642 = smul.addr %s9638, 2
          %s9643 = smul.addr %s30, 32
          %s9644 = sadd.s32 %s9642, %s9643
          %s9645 = smul.addr %s9644, 128
          %s9646 = scalar_lea.hbm %s5, %s9645
          %s9647 = sshll.u32 %s9634, 4
          %s9648 = int_to_ptr.vmem [resolvable:$true] %s9647
          %9653 = dma.vmem_to_hbm [thread:$0]  %s9648, 4096, %s9646, %s9631, 128, 128, 8
        $region64: #{tpu_custom_call.1} parent=39 // pred_fallthru
          _
      $region40: #{tpu_custom_call.1} parent=5 // pred_fallthru
        _
      %p9654 = scmp.le.s32.totalorder 2, %s21
      // Predicated region
      $region65: #{tpu_custom_call.1} parent=5 // pred_check
        %p9655 = pneg %p9654
      $region66: #{tpu_custom_call.1} parent=5 // pred_check_branch
        %9657 = sbr.rel (%p9655) target = $region68
      $region67: #{tpu_custom_call.1} parent=5 // pred_region
        %s9658 = ssub.s32 %s21, 2
        // Predicated region
        $region69: #{tpu_custom_call.1} parent=67 // pred_check
          %p9659 = pneg %p183
        $region70: #{tpu_custom_call.1} parent=67 // pred_check_branch
          %9661 = sbr.rel (%p9659) target = $region72
        $region71: #{tpu_custom_call.1} parent=67 // pred_region
          %s9662 = sand.u32 %s168, 1
          %s9663 = scalar_lea.sflag [#allocation5], %s9662
          %s9664 = sand.u32 %s168, 1
          %s9665 = smul.addr %s9664, 256
          %s9666 = scalar_lea.vmem [#allocation12], %s9665
          %9667 = dma.done %s9663, 4096
        $region72: #{tpu_custom_call.1} parent=67 // pred_fallthru
          _
      $region68: #{tpu_custom_call.1} parent=5 // pred_fallthru
        _
    $region6: #{tpu_custom_call.1} parent=1 // loop_footer
      %s25 = sadd.s32 1, %s21
    $region7: #{tpu_custom_call.1} parent=1 // loop_footer_branch
      %20 = sbr.rel target = $region3
    $region8: #{tpu_custom_call.1} parent=1 // loop_exit
      _
    %9668 = vsyncpa [#allocation4], 1
    %s9669 = scalar_lea.sflag [#allocation4], 1
    %9670 = vsyncpa %s9669, 1
    %9671 = vsyncpa [#allocation7], 1
    %s9672 = scalar_lea.sflag [#allocation7], 1
    %9673 = vsyncpa %s9672, 1
    %9674 = vsyncpa [#allocation10], 1
    %9675 = vsyncpa [#allocation5], 1
    %s9676 = scalar_lea.sflag [#allocation5], 1
    %9677 = vsyncpa %s9676, 1

</llo_original>
